<compile_context>
chip_gen: v5e
topology: v5e:2x2
jax: 0.10.0
libtpu: 0.0.40
codegen_flags: <defaults>
</compile_context>

<pallas_src>
import functools

import jax
import jax.numpy as jnp
from jax.experimental import pallas as pl
from jax.experimental.pallas import tpu as pltpu

# Cast MXU operands to bf16 (f32 accumulation). Off by default for closeness
# to the f32 reference; flip on for native-bf16 MXU throughput + halved DMA.
USE_BF16_MATMUL = False


def _mx(x):
    return x.astype(jnp.bfloat16) if USE_BF16_MATMUL else x


def _round_up(n, m):
    return (n + m - 1) // m * m


# ------------------------------- fused kernel --------------------------------
# One grid step processes `bp` samples (bp multiple of 8).
#   pw1_ref : [144, bp, 128]  conv1 im2col, rows = pooled pos (ph*12+pw),
#                             sublanes = local batch, lanes = win*32 + (ki*5+kj)
#   w1_ref  : [128, 128]      block-diagonal conv1 weight (4 blocks of [32,32])
#   b1_ref  : [1, 32]         conv1 bias  (10 valid, rest 0)
#   w2_ref  : [25, 32, 32]    conv2 weight per kernel offset [cin, cout]
#   b2_ref  : [1, 32]         conv2 bias  (20 valid)
#   wf1_ref : [16, 32, 64]    fc1 weight per pooled spatial position (NCHW
#                             flatten c*16 + p folded in), [cin, cout]
#   bf1_ref : [1, 64], wf2_ref: [64, 128], bf2_ref: [1, 128]
#   o_ref   : [bp, 128]       logits (10 valid lanes)

def _network_kernel(pw1_ref, w1_ref, b1_ref, w2_ref, b2_ref, wf1_ref, bf1_ref,
                    wf2_ref, bf2_ref, o_ref, *, bp):
    # -------- conv1 (single dense-K matmul) + fused maxpool2x2 + ReLU --------
    pw1 = pw1_ref[...].reshape(144 * bp, 128)           # rows = (ph*12+pw)*bp + b
    y1 = jnp.dot(pw1, w1_ref[...], preferred_element_type=jnp.float32)
    pooled = jnp.maximum(jnp.maximum(y1[:, 0:32], y1[:, 32:64]),
                         jnp.maximum(y1[:, 64:96], y1[:, 96:128]))
    x1 = jnp.maximum(pooled + b1_ref[...], 0.0)          # [144*bp, 32], ch>=10 == 0
    x1 = _mx(x1).reshape(12, 12, bp, 32)                 # [ph, pw, b, cin]

    # -------- conv2: im2col fused in-kernel as 25 shifted matmuls ------------
    # x1[ki:ki+8, kj:kj+8] are free leading-dim static slices; 5 independent
    # accumulator chains (one per ki) are tree-summed at the end.
    parts = []
    for ki in range(5):
        acc = None
        for kj in range(5):
            sl = x1[ki:ki + 8, kj:kj + 8].reshape(64 * bp, 32)
            z = jnp.dot(sl, w2_ref[ki * 5 + kj],
                        preferred_element_type=jnp.float32)
            acc = z if acc is None else acc + z
        parts.append(acc)
    y2 = ((parts[0] + parts[1]) + (parts[2] + parts[3])) + parts[4]
    y2 = y2 + b2_ref[...]                                 # rows = (oh*8+ow)*bp + b

    # TODO(synk): Dropout(p=0.5) implemented in eval/inference mode (identity);
    # training-mode dropout would use pltpu.prng_seed / pltpu.prng_random_bits.

    # maxpool2x2 + ReLU: split rows (p2h, wi, p2w, wj, b) and max over wi, wj.
    y2 = y2.reshape(4, 2, 4, 2, bp, 32)
    p2 = jnp.maximum(jnp.maximum(y2[:, 0, :, 0], y2[:, 0, :, 1]),
                     jnp.maximum(y2[:, 1, :, 0], y2[:, 1, :, 1]))
    p2 = jnp.maximum(p2, 0.0)                              # [4, 4, bp, 32]
    p2 = _mx(p2).reshape(16, bp, 32)                       # [p2h*4+p2w, b, cout]

    # -------- fc1 (NCHW flatten folded into per-position weights) + ReLU -----
    # 16 per-position matmuls, 4 independent accumulator chains, tree-summed.
    groups = []
    for g in range(4):
        acc = None
        for t in range(4):
            pidx = 4 * g + t
            z = jnp.dot(p2[pidx], wf1_ref[pidx],
                        preferred_element_type=jnp.float32)
            acc = z if acc is None else acc + z
        groups.append(acc)
    h = ((groups[0] + groups[1]) + (groups[2] + groups[3])) + bf1_ref[...]
    h = jnp.maximum(h, 0.0)                                # [bp, 64]

    # ----------------------------------- fc2 ---------------------------------
    o_ref[...] = jnp.dot(_mx(h), wf2_ref[...],
                         preferred_element_type=jnp.float32) + bf2_ref[...]


def _network_pallas(pw1, weights, batch_pad, bp):
    nsteps = batch_pad // bp
    w1d, b1, w2b, b2, wf1b, bf1, wf2p, bf2 = weights
    kern = functools.partial(_network_kernel, bp=bp)
    return pl.pallas_call(
        kern,
        out_shape=jax.ShapeDtypeStruct((batch_pad, 128), jnp.float32),
        grid_spec=pltpu.PrefetchScalarGridSpec(
            num_scalar_prefetch=0,
            grid=(nsteps,),
            in_specs=[
                pl.BlockSpec((144, bp, 128), lambda i: (0, i, 0)),   # patches
                pl.BlockSpec((128, 128), lambda i: (0, 0)),          # w1 (resident)
                pl.BlockSpec((1, 32), lambda i: (0, 0)),             # b1
                pl.BlockSpec((25, 32, 32), lambda i: (0, 0, 0)),     # w2
                pl.BlockSpec((1, 32), lambda i: (0, 0)),             # b2
                pl.BlockSpec((16, 32, 64), lambda i: (0, 0, 0)),     # fc1 w
                pl.BlockSpec((1, 64), lambda i: (0, 0)),             # fc1 b
                pl.BlockSpec((64, 128), lambda i: (0, 0)),           # fc2 w
                pl.BlockSpec((1, 128), lambda i: (0, 0)),            # fc2 b
            ],
            out_specs=pl.BlockSpec((bp, 128), lambda i: (i, 0))),
        compiler_params=pltpu.CompilerParams(
            dimension_semantics=("parallel",)),
    )(pw1, w1d, b1, w2b, b2, wf1b, bf1, wf2p, bf2)


# ------------------------- one-time weight preparation ------------------------

def prepare_params(params):
    """Re-pack PyTorch-layout weights into the kernel's padded layouts.

    Hoisted out of the jitted forward so the permutations/pads run once.
    """
    f32 = jnp.float32
    mxdt = jnp.bfloat16 if USE_BF16_MATMUL else f32

    # conv1 -> block-diagonal [128,128]: input lanes win*32 + (ki*5+kj),
    # output lanes win*32 + cout (same [25,10] weight in each of the 4 blocks).
    w1 = params["w1"].astype(f32).reshape(10, 25).T                  # [kidx, cout]
    w1d = jnp.zeros((128, 128), f32)
    for win in range(4):
        w1d = w1d.at[win * 32:win * 32 + 25, win * 32:win * 32 + 10].set(w1)
    b1 = jnp.zeros((1, 32), f32).at[0, :10].set(params["b1"].astype(f32))

    # conv2 -> one [cin, cout] block per (ki,kj), padded 10->32 / 20->32.
    w2 = params["w2"].astype(f32).transpose(2, 3, 1, 0).reshape(25, 10, 20)
    w2b = jnp.zeros((25, 32, 32), f32).at[:, :10, :20].set(w2)
    b2 = jnp.zeros((1, 32), f32).at[0, :20].set(params["b2"].astype(f32))

    # fc1: fold the PyTorch NCHW flatten (feature = c*16 + p2h*4 + p2w) into
    # one [cin, cout] block per pooled spatial position p.
    wf1 = params["wf1"].astype(f32).reshape(50, 20, 16).transpose(2, 1, 0)
    wf1b = jnp.zeros((16, 32, 64), f32).at[:, :20, :50].set(wf1)
    bf1 = jnp.zeros((1, 64), f32).at[0, :50].set(params["bf1"].astype(f32))

    wf2p = jnp.zeros((64, 128), f32).at[:50, :10].set(params["wf2"].astype(f32).T)
    bf2 = jnp.zeros((1, 128), f32).at[0, :10].set(params["bf2"].astype(f32))

    return (w1d.astype(mxdt), b1, w2b.astype(mxdt), b2,
            wf1b.astype(mxdt), bf1, wf2p.astype(mxdt), bf2)


# ------------------------------- XLA-side glue --------------------------------

def _conv1_patches(x_nchw, batch_pad):
    """x [B,1,28,28] -> [144, batch_pad, 128] conv1 im2col.

    Row = pooled position ph*12+pw, sublane = batch, lane = win*32 + (ki*5+kj),
    built directly in (ph, pw, b) order so no activation transpose is needed.
    """
    b = x_nchw.shape[0]
    x = jnp.pad(x_nchw.astype(jnp.float32),
                ((0, batch_pad - b), (0, 0), (0, 0), (0, 0)))
    xt = jnp.transpose(x[:, 0], (1, 2, 0))                       # [28, 28, Bpad]
    groups = []
    for wi in range(2):
        for wj in range(2):
            pats = [xt[wi + ki:wi + ki + 24:2, wj + kj:wj + kj + 24:2, :]
                    for ki in range(5) for kj in range(5)]       # 25 x [12,12,Bpad]
            blk = jnp.stack(pats, axis=-1)                        # [12,12,Bpad,25]
            groups.append(jnp.pad(blk, ((0, 0), (0, 0), (0, 0), (0, 7))))
    pw1 = jnp.concatenate(groups, axis=-1).reshape(144, batch_pad, 128)
    return pw1.astype(jnp.bfloat16) if USE_BF16_MATMUL else pw1


# ------------------------------- model forward --------------------------------

def init_params(key):
    ks = jax.random.split(key, 8)

    def u(k, shape, fan_in):
        bound = 1.0 / jnp.sqrt(jnp.float32(fan_in))
        return jax.random.uniform(k, shape, jnp.float32, -bound, bound)

    return {
        "w1": u(ks[0], (10, 1, 5, 5), 1 * 5 * 5),
        "b1": u(ks[1], (10,), 1 * 5 * 5),
        "w2": u(ks[2], (20, 10, 5, 5), 10 * 5 * 5),
        "b2": u(ks[3], (20,), 10 * 5 * 5),
        "wf1": u(ks[4], (50, 320), 320),
        "bf1": u(ks[5], (50,), 320),
        "wf2": u(ks[6], (10, 50), 50),
        "bf2": u(ks[7], (10,), 50),
    }


def network_forward(prepared, x_nchw):
    b = x_nchw.shape[0]
    bp = min(16, _round_up(b, 8))          # samples per grid step (VMEM-safe on v5e/v7x)
    batch_pad = _round_up(b, bp)
    pw1 = _conv1_patches(x_nchw, batch_pad)
    out = _network_pallas(pw1, prepared, batch_pad, bp)
    return out[:b, :10]


# --------------------------- pure-JAX reference check -------------------------

def reference_forward(params, x_nchw):
    hp = jax.lax.Precision.HIGHEST
    x = x_nchw.astype(jnp.float32)
    y = jax.lax.conv_general_dilated(
        x, params["w1"], (1, 1), "VALID",
        dimension_numbers=("NCHW", "OIHW", "NCHW"), precision=hp)
    y = y + params["b1"].reshape(1, -1, 1, 1)
    y = jax.lax.reduce_window(y, -jnp.inf, jax.lax.max,
                              (1, 1, 2, 2), (1, 1, 2, 2), "VALID")
    y = jnp.maximum(y, 0.0)
    y = jax.lax.conv_general_dilated(
        y, params["w2"], (1, 1), "VALID",
        dimension_numbers=("NCHW", "OIHW", "NCHW"), precision=hp)
    y = y + params["b2"].reshape(1, -1, 1, 1)
    y = jax.lax.reduce_window(y, -jnp.inf, jax.lax.max,
                              (1, 1, 2, 2), (1, 1, 2, 2), "VALID")
    y = jnp.maximum(y, 0.0)
    y = y.reshape(y.shape[0], -1)
    y = jnp.maximum(jnp.dot(y, params["wf1"].T, precision=hp) + params["bf1"], 0.0)
    return jnp.dot(y, params["wf2"].T, precision=hp) + params["bf2"]


if __name__ == "__main__":
    key = jax.random.PRNGKey(0)
    k_params, k_x = jax.random.split(key)
    params = init_params(k_params)
    # 28x28 input is forced by Flatten -> Linear(20*4*4, 50); batch kept small.
    x = jax.random.normal(k_x, (2, 1, 28, 28), dtype=jnp.float32)

    prepared = prepare_params(params)              # runs once, outside the forward
    fwd = jax.jit(network_forward)
    out = fwd(prepared, x)
    jax.block_until_ready(out)
    assert out.shape == (2, 10), out.shape

    ref = jax.jit(reference_forward)(params, x)
    jax.block_until_ready(ref)
    tol = 5e-2 if USE_BF16_MATMUL else 2e-3
    assert bool(jnp.allclose(out, ref, rtol=tol, atol=tol)), (
        "max abs diff = %f" % float(jnp.max(jnp.abs(out - ref))))
    print("KERNEL_OK")
</pallas_src>

<mosaic_0001>
module attributes {stable_mosaic.version = 11 : i64} {
  func.func @_network_kernel(%arg0: i32, %arg1: memref<144x8x128xf32, #tpu.memory_space<vmem>>, %arg2: memref<128x128xf32, #tpu.memory_space<vmem>>, %arg3: memref<1x32xf32, #tpu.memory_space<vmem>>, %arg4: memref<25x32x32xf32, #tpu.memory_space<vmem>>, %arg5: memref<1x32xf32, #tpu.memory_space<vmem>>, %arg6: memref<16x32x64xf32, #tpu.memory_space<vmem>>, %arg7: memref<1x64xf32, #tpu.memory_space<vmem>>, %arg8: memref<64x128xf32, #tpu.memory_space<vmem>>, %arg9: memref<1x128xf32, #tpu.memory_space<vmem>>, %arg10: memref<8x128xf32, #tpu.memory_space<vmem>>) attributes {dimension_semantics = [#tpu.dimension_semantics<parallel>], iteration_bounds = array<i64: 1>, scalar_prefetch = 0 : i64, scratch_operands = 0 : i64, tpu.core_type = #tpu.core_type<tc>, window_params = [{transform_indices = @transform_0, window_bounds = array<i64: 144, 8, 128>}, {pipeline_mode = #tpu.pipeline_mode<synchronous>, transform_indices = @transform_1, window_bounds = array<i64: 128, 128>}, {pipeline_mode = #tpu.pipeline_mode<synchronous>, transform_indices = @transform_2, window_bounds = array<i64: 1, 32>}, {pipeline_mode = #tpu.pipeline_mode<synchronous>, transform_indices = @transform_3, window_bounds = array<i64: 25, 32, 32>}, {pipeline_mode = #tpu.pipeline_mode<synchronous>, transform_indices = @transform_4, window_bounds = array<i64: 1, 32>}, {pipeline_mode = #tpu.pipeline_mode<synchronous>, transform_indices = @transform_5, window_bounds = array<i64: 16, 32, 64>}, {pipeline_mode = #tpu.pipeline_mode<synchronous>, transform_indices = @transform_6, window_bounds = array<i64: 1, 64>}, {pipeline_mode = #tpu.pipeline_mode<synchronous>, transform_indices = @transform_7, window_bounds = array<i64: 64, 128>}, {pipeline_mode = #tpu.pipeline_mode<synchronous>, transform_indices = @transform_8, window_bounds = array<i64: 1, 128>}, {transform_indices = @transform_9, window_bounds = array<i64: 8, 128>}]} {
    %c0 = arith.constant 0 : index
    %c0_0 = arith.constant 0 : index
    %c0_1 = arith.constant 0 : index
    %0 = vector.load %arg1[%c0, %c0_0, %c0_1] : memref<144x8x128xf32, #tpu.memory_space<vmem>>, vector<144x8x128xf32>
    %1 = vector.shape_cast %0 : vector<144x8x128xf32> to vector<1152x128xf32>
    %c0_2 = arith.constant 0 : index
    %c0_3 = arith.constant 0 : index
    %2 = vector.load %arg2[%c0_2, %c0_3] : memref<128x128xf32, #tpu.memory_space<vmem>>, vector<128x128xf32>
    %cst = arith.constant dense<0.000000e+00> : vector<1152x128xf32>
    %3 = tpu.matmul %1, %2, %cst {dimension_numbers = #tpu.dot_dimension_numbers<[1], [0], [0], [1], [0, 0, 1, 1], [], []>} : vector<1152x128xf32>, vector<128x128xf32>, vector<1152x128xf32> -> vector<1152x128xf32>
    %4 = vector.extract_strided_slice %3 {offsets = [0, 0], sizes = [1152, 32], strides = [1, 1]} : vector<1152x128xf32> to vector<1152x32xf32>
    %5 = vector.extract_strided_slice %3 {offsets = [0, 32], sizes = [1152, 32], strides = [1, 1]} : vector<1152x128xf32> to vector<1152x32xf32>
    %6 = arith.maximumf %4, %5 : vector<1152x32xf32>
    %7 = vector.extract_strided_slice %3 {offsets = [0, 64], sizes = [1152, 32], strides = [1, 1]} : vector<1152x128xf32> to vector<1152x32xf32>
    %8 = vector.extract_strided_slice %3 {offsets = [0, 96], sizes = [1152, 32], strides = [1, 1]} : vector<1152x128xf32> to vector<1152x32xf32>
    %9 = arith.maximumf %7, %8 : vector<1152x32xf32>
    %10 = arith.maximumf %6, %9 : vector<1152x32xf32>
    %c0_4 = arith.constant 0 : index
    %c0_5 = arith.constant 0 : index
    %11 = vector.load %arg3[%c0_4, %c0_5] : memref<1x32xf32, #tpu.memory_space<vmem>>, vector<1x32xf32>
    %12 = vector.broadcast %11 : vector<1x32xf32> to vector<1152x32xf32>
    %13 = arith.addf %10, %12 : vector<1152x32xf32>
    %cst_6 = arith.constant 0.000000e+00 : f32
    %14 = vector.broadcast %cst_6 : f32 to vector<1152x32xf32>
    %15 = arith.maximumf %13, %14 : vector<1152x32xf32>
    %16 = vector.shape_cast %15 : vector<1152x32xf32> to vector<12x12x8x32xf32>
    %17 = vector.extract_strided_slice %16 {offsets = [0, 0, 0, 0], sizes = [8, 8, 8, 32], strides = [1, 1, 1, 1]} : vector<12x12x8x32xf32> to vector<8x8x8x32xf32>
    %18 = vector.shape_cast %17 : vector<8x8x8x32xf32> to vector<512x32xf32>
    %c0_7 = arith.constant 0 : index
    %c0_8 = arith.constant 0 : index
    %c0_9 = arith.constant 0 : index
    %19 = vector.load %arg4[%c0_7, %c0_8, %c0_9] : memref<25x32x32xf32, #tpu.memory_space<vmem>>, vector<1x32x32xf32>
    %20 = vector.shape_cast %19 : vector<1x32x32xf32> to vector<32x32xf32>
    %cst_10 = arith.constant dense<0.000000e+00> : vector<512x32xf32>
    %21 = tpu.matmul %18, %20, %cst_10 {dimension_numbers = #tpu.dot_dimension_numbers<[1], [0], [0], [1], [0, 0, 1, 1], [], []>} : vector<512x32xf32>, vector<32x32xf32>, vector<512x32xf32> -> vector<512x32xf32>
    %22 = vector.extract_strided_slice %16 {offsets = [0, 1, 0, 0], sizes = [8, 8, 8, 32], strides = [1, 1, 1, 1]} : vector<12x12x8x32xf32> to vector<8x8x8x32xf32>
    %23 = vector.shape_cast %22 : vector<8x8x8x32xf32> to vector<512x32xf32>
    %c1 = arith.constant 1 : index
    %c0_11 = arith.constant 0 : index
    %c0_12 = arith.constant 0 : index
    %24 = vector.load %arg4[%c1, %c0_11, %c0_12] : memref<25x32x32xf32, #tpu.memory_space<vmem>>, vector<1x32x32xf32>
    %25 = vector.shape_cast %24 : vector<1x32x32xf32> to vector<32x32xf32>
    %cst_13 = arith.constant dense<0.000000e+00> : vector<512x32xf32>
    %26 = tpu.matmul %23, %25, %cst_13 {dimension_numbers = #tpu.dot_dimension_numbers<[1], [0], [0], [1], [0, 0, 1, 1], [], []>} : vector<512x32xf32>, vector<32x32xf32>, vector<512x32xf32> -> vector<512x32xf32>
    %27 = arith.addf %21, %26 : vector<512x32xf32>
    %28 = vector.extract_strided_slice %16 {offsets = [0, 2, 0, 0], sizes = [8, 8, 8, 32], strides = [1, 1, 1, 1]} : vector<12x12x8x32xf32> to vector<8x8x8x32xf32>
    %29 = vector.shape_cast %28 : vector<8x8x8x32xf32> to vector<512x32xf32>
    %c2 = arith.constant 2 : index
    %c0_14 = arith.constant 0 : index
    %c0_15 = arith.constant 0 : index
    %30 = vector.load %arg4[%c2, %c0_14, %c0_15] : memref<25x32x32xf32, #tpu.memory_space<vmem>>, vector<1x32x32xf32>
    %31 = vector.shape_cast %30 : vector<1x32x32xf32> to vector<32x32xf32>
    %cst_16 = arith.constant dense<0.000000e+00> : vector<512x32xf32>
    %32 = tpu.matmul %29, %31, %cst_16 {dimension_numbers = #tpu.dot_dimension_numbers<[1], [0], [0], [1], [0, 0, 1, 1], [], []>} : vector<512x32xf32>, vector<32x32xf32>, vector<512x32xf32> -> vector<512x32xf32>
    %33 = arith.addf %27, %32 : vector<512x32xf32>
    %34 = vector.extract_strided_slice %16 {offsets = [0, 3, 0, 0], sizes = [8, 8, 8, 32], strides = [1, 1, 1, 1]} : vector<12x12x8x32xf32> to vector<8x8x8x32xf32>
    %35 = vector.shape_cast %34 : vector<8x8x8x32xf32> to vector<512x32xf32>
    %c3 = arith.constant 3 : index
    %c0_17 = arith.constant 0 : index
    %c0_18 = arith.constant 0 : index
    %36 = vector.load %arg4[%c3, %c0_17, %c0_18] : memref<25x32x32xf32, #tpu.memory_space<vmem>>, vector<1x32x32xf32>
    %37 = vector.shape_cast %36 : vector<1x32x32xf32> to vector<32x32xf32>
    %cst_19 = arith.constant dense<0.000000e+00> : vector<512x32xf32>
    %38 = tpu.matmul %35, %37, %cst_19 {dimension_numbers = #tpu.dot_dimension_numbers<[1], [0], [0], [1], [0, 0, 1, 1], [], []>} : vector<512x32xf32>, vector<32x32xf32>, vector<512x32xf32> -> vector<512x32xf32>
    %39 = arith.addf %33, %38 : vector<512x32xf32>
    %40 = vector.extract_strided_slice %16 {offsets = [0, 4, 0, 0], sizes = [8, 8, 8, 32], strides = [1, 1, 1, 1]} : vector<12x12x8x32xf32> to vector<8x8x8x32xf32>
    %41 = vector.shape_cast %40 : vector<8x8x8x32xf32> to vector<512x32xf32>
    %c4 = arith.constant 4 : index
    %c0_20 = arith.constant 0 : index
    %c0_21 = arith.constant 0 : index
    %42 = vector.load %arg4[%c4, %c0_20, %c0_21] : memref<25x32x32xf32, #tpu.memory_space<vmem>>, vector<1x32x32xf32>
    %43 = vector.shape_cast %42 : vector<1x32x32xf32> to vector<32x32xf32>
    %cst_22 = arith.constant dense<0.000000e+00> : vector<512x32xf32>
    %44 = tpu.matmul %41, %43, %cst_22 {dimension_numbers = #tpu.dot_dimension_numbers<[1], [0], [0], [1], [0, 0, 1, 1], [], []>} : vector<512x32xf32>, vector<32x32xf32>, vector<512x32xf32> -> vector<512x32xf32>
    %45 = arith.addf %39, %44 : vector<512x32xf32>
    %46 = vector.extract_strided_slice %16 {offsets = [1, 0, 0, 0], sizes = [8, 8, 8, 32], strides = [1, 1, 1, 1]} : vector<12x12x8x32xf32> to vector<8x8x8x32xf32>
    %47 = vector.shape_cast %46 : vector<8x8x8x32xf32> to vector<512x32xf32>
    %c5 = arith.constant 5 : index
    %c0_23 = arith.constant 0 : index
    %c0_24 = arith.constant 0 : index
    %48 = vector.load %arg4[%c5, %c0_23, %c0_24] : memref<25x32x32xf32, #tpu.memory_space<vmem>>, vector<1x32x32xf32>
    %49 = vector.shape_cast %48 : vector<1x32x32xf32> to vector<32x32xf32>
    %cst_25 = arith.constant dense<0.000000e+00> : vector<512x32xf32>
    %50 = tpu.matmul %47, %49, %cst_25 {dimension_numbers = #tpu.dot_dimension_numbers<[1], [0], [0], [1], [0, 0, 1, 1], [], []>} : vector<512x32xf32>, vector<32x32xf32>, vector<512x32xf32> -> vector<512x32xf32>
    %51 = vector.extract_strided_slice %16 {offsets = [1, 1, 0, 0], sizes = [8, 8, 8, 32], strides = [1, 1, 1, 1]} : vector<12x12x8x32xf32> to vector<8x8x8x32xf32>
    %52 = vector.shape_cast %51 : vector<8x8x8x32xf32> to vector<512x32xf32>
    %c6 = arith.constant 6 : index
    %c0_26 = arith.constant 0 : index
    %c0_27 = arith.constant 0 : index
    %53 = vector.load %arg4[%c6, %c0_26, %c0_27] : memref<25x32x32xf32, #tpu.memory_space<vmem>>, vector<1x32x32xf32>
    %54 = vector.shape_cast %53 : vector<1x32x32xf32> to vector<32x32xf32>
    %cst_28 = arith.constant dense<0.000000e+00> : vector<512x32xf32>
    %55 = tpu.matmul %52, %54, %cst_28 {dimension_numbers = #tpu.dot_dimension_numbers<[1], [0], [0], [1], [0, 0, 1, 1], [], []>} : vector<512x32xf32>, vector<32x32xf32>, vector<512x32xf32> -> vector<512x32xf32>
    %56 = arith.addf %50, %55 : vector<512x32xf32>
    %57 = vector.extract_strided_slice %16 {offsets = [1, 2, 0, 0], sizes = [8, 8, 8, 32], strides = [1, 1, 1, 1]} : vector<12x12x8x32xf32> to vector<8x8x8x32xf32>
    %58 = vector.shape_cast %57 : vector<8x8x8x32xf32> to vector<512x32xf32>
    %c7 = arith.constant 7 : index
    %c0_29 = arith.constant 0 : index
    %c0_30 = arith.constant 0 : index
    %59 = vector.load %arg4[%c7, %c0_29, %c0_30] : memref<25x32x32xf32, #tpu.memory_space<vmem>>, vector<1x32x32xf32>
    %60 = vector.shape_cast %59 : vector<1x32x32xf32> to vector<32x32xf32>
    %cst_31 = arith.constant dense<0.000000e+00> : vector<512x32xf32>
    %61 = tpu.matmul %58, %60, %cst_31 {dimension_numbers = #tpu.dot_dimension_numbers<[1], [0], [0], [1], [0, 0, 1, 1], [], []>} : vector<512x32xf32>, vector<32x32xf32>, vector<512x32xf32> -> vector<512x32xf32>
    %62 = arith.addf %56, %61 : vector<512x32xf32>
    %63 = vector.extract_strided_slice %16 {offsets = [1, 3, 0, 0], sizes = [8, 8, 8, 32], strides = [1, 1, 1, 1]} : vector<12x12x8x32xf32> to vector<8x8x8x32xf32>
    %64 = vector.shape_cast %63 : vector<8x8x8x32xf32> to vector<512x32xf32>
    %c8 = arith.constant 8 : index
    %c0_32 = arith.constant 0 : index
    %c0_33 = arith.constant 0 : index
    %65 = vector.load %arg4[%c8, %c0_32, %c0_33] : memref<25x32x32xf32, #tpu.memory_space<vmem>>, vector<1x32x32xf32>
    %66 = vector.shape_cast %65 : vector<1x32x32xf32> to vector<32x32xf32>
    %cst_34 = arith.constant dense<0.000000e+00> : vector<512x32xf32>
    %67 = tpu.matmul %64, %66, %cst_34 {dimension_numbers = #tpu.dot_dimension_numbers<[1], [0], [0], [1], [0, 0, 1, 1], [], []>} : vector<512x32xf32>, vector<32x32xf32>, vector<512x32xf32> -> vector<512x32xf32>
    %68 = arith.addf %62, %67 : vector<512x32xf32>
    %69 = vector.extract_strided_slice %16 {offsets = [1, 4, 0, 0], sizes = [8, 8, 8, 32], strides = [1, 1, 1, 1]} : vector<12x12x8x32xf32> to vector<8x8x8x32xf32>
    %70 = vector.shape_cast %69 : vector<8x8x8x32xf32> to vector<512x32xf32>
    %c9 = arith.constant 9 : index
    %c0_35 = arith.constant 0 : index
    %c0_36 = arith.constant 0 : index
    %71 = vector.load %arg4[%c9, %c0_35, %c0_36] : memref<25x32x32xf32, #tpu.memory_space<vmem>>, vector<1x32x32xf32>
    %72 = vector.shape_cast %71 : vector<1x32x32xf32> to vector<32x32xf32>
    %cst_37 = arith.constant dense<0.000000e+00> : vector<512x32xf32>
    %73 = tpu.matmul %70, %72, %cst_37 {dimension_numbers = #tpu.dot_dimension_numbers<[1], [0], [0], [1], [0, 0, 1, 1], [], []>} : vector<512x32xf32>, vector<32x32xf32>, vector<512x32xf32> -> vector<512x32xf32>
    %74 = arith.addf %68, %73 : vector<512x32xf32>
    %75 = vector.extract_strided_slice %16 {offsets = [2, 0, 0, 0], sizes = [8, 8, 8, 32], strides = [1, 1, 1, 1]} : vector<12x12x8x32xf32> to vector<8x8x8x32xf32>
    %76 = vector.shape_cast %75 : vector<8x8x8x32xf32> to vector<512x32xf32>
    %c10 = arith.constant 10 : index
    %c0_38 = arith.constant 0 : index
    %c0_39 = arith.constant 0 : index
    %77 = vector.load %arg4[%c10, %c0_38, %c0_39] : memref<25x32x32xf32, #tpu.memory_space<vmem>>, vector<1x32x32xf32>
    %78 = vector.shape_cast %77 : vector<1x32x32xf32> to vector<32x32xf32>
    %cst_40 = arith.constant dense<0.000000e+00> : vector<512x32xf32>
    %79 = tpu.matmul %76, %78, %cst_40 {dimension_numbers = #tpu.dot_dimension_numbers<[1], [0], [0], [1], [0, 0, 1, 1], [], []>} : vector<512x32xf32>, vector<32x32xf32>, vector<512x32xf32> -> vector<512x32xf32>
    %80 = vector.extract_strided_slice %16 {offsets = [2, 1, 0, 0], sizes = [8, 8, 8, 32], strides = [1, 1, 1, 1]} : vector<12x12x8x32xf32> to vector<8x8x8x32xf32>
    %81 = vector.shape_cast %80 : vector<8x8x8x32xf32> to vector<512x32xf32>
    %c11 = arith.constant 11 : index
    %c0_41 = arith.constant 0 : index
    %c0_42 = arith.constant 0 : index
    %82 = vector.load %arg4[%c11, %c0_41, %c0_42] : memref<25x32x32xf32, #tpu.memory_space<vmem>>, vector<1x32x32xf32>
    %83 = vector.shape_cast %82 : vector<1x32x32xf32> to vector<32x32xf32>
    %cst_43 = arith.constant dense<0.000000e+00> : vector<512x32xf32>
    %84 = tpu.matmul %81, %83, %cst_43 {dimension_numbers = #tpu.dot_dimension_numbers<[1], [0], [0], [1], [0, 0, 1, 1], [], []>} : vector<512x32xf32>, vector<32x32xf32>, vector<512x32xf32> -> vector<512x32xf32>
    %85 = arith.addf %79, %84 : vector<512x32xf32>
    %86 = vector.extract_strided_slice %16 {offsets = [2, 2, 0, 0], sizes = [8, 8, 8, 32], strides = [1, 1, 1, 1]} : vector<12x12x8x32xf32> to vector<8x8x8x32xf32>
    %87 = vector.shape_cast %86 : vector<8x8x8x32xf32> to vector<512x32xf32>
    %c12 = arith.constant 12 : index
    %c0_44 = arith.constant 0 : index
    %c0_45 = arith.constant 0 : index
    %88 = vector.load %arg4[%c12, %c0_44, %c0_45] : memref<25x32x32xf32, #tpu.memory_space<vmem>>, vector<1x32x32xf32>
    %89 = vector.shape_cast %88 : vector<1x32x32xf32> to vector<32x32xf32>
    %cst_46 = arith.constant dense<0.000000e+00> : vector<512x32xf32>
    %90 = tpu.matmul %87, %89, %cst_46 {dimension_numbers = #tpu.dot_dimension_numbers<[1], [0], [0], [1], [0, 0, 1, 1], [], []>} : vector<512x32xf32>, vector<32x32xf32>, vector<512x32xf32> -> vector<512x32xf32>
    %91 = arith.addf %85, %90 : vector<512x32xf32>
    %92 = vector.extract_strided_slice %16 {offsets = [2, 3, 0, 0], sizes = [8, 8, 8, 32], strides = [1, 1, 1, 1]} : vector<12x12x8x32xf32> to vector<8x8x8x32xf32>
    %93 = vector.shape_cast %92 : vector<8x8x8x32xf32> to vector<512x32xf32>
    %c13 = arith.constant 13 : index
    %c0_47 = arith.constant 0 : index
    %c0_48 = arith.constant 0 : index
    %94 = vector.load %arg4[%c13, %c0_47, %c0_48] : memref<25x32x32xf32, #tpu.memory_space<vmem>>, vector<1x32x32xf32>
    %95 = vector.shape_cast %94 : vector<1x32x32xf32> to vector<32x32xf32>
    %cst_49 = arith.constant dense<0.000000e+00> : vector<512x32xf32>
    %96 = tpu.matmul %93, %95, %cst_49 {dimension_numbers = #tpu.dot_dimension_numbers<[1], [0], [0], [1], [0, 0, 1, 1], [], []>} : vector<512x32xf32>, vector<32x32xf32>, vector<512x32xf32> -> vector<512x32xf32>
    %97 = arith.addf %91, %96 : vector<512x32xf32>
    %98 = vector.extract_strided_slice %16 {offsets = [2, 4, 0, 0], sizes = [8, 8, 8, 32], strides = [1, 1, 1, 1]} : vector<12x12x8x32xf32> to vector<8x8x8x32xf32>
    %99 = vector.shape_cast %98 : vector<8x8x8x32xf32> to vector<512x32xf32>
    %c14 = arith.constant 14 : index
    %c0_50 = arith.constant 0 : index
    %c0_51 = arith.constant 0 : index
    %100 = vector.load %arg4[%c14, %c0_50, %c0_51] : memref<25x32x32xf32, #tpu.memory_space<vmem>>, vector<1x32x32xf32>
    %101 = vector.shape_cast %100 : vector<1x32x32xf32> to vector<32x32xf32>
    %cst_52 = arith.constant dense<0.000000e+00> : vector<512x32xf32>
    %102 = tpu.matmul %99, %101, %cst_52 {dimension_numbers = #tpu.dot_dimension_numbers<[1], [0], [0], [1], [0, 0, 1, 1], [], []>} : vector<512x32xf32>, vector<32x32xf32>, vector<512x32xf32> -> vector<512x32xf32>
    %103 = arith.addf %97, %102 : vector<512x32xf32>
    %104 = vector.extract_strided_slice %16 {offsets = [3, 0, 0, 0], sizes = [8, 8, 8, 32], strides = [1, 1, 1, 1]} : vector<12x12x8x32xf32> to vector<8x8x8x32xf32>
    %105 = vector.shape_cast %104 : vector<8x8x8x32xf32> to vector<512x32xf32>
    %c15 = arith.constant 15 : index
    %c0_53 = arith.constant 0 : index
    %c0_54 = arith.constant 0 : index
    %106 = vector.load %arg4[%c15, %c0_53, %c0_54] : memref<25x32x32xf32, #tpu.memory_space<vmem>>, vector<1x32x32xf32>
    %107 = vector.shape_cast %106 : vector<1x32x32xf32> to vector<32x32xf32>
    %cst_55 = arith.constant dense<0.000000e+00> : vector<512x32xf32>
    %108 = tpu.matmul %105, %107, %cst_55 {dimension_numbers = #tpu.dot_dimension_numbers<[1], [0], [0], [1], [0, 0, 1, 1], [], []>} : vector<512x32xf32>, vector<32x32xf32>, vector<512x32xf32> -> vector<512x32xf32>
    %109 = vector.extract_strided_slice %16 {offsets = [3, 1, 0, 0], sizes = [8, 8, 8, 32], strides = [1, 1, 1, 1]} : vector<12x12x8x32xf32> to vector<8x8x8x32xf32>
    %110 = vector.shape_cast %109 : vector<8x8x8x32xf32> to vector<512x32xf32>
    %c16 = arith.constant 16 : index
    %c0_56 = arith.constant 0 : index
    %c0_57 = arith.constant 0 : index
    %111 = vector.load %arg4[%c16, %c0_56, %c0_57] : memref<25x32x32xf32, #tpu.memory_space<vmem>>, vector<1x32x32xf32>
    %112 = vector.shape_cast %111 : vector<1x32x32xf32> to vector<32x32xf32>
    %cst_58 = arith.constant dense<0.000000e+00> : vector<512x32xf32>
    %113 = tpu.matmul %110, %112, %cst_58 {dimension_numbers = #tpu.dot_dimension_numbers<[1], [0], [0], [1], [0, 0, 1, 1], [], []>} : vector<512x32xf32>, vector<32x32xf32>, vector<512x32xf32> -> vector<512x32xf32>
    %114 = arith.addf %108, %113 : vector<512x32xf32>
    %115 = vector.extract_strided_slice %16 {offsets = [3, 2, 0, 0], sizes = [8, 8, 8, 32], strides = [1, 1, 1, 1]} : vector<12x12x8x32xf32> to vector<8x8x8x32xf32>
    %116 = vector.shape_cast %115 : vector<8x8x8x32xf32> to vector<512x32xf32>
    %c17 = arith.constant 17 : index
    %c0_59 = arith.constant 0 : index
    %c0_60 = arith.constant 0 : index
    %117 = vector.load %arg4[%c17, %c0_59, %c0_60] : memref<25x32x32xf32, #tpu.memory_space<vmem>>, vector<1x32x32xf32>
    %118 = vector.shape_cast %117 : vector<1x32x32xf32> to vector<32x32xf32>
    %cst_61 = arith.constant dense<0.000000e+00> : vector<512x32xf32>
    %119 = tpu.matmul %116, %118, %cst_61 {dimension_numbers = #tpu.dot_dimension_numbers<[1], [0], [0], [1], [0, 0, 1, 1], [], []>} : vector<512x32xf32>, vector<32x32xf32>, vector<512x32xf32> -> vector<512x32xf32>
    %120 = arith.addf %114, %119 : vector<512x32xf32>
    %121 = vector.extract_strided_slice %16 {offsets = [3, 3, 0, 0], sizes = [8, 8, 8, 32], strides = [1, 1, 1, 1]} : vector<12x12x8x32xf32> to vector<8x8x8x32xf32>
    %122 = vector.shape_cast %121 : vector<8x8x8x32xf32> to vector<512x32xf32>
    %c18 = arith.constant 18 : index
    %c0_62 = arith.constant 0 : index
    %c0_63 = arith.constant 0 : index
    %123 = vector.load %arg4[%c18, %c0_62, %c0_63] : memref<25x32x32xf32, #tpu.memory_space<vmem>>, vector<1x32x32xf32>
    %124 = vector.shape_cast %123 : vector<1x32x32xf32> to vector<32x32xf32>
    %cst_64 = arith.constant dense<0.000000e+00> : vector<512x32xf32>
    %125 = tpu.matmul %122, %124, %cst_64 {dimension_numbers = #tpu.dot_dimension_numbers<[1], [0], [0], [1], [0, 0, 1, 1], [], []>} : vector<512x32xf32>, vector<32x32xf32>, vector<512x32xf32> -> vector<512x32xf32>
    %126 = arith.addf %120, %125 : vector<512x32xf32>
    %127 = vector.extract_strided_slice %16 {offsets = [3, 4, 0, 0], sizes = [8, 8, 8, 32], strides = [1, 1, 1, 1]} : vector<12x12x8x32xf32> to vector<8x8x8x32xf32>
    %128 = vector.shape_cast %127 : vector<8x8x8x32xf32> to vector<512x32xf32>
    %c19 = arith.constant 19 : index
    %c0_65 = arith.constant 0 : index
    %c0_66 = arith.constant 0 : index
    %129 = vector.load %arg4[%c19, %c0_65, %c0_66] : memref<25x32x32xf32, #tpu.memory_space<vmem>>, vector<1x32x32xf32>
    %130 = vector.shape_cast %129 : vector<1x32x32xf32> to vector<32x32xf32>
    %cst_67 = arith.constant dense<0.000000e+00> : vector<512x32xf32>
    %131 = tpu.matmul %128, %130, %cst_67 {dimension_numbers = #tpu.dot_dimension_numbers<[1], [0], [0], [1], [0, 0, 1, 1], [], []>} : vector<512x32xf32>, vector<32x32xf32>, vector<512x32xf32> -> vector<512x32xf32>
    %132 = arith.addf %126, %131 : vector<512x32xf32>
    %133 = vector.extract_strided_slice %16 {offsets = [4, 0, 0, 0], sizes = [8, 8, 8, 32], strides = [1, 1, 1, 1]} : vector<12x12x8x32xf32> to vector<8x8x8x32xf32>
    %134 = vector.shape_cast %133 : vector<8x8x8x32xf32> to vector<512x32xf32>
    %c20 = arith.constant 20 : index
    %c0_68 = arith.constant 0 : index
    %c0_69 = arith.constant 0 : index
    %135 = vector.load %arg4[%c20, %c0_68, %c0_69] : memref<25x32x32xf32, #tpu.memory_space<vmem>>, vector<1x32x32xf32>
    %136 = vector.shape_cast %135 : vector<1x32x32xf32> to vector<32x32xf32>
    %cst_70 = arith.constant dense<0.000000e+00> : vector<512x32xf32>
    %137 = tpu.matmul %134, %136, %cst_70 {dimension_numbers = #tpu.dot_dimension_numbers<[1], [0], [0], [1], [0, 0, 1, 1], [], []>} : vector<512x32xf32>, vector<32x32xf32>, vector<512x32xf32> -> vector<512x32xf32>
    %138 = vector.extract_strided_slice %16 {offsets = [4, 1, 0, 0], sizes = [8, 8, 8, 32], strides = [1, 1, 1, 1]} : vector<12x12x8x32xf32> to vector<8x8x8x32xf32>
    %139 = vector.shape_cast %138 : vector<8x8x8x32xf32> to vector<512x32xf32>
    %c21 = arith.constant 21 : index
    %c0_71 = arith.constant 0 : index
    %c0_72 = arith.constant 0 : index
    %140 = vector.load %arg4[%c21, %c0_71, %c0_72] : memref<25x32x32xf32, #tpu.memory_space<vmem>>, vector<1x32x32xf32>
    %141 = vector.shape_cast %140 : vector<1x32x32xf32> to vector<32x32xf32>
    %cst_73 = arith.constant dense<0.000000e+00> : vector<512x32xf32>
    %142 = tpu.matmul %139, %141, %cst_73 {dimension_numbers = #tpu.dot_dimension_numbers<[1], [0], [0], [1], [0, 0, 1, 1], [], []>} : vector<512x32xf32>, vector<32x32xf32>, vector<512x32xf32> -> vector<512x32xf32>
    %143 = arith.addf %137, %142 : vector<512x32xf32>
    %144 = vector.extract_strided_slice %16 {offsets = [4, 2, 0, 0], sizes = [8, 8, 8, 32], strides = [1, 1, 1, 1]} : vector<12x12x8x32xf32> to vector<8x8x8x32xf32>
    %145 = vector.shape_cast %144 : vector<8x8x8x32xf32> to vector<512x32xf32>
    %c22 = arith.constant 22 : index
    %c0_74 = arith.constant 0 : index
    %c0_75 = arith.constant 0 : index
    %146 = vector.load %arg4[%c22, %c0_74, %c0_75] : memref<25x32x32xf32, #tpu.memory_space<vmem>>, vector<1x32x32xf32>
    %147 = vector.shape_cast %146 : vector<1x32x32xf32> to vector<32x32xf32>
    %cst_76 = arith.constant dense<0.000000e+00> : vector<512x32xf32>
    %148 = tpu.matmul %145, %147, %cst_76 {dimension_numbers = #tpu.dot_dimension_numbers<[1], [0], [0], [1], [0, 0, 1, 1], [], []>} : vector<512x32xf32>, vector<32x32xf32>, vector<512x32xf32> -> vector<512x32xf32>
    %149 = arith.addf %143, %148 : vector<512x32xf32>
    %150 = vector.extract_strided_slice %16 {offsets = [4, 3, 0, 0], sizes = [8, 8, 8, 32], strides = [1, 1, 1, 1]} : vector<12x12x8x32xf32> to vector<8x8x8x32xf32>
    %151 = vector.shape_cast %150 : vector<8x8x8x32xf32> to vector<512x32xf32>
    %c23 = arith.constant 23 : index
    %c0_77 = arith.constant 0 : index
    %c0_78 = arith.constant 0 : index
    %152 = vector.load %arg4[%c23, %c0_77, %c0_78] : memref<25x32x32xf32, #tpu.memory_space<vmem>>, vector<1x32x32xf32>
    %153 = vector.shape_cast %152 : vector<1x32x32xf32> to vector<32x32xf32>
    %cst_79 = arith.constant dense<0.000000e+00> : vector<512x32xf32>
    %154 = tpu.matmul %151, %153, %cst_79 {dimension_numbers = #tpu.dot_dimension_numbers<[1], [0], [0], [1], [0, 0, 1, 1], [], []>} : vector<512x32xf32>, vector<32x32xf32>, vector<512x32xf32> -> vector<512x32xf32>
    %155 = arith.addf %149, %154 : vector<512x32xf32>
    %156 = vector.extract_strided_slice %16 {offsets = [4, 4, 0, 0], sizes = [8, 8, 8, 32], strides = [1, 1, 1, 1]} : vector<12x12x8x32xf32> to vector<8x8x8x32xf32>
    %157 = vector.shape_cast %156 : vector<8x8x8x32xf32> to vector<512x32xf32>
    %c24 = arith.constant 24 : index
    %c0_80 = arith.constant 0 : index
    %c0_81 = arith.constant 0 : index
    %158 = vector.load %arg4[%c24, %c0_80, %c0_81] : memref<25x32x32xf32, #tpu.memory_space<vmem>>, vector<1x32x32xf32>
    %159 = vector.shape_cast %158 : vector<1x32x32xf32> to vector<32x32xf32>
    %cst_82 = arith.constant dense<0.000000e+00> : vector<512x32xf32>
    %160 = tpu.matmul %157, %159, %cst_82 {dimension_numbers = #tpu.dot_dimension_numbers<[1], [0], [0], [1], [0, 0, 1, 1], [], []>} : vector<512x32xf32>, vector<32x32xf32>, vector<512x32xf32> -> vector<512x32xf32>
    %161 = arith.addf %155, %160 : vector<512x32xf32>
    %162 = arith.addf %45, %74 : vector<512x32xf32>
    %163 = arith.addf %103, %132 : vector<512x32xf32>
    %164 = arith.addf %162, %163 : vector<512x32xf32>
    %165 = arith.addf %164, %161 : vector<512x32xf32>
    %c0_83 = arith.constant 0 : index
    %c0_84 = arith.constant 0 : index
    %166 = vector.load %arg5[%c0_83, %c0_84] : memref<1x32xf32, #tpu.memory_space<vmem>>, vector<1x32xf32>
    %167 = vector.broadcast %166 : vector<1x32xf32> to vector<512x32xf32>
    %168 = arith.addf %165, %167 : vector<512x32xf32>
    %169 = vector.shape_cast %168 : vector<512x32xf32> to vector<4x2x4x2x8x32xf32>
    %170 = vector.extract_strided_slice %169 {offsets = [0, 0, 0, 0, 0, 0], sizes = [4, 1, 4, 1, 8, 32], strides = [1, 1, 1, 1, 1, 1]} : vector<4x2x4x2x8x32xf32> to vector<4x1x4x1x8x32xf32>
    %171 = vector.shape_cast %170 : vector<4x1x4x1x8x32xf32> to vector<4x4x8x32xf32>
    %172 = vector.extract_strided_slice %169 {offsets = [0, 0, 0, 1, 0, 0], sizes = [4, 1, 4, 1, 8, 32], strides = [1, 1, 1, 1, 1, 1]} : vector<4x2x4x2x8x32xf32> to vector<4x1x4x1x8x32xf32>
    %173 = vector.shape_cast %172 : vector<4x1x4x1x8x32xf32> to vector<4x4x8x32xf32>
    %174 = arith.maximumf %171, %173 : vector<4x4x8x32xf32>
    %175 = vector.extract_strided_slice %169 {offsets = [0, 1, 0, 0, 0, 0], sizes = [4, 1, 4, 1, 8, 32], strides = [1, 1, 1, 1, 1, 1]} : vector<4x2x4x2x8x32xf32> to vector<4x1x4x1x8x32xf32>
    %176 = vector.shape_cast %175 : vector<4x1x4x1x8x32xf32> to vector<4x4x8x32xf32>
    %177 = vector.extract_strided_slice %169 {offsets = [0, 1, 0, 1, 0, 0], sizes = [4, 1, 4, 1, 8, 32], strides = [1, 1, 1, 1, 1, 1]} : vector<4x2x4x2x8x32xf32> to vector<4x1x4x1x8x32xf32>
    %178 = vector.shape_cast %177 : vector<4x1x4x1x8x32xf32> to vector<4x4x8x32xf32>
    %179 = arith.maximumf %176, %178 : vector<4x4x8x32xf32>
    %180 = arith.maximumf %174, %179 : vector<4x4x8x32xf32>
    %cst_85 = arith.constant 0.000000e+00 : f32
    %181 = vector.broadcast %cst_85 : f32 to vector<4x4x8x32xf32>
    %182 = arith.maximumf %180, %181 : vector<4x4x8x32xf32>
    %183 = vector.shape_cast %182 : vector<4x4x8x32xf32> to vector<16x8x32xf32>
    %184 = vector.extract_strided_slice %183 {offsets = [0, 0, 0], sizes = [1, 8, 32], strides = [1, 1, 1]} : vector<16x8x32xf32> to vector<1x8x32xf32>
    %185 = vector.shape_cast %184 : vector<1x8x32xf32> to vector<8x32xf32>
    %c0_86 = arith.constant 0 : index
    %c0_87 = arith.constant 0 : index
    %c0_88 = arith.constant 0 : index
    %186 = vector.load %arg6[%c0_86, %c0_87, %c0_88] : memref<16x32x64xf32, #tpu.memory_space<vmem>>, vector<1x32x64xf32>
    %187 = vector.shape_cast %186 : vector<1x32x64xf32> to vector<32x64xf32>
    %cst_89 = arith.constant dense<0.000000e+00> : vector<8x64xf32>
    %188 = tpu.matmul %185, %187, %cst_89 {dimension_numbers = #tpu.dot_dimension_numbers<[1], [0], [0], [1], [0, 0, 1, 1], [], []>} : vector<8x32xf32>, vector<32x64xf32>, vector<8x64xf32> -> vector<8x64xf32>
    %189 = vector.extract_strided_slice %183 {offsets = [1, 0, 0], sizes = [1, 8, 32], strides = [1, 1, 1]} : vector<16x8x32xf32> to vector<1x8x32xf32>
    %190 = vector.shape_cast %189 : vector<1x8x32xf32> to vector<8x32xf32>
    %c1_90 = arith.constant 1 : index
    %c0_91 = arith.constant 0 : index
    %c0_92 = arith.constant 0 : index
    %191 = vector.load %arg6[%c1_90, %c0_91, %c0_92] : memref<16x32x64xf32, #tpu.memory_space<vmem>>, vector<1x32x64xf32>
    %192 = vector.shape_cast %191 : vector<1x32x64xf32> to vector<32x64xf32>
    %cst_93 = arith.constant dense<0.000000e+00> : vector<8x64xf32>
    %193 = tpu.matmul %190, %192, %cst_93 {dimension_numbers = #tpu.dot_dimension_numbers<[1], [0], [0], [1], [0, 0, 1, 1], [], []>} : vector<8x32xf32>, vector<32x64xf32>, vector<8x64xf32> -> vector<8x64xf32>
    %194 = arith.addf %188, %193 : vector<8x64xf32>
    %195 = vector.extract_strided_slice %183 {offsets = [2, 0, 0], sizes = [1, 8, 32], strides = [1, 1, 1]} : vector<16x8x32xf32> to vector<1x8x32xf32>
    %196 = vector.shape_cast %195 : vector<1x8x32xf32> to vector<8x32xf32>
    %c2_94 = arith.constant 2 : index
    %c0_95 = arith.constant 0 : index
    %c0_96 = arith.constant 0 : index
    %197 = vector.load %arg6[%c2_94, %c0_95, %c0_96] : memref<16x32x64xf32, #tpu.memory_space<vmem>>, vector<1x32x64xf32>
    %198 = vector.shape_cast %197 : vector<1x32x64xf32> to vector<32x64xf32>
    %cst_97 = arith.constant dense<0.000000e+00> : vector<8x64xf32>
    %199 = tpu.matmul %196, %198, %cst_97 {dimension_numbers = #tpu.dot_dimension_numbers<[1], [0], [0], [1], [0, 0, 1, 1], [], []>} : vector<8x32xf32>, vector<32x64xf32>, vector<8x64xf32> -> vector<8x64xf32>
    %200 = arith.addf %194, %199 : vector<8x64xf32>
    %201 = vector.extract_strided_slice %183 {offsets = [3, 0, 0], sizes = [1, 8, 32], strides = [1, 1, 1]} : vector<16x8x32xf32> to vector<1x8x32xf32>
    %202 = vector.shape_cast %201 : vector<1x8x32xf32> to vector<8x32xf32>
    %c3_98 = arith.constant 3 : index
    %c0_99 = arith.constant 0 : index
    %c0_100 = arith.constant 0 : index
    %203 = vector.load %arg6[%c3_98, %c0_99, %c0_100] : memref<16x32x64xf32, #tpu.memory_space<vmem>>, vector<1x32x64xf32>
    %204 = vector.shape_cast %203 : vector<1x32x64xf32> to vector<32x64xf32>
    %cst_101 = arith.constant dense<0.000000e+00> : vector<8x64xf32>
    %205 = tpu.matmul %202, %204, %cst_101 {dimension_numbers = #tpu.dot_dimension_numbers<[1], [0], [0], [1], [0, 0, 1, 1], [], []>} : vector<8x32xf32>, vector<32x64xf32>, vector<8x64xf32> -> vector<8x64xf32>
    %206 = arith.addf %200, %205 : vector<8x64xf32>
    %207 = vector.extract_strided_slice %183 {offsets = [4, 0, 0], sizes = [1, 8, 32], strides = [1, 1, 1]} : vector<16x8x32xf32> to vector<1x8x32xf32>
    %208 = vector.shape_cast %207 : vector<1x8x32xf32> to vector<8x32xf32>
    %c4_102 = arith.constant 4 : index
    %c0_103 = arith.constant 0 : index
    %c0_104 = arith.constant 0 : index
    %209 = vector.load %arg6[%c4_102, %c0_103, %c0_104] : memref<16x32x64xf32, #tpu.memory_space<vmem>>, vector<1x32x64xf32>
    %210 = vector.shape_cast %209 : vector<1x32x64xf32> to vector<32x64xf32>
    %cst_105 = arith.constant dense<0.000000e+00> : vector<8x64xf32>
    %211 = tpu.matmul %208, %210, %cst_105 {dimension_numbers = #tpu.dot_dimension_numbers<[1], [0], [0], [1], [0, 0, 1, 1], [], []>} : vector<8x32xf32>, vector<32x64xf32>, vector<8x64xf32> -> vector<8x64xf32>
    %212 = vector.extract_strided_slice %183 {offsets = [5, 0, 0], sizes = [1, 8, 32], strides = [1, 1, 1]} : vector<16x8x32xf32> to vector<1x8x32xf32>
    %213 = vector.shape_cast %212 : vector<1x8x32xf32> to vector<8x32xf32>
    %c5_106 = arith.constant 5 : index
    %c0_107 = arith.constant 0 : index
    %c0_108 = arith.constant 0 : index
    %214 = vector.load %arg6[%c5_106, %c0_107, %c0_108] : memref<16x32x64xf32, #tpu.memory_space<vmem>>, vector<1x32x64xf32>
    %215 = vector.shape_cast %214 : vector<1x32x64xf32> to vector<32x64xf32>
    %cst_109 = arith.constant dense<0.000000e+00> : vector<8x64xf32>
    %216 = tpu.matmul %213, %215, %cst_109 {dimension_numbers = #tpu.dot_dimension_numbers<[1], [0], [0], [1], [0, 0, 1, 1], [], []>} : vector<8x32xf32>, vector<32x64xf32>, vector<8x64xf32> -> vector<8x64xf32>
    %217 = arith.addf %211, %216 : vector<8x64xf32>
    %218 = vector.extract_strided_slice %183 {offsets = [6, 0, 0], sizes = [1, 8, 32], strides = [1, 1, 1]} : vector<16x8x32xf32> to vector<1x8x32xf32>
    %219 = vector.shape_cast %218 : vector<1x8x32xf32> to vector<8x32xf32>
    %c6_110 = arith.constant 6 : index
    %c0_111 = arith.constant 0 : index
    %c0_112 = arith.constant 0 : index
    %220 = vector.load %arg6[%c6_110, %c0_111, %c0_112] : memref<16x32x64xf32, #tpu.memory_space<vmem>>, vector<1x32x64xf32>
    %221 = vector.shape_cast %220 : vector<1x32x64xf32> to vector<32x64xf32>
    %cst_113 = arith.constant dense<0.000000e+00> : vector<8x64xf32>
    %222 = tpu.matmul %219, %221, %cst_113 {dimension_numbers = #tpu.dot_dimension_numbers<[1], [0], [0], [1], [0, 0, 1, 1], [], []>} : vector<8x32xf32>, vector<32x64xf32>, vector<8x64xf32> -> vector<8x64xf32>
    %223 = arith.addf %217, %222 : vector<8x64xf32>
    %224 = vector.extract_strided_slice %183 {offsets = [7, 0, 0], sizes = [1, 8, 32], strides = [1, 1, 1]} : vector<16x8x32xf32> to vector<1x8x32xf32>
    %225 = vector.shape_cast %224 : vector<1x8x32xf32> to vector<8x32xf32>
    %c7_114 = arith.constant 7 : index
    %c0_115 = arith.constant 0 : index
    %c0_116 = arith.constant 0 : index
    %226 = vector.load %arg6[%c7_114, %c0_115, %c0_116] : memref<16x32x64xf32, #tpu.memory_space<vmem>>, vector<1x32x64xf32>
    %227 = vector.shape_cast %226 : vector<1x32x64xf32> to vector<32x64xf32>
    %cst_117 = arith.constant dense<0.000000e+00> : vector<8x64xf32>
    %228 = tpu.matmul %225, %227, %cst_117 {dimension_numbers = #tpu.dot_dimension_numbers<[1], [0], [0], [1], [0, 0, 1, 1], [], []>} : vector<8x32xf32>, vector<32x64xf32>, vector<8x64xf32> -> vector<8x64xf32>
    %229 = arith.addf %223, %228 : vector<8x64xf32>
    %230 = vector.extract_strided_slice %183 {offsets = [8, 0, 0], sizes = [1, 8, 32], strides = [1, 1, 1]} : vector<16x8x32xf32> to vector<1x8x32xf32>
    %231 = vector.shape_cast %230 : vector<1x8x32xf32> to vector<8x32xf32>
    %c8_118 = arith.constant 8 : index
    %c0_119 = arith.constant 0 : index
    %c0_120 = arith.constant 0 : index
    %232 = vector.load %arg6[%c8_118, %c0_119, %c0_120] : memref<16x32x64xf32, #tpu.memory_space<vmem>>, vector<1x32x64xf32>
    %233 = vector.shape_cast %232 : vector<1x32x64xf32> to vector<32x64xf32>
    %cst_121 = arith.constant dense<0.000000e+00> : vector<8x64xf32>
    %234 = tpu.matmul %231, %233, %cst_121 {dimension_numbers = #tpu.dot_dimension_numbers<[1], [0], [0], [1], [0, 0, 1, 1], [], []>} : vector<8x32xf32>, vector<32x64xf32>, vector<8x64xf32> -> vector<8x64xf32>
    %235 = vector.extract_strided_slice %183 {offsets = [9, 0, 0], sizes = [1, 8, 32], strides = [1, 1, 1]} : vector<16x8x32xf32> to vector<1x8x32xf32>
    %236 = vector.shape_cast %235 : vector<1x8x32xf32> to vector<8x32xf32>
    %c9_122 = arith.constant 9 : index
    %c0_123 = arith.constant 0 : index
    %c0_124 = arith.constant 0 : index
    %237 = vector.load %arg6[%c9_122, %c0_123, %c0_124] : memref<16x32x64xf32, #tpu.memory_space<vmem>>, vector<1x32x64xf32>
    %238 = vector.shape_cast %237 : vector<1x32x64xf32> to vector<32x64xf32>
    %cst_125 = arith.constant dense<0.000000e+00> : vector<8x64xf32>
    %239 = tpu.matmul %236, %238, %cst_125 {dimension_numbers = #tpu.dot_dimension_numbers<[1], [0], [0], [1], [0, 0, 1, 1], [], []>} : vector<8x32xf32>, vector<32x64xf32>, vector<8x64xf32> -> vector<8x64xf32>
    %240 = arith.addf %234, %239 : vector<8x64xf32>
    %241 = vector.extract_strided_slice %183 {offsets = [10, 0, 0], sizes = [1, 8, 32], strides = [1, 1, 1]} : vector<16x8x32xf32> to vector<1x8x32xf32>
    %242 = vector.shape_cast %241 : vector<1x8x32xf32> to vector<8x32xf32>
    %c10_126 = arith.constant 10 : index
    %c0_127 = arith.constant 0 : index
    %c0_128 = arith.constant 0 : index
    %243 = vector.load %arg6[%c10_126, %c0_127, %c0_128] : memref<16x32x64xf32, #tpu.memory_space<vmem>>, vector<1x32x64xf32>
    %244 = vector.shape_cast %243 : vector<1x32x64xf32> to vector<32x64xf32>
    %cst_129 = arith.constant dense<0.000000e+00> : vector<8x64xf32>
    %245 = tpu.matmul %242, %244, %cst_129 {dimension_numbers = #tpu.dot_dimension_numbers<[1], [0], [0], [1], [0, 0, 1, 1], [], []>} : vector<8x32xf32>, vector<32x64xf32>, vector<8x64xf32> -> vector<8x64xf32>
    %246 = arith.addf %240, %245 : vector<8x64xf32>
    %247 = vector.extract_strided_slice %183 {offsets = [11, 0, 0], sizes = [1, 8, 32], strides = [1, 1, 1]} : vector<16x8x32xf32> to vector<1x8x32xf32>
    %248 = vector.shape_cast %247 : vector<1x8x32xf32> to vector<8x32xf32>
    %c11_130 = arith.constant 11 : index
    %c0_131 = arith.constant 0 : index
    %c0_132 = arith.constant 0 : index
    %249 = vector.load %arg6[%c11_130, %c0_131, %c0_132] : memref<16x32x64xf32, #tpu.memory_space<vmem>>, vector<1x32x64xf32>
    %250 = vector.shape_cast %249 : vector<1x32x64xf32> to vector<32x64xf32>
    %cst_133 = arith.constant dense<0.000000e+00> : vector<8x64xf32>
    %251 = tpu.matmul %248, %250, %cst_133 {dimension_numbers = #tpu.dot_dimension_numbers<[1], [0], [0], [1], [0, 0, 1, 1], [], []>} : vector<8x32xf32>, vector<32x64xf32>, vector<8x64xf32> -> vector<8x64xf32>
    %252 = arith.addf %246, %251 : vector<8x64xf32>
    %253 = vector.extract_strided_slice %183 {offsets = [12, 0, 0], sizes = [1, 8, 32], strides = [1, 1, 1]} : vector<16x8x32xf32> to vector<1x8x32xf32>
    %254 = vector.shape_cast %253 : vector<1x8x32xf32> to vector<8x32xf32>
    %c12_134 = arith.constant 12 : index
    %c0_135 = arith.constant 0 : index
    %c0_136 = arith.constant 0 : index
    %255 = vector.load %arg6[%c12_134, %c0_135, %c0_136] : memref<16x32x64xf32, #tpu.memory_space<vmem>>, vector<1x32x64xf32>
    %256 = vector.shape_cast %255 : vector<1x32x64xf32> to vector<32x64xf32>
    %cst_137 = arith.constant dense<0.000000e+00> : vector<8x64xf32>
    %257 = tpu.matmul %254, %256, %cst_137 {dimension_numbers = #tpu.dot_dimension_numbers<[1], [0], [0], [1], [0, 0, 1, 1], [], []>} : vector<8x32xf32>, vector<32x64xf32>, vector<8x64xf32> -> vector<8x64xf32>
    %258 = vector.extract_strided_slice %183 {offsets = [13, 0, 0], sizes = [1, 8, 32], strides = [1, 1, 1]} : vector<16x8x32xf32> to vector<1x8x32xf32>
    %259 = vector.shape_cast %258 : vector<1x8x32xf32> to vector<8x32xf32>
    %c13_138 = arith.constant 13 : index
    %c0_139 = arith.constant 0 : index
    %c0_140 = arith.constant 0 : index
    %260 = vector.load %arg6[%c13_138, %c0_139, %c0_140] : memref<16x32x64xf32, #tpu.memory_space<vmem>>, vector<1x32x64xf32>
    %261 = vector.shape_cast %260 : vector<1x32x64xf32> to vector<32x64xf32>
    %cst_141 = arith.constant dense<0.000000e+00> : vector<8x64xf32>
    %262 = tpu.matmul %259, %261, %cst_141 {dimension_numbers = #tpu.dot_dimension_numbers<[1], [0], [0], [1], [0, 0, 1, 1], [], []>} : vector<8x32xf32>, vector<32x64xf32>, vector<8x64xf32> -> vector<8x64xf32>
    %263 = arith.addf %257, %262 : vector<8x64xf32>
    %264 = vector.extract_strided_slice %183 {offsets = [14, 0, 0], sizes = [1, 8, 32], strides = [1, 1, 1]} : vector<16x8x32xf32> to vector<1x8x32xf32>
    %265 = vector.shape_cast %264 : vector<1x8x32xf32> to vector<8x32xf32>
    %c14_142 = arith.constant 14 : index
    %c0_143 = arith.constant 0 : index
    %c0_144 = arith.constant 0 : index
    %266 = vector.load %arg6[%c14_142, %c0_143, %c0_144] : memref<16x32x64xf32, #tpu.memory_space<vmem>>, vector<1x32x64xf32>
    %267 = vector.shape_cast %266 : vector<1x32x64xf32> to vector<32x64xf32>
    %cst_145 = arith.constant dense<0.000000e+00> : vector<8x64xf32>
    %268 = tpu.matmul %265, %267, %cst_145 {dimension_numbers = #tpu.dot_dimension_numbers<[1], [0], [0], [1], [0, 0, 1, 1], [], []>} : vector<8x32xf32>, vector<32x64xf32>, vector<8x64xf32> -> vector<8x64xf32>
    %269 = arith.addf %263, %268 : vector<8x64xf32>
    %270 = vector.extract_strided_slice %183 {offsets = [15, 0, 0], sizes = [1, 8, 32], strides = [1, 1, 1]} : vector<16x8x32xf32> to vector<1x8x32xf32>
    %271 = vector.shape_cast %270 : vector<1x8x32xf32> to vector<8x32xf32>
    %c15_146 = arith.constant 15 : index
    %c0_147 = arith.constant 0 : index
    %c0_148 = arith.constant 0 : index
    %272 = vector.load %arg6[%c15_146, %c0_147, %c0_148] : memref<16x32x64xf32, #tpu.memory_space<vmem>>, vector<1x32x64xf32>
    %273 = vector.shape_cast %272 : vector<1x32x64xf32> to vector<32x64xf32>
    %cst_149 = arith.constant dense<0.000000e+00> : vector<8x64xf32>
    %274 = tpu.matmul %271, %273, %cst_149 {dimension_numbers = #tpu.dot_dimension_numbers<[1], [0], [0], [1], [0, 0, 1, 1], [], []>} : vector<8x32xf32>, vector<32x64xf32>, vector<8x64xf32> -> vector<8x64xf32>
    %275 = arith.addf %269, %274 : vector<8x64xf32>
    %276 = arith.addf %206, %229 : vector<8x64xf32>
    %277 = arith.addf %252, %275 : vector<8x64xf32>
    %278 = arith.addf %276, %277 : vector<8x64xf32>
    %c0_150 = arith.constant 0 : index
    %c0_151 = arith.constant 0 : index
    %279 = vector.load %arg7[%c0_150, %c0_151] : memref<1x64xf32, #tpu.memory_space<vmem>>, vector<1x64xf32>
    %280 = vector.broadcast %279 : vector<1x64xf32> to vector<8x64xf32>
    %281 = arith.addf %278, %280 : vector<8x64xf32>
    %cst_152 = arith.constant 0.000000e+00 : f32
    %282 = vector.broadcast %cst_152 : f32 to vector<8x64xf32>
    %283 = arith.maximumf %281, %282 : vector<8x64xf32>
    %c0_153 = arith.constant 0 : index
    %c0_154 = arith.constant 0 : index
    %284 = vector.load %arg8[%c0_153, %c0_154] : memref<64x128xf32, #tpu.memory_space<vmem>>, vector<64x128xf32>
    %cst_155 = arith.constant dense<0.000000e+00> : vector<8x128xf32>
    %285 = tpu.matmul %283, %284, %cst_155 {dimension_numbers = #tpu.dot_dimension_numbers<[1], [0], [0], [1], [0, 0, 1, 1], [], []>} : vector<8x64xf32>, vector<64x128xf32>, vector<8x128xf32> -> vector<8x128xf32>
    %c0_156 = arith.constant 0 : index
    %c0_157 = arith.constant 0 : index
    %286 = vector.load %arg9[%c0_156, %c0_157] : memref<1x128xf32, #tpu.memory_space<vmem>>, vector<1x128xf32>
    %287 = vector.broadcast %286 : vector<1x128xf32> to vector<8x128xf32>
    %288 = arith.addf %285, %287 : vector<8x128xf32>
    %c0_158 = arith.constant 0 : index
    %c0_159 = arith.constant 0 : index
    %289 = vector.load %arg10[%c0_158, %c0_159] : memref<8x128xf32, #tpu.memory_space<vmem>>, vector<8x128xf32>
    tpu.vector_store %arg10[%c0_158, %c0_159], %288 {strides = array<i32>} : memref<8x128xf32, #tpu.memory_space<vmem>>, vector<8x128xf32>,
    return
  }
  func.func @transform_0(%arg0: i32) -> (i32, i32, i32) {
    %c0_i32 = arith.constant 0 : i32
    %c0_i32_0 = arith.constant 0 : i32
    %c0_i32_1 = arith.constant 0 : i32
    return %c0_i32, %arg0, %c0_i32_0 : i32, i32, i32
  }
  func.func @transform_1(%arg0: i32) -> (i32, i32) {
    %c0_i32 = arith.constant 0 : i32
    %c0_i32_0 = arith.constant 0 : i32
    %c0_i32_1 = arith.constant 0 : i32
    return %c0_i32, %c0_i32_0 : i32, i32
  }
  func.func @transform_2(%arg0: i32) -> (i32, i32) {
    %c0_i32 = arith.constant 0 : i32
    %c0_i32_0 = arith.constant 0 : i32
    %c0_i32_1 = arith.constant 0 : i32
    return %c0_i32, %c0_i32_0 : i32, i32
  }
  func.func @transform_3(%arg0: i32) -> (i32, i32, i32) {
    %c0_i32 = arith.constant 0 : i32
    %c0_i32_0 = arith.constant 0 : i32
    %c0_i32_1 = arith.constant 0 : i32
    %c0_i32_2 = arith.constant 0 : i32
    return %c0_i32, %c0_i32_0, %c0_i32_1 : i32, i32, i32
  }
  func.func @transform_4(%arg0: i32) -> (i32, i32) {
    %c0_i32 = arith.constant 0 : i32
    %c0_i32_0 = arith.constant 0 : i32
    %c0_i32_1 = arith.constant 0 : i32
    return %c0_i32, %c0_i32_0 : i32, i32
  }
  func.func @transform_5(%arg0: i32) -> (i32, i32, i32) {
    %c0_i32 = arith.constant 0 : i32
    %c0_i32_0 = arith.constant 0 : i32
    %c0_i32_1 = arith.constant 0 : i32
    %c0_i32_2 = arith.constant 0 : i32
    return %c0_i32, %c0_i32_0, %c0_i32_1 : i32, i32, i32
  }
  func.func @transform_6(%arg0: i32) -> (i32, i32) {
    %c0_i32 = arith.constant 0 : i32
    %c0_i32_0 = arith.constant 0 : i32
    %c0_i32_1 = arith.constant 0 : i32
    return %c0_i32, %c0_i32_0 : i32, i32
  }
  func.func @transform_7(%arg0: i32) -> (i32, i32) {
    %c0_i32 = arith.constant 0 : i32
    %c0_i32_0 = arith.constant 0 : i32
    %c0_i32_1 = arith.constant 0 : i32
    return %c0_i32, %c0_i32_0 : i32, i32
  }
  func.func @transform_8(%arg0: i32) -> (i32, i32) {
    %c0_i32 = arith.constant 0 : i32
    %c0_i32_0 = arith.constant 0 : i32
    %c0_i32_1 = arith.constant 0 : i32
    return %c0_i32, %c0_i32_0 : i32, i32
  }
  func.func @transform_9(%arg0: i32) -> (i32, i32) {
    %c0_i32 = arith.constant 0 : i32
    %c0_i32_0 = arith.constant 0 : i32
    return %arg0, %c0_i32 : i32, i32
  }
}

</mosaic_0001>

<llo_original>
// kernel: network_forward.1
$region0: #{network_forward.1}
  #allocation0 [shape = 'u32[]', space=smem, size = 0x4, offset = 0x4, fixed_abs, tag = 'smem constant byte address 0x4 - core index']
  #allocation1 [shape = 'u32[72,128]{1,0:T(1,128)}', space=vmem, size = 0x9000, scoped, tag = 'internal scratch']
  %s0 = inlined_call_operand.vmem [shape: f32[144,8,128], index: 0, kind: input, shape index: {}]
  %s1 = inlined_call_operand.vmem [shape: f32[128,128], index: 1, kind: input, shape index: {}]
  %s2 = inlined_call_operand.vmem [shape: f32[1,32], index: 2, kind: input, shape index: {}]
  %s3 = inlined_call_operand.vmem [shape: f32[25,32,32], index: 3, kind: input, shape index: {}]
  %s4 = inlined_call_operand.vmem [shape: f32[1,32], index: 4, kind: input, shape index: {}]
  %s5 = inlined_call_operand.vmem [shape: f32[16,32,64], index: 5, kind: input, shape index: {}]
  %s6 = inlined_call_operand.vmem [shape: f32[1,64], index: 6, kind: input, shape index: {}]
  %s7 = inlined_call_operand.vmem [shape: f32[64,128], index: 7, kind: input, shape index: {}]
  %s8 = inlined_call_operand.vmem [shape: f32[1,128], index: 8, kind: input, shape index: {}]
  %s9 = inlined_call_operand.vmem [shape: f32[8,128], index: 9, kind: output, shape index: {}]
  %s10 = sld [smem:[#allocation0]]
  $region46: #{network_forward.1} parent=0
    _
  %s12 = ssub.s32 1, %s10
  %s13 = scalar_select 0, %s12, %s10
  // Predicated region
  $region2: #{network_forward.1} parent=0 // pred_check
    _
  $region3: #{network_forward.1} parent=0 // pred_check_branch
    %15 = sbr.rel (0) target = $region5
  $region4: #{network_forward.1} parent=0 // pred_region
    _
  $region5: #{network_forward.1} parent=0 // pred_fallthru
    _
  // Predicated region
  $region6: #{network_forward.1} parent=0 // pred_check
    _
  $region7: #{network_forward.1} parent=0 // pred_check_branch
    %17 = sbr.rel (0) target = $region9
  $region8: #{network_forward.1} parent=0 // pred_region
    _
  $region9: #{network_forward.1} parent=0 // pred_fallthru
    _
  // Predicated region
  $region10: #{network_forward.1} parent=0 // pred_check
    _
  $region11: #{network_forward.1} parent=0 // pred_check_branch
    %19 = sbr.rel (0) target = $region13
  $region12: #{network_forward.1} parent=0 // pred_region
    _
  $region13: #{network_forward.1} parent=0 // pred_fallthru
    _
  // Predicated region
  $region14: #{network_forward.1} parent=0 // pred_check
    _
  $region15: #{network_forward.1} parent=0 // pred_check_branch
    %21 = sbr.rel (0) target = $region17
  $region16: #{network_forward.1} parent=0 // pred_region
    _
  $region17: #{network_forward.1} parent=0 // pred_fallthru
    _
  // Predicated region
  $region18: #{network_forward.1} parent=0 // pred_check
    _
  $region19: #{network_forward.1} parent=0 // pred_check_branch
    %23 = sbr.rel (0) target = $region21
  $region20: #{network_forward.1} parent=0 // pred_region
    _
  $region21: #{network_forward.1} parent=0 // pred_fallthru
    _
  // Predicated region
  $region22: #{network_forward.1} parent=0 // pred_check
    _
  $region23: #{network_forward.1} parent=0 // pred_check_branch
    %25 = sbr.rel (0) target = $region25
  $region24: #{network_forward.1} parent=0 // pred_region
    _
  $region25: #{network_forward.1} parent=0 // pred_fallthru
    _
  // Predicated region
  $region26: #{network_forward.1} parent=0 // pred_check
    _
  $region27: #{network_forward.1} parent=0 // pred_check_branch
    %27 = sbr.rel (0) target = $region29
  $region28: #{network_forward.1} parent=0 // pred_region
    _
  $region29: #{network_forward.1} parent=0 // pred_fallthru
    _
  // Predicated region
  $region30: #{network_forward.1} parent=0 // pred_check
    _
  $region31: #{network_forward.1} parent=0 // pred_check_branch
    %29 = sbr.rel (0) target = $region33
  $region32: #{network_forward.1} parent=0 // pred_region
    _
  $region33: #{network_forward.1} parent=0 // pred_fallthru
    _
  // Predicated region
  $region34: #{network_forward.1} parent=0 // pred_check
    _
  $region35: #{network_forward.1} parent=0 // pred_check_branch
    %31 = sbr.rel (0) target = $region37
  $region36: #{network_forward.1} parent=0 // pred_region
    _
  $region37: #{network_forward.1} parent=0 // pred_fallthru
    _
  %v32 = vld [vmem:[%s0] sm:$0xff]
  %v33 = vld [vmem:[%s0 + $0x8] sm:$0xff]
  %v34 = vld [vmem:[%s0 + $0x10] sm:$0xff]
  %v35 = vld [vmem:[%s0 + $0x18] sm:$0xff]
  %v36 = vld [vmem:[%s0 + $0x20] sm:$0xff]
  %v37 = vld [vmem:[%s0 + $0x28] sm:$0xff]
  %v38 = vld [vmem:[%s0 + $0x30] sm:$0xff]
  %v39 = vld [vmem:[%s0 + $0x38] sm:$0xff]
  %v40 = vld [vmem:[%s0 + $0x40] sm:$0xff]
  %v41 = vld [vmem:[%s0 + $0x48] sm:$0xff]
  %v42 = vld [vmem:[%s0 + $0x50] sm:$0xff]
  %v43 = vld [vmem:[%s0 + $0x58] sm:$0xff]
  %v44 = vld [vmem:[%s0 + $0x60] sm:$0xff]
  %v45 = vld [vmem:[%s0 + $0x68] sm:$0xff]
  %v46 = vld [vmem:[%s0 + $0x70] sm:$0xff]
  %v47 = vld [vmem:[%s0 + $0x78] sm:$0xff]
  %v48 = vld [vmem:[%s0 + $0x80] sm:$0xff]
  %v49 = vld [vmem:[%s0 + $0x88] sm:$0xff]
  %v50 = vld [vmem:[%s0 + $0x90] sm:$0xff]
  %v51 = vld [vmem:[%s0 + $0x98] sm:$0xff]
  %v52 = vld [vmem:[%s0 + $0xa0] sm:$0xff]
  %v53 = vld [vmem:[%s0 + $0xa8] sm:$0xff]
  %v54 = vld [vmem:[%s0 + $0xb0] sm:$0xff]
  %v55 = vld [vmem:[%s0 + $0xb8] sm:$0xff]
  %v56 = vld [vmem:[%s0 + $0xc0] sm:$0xff]
  %v57 = vld [vmem:[%s0 + $0xc8] sm:$0xff]
  %v58 = vld [vmem:[%s0 + $0xd0] sm:$0xff]
  %v59 = vld [vmem:[%s0 + $0xd8] sm:$0xff]
  %v60 = vld [vmem:[%s0 + $0xe0] sm:$0xff]
  %v61 = vld [vmem:[%s0 + $0xe8] sm:$0xff]
  %v62 = vld [vmem:[%s0 + $0xf0] sm:$0xff]
  %v63 = vld [vmem:[%s0 + $0xf8] sm:$0xff]
  %v64 = vld [vmem:[%s0 + $0x100] sm:$0xff]
  %v65 = vld [vmem:[%s0 + $0x108] sm:$0xff]
  %v66 = vld [vmem:[%s0 + $0x110] sm:$0xff]
  %v67 = vld [vmem:[%s0 + $0x118] sm:$0xff]
  %v68 = vld [vmem:[%s0 + $0x120] sm:$0xff]
  %v69 = vld [vmem:[%s0 + $0x128] sm:$0xff]
  %v70 = vld [vmem:[%s0 + $0x130] sm:$0xff]
  %v71 = vld [vmem:[%s0 + $0x138] sm:$0xff]
  %v72 = vld [vmem:[%s0 + $0x140] sm:$0xff]
  %v73 = vld [vmem:[%s0 + $0x148] sm:$0xff]
  %v74 = vld [vmem:[%s0 + $0x150] sm:$0xff]
  %v75 = vld [vmem:[%s0 + $0x158] sm:$0xff]
  %v76 = vld [vmem:[%s0 + $0x160] sm:$0xff]
  %v77 = vld [vmem:[%s0 + $0x168] sm:$0xff]
  %v78 = vld [vmem:[%s0 + $0x170] sm:$0xff]
  %v79 = vld [vmem:[%s0 + $0x178] sm:$0xff]
  %v80 = vld [vmem:[%s0 + $0x180] sm:$0xff]
  %v81 = vld [vmem:[%s0 + $0x188] sm:$0xff]
  %v82 = vld [vmem:[%s0 + $0x190] sm:$0xff]
  %v83 = vld [vmem:[%s0 + $0x198] sm:$0xff]
  %v84 = vld [vmem:[%s0 + $0x1a0] sm:$0xff]
  %v85 = vld [vmem:[%s0 + $0x1a8] sm:$0xff]
  %v86 = vld [vmem:[%s0 + $0x1b0] sm:$0xff]
  %v87 = vld [vmem:[%s0 + $0x1b8] sm:$0xff]
  %v88 = vld [vmem:[%s0 + $0x1c0] sm:$0xff]
  %v89 = vld [vmem:[%s0 + $0x1c8] sm:$0xff]
  %v90 = vld [vmem:[%s0 + $0x1d0] sm:$0xff]
  %v91 = vld [vmem:[%s0 + $0x1d8] sm:$0xff]
  %v92 = vld [vmem:[%s0 + $0x1e0] sm:$0xff]
  %v93 = vld [vmem:[%s0 + $0x1e8] sm:$0xff]
  %v94 = vld [vmem:[%s0 + $0x1f0] sm:$0xff]
  %v95 = vld [vmem:[%s0 + $0x1f8] sm:$0xff]
  %v96 = vld [vmem:[%s0 + $0x200] sm:$0xff]
  %v97 = vld [vmem:[%s0 + $0x208] sm:$0xff]
  %v98 = vld [vmem:[%s0 + $0x210] sm:$0xff]
  %v99 = vld [vmem:[%s0 + $0x218] sm:$0xff]
  %v100 = vld [vmem:[%s0 + $0x220] sm:$0xff]
  %v101 = vld [vmem:[%s0 + $0x228] sm:$0xff]
  %v102 = vld [vmem:[%s0 + $0x230] sm:$0xff]
  %v103 = vld [vmem:[%s0 + $0x238] sm:$0xff]
  %v104 = vld [vmem:[%s0 + $0x240] sm:$0xff]
  %v105 = vld [vmem:[%s0 + $0x248] sm:$0xff]
  %v106 = vld [vmem:[%s0 + $0x250] sm:$0xff]
  %v107 = vld [vmem:[%s0 + $0x258] sm:$0xff]
  %v108 = vld [vmem:[%s0 + $0x260] sm:$0xff]
  %v109 = vld [vmem:[%s0 + $0x268] sm:$0xff]
  %v110 = vld [vmem:[%s0 + $0x270] sm:$0xff]
  %v111 = vld [vmem:[%s0 + $0x278] sm:$0xff]
  %v112 = vld [vmem:[%s0 + $0x280] sm:$0xff]
  %v113 = vld [vmem:[%s0 + $0x288] sm:$0xff]
  %v114 = vld [vmem:[%s0 + $0x290] sm:$0xff]
  %v115 = vld [vmem:[%s0 + $0x298] sm:$0xff]
  %v116 = vld [vmem:[%s0 + $0x2a0] sm:$0xff]
  %v117 = vld [vmem:[%s0 + $0x2a8] sm:$0xff]
  %v118 = vld [vmem:[%s0 + $0x2b0] sm:$0xff]
  %v119 = vld [vmem:[%s0 + $0x2b8] sm:$0xff]
  %v120 = vld [vmem:[%s0 + $0x2c0] sm:$0xff]
  %v121 = vld [vmem:[%s0 + $0x2c8] sm:$0xff]
  %v122 = vld [vmem:[%s0 + $0x2d0] sm:$0xff]
  %v123 = vld [vmem:[%s0 + $0x2d8] sm:$0xff]
  %v124 = vld [vmem:[%s0 + $0x2e0] sm:$0xff]
  %v125 = vld [vmem:[%s0 + $0x2e8] sm:$0xff]
  %v126 = vld [vmem:[%s0 + $0x2f0] sm:$0xff]
  %v127 = vld [vmem:[%s0 + $0x2f8] sm:$0xff]
  %v128 = vld [vmem:[%s0 + $0x300] sm:$0xff]
  %v129 = vld [vmem:[%s0 + $0x308] sm:$0xff]
  %v130 = vld [vmem:[%s0 + $0x310] sm:$0xff]
  %v131 = vld [vmem:[%s0 + $0x318] sm:$0xff]
  %v132 = vld [vmem:[%s0 + $0x320] sm:$0xff]
  %v133 = vld [vmem:[%s0 + $0x328] sm:$0xff]
  %v134 = vld [vmem:[%s0 + $0x330] sm:$0xff]
  %v135 = vld [vmem:[%s0 + $0x338] sm:$0xff]
  %v136 = vld [vmem:[%s0 + $0x340] sm:$0xff]
  %v137 = vld [vmem:[%s0 + $0x348] sm:$0xff]
  %v138 = vld [vmem:[%s0 + $0x350] sm:$0xff]
  %v139 = vld [vmem:[%s0 + $0x358] sm:$0xff]
  %v140 = vld [vmem:[%s0 + $0x360] sm:$0xff]
  %v141 = vld [vmem:[%s0 + $0x368] sm:$0xff]
  %v142 = vld [vmem:[%s0 + $0x370] sm:$0xff]
  %v143 = vld [vmem:[%s0 + $0x378] sm:$0xff]
  %v144 = vld [vmem:[%s0 + $0x380] sm:$0xff]
  %v145 = vld [vmem:[%s0 + $0x388] sm:$0xff]
  %v146 = vld [vmem:[%s0 + $0x390] sm:$0xff]
  %v147 = vld [vmem:[%s0 + $0x398] sm:$0xff]
  %v148 = vld [vmem:[%s0 + $0x3a0] sm:$0xff]
  %v149 = vld [vmem:[%s0 + $0x3a8] sm:$0xff]
  %v150 = vld [vmem:[%s0 + $0x3b0] sm:$0xff]
  %v151 = vld [vmem:[%s0 + $0x3b8] sm:$0xff]
  %v152 = vld [vmem:[%s0 + $0x3c0] sm:$0xff]
  %v153 = vld [vmem:[%s0 + $0x3c8] sm:$0xff]
  %v154 = vld [vmem:[%s0 + $0x3d0] sm:$0xff]
  %v155 = vld [vmem:[%s0 + $0x3d8] sm:$0xff]
  %v156 = vld [vmem:[%s0 + $0x3e0] sm:$0xff]
  %v157 = vld [vmem:[%s0 + $0x3e8] sm:$0xff]
  %v158 = vld [vmem:[%s0 + $0x3f0] sm:$0xff]
  %v159 = vld [vmem:[%s0 + $0x3f8] sm:$0xff]
  %v160 = vld [vmem:[%s0 + $0x400] sm:$0xff]
  %v161 = vld [vmem:[%s0 + $0x408] sm:$0xff]
  %v162 = vld [vmem:[%s0 + $0x410] sm:$0xff]
  %v163 = vld [vmem:[%s0 + $0x418] sm:$0xff]
  %v164 = vld [vmem:[%s0 + $0x420] sm:$0xff]
  %v165 = vld [vmem:[%s0 + $0x428] sm:$0xff]
  %v166 = vld [vmem:[%s0 + $0x430] sm:$0xff]
  %v167 = vld [vmem:[%s0 + $0x438] sm:$0xff]
  %v168 = vld [vmem:[%s0 + $0x440] sm:$0xff]
  %v169 = vld [vmem:[%s0 + $0x448] sm:$0xff]
  %v170 = vld [vmem:[%s0 + $0x450] sm:$0xff]
  %v171 = vld [vmem:[%s0 + $0x458] sm:$0xff]
  %v172 = vld [vmem:[%s0 + $0x460] sm:$0xff]
  %v173 = vld [vmem:[%s0 + $0x468] sm:$0xff]
  %v174 = vld [vmem:[%s0 + $0x470] sm:$0xff]
  %v175 = vld [vmem:[%s0 + $0x478] sm:$0xff]
  %v176 = vld [vmem:[%s1] sm:$0xff]
  %v177 = vld [vmem:[%s1 + $0x8] sm:$0xff]
  %v178 = vld [vmem:[%s1 + $0x10] sm:$0xff]
  %v179 = vld [vmem:[%s1 + $0x18] sm:$0xff]
  %v180 = vld [vmem:[%s1 + $0x20] sm:$0xff]
  %v181 = vld [vmem:[%s1 + $0x28] sm:$0xff]
  %v182 = vld [vmem:[%s1 + $0x30] sm:$0xff]
  %v183 = vld [vmem:[%s1 + $0x38] sm:$0xff]
  %v184 = vld [vmem:[%s1 + $0x40] sm:$0xff]
  %v185 = vld [vmem:[%s1 + $0x48] sm:$0xff]
  %v186 = vld [vmem:[%s1 + $0x50] sm:$0xff]
  %v187 = vld [vmem:[%s1 + $0x58] sm:$0xff]
  %v188 = vld [vmem:[%s1 + $0x60] sm:$0xff]
  %v189 = vld [vmem:[%s1 + $0x68] sm:$0xff]
  %v190 = vld [vmem:[%s1 + $0x70] sm:$0xff]
  %v191 = vld [vmem:[%s1 + $0x78] sm:$0xff]
  %192 = vmatpush.msra.mxu0 %v191
  %193 = vmatpush.msra.mxu0 %v190
  %194 = vmatpush.msra.mxu0 %v189
  %195 = vmatpush.msra.mxu0 %v188
  %196 = vmatpush.msra.mxu0 %v187
  %197 = vmatpush.msra.mxu0 %v186
  %198 = vmatpush.msra.mxu0 %v185
  %199 = vmatpush.msra.mxu0 %v184
  %200 = vmatpush.msra.mxu0 %v183
  %201 = vmatpush.msra.mxu0 %v182
  %202 = vmatpush.msra.mxu0 %v181
  %203 = vmatpush.msra.mxu0 %v180
  %204 = vmatpush.msra.mxu0 %v179
  %205 = vmatpush.msra.mxu0 %v178
  %206 = vmatpush.msra.mxu0 %v177
  %207 = vmatpush.msra.mxu0 %v176
  %208 = vmatmul.f32.gmra.mxu0 %v32
  %v209 = vpop.f32.mrf.mxu0
  %v210 = vadd.f32 0.0, %v209
  %211 = vmatmul.f32.gmra.mxu0 %v33
  %v212 = vpop.f32.mrf.mxu0
  %v213 = vadd.f32 0.0, %v212
  %214 = vmatmul.f32.gmra.mxu0 %v34
  %v215 = vpop.f32.mrf.mxu0
  %v216 = vadd.f32 0.0, %v215
  %217 = vmatmul.f32.gmra.mxu0 %v35
  %v218 = vpop.f32.mrf.mxu0
  %v219 = vadd.f32 0.0, %v218
  %220 = vmatmul.f32.gmra.mxu0 %v36
  %v221 = vpop.f32.mrf.mxu0
  %v222 = vadd.f32 0.0, %v221
  %223 = vmatmul.f32.gmra.mxu0 %v37
  %v224 = vpop.f32.mrf.mxu0
  %v225 = vadd.f32 0.0, %v224
  %226 = vmatmul.f32.gmra.mxu0 %v38
  %v227 = vpop.f32.mrf.mxu0
  %v228 = vadd.f32 0.0, %v227
  %229 = vmatmul.f32.gmra.mxu0 %v39
  %v230 = vpop.f32.mrf.mxu0
  %v231 = vadd.f32 0.0, %v230
  %232 = vmatmul.f32.gmra.mxu0 %v40
  %v233 = vpop.f32.mrf.mxu0
  %v234 = vadd.f32 0.0, %v233
  %235 = vmatmul.f32.gmra.mxu0 %v41
  %v236 = vpop.f32.mrf.mxu0
  %v237 = vadd.f32 0.0, %v236
  %238 = vmatmul.f32.gmra.mxu0 %v42
  %v239 = vpop.f32.mrf.mxu0
  %v240 = vadd.f32 0.0, %v239
  %241 = vmatmul.f32.gmra.mxu0 %v43
  %v242 = vpop.f32.mrf.mxu0
  %v243 = vadd.f32 0.0, %v242
  %244 = vmatmul.f32.gmra.mxu0 %v44
  %v245 = vpop.f32.mrf.mxu0
  %v246 = vadd.f32 0.0, %v245
  %247 = vmatmul.f32.gmra.mxu0 %v45
  %v248 = vpop.f32.mrf.mxu0
  %v249 = vadd.f32 0.0, %v248
  %250 = vmatmul.f32.gmra.mxu0 %v46
  %v251 = vpop.f32.mrf.mxu0
  %v252 = vadd.f32 0.0, %v251
  %253 = vmatmul.f32.gmra.mxu0 %v47
  %v254 = vpop.f32.mrf.mxu0
  %v255 = vadd.f32 0.0, %v254
  %256 = vmatmul.f32.gmra.mxu0 %v48
  %v257 = vpop.f32.mrf.mxu0
  %v258 = vadd.f32 0.0, %v257
  %259 = vmatmul.f32.gmra.mxu0 %v49
  %v260 = vpop.f32.mrf.mxu0
  %v261 = vadd.f32 0.0, %v260
  %262 = vmatmul.f32.gmra.mxu0 %v50
  %v263 = vpop.f32.mrf.mxu0
  %v264 = vadd.f32 0.0, %v263
  %265 = vmatmul.f32.gmra.mxu0 %v51
  %v266 = vpop.f32.mrf.mxu0
  %v267 = vadd.f32 0.0, %v266
  %268 = vmatmul.f32.gmra.mxu0 %v52
  %v269 = vpop.f32.mrf.mxu0
  %v270 = vadd.f32 0.0, %v269
  %271 = vmatmul.f32.gmra.mxu0 %v53
  %v272 = vpop.f32.mrf.mxu0
  %v273 = vadd.f32 0.0, %v272
  %274 = vmatmul.f32.gmra.mxu0 %v54
  %v275 = vpop.f32.mrf.mxu0
  %v276 = vadd.f32 0.0, %v275
  %277 = vmatmul.f32.gmra.mxu0 %v55
  %v278 = vpop.f32.mrf.mxu0
  %v279 = vadd.f32 0.0, %v278
  %280 = vmatmul.f32.gmra.mxu0 %v56
  %v281 = vpop.f32.mrf.mxu0
  %v282 = vadd.f32 0.0, %v281
  %283 = vmatmul.f32.gmra.mxu0 %v57
  %v284 = vpop.f32.mrf.mxu0
  %v285 = vadd.f32 0.0, %v284
  %286 = vmatmul.f32.gmra.mxu0 %v58
  %v287 = vpop.f32.mrf.mxu0
  %v288 = vadd.f32 0.0, %v287
  %289 = vmatmul.f32.gmra.mxu0 %v59
  %v290 = vpop.f32.mrf.mxu0
  %v291 = vadd.f32 0.0, %v290
  %292 = vmatmul.f32.gmra.mxu0 %v60
  %v293 = vpop.f32.mrf.mxu0
  %v294 = vadd.f32 0.0, %v293
  %295 = vmatmul.f32.gmra.mxu0 %v61
  %v296 = vpop.f32.mrf.mxu0
  %v297 = vadd.f32 0.0, %v296
  %298 = vmatmul.f32.gmra.mxu0 %v62
  %v299 = vpop.f32.mrf.mxu0
  %v300 = vadd.f32 0.0, %v299
  %301 = vmatmul.f32.gmra.mxu0 %v63
  %v302 = vpop.f32.mrf.mxu0
  %v303 = vadd.f32 0.0, %v302
  %304 = vmatmul.f32.gmra.mxu0 %v64
  %v305 = vpop.f32.mrf.mxu0
  %v306 = vadd.f32 0.0, %v305
  %307 = vmatmul.f32.gmra.mxu0 %v65
  %v308 = vpop.f32.mrf.mxu0
  %v309 = vadd.f32 0.0, %v308
  %310 = vmatmul.f32.gmra.mxu0 %v66
  %v311 = vpop.f32.mrf.mxu0
  %v312 = vadd.f32 0.0, %v311
  %313 = vmatmul.f32.gmra.mxu0 %v67
  %v314 = vpop.f32.mrf.mxu0
  %v315 = vadd.f32 0.0, %v314
  %316 = vmatmul.f32.gmra.mxu0 %v68
  %v317 = vpop.f32.mrf.mxu0
  %v318 = vadd.f32 0.0, %v317
  %319 = vmatmul.f32.gmra.mxu0 %v69
  %v320 = vpop.f32.mrf.mxu0
  %v321 = vadd.f32 0.0, %v320
  %322 = vmatmul.f32.gmra.mxu0 %v70
  %v323 = vpop.f32.mrf.mxu0
  %v324 = vadd.f32 0.0, %v323
  %325 = vmatmul.f32.gmra.mxu0 %v71
  %v326 = vpop.f32.mrf.mxu0
  %v327 = vadd.f32 0.0, %v326
  %328 = vmatmul.f32.gmra.mxu0 %v72
  %v329 = vpop.f32.mrf.mxu0
  %v330 = vadd.f32 0.0, %v329
  %331 = vmatmul.f32.gmra.mxu0 %v73
  %v332 = vpop.f32.mrf.mxu0
  %v333 = vadd.f32 0.0, %v332
  %334 = vmatmul.f32.gmra.mxu0 %v74
  %v335 = vpop.f32.mrf.mxu0
  %v336 = vadd.f32 0.0, %v335
  %337 = vmatmul.f32.gmra.mxu0 %v75
  %v338 = vpop.f32.mrf.mxu0
  %v339 = vadd.f32 0.0, %v338
  %340 = vmatmul.f32.gmra.mxu0 %v76
  %v341 = vpop.f32.mrf.mxu0
  %v342 = vadd.f32 0.0, %v341
  %343 = vmatmul.f32.gmra.mxu0 %v77
  %v344 = vpop.f32.mrf.mxu0
  %v345 = vadd.f32 0.0, %v344
  %346 = vmatmul.f32.gmra.mxu0 %v78
  %v347 = vpop.f32.mrf.mxu0
  %v348 = vadd.f32 0.0, %v347
  %349 = vmatmul.f32.gmra.mxu0 %v79
  %v350 = vpop.f32.mrf.mxu0
  %v351 = vadd.f32 0.0, %v350
  %352 = vmatmul.f32.gmra.mxu0 %v80
  %v353 = vpop.f32.mrf.mxu0
  %v354 = vadd.f32 0.0, %v353
  %355 = vmatmul.f32.gmra.mxu0 %v81
  %v356 = vpop.f32.mrf.mxu0
  %v357 = vadd.f32 0.0, %v356
  %358 = vmatmul.f32.gmra.mxu0 %v82
  %v359 = vpop.f32.mrf.mxu0
  %v360 = vadd.f32 0.0, %v359
  %361 = vmatmul.f32.gmra.mxu0 %v83
  %v362 = vpop.f32.mrf.mxu0
  %v363 = vadd.f32 0.0, %v362
  %364 = vmatmul.f32.gmra.mxu0 %v84
  %v365 = vpop.f32.mrf.mxu0
  %v366 = vadd.f32 0.0, %v365
  %367 = vmatmul.f32.gmra.mxu0 %v85
  %v368 = vpop.f32.mrf.mxu0
  %v369 = vadd.f32 0.0, %v368
  %370 = vmatmul.f32.gmra.mxu0 %v86
  %v371 = vpop.f32.mrf.mxu0
  %v372 = vadd.f32 0.0, %v371
  %373 = vmatmul.f32.gmra.mxu0 %v87
  %v374 = vpop.f32.mrf.mxu0
  %v375 = vadd.f32 0.0, %v374
  %376 = vmatmul.f32.gmra.mxu0 %v88
  %v377 = vpop.f32.mrf.mxu0
  %v378 = vadd.f32 0.0, %v377
  %379 = vmatmul.f32.gmra.mxu0 %v89
  %v380 = vpop.f32.mrf.mxu0
  %v381 = vadd.f32 0.0, %v380
  %382 = vmatmul.f32.gmra.mxu0 %v90
  %v383 = vpop.f32.mrf.mxu0
  %v384 = vadd.f32 0.0, %v383
  %385 = vmatmul.f32.gmra.mxu0 %v91
  %v386 = vpop.f32.mrf.mxu0
  %v387 = vadd.f32 0.0, %v386
  %388 = vmatmul.f32.gmra.mxu0 %v92
  %v389 = vpop.f32.mrf.mxu0
  %v390 = vadd.f32 0.0, %v389
  %391 = vmatmul.f32.gmra.mxu0 %v93
  %v392 = vpop.f32.mrf.mxu0
  %v393 = vadd.f32 0.0, %v392
  %394 = vmatmul.f32.gmra.mxu0 %v94
  %v395 = vpop.f32.mrf.mxu0
  %v396 = vadd.f32 0.0, %v395
  %397 = vmatmul.f32.gmra.mxu0 %v95
  %v398 = vpop.f32.mrf.mxu0
  %v399 = vadd.f32 0.0, %v398
  %400 = vmatmul.f32.gmra.mxu0 %v96
  %v401 = vpop.f32.mrf.mxu0
  %v402 = vadd.f32 0.0, %v401
  %403 = vmatmul.f32.gmra.mxu0 %v97
  %v404 = vpop.f32.mrf.mxu0
  %v405 = vadd.f32 0.0, %v404
  %406 = vmatmul.f32.gmra.mxu0 %v98
  %v407 = vpop.f32.mrf.mxu0
  %v408 = vadd.f32 0.0, %v407
  %409 = vmatmul.f32.gmra.mxu0 %v99
  %v410 = vpop.f32.mrf.mxu0
  %v411 = vadd.f32 0.0, %v410
  %412 = vmatmul.f32.gmra.mxu0 %v100
  %v413 = vpop.f32.mrf.mxu0
  %v414 = vadd.f32 0.0, %v413
  %415 = vmatmul.f32.gmra.mxu0 %v101
  %v416 = vpop.f32.mrf.mxu0
  %v417 = vadd.f32 0.0, %v416
  %418 = vmatmul.f32.gmra.mxu0 %v102
  %v419 = vpop.f32.mrf.mxu0
  %v420 = vadd.f32 0.0, %v419
  %421 = vmatmul.f32.gmra.mxu0 %v103
  %v422 = vpop.f32.mrf.mxu0
  %v423 = vadd.f32 0.0, %v422
  %424 = vmatmul.f32.gmra.mxu0 %v104
  %v425 = vpop.f32.mrf.mxu0
  %v426 = vadd.f32 0.0, %v425
  %427 = vmatmul.f32.gmra.mxu0 %v105
  %v428 = vpop.f32.mrf.mxu0
  %v429 = vadd.f32 0.0, %v428
  %430 = vmatmul.f32.gmra.mxu0 %v106
  %v431 = vpop.f32.mrf.mxu0
  %v432 = vadd.f32 0.0, %v431
  %433 = vmatmul.f32.gmra.mxu0 %v107
  %v434 = vpop.f32.mrf.mxu0
  %v435 = vadd.f32 0.0, %v434
  %436 = vmatmul.f32.gmra.mxu0 %v108
  %v437 = vpop.f32.mrf.mxu0
  %v438 = vadd.f32 0.0, %v437
  %439 = vmatmul.f32.gmra.mxu0 %v109
  %v440 = vpop.f32.mrf.mxu0
  %v441 = vadd.f32 0.0, %v440
  %442 = vmatmul.f32.gmra.mxu0 %v110
  %v443 = vpop.f32.mrf.mxu0
  %v444 = vadd.f32 0.0, %v443
  %445 = vmatmul.f32.gmra.mxu0 %v111
  %v446 = vpop.f32.mrf.mxu0
  %v447 = vadd.f32 0.0, %v446
  %448 = vmatmul.f32.gmra.mxu0 %v112
  %v449 = vpop.f32.mrf.mxu0
  %v450 = vadd.f32 0.0, %v449
  %451 = vmatmul.f32.gmra.mxu0 %v113
  %v452 = vpop.f32.mrf.mxu0
  %v453 = vadd.f32 0.0, %v452
  %454 = vmatmul.f32.gmra.mxu0 %v114
  %v455 = vpop.f32.mrf.mxu0
  %v456 = vadd.f32 0.0, %v455
  %457 = vmatmul.f32.gmra.mxu0 %v115
  %v458 = vpop.f32.mrf.mxu0
  %v459 = vadd.f32 0.0, %v458
  %460 = vmatmul.f32.gmra.mxu0 %v116
  %v461 = vpop.f32.mrf.mxu0
  %v462 = vadd.f32 0.0, %v461
  %463 = vmatmul.f32.gmra.mxu0 %v117
  %v464 = vpop.f32.mrf.mxu0
  %v465 = vadd.f32 0.0, %v464
  %466 = vmatmul.f32.gmra.mxu0 %v118
  %v467 = vpop.f32.mrf.mxu0
  %v468 = vadd.f32 0.0, %v467
  %469 = vmatmul.f32.gmra.mxu0 %v119
  %v470 = vpop.f32.mrf.mxu0
  %v471 = vadd.f32 0.0, %v470
  %472 = vmatmul.f32.gmra.mxu0 %v120
  %v473 = vpop.f32.mrf.mxu0
  %v474 = vadd.f32 0.0, %v473
  %475 = vmatmul.f32.gmra.mxu0 %v121
  %v476 = vpop.f32.mrf.mxu0
  %v477 = vadd.f32 0.0, %v476
  %478 = vmatmul.f32.gmra.mxu0 %v122
  %v479 = vpop.f32.mrf.mxu0
  %v480 = vadd.f32 0.0, %v479
  %481 = vmatmul.f32.gmra.mxu0 %v123
  %v482 = vpop.f32.mrf.mxu0
  %v483 = vadd.f32 0.0, %v482
  %484 = vmatmul.f32.gmra.mxu0 %v124
  %v485 = vpop.f32.mrf.mxu0
  %v486 = vadd.f32 0.0, %v485
  %487 = vmatmul.f32.gmra.mxu0 %v125
  %v488 = vpop.f32.mrf.mxu0
  %v489 = vadd.f32 0.0, %v488
  %490 = vmatmul.f32.gmra.mxu0 %v126
  %v491 = vpop.f32.mrf.mxu0
  %v492 = vadd.f32 0.0, %v491
  %493 = vmatmul.f32.gmra.mxu0 %v127
  %v494 = vpop.f32.mrf.mxu0
  %v495 = vadd.f32 0.0, %v494
  %496 = vmatmul.f32.gmra.mxu0 %v128
  %v497 = vpop.f32.mrf.mxu0
  %v498 = vadd.f32 0.0, %v497
  %499 = vmatmul.f32.gmra.mxu0 %v129
  %v500 = vpop.f32.mrf.mxu0
  %v501 = vadd.f32 0.0, %v500
  %502 = vmatmul.f32.gmra.mxu0 %v130
  %v503 = vpop.f32.mrf.mxu0
  %v504 = vadd.f32 0.0, %v503
  %505 = vmatmul.f32.gmra.mxu0 %v131
  %v506 = vpop.f32.mrf.mxu0
  %v507 = vadd.f32 0.0, %v506
  %508 = vmatmul.f32.gmra.mxu0 %v132
  %v509 = vpop.f32.mrf.mxu0
  %v510 = vadd.f32 0.0, %v509
  %511 = vmatmul.f32.gmra.mxu0 %v133
  %v512 = vpop.f32.mrf.mxu0
  %v513 = vadd.f32 0.0, %v512
  %514 = vmatmul.f32.gmra.mxu0 %v134
  %v515 = vpop.f32.mrf.mxu0
  %v516 = vadd.f32 0.0, %v515
  %517 = vmatmul.f32.gmra.mxu0 %v135
  %v518 = vpop.f32.mrf.mxu0
  %v519 = vadd.f32 0.0, %v518
  %520 = vmatmul.f32.gmra.mxu0 %v136
  %v521 = vpop.f32.mrf.mxu0
  %v522 = vadd.f32 0.0, %v521
  %523 = vmatmul.f32.gmra.mxu0 %v137
  %v524 = vpop.f32.mrf.mxu0
  %v525 = vadd.f32 0.0, %v524
  %526 = vmatmul.f32.gmra.mxu0 %v138
  %v527 = vpop.f32.mrf.mxu0
  %v528 = vadd.f32 0.0, %v527
  %529 = vmatmul.f32.gmra.mxu0 %v139
  %v530 = vpop.f32.mrf.mxu0
  %v531 = vadd.f32 0.0, %v530
  %532 = vmatmul.f32.gmra.mxu0 %v140
  %v533 = vpop.f32.mrf.mxu0
  %v534 = vadd.f32 0.0, %v533
  %535 = vmatmul.f32.gmra.mxu0 %v141
  %v536 = vpop.f32.mrf.mxu0
  %v537 = vadd.f32 0.0, %v536
  %538 = vmatmul.f32.gmra.mxu0 %v142
  %v539 = vpop.f32.mrf.mxu0
  %v540 = vadd.f32 0.0, %v539
  %541 = vmatmul.f32.gmra.mxu0 %v143
  %v542 = vpop.f32.mrf.mxu0
  %v543 = vadd.f32 0.0, %v542
  %544 = vmatmul.f32.gmra.mxu0 %v144
  %v545 = vpop.f32.mrf.mxu0
  %v546 = vadd.f32 0.0, %v545
  %547 = vmatmul.f32.gmra.mxu0 %v145
  %v548 = vpop.f32.mrf.mxu0
  %v549 = vadd.f32 0.0, %v548
  %550 = vmatmul.f32.gmra.mxu0 %v146
  %v551 = vpop.f32.mrf.mxu0
  %v552 = vadd.f32 0.0, %v551
  %553 = vmatmul.f32.gmra.mxu0 %v147
  %v554 = vpop.f32.mrf.mxu0
  %v555 = vadd.f32 0.0, %v554
  %556 = vmatmul.f32.gmra.mxu0 %v148
  %v557 = vpop.f32.mrf.mxu0
  %v558 = vadd.f32 0.0, %v557
  %559 = vmatmul.f32.gmra.mxu0 %v149
  %v560 = vpop.f32.mrf.mxu0
  %v561 = vadd.f32 0.0, %v560
  %562 = vmatmul.f32.gmra.mxu0 %v150
  %v563 = vpop.f32.mrf.mxu0
  %v564 = vadd.f32 0.0, %v563
  %565 = vmatmul.f32.gmra.mxu0 %v151
  %v566 = vpop.f32.mrf.mxu0
  %v567 = vadd.f32 0.0, %v566
  %568 = vmatmul.f32.gmra.mxu0 %v152
  %v569 = vpop.f32.mrf.mxu0
  %v570 = vadd.f32 0.0, %v569
  %571 = vmatmul.f32.gmra.mxu0 %v153
  %v572 = vpop.f32.mrf.mxu0
  %v573 = vadd.f32 0.0, %v572
  %574 = vmatmul.f32.gmra.mxu0 %v154
  %v575 = vpop.f32.mrf.mxu0
  %v576 = vadd.f32 0.0, %v575
  %577 = vmatmul.f32.gmra.mxu0 %v155
  %v578 = vpop.f32.mrf.mxu0
  %v579 = vadd.f32 0.0, %v578
  %580 = vmatmul.f32.gmra.mxu0 %v156
  %v581 = vpop.f32.mrf.mxu0
  %v582 = vadd.f32 0.0, %v581
  %583 = vmatmul.f32.gmra.mxu0 %v157
  %v584 = vpop.f32.mrf.mxu0
  %v585 = vadd.f32 0.0, %v584
  %586 = vmatmul.f32.gmra.mxu0 %v158
  %v587 = vpop.f32.mrf.mxu0
  %v588 = vadd.f32 0.0, %v587
  %589 = vmatmul.f32.gmra.mxu0 %v159
  %v590 = vpop.f32.mrf.mxu0
  %v591 = vadd.f32 0.0, %v590
  %592 = vmatmul.f32.gmra.mxu0 %v160
  %v593 = vpop.f32.mrf.mxu0
  %v594 = vadd.f32 0.0, %v593
  %595 = vmatmul.f32.gmra.mxu0 %v161
  %v596 = vpop.f32.mrf.mxu0
  %v597 = vadd.f32 0.0, %v596
  %598 = vmatmul.f32.gmra.mxu0 %v162
  %v599 = vpop.f32.mrf.mxu0
  %v600 = vadd.f32 0.0, %v599
  %601 = vmatmul.f32.gmra.mxu0 %v163
  %v602 = vpop.f32.mrf.mxu0
  %v603 = vadd.f32 0.0, %v602
  %604 = vmatmul.f32.gmra.mxu0 %v164
  %v605 = vpop.f32.mrf.mxu0
  %v606 = vadd.f32 0.0, %v605
  %607 = vmatmul.f32.gmra.mxu0 %v165
  %v608 = vpop.f32.mrf.mxu0
  %v609 = vadd.f32 0.0, %v608
  %610 = vmatmul.f32.gmra.mxu0 %v166
  %v611 = vpop.f32.mrf.mxu0
  %v612 = vadd.f32 0.0, %v611
  %613 = vmatmul.f32.gmra.mxu0 %v167
  %v614 = vpop.f32.mrf.mxu0
  %v615 = vadd.f32 0.0, %v614
  %616 = vmatmul.f32.gmra.mxu0 %v168
  %v617 = vpop.f32.mrf.mxu0
  %v618 = vadd.f32 0.0, %v617
  %619 = vmatmul.f32.gmra.mxu0 %v169
  %v620 = vpop.f32.mrf.mxu0
  %v621 = vadd.f32 0.0, %v620
  %622 = vmatmul.f32.gmra.mxu0 %v170
  %v623 = vpop.f32.mrf.mxu0
  %v624 = vadd.f32 0.0, %v623
  %625 = vmatmul.f32.gmra.mxu0 %v171
  %v626 = vpop.f32.mrf.mxu0
  %v627 = vadd.f32 0.0, %v626
  %628 = vmatmul.f32.gmra.mxu0 %v172
  %v629 = vpop.f32.mrf.mxu0
  %v630 = vadd.f32 0.0, %v629
  %631 = vmatmul.f32.gmra.mxu0 %v173
  %v632 = vpop.f32.mrf.mxu0
  %v633 = vadd.f32 0.0, %v632
  %634 = vmatmul.f32.gmra.mxu0 %v174
  %v635 = vpop.f32.mrf.mxu0
  %v636 = vadd.f32 0.0, %v635
  %637 = vmatmul.f32.gmra.mxu0 %v175
  %v638 = vpop.f32.mrf.mxu0
  %v639 = vadd.f32 0.0, %v638
  %640 = vdwg.mxu0
  %785 = vrot.lane.b32.xlu0 %v210, 96
  %v786 = vpop.permute.xlu0 %785
  %787 = vrot.lane.b32.xlu0 %v213, 96
  %v788 = vpop.permute.xlu0 %787
  %789 = vrot.lane.b32.xlu0 %v216, 96
  %v790 = vpop.permute.xlu0 %789
  %791 = vrot.lane.b32.xlu0 %v219, 96
  %v792 = vpop.permute.xlu0 %791
  %793 = vrot.lane.b32.xlu0 %v222, 96
  %v794 = vpop.permute.xlu0 %793
  %795 = vrot.lane.b32.xlu0 %v225, 96
  %v796 = vpop.permute.xlu0 %795
  %797 = vrot.lane.b32.xlu0 %v228, 96
  %v798 = vpop.permute.xlu0 %797
  %799 = vrot.lane.b32.xlu0 %v231, 96
  %v800 = vpop.permute.xlu0 %799
  %801 = vrot.lane.b32.xlu0 %v234, 96
  %v802 = vpop.permute.xlu0 %801
  %803 = vrot.lane.b32.xlu0 %v237, 96
  %v804 = vpop.permute.xlu0 %803
  %805 = vrot.lane.b32.xlu0 %v240, 96
  %v806 = vpop.permute.xlu0 %805
  %807 = vrot.lane.b32.xlu0 %v243, 96
  %v808 = vpop.permute.xlu0 %807
  %809 = vrot.lane.b32.xlu0 %v246, 96
  %v810 = vpop.permute.xlu0 %809
  %811 = vrot.lane.b32.xlu0 %v249, 96
  %v812 = vpop.permute.xlu0 %811
  %813 = vrot.lane.b32.xlu0 %v252, 96
  %v814 = vpop.permute.xlu0 %813
  %815 = vrot.lane.b32.xlu0 %v255, 96
  %v816 = vpop.permute.xlu0 %815
  %817 = vrot.lane.b32.xlu0 %v258, 96
  %v818 = vpop.permute.xlu0 %817
  %819 = vrot.lane.b32.xlu0 %v261, 96
  %v820 = vpop.permute.xlu0 %819
  %821 = vrot.lane.b32.xlu0 %v264, 96
  %v822 = vpop.permute.xlu0 %821
  %823 = vrot.lane.b32.xlu0 %v267, 96
  %v824 = vpop.permute.xlu0 %823
  %825 = vrot.lane.b32.xlu0 %v270, 96
  %v826 = vpop.permute.xlu0 %825
  %827 = vrot.lane.b32.xlu0 %v273, 96
  %v828 = vpop.permute.xlu0 %827
  %829 = vrot.lane.b32.xlu0 %v276, 96
  %v830 = vpop.permute.xlu0 %829
  %831 = vrot.lane.b32.xlu0 %v279, 96
  %v832 = vpop.permute.xlu0 %831
  %833 = vrot.lane.b32.xlu0 %v282, 96
  %v834 = vpop.permute.xlu0 %833
  %835 = vrot.lane.b32.xlu0 %v285, 96
  %v836 = vpop.permute.xlu0 %835
  %837 = vrot.lane.b32.xlu0 %v288, 96
  %v838 = vpop.permute.xlu0 %837
  %839 = vrot.lane.b32.xlu0 %v291, 96
  %v840 = vpop.permute.xlu0 %839
  %841 = vrot.lane.b32.xlu0 %v294, 96
  %v842 = vpop.permute.xlu0 %841
  %843 = vrot.lane.b32.xlu0 %v297, 96
  %v844 = vpop.permute.xlu0 %843
  %845 = vrot.lane.b32.xlu0 %v300, 96
  %v846 = vpop.permute.xlu0 %845
  %847 = vrot.lane.b32.xlu0 %v303, 96
  %v848 = vpop.permute.xlu0 %847
  %849 = vrot.lane.b32.xlu0 %v306, 96
  %v850 = vpop.permute.xlu0 %849
  %851 = vrot.lane.b32.xlu0 %v309, 96
  %v852 = vpop.permute.xlu0 %851
  %853 = vrot.lane.b32.xlu0 %v312, 96
  %v854 = vpop.permute.xlu0 %853
  %855 = vrot.lane.b32.xlu0 %v315, 96
  %v856 = vpop.permute.xlu0 %855
  %857 = vrot.lane.b32.xlu0 %v318, 96
  %v858 = vpop.permute.xlu0 %857
  %859 = vrot.lane.b32.xlu0 %v321, 96
  %v860 = vpop.permute.xlu0 %859
  %861 = vrot.lane.b32.xlu0 %v324, 96
  %v862 = vpop.permute.xlu0 %861
  %863 = vrot.lane.b32.xlu0 %v327, 96
  %v864 = vpop.permute.xlu0 %863
  %865 = vrot.lane.b32.xlu0 %v330, 96
  %v866 = vpop.permute.xlu0 %865
  %867 = vrot.lane.b32.xlu0 %v333, 96
  %v868 = vpop.permute.xlu0 %867
  %869 = vrot.lane.b32.xlu0 %v336, 96
  %v870 = vpop.permute.xlu0 %869
  %871 = vrot.lane.b32.xlu0 %v339, 96
  %v872 = vpop.permute.xlu0 %871
  %873 = vrot.lane.b32.xlu0 %v342, 96
  %v874 = vpop.permute.xlu0 %873
  %875 = vrot.lane.b32.xlu0 %v345, 96
  %v876 = vpop.permute.xlu0 %875
  %877 = vrot.lane.b32.xlu0 %v348, 96
  %v878 = vpop.permute.xlu0 %877
  %879 = vrot.lane.b32.xlu0 %v351, 96
  %v880 = vpop.permute.xlu0 %879
  %881 = vrot.lane.b32.xlu0 %v354, 96
  %v882 = vpop.permute.xlu0 %881
  %883 = vrot.lane.b32.xlu0 %v357, 96
  %v884 = vpop.permute.xlu0 %883
  %885 = vrot.lane.b32.xlu0 %v360, 96
  %v886 = vpop.permute.xlu0 %885
  %887 = vrot.lane.b32.xlu0 %v363, 96
  %v888 = vpop.permute.xlu0 %887
  %889 = vrot.lane.b32.xlu0 %v366, 96
  %v890 = vpop.permute.xlu0 %889
  %891 = vrot.lane.b32.xlu0 %v369, 96
  %v892 = vpop.permute.xlu0 %891
  %893 = vrot.lane.b32.xlu0 %v372, 96
  %v894 = vpop.permute.xlu0 %893
  %895 = vrot.lane.b32.xlu0 %v375, 96
  %v896 = vpop.permute.xlu0 %895
  %897 = vrot.lane.b32.xlu0 %v378, 96
  %v898 = vpop.permute.xlu0 %897
  %899 = vrot.lane.b32.xlu0 %v381, 96
  %v900 = vpop.permute.xlu0 %899
  %901 = vrot.lane.b32.xlu0 %v384, 96
  %v902 = vpop.permute.xlu0 %901
  %903 = vrot.lane.b32.xlu0 %v387, 96
  %v904 = vpop.permute.xlu0 %903
  %905 = vrot.lane.b32.xlu0 %v390, 96
  %v906 = vpop.permute.xlu0 %905
  %907 = vrot.lane.b32.xlu0 %v393, 96
  %v908 = vpop.permute.xlu0 %907
  %909 = vrot.lane.b32.xlu0 %v396, 96
  %v910 = vpop.permute.xlu0 %909
  %911 = vrot.lane.b32.xlu0 %v399, 96
  %v912 = vpop.permute.xlu0 %911
  %913 = vrot.lane.b32.xlu0 %v402, 96
  %v914 = vpop.permute.xlu0 %913
  %915 = vrot.lane.b32.xlu0 %v405, 96
  %v916 = vpop.permute.xlu0 %915
  %917 = vrot.lane.b32.xlu0 %v408, 96
  %v918 = vpop.permute.xlu0 %917
  %919 = vrot.lane.b32.xlu0 %v411, 96
  %v920 = vpop.permute.xlu0 %919
  %921 = vrot.lane.b32.xlu0 %v414, 96
  %v922 = vpop.permute.xlu0 %921
  %923 = vrot.lane.b32.xlu0 %v417, 96
  %v924 = vpop.permute.xlu0 %923
  %925 = vrot.lane.b32.xlu0 %v420, 96
  %v926 = vpop.permute.xlu0 %925
  %927 = vrot.lane.b32.xlu0 %v423, 96
  %v928 = vpop.permute.xlu0 %927
  %929 = vrot.lane.b32.xlu0 %v426, 96
  %v930 = vpop.permute.xlu0 %929
  %931 = vrot.lane.b32.xlu0 %v429, 96
  %v932 = vpop.permute.xlu0 %931
  %933 = vrot.lane.b32.xlu0 %v432, 96
  %v934 = vpop.permute.xlu0 %933
  %935 = vrot.lane.b32.xlu0 %v435, 96
  %v936 = vpop.permute.xlu0 %935
  %937 = vrot.lane.b32.xlu0 %v438, 96
  %v938 = vpop.permute.xlu0 %937
  %939 = vrot.lane.b32.xlu0 %v441, 96
  %v940 = vpop.permute.xlu0 %939
  %941 = vrot.lane.b32.xlu0 %v444, 96
  %v942 = vpop.permute.xlu0 %941
  %943 = vrot.lane.b32.xlu0 %v447, 96
  %v944 = vpop.permute.xlu0 %943
  %945 = vrot.lane.b32.xlu0 %v450, 96
  %v946 = vpop.permute.xlu0 %945
  %947 = vrot.lane.b32.xlu0 %v453, 96
  %v948 = vpop.permute.xlu0 %947
  %949 = vrot.lane.b32.xlu0 %v456, 96
  %v950 = vpop.permute.xlu0 %949
  %951 = vrot.lane.b32.xlu0 %v459, 96
  %v952 = vpop.permute.xlu0 %951
  %953 = vrot.lane.b32.xlu0 %v462, 96
  %v954 = vpop.permute.xlu0 %953
  %955 = vrot.lane.b32.xlu0 %v465, 96
  %v956 = vpop.permute.xlu0 %955
  %957 = vrot.lane.b32.xlu0 %v468, 96
  %v958 = vpop.permute.xlu0 %957
  %959 = vrot.lane.b32.xlu0 %v471, 96
  %v960 = vpop.permute.xlu0 %959
  %961 = vrot.lane.b32.xlu0 %v474, 96
  %v962 = vpop.permute.xlu0 %961
  %963 = vrot.lane.b32.xlu0 %v477, 96
  %v964 = vpop.permute.xlu0 %963
  %965 = vrot.lane.b32.xlu0 %v480, 96
  %v966 = vpop.permute.xlu0 %965
  %967 = vrot.lane.b32.xlu0 %v483, 96
  %v968 = vpop.permute.xlu0 %967
  %969 = vrot.lane.b32.xlu0 %v486, 96
  %v970 = vpop.permute.xlu0 %969
  %971 = vrot.lane.b32.xlu0 %v489, 96
  %v972 = vpop.permute.xlu0 %971
  %973 = vrot.lane.b32.xlu0 %v492, 96
  %v974 = vpop.permute.xlu0 %973
  %975 = vrot.lane.b32.xlu0 %v495, 96
  %v976 = vpop.permute.xlu0 %975
  %977 = vrot.lane.b32.xlu0 %v498, 96
  %v978 = vpop.permute.xlu0 %977
  %979 = vrot.lane.b32.xlu0 %v501, 96
  %v980 = vpop.permute.xlu0 %979
  %981 = vrot.lane.b32.xlu0 %v504, 96
  %v982 = vpop.permute.xlu0 %981
  %983 = vrot.lane.b32.xlu0 %v507, 96
  %v984 = vpop.permute.xlu0 %983
  %985 = vrot.lane.b32.xlu0 %v510, 96
  %v986 = vpop.permute.xlu0 %985
  %987 = vrot.lane.b32.xlu0 %v513, 96
  %v988 = vpop.permute.xlu0 %987
  %989 = vrot.lane.b32.xlu0 %v516, 96
  %v990 = vpop.permute.xlu0 %989
  %991 = vrot.lane.b32.xlu0 %v519, 96
  %v992 = vpop.permute.xlu0 %991
  %993 = vrot.lane.b32.xlu0 %v522, 96
  %v994 = vpop.permute.xlu0 %993
  %995 = vrot.lane.b32.xlu0 %v525, 96
  %v996 = vpop.permute.xlu0 %995
  %997 = vrot.lane.b32.xlu0 %v528, 96
  %v998 = vpop.permute.xlu0 %997
  %999 = vrot.lane.b32.xlu0 %v531, 96
  %v1000 = vpop.permute.xlu0 %999
  %1001 = vrot.lane.b32.xlu0 %v534, 96
  %v1002 = vpop.permute.xlu0 %1001
  %1003 = vrot.lane.b32.xlu0 %v537, 96
  %v1004 = vpop.permute.xlu0 %1003
  %1005 = vrot.lane.b32.xlu0 %v540, 96
  %v1006 = vpop.permute.xlu0 %1005
  %1007 = vrot.lane.b32.xlu0 %v543, 96
  %v1008 = vpop.permute.xlu0 %1007
  %1009 = vrot.lane.b32.xlu0 %v546, 96
  %v1010 = vpop.permute.xlu0 %1009
  %1011 = vrot.lane.b32.xlu0 %v549, 96
  %v1012 = vpop.permute.xlu0 %1011
  %1013 = vrot.lane.b32.xlu0 %v552, 96
  %v1014 = vpop.permute.xlu0 %1013
  %1015 = vrot.lane.b32.xlu0 %v555, 96
  %v1016 = vpop.permute.xlu0 %1015
  %1017 = vrot.lane.b32.xlu0 %v558, 96
  %v1018 = vpop.permute.xlu0 %1017
  %1019 = vrot.lane.b32.xlu0 %v561, 96
  %v1020 = vpop.permute.xlu0 %1019
  %1021 = vrot.lane.b32.xlu0 %v564, 96
  %v1022 = vpop.permute.xlu0 %1021
  %1023 = vrot.lane.b32.xlu0 %v567, 96
  %v1024 = vpop.permute.xlu0 %1023
  %1025 = vrot.lane.b32.xlu0 %v570, 96
  %v1026 = vpop.permute.xlu0 %1025
  %1027 = vrot.lane.b32.xlu0 %v573, 96
  %v1028 = vpop.permute.xlu0 %1027
  %1029 = vrot.lane.b32.xlu0 %v576, 96
  %v1030 = vpop.permute.xlu0 %1029
  %1031 = vrot.lane.b32.xlu0 %v579, 96
  %v1032 = vpop.permute.xlu0 %1031
  %1033 = vrot.lane.b32.xlu0 %v582, 96
  %v1034 = vpop.permute.xlu0 %1033
  %1035 = vrot.lane.b32.xlu0 %v585, 96
  %v1036 = vpop.permute.xlu0 %1035
  %1037 = vrot.lane.b32.xlu0 %v588, 96
  %v1038 = vpop.permute.xlu0 %1037
  %1039 = vrot.lane.b32.xlu0 %v591, 96
  %v1040 = vpop.permute.xlu0 %1039
  %1041 = vrot.lane.b32.xlu0 %v594, 96
  %v1042 = vpop.permute.xlu0 %1041
  %1043 = vrot.lane.b32.xlu0 %v597, 96
  %v1044 = vpop.permute.xlu0 %1043
  %1045 = vrot.lane.b32.xlu0 %v600, 96
  %v1046 = vpop.permute.xlu0 %1045
  %1047 = vrot.lane.b32.xlu0 %v603, 96
  %v1048 = vpop.permute.xlu0 %1047
  %1049 = vrot.lane.b32.xlu0 %v606, 96
  %v1050 = vpop.permute.xlu0 %1049
  %1051 = vrot.lane.b32.xlu0 %v609, 96
  %v1052 = vpop.permute.xlu0 %1051
  %1053 = vrot.lane.b32.xlu0 %v612, 96
  %v1054 = vpop.permute.xlu0 %1053
  %1055 = vrot.lane.b32.xlu0 %v615, 96
  %v1056 = vpop.permute.xlu0 %1055
  %1057 = vrot.lane.b32.xlu0 %v618, 96
  %v1058 = vpop.permute.xlu0 %1057
  %1059 = vrot.lane.b32.xlu0 %v621, 96
  %v1060 = vpop.permute.xlu0 %1059
  %1061 = vrot.lane.b32.xlu0 %v624, 96
  %v1062 = vpop.permute.xlu0 %1061
  %1063 = vrot.lane.b32.xlu0 %v627, 96
  %v1064 = vpop.permute.xlu0 %1063
  %1065 = vrot.lane.b32.xlu0 %v630, 96
  %v1066 = vpop.permute.xlu0 %1065
  %1067 = vrot.lane.b32.xlu0 %v633, 96
  %v1068 = vpop.permute.xlu0 %1067
  %1069 = vrot.lane.b32.xlu0 %v636, 96
  %v1070 = vpop.permute.xlu0 %1069
  %1071 = vrot.lane.b32.xlu0 %v639, 96
  %v1072 = vpop.permute.xlu0 %1071
  %v1217 = vmax.f32 %v210, %v786
  %v1218 = vmax.f32 %v213, %v788
  %v1219 = vmax.f32 %v216, %v790
  %v1220 = vmax.f32 %v219, %v792
  %v1221 = vmax.f32 %v222, %v794
  %v1222 = vmax.f32 %v225, %v796
  %v1223 = vmax.f32 %v228, %v798
  %v1224 = vmax.f32 %v231, %v800
  %v1225 = vmax.f32 %v234, %v802
  %v1226 = vmax.f32 %v237, %v804
  %v1227 = vmax.f32 %v240, %v806
  %v1228 = vmax.f32 %v243, %v808
  %v1229 = vmax.f32 %v246, %v810
  %v1230 = vmax.f32 %v249, %v812
  %v1231 = vmax.f32 %v252, %v814
  %v1232 = vmax.f32 %v255, %v816
  %v1233 = vmax.f32 %v258, %v818
  %v1234 = vmax.f32 %v261, %v820
  %v1235 = vmax.f32 %v264, %v822
  %v1236 = vmax.f32 %v267, %v824
  %v1237 = vmax.f32 %v270, %v826
  %v1238 = vmax.f32 %v273, %v828
  %v1239 = vmax.f32 %v276, %v830
  %v1240 = vmax.f32 %v279, %v832
  %v1241 = vmax.f32 %v282, %v834
  %v1242 = vmax.f32 %v285, %v836
  %v1243 = vmax.f32 %v288, %v838
  %v1244 = vmax.f32 %v291, %v840
  %v1245 = vmax.f32 %v294, %v842
  %v1246 = vmax.f32 %v297, %v844
  %v1247 = vmax.f32 %v300, %v846
  %v1248 = vmax.f32 %v303, %v848
  %v1249 = vmax.f32 %v306, %v850
  %v1250 = vmax.f32 %v309, %v852
  %v1251 = vmax.f32 %v312, %v854
  %v1252 = vmax.f32 %v315, %v856
  %v1253 = vmax.f32 %v318, %v858
  %v1254 = vmax.f32 %v321, %v860
  %v1255 = vmax.f32 %v324, %v862
  %v1256 = vmax.f32 %v327, %v864
  %v1257 = vmax.f32 %v330, %v866
  %v1258 = vmax.f32 %v333, %v868
  %v1259 = vmax.f32 %v336, %v870
  %v1260 = vmax.f32 %v339, %v872
  %v1261 = vmax.f32 %v342, %v874
  %v1262 = vmax.f32 %v345, %v876
  %v1263 = vmax.f32 %v348, %v878
  %v1264 = vmax.f32 %v351, %v880
  %v1265 = vmax.f32 %v354, %v882
  %v1266 = vmax.f32 %v357, %v884
  %v1267 = vmax.f32 %v360, %v886
  %v1268 = vmax.f32 %v363, %v888
  %v1269 = vmax.f32 %v366, %v890
  %v1270 = vmax.f32 %v369, %v892
  %v1271 = vmax.f32 %v372, %v894
  %v1272 = vmax.f32 %v375, %v896
  %v1273 = vmax.f32 %v378, %v898
  %v1274 = vmax.f32 %v381, %v900
  %v1275 = vmax.f32 %v384, %v902
  %v1276 = vmax.f32 %v387, %v904
  %v1277 = vmax.f32 %v390, %v906
  %v1278 = vmax.f32 %v393, %v908
  %v1279 = vmax.f32 %v396, %v910
  %v1280 = vmax.f32 %v399, %v912
  %v1281 = vmax.f32 %v402, %v914
  %v1282 = vmax.f32 %v405, %v916
  %v1283 = vmax.f32 %v408, %v918
  %v1284 = vmax.f32 %v411, %v920
  %v1285 = vmax.f32 %v414, %v922
  %v1286 = vmax.f32 %v417, %v924
  %v1287 = vmax.f32 %v420, %v926
  %v1288 = vmax.f32 %v423, %v928
  %v1289 = vmax.f32 %v426, %v930
  %v1290 = vmax.f32 %v429, %v932
  %v1291 = vmax.f32 %v432, %v934
  %v1292 = vmax.f32 %v435, %v936
  %v1293 = vmax.f32 %v438, %v938
  %v1294 = vmax.f32 %v441, %v940
  %v1295 = vmax.f32 %v444, %v942
  %v1296 = vmax.f32 %v447, %v944
  %v1297 = vmax.f32 %v450, %v946
  %v1298 = vmax.f32 %v453, %v948
  %v1299 = vmax.f32 %v456, %v950
  %v1300 = vmax.f32 %v459, %v952
  %v1301 = vmax.f32 %v462, %v954
  %v1302 = vmax.f32 %v465, %v956
  %v1303 = vmax.f32 %v468, %v958
  %v1304 = vmax.f32 %v471, %v960
  %v1305 = vmax.f32 %v474, %v962
  %v1306 = vmax.f32 %v477, %v964
  %v1307 = vmax.f32 %v480, %v966
  %v1308 = vmax.f32 %v483, %v968
  %v1309 = vmax.f32 %v486, %v970
  %v1310 = vmax.f32 %v489, %v972
  %v1311 = vmax.f32 %v492, %v974
  %v1312 = vmax.f32 %v495, %v976
  %v1313 = vmax.f32 %v498, %v978
  %v1314 = vmax.f32 %v501, %v980
  %v1315 = vmax.f32 %v504, %v982
  %v1316 = vmax.f32 %v507, %v984
  %v1317 = vmax.f32 %v510, %v986
  %v1318 = vmax.f32 %v513, %v988
  %v1319 = vmax.f32 %v516, %v990
  %v1320 = vmax.f32 %v519, %v992
  %v1321 = vmax.f32 %v522, %v994
  %v1322 = vmax.f32 %v525, %v996
  %v1323 = vmax.f32 %v528, %v998
  %v1324 = vmax.f32 %v531, %v1000
  %v1325 = vmax.f32 %v534, %v1002
  %v1326 = vmax.f32 %v537, %v1004
  %v1327 = vmax.f32 %v540, %v1006
  %v1328 = vmax.f32 %v543, %v1008
  %v1329 = vmax.f32 %v546, %v1010
  %v1330 = vmax.f32 %v549, %v1012
  %v1331 = vmax.f32 %v552, %v1014
  %v1332 = vmax.f32 %v555, %v1016
  %v1333 = vmax.f32 %v558, %v1018
  %v1334 = vmax.f32 %v561, %v1020
  %v1335 = vmax.f32 %v564, %v1022
  %v1336 = vmax.f32 %v567, %v1024
  %v1337 = vmax.f32 %v570, %v1026
  %v1338 = vmax.f32 %v573, %v1028
  %v1339 = vmax.f32 %v576, %v1030
  %v1340 = vmax.f32 %v579, %v1032
  %v1341 = vmax.f32 %v582, %v1034
  %v1342 = vmax.f32 %v585, %v1036
  %v1343 = vmax.f32 %v588, %v1038
  %v1344 = vmax.f32 %v591, %v1040
  %v1345 = vmax.f32 %v594, %v1042
  %v1346 = vmax.f32 %v597, %v1044
  %v1347 = vmax.f32 %v600, %v1046
  %v1348 = vmax.f32 %v603, %v1048
  %v1349 = vmax.f32 %v606, %v1050
  %v1350 = vmax.f32 %v609, %v1052
  %v1351 = vmax.f32 %v612, %v1054
  %v1352 = vmax.f32 %v615, %v1056
  %v1353 = vmax.f32 %v618, %v1058
  %v1354 = vmax.f32 %v621, %v1060
  %v1355 = vmax.f32 %v624, %v1062
  %v1356 = vmax.f32 %v627, %v1064
  %v1357 = vmax.f32 %v630, %v1066
  %v1358 = vmax.f32 %v633, %v1068
  %v1359 = vmax.f32 %v636, %v1070
  %v1360 = vmax.f32 %v639, %v1072
  %1505 = vrot.lane.b32.xlu0 %v1217, 64
  %v1506 = vpop.permute.xlu0 %1505
  %1507 = vrot.lane.b32.xlu0 %v1218, 64
  %v1508 = vpop.permute.xlu0 %1507
  %1509 = vrot.lane.b32.xlu0 %v1219, 64
  %v1510 = vpop.permute.xlu0 %1509
  %1511 = vrot.lane.b32.xlu0 %v1220, 64
  %v1512 = vpop.permute.xlu0 %1511
  %1513 = vrot.lane.b32.xlu0 %v1221, 64
  %v1514 = vpop.permute.xlu0 %1513
  %1515 = vrot.lane.b32.xlu0 %v1222, 64
  %v1516 = vpop.permute.xlu0 %1515
  %1517 = vrot.lane.b32.xlu0 %v1223, 64
  %v1518 = vpop.permute.xlu0 %1517
  %1519 = vrot.lane.b32.xlu0 %v1224, 64
  %v1520 = vpop.permute.xlu0 %1519
  %1521 = vrot.lane.b32.xlu0 %v1225, 64
  %v1522 = vpop.permute.xlu0 %1521
  %1523 = vrot.lane.b32.xlu0 %v1226, 64
  %v1524 = vpop.permute.xlu0 %1523
  %1525 = vrot.lane.b32.xlu0 %v1227, 64
  %v1526 = vpop.permute.xlu0 %1525
  %1527 = vrot.lane.b32.xlu0 %v1228, 64
  %v1528 = vpop.permute.xlu0 %1527
  %1529 = vrot.lane.b32.xlu0 %v1229, 64
  %v1530 = vpop.permute.xlu0 %1529
  %1531 = vrot.lane.b32.xlu0 %v1230, 64
  %v1532 = vpop.permute.xlu0 %1531
  %1533 = vrot.lane.b32.xlu0 %v1231, 64
  %v1534 = vpop.permute.xlu0 %1533
  %1535 = vrot.lane.b32.xlu0 %v1232, 64
  %v1536 = vpop.permute.xlu0 %1535
  %1537 = vrot.lane.b32.xlu0 %v1233, 64
  %v1538 = vpop.permute.xlu0 %1537
  %1539 = vrot.lane.b32.xlu0 %v1234, 64
  %v1540 = vpop.permute.xlu0 %1539
  %1541 = vrot.lane.b32.xlu0 %v1235, 64
  %v1542 = vpop.permute.xlu0 %1541
  %1543 = vrot.lane.b32.xlu0 %v1236, 64
  %v1544 = vpop.permute.xlu0 %1543
  %1545 = vrot.lane.b32.xlu0 %v1237, 64
  %v1546 = vpop.permute.xlu0 %1545
  %1547 = vrot.lane.b32.xlu0 %v1238, 64
  %v1548 = vpop.permute.xlu0 %1547
  %1549 = vrot.lane.b32.xlu0 %v1239, 64
  %v1550 = vpop.permute.xlu0 %1549
  %1551 = vrot.lane.b32.xlu0 %v1240, 64
  %v1552 = vpop.permute.xlu0 %1551
  %1553 = vrot.lane.b32.xlu0 %v1241, 64
  %v1554 = vpop.permute.xlu0 %1553
  %1555 = vrot.lane.b32.xlu0 %v1242, 64
  %v1556 = vpop.permute.xlu0 %1555
  %1557 = vrot.lane.b32.xlu0 %v1243, 64
  %v1558 = vpop.permute.xlu0 %1557
  %1559 = vrot.lane.b32.xlu0 %v1244, 64
  %v1560 = vpop.permute.xlu0 %1559
  %1561 = vrot.lane.b32.xlu0 %v1245, 64
  %v1562 = vpop.permute.xlu0 %1561
  %1563 = vrot.lane.b32.xlu0 %v1246, 64
  %v1564 = vpop.permute.xlu0 %1563
  %1565 = vrot.lane.b32.xlu0 %v1247, 64
  %v1566 = vpop.permute.xlu0 %1565
  %1567 = vrot.lane.b32.xlu0 %v1248, 64
  %v1568 = vpop.permute.xlu0 %1567
  %1569 = vrot.lane.b32.xlu0 %v1249, 64
  %v1570 = vpop.permute.xlu0 %1569
  %1571 = vrot.lane.b32.xlu0 %v1250, 64
  %v1572 = vpop.permute.xlu0 %1571
  %1573 = vrot.lane.b32.xlu0 %v1251, 64
  %v1574 = vpop.permute.xlu0 %1573
  %1575 = vrot.lane.b32.xlu0 %v1252, 64
  %v1576 = vpop.permute.xlu0 %1575
  %1577 = vrot.lane.b32.xlu0 %v1253, 64
  %v1578 = vpop.permute.xlu0 %1577
  %1579 = vrot.lane.b32.xlu0 %v1254, 64
  %v1580 = vpop.permute.xlu0 %1579
  %1581 = vrot.lane.b32.xlu0 %v1255, 64
  %v1582 = vpop.permute.xlu0 %1581
  %1583 = vrot.lane.b32.xlu0 %v1256, 64
  %v1584 = vpop.permute.xlu0 %1583
  %1585 = vrot.lane.b32.xlu0 %v1257, 64
  %v1586 = vpop.permute.xlu0 %1585
  %1587 = vrot.lane.b32.xlu0 %v1258, 64
  %v1588 = vpop.permute.xlu0 %1587
  %1589 = vrot.lane.b32.xlu0 %v1259, 64
  %v1590 = vpop.permute.xlu0 %1589
  %1591 = vrot.lane.b32.xlu0 %v1260, 64
  %v1592 = vpop.permute.xlu0 %1591
  %1593 = vrot.lane.b32.xlu0 %v1261, 64
  %v1594 = vpop.permute.xlu0 %1593
  %1595 = vrot.lane.b32.xlu0 %v1262, 64
  %v1596 = vpop.permute.xlu0 %1595
  %1597 = vrot.lane.b32.xlu0 %v1263, 64
  %v1598 = vpop.permute.xlu0 %1597
  %1599 = vrot.lane.b32.xlu0 %v1264, 64
  %v1600 = vpop.permute.xlu0 %1599
  %1601 = vrot.lane.b32.xlu0 %v1265, 64
  %v1602 = vpop.permute.xlu0 %1601
  %1603 = vrot.lane.b32.xlu0 %v1266, 64
  %v1604 = vpop.permute.xlu0 %1603
  %1605 = vrot.lane.b32.xlu0 %v1267, 64
  %v1606 = vpop.permute.xlu0 %1605
  %1607 = vrot.lane.b32.xlu0 %v1268, 64
  %v1608 = vpop.permute.xlu0 %1607
  %1609 = vrot.lane.b32.xlu0 %v1269, 64
  %v1610 = vpop.permute.xlu0 %1609
  %1611 = vrot.lane.b32.xlu0 %v1270, 64
  %v1612 = vpop.permute.xlu0 %1611
  %1613 = vrot.lane.b32.xlu0 %v1271, 64
  %v1614 = vpop.permute.xlu0 %1613
  %1615 = vrot.lane.b32.xlu0 %v1272, 64
  %v1616 = vpop.permute.xlu0 %1615
  %1617 = vrot.lane.b32.xlu0 %v1273, 64
  %v1618 = vpop.permute.xlu0 %1617
  %1619 = vrot.lane.b32.xlu0 %v1274, 64
  %v1620 = vpop.permute.xlu0 %1619
  %1621 = vrot.lane.b32.xlu0 %v1275, 64
  %v1622 = vpop.permute.xlu0 %1621
  %1623 = vrot.lane.b32.xlu0 %v1276, 64
  %v1624 = vpop.permute.xlu0 %1623
  %1625 = vrot.lane.b32.xlu0 %v1277, 64
  %v1626 = vpop.permute.xlu0 %1625
  %1627 = vrot.lane.b32.xlu0 %v1278, 64
  %v1628 = vpop.permute.xlu0 %1627
  %1629 = vrot.lane.b32.xlu0 %v1279, 64
  %v1630 = vpop.permute.xlu0 %1629
  %1631 = vrot.lane.b32.xlu0 %v1280, 64
  %v1632 = vpop.permute.xlu0 %1631
  %1633 = vrot.lane.b32.xlu0 %v1281, 64
  %v1634 = vpop.permute.xlu0 %1633
  %1635 = vrot.lane.b32.xlu0 %v1282, 64
  %v1636 = vpop.permute.xlu0 %1635
  %1637 = vrot.lane.b32.xlu0 %v1283, 64
  %v1638 = vpop.permute.xlu0 %1637
  %1639 = vrot.lane.b32.xlu0 %v1284, 64
  %v1640 = vpop.permute.xlu0 %1639
  %1641 = vrot.lane.b32.xlu0 %v1285, 64
  %v1642 = vpop.permute.xlu0 %1641
  %1643 = vrot.lane.b32.xlu0 %v1286, 64
  %v1644 = vpop.permute.xlu0 %1643
  %1645 = vrot.lane.b32.xlu0 %v1287, 64
  %v1646 = vpop.permute.xlu0 %1645
  %1647 = vrot.lane.b32.xlu0 %v1288, 64
  %v1648 = vpop.permute.xlu0 %1647
  %1649 = vrot.lane.b32.xlu0 %v1289, 64
  %v1650 = vpop.permute.xlu0 %1649
  %1651 = vrot.lane.b32.xlu0 %v1290, 64
  %v1652 = vpop.permute.xlu0 %1651
  %1653 = vrot.lane.b32.xlu0 %v1291, 64
  %v1654 = vpop.permute.xlu0 %1653
  %1655 = vrot.lane.b32.xlu0 %v1292, 64
  %v1656 = vpop.permute.xlu0 %1655
  %1657 = vrot.lane.b32.xlu0 %v1293, 64
  %v1658 = vpop.permute.xlu0 %1657
  %1659 = vrot.lane.b32.xlu0 %v1294, 64
  %v1660 = vpop.permute.xlu0 %1659
  %1661 = vrot.lane.b32.xlu0 %v1295, 64
  %v1662 = vpop.permute.xlu0 %1661
  %1663 = vrot.lane.b32.xlu0 %v1296, 64
  %v1664 = vpop.permute.xlu0 %1663
  %1665 = vrot.lane.b32.xlu0 %v1297, 64
  %v1666 = vpop.permute.xlu0 %1665
  %1667 = vrot.lane.b32.xlu0 %v1298, 64
  %v1668 = vpop.permute.xlu0 %1667
  %1669 = vrot.lane.b32.xlu0 %v1299, 64
  %v1670 = vpop.permute.xlu0 %1669
  %1671 = vrot.lane.b32.xlu0 %v1300, 64
  %v1672 = vpop.permute.xlu0 %1671
  %1673 = vrot.lane.b32.xlu0 %v1301, 64
  %v1674 = vpop.permute.xlu0 %1673
  %1675 = vrot.lane.b32.xlu0 %v1302, 64
  %v1676 = vpop.permute.xlu0 %1675
  %1677 = vrot.lane.b32.xlu0 %v1303, 64
  %v1678 = vpop.permute.xlu0 %1677
  %1679 = vrot.lane.b32.xlu0 %v1304, 64
  %v1680 = vpop.permute.xlu0 %1679
  %1681 = vrot.lane.b32.xlu0 %v1305, 64
  %v1682 = vpop.permute.xlu0 %1681
  %1683 = vrot.lane.b32.xlu0 %v1306, 64
  %v1684 = vpop.permute.xlu0 %1683
  %1685 = vrot.lane.b32.xlu0 %v1307, 64
  %v1686 = vpop.permute.xlu0 %1685
  %1687 = vrot.lane.b32.xlu0 %v1308, 64
  %v1688 = vpop.permute.xlu0 %1687
  %1689 = vrot.lane.b32.xlu0 %v1309, 64
  %v1690 = vpop.permute.xlu0 %1689
  %1691 = vrot.lane.b32.xlu0 %v1310, 64
  %v1692 = vpop.permute.xlu0 %1691
  %1693 = vrot.lane.b32.xlu0 %v1311, 64
  %v1694 = vpop.permute.xlu0 %1693
  %1695 = vrot.lane.b32.xlu0 %v1312, 64
  %v1696 = vpop.permute.xlu0 %1695
  %1697 = vrot.lane.b32.xlu0 %v1313, 64
  %v1698 = vpop.permute.xlu0 %1697
  %1699 = vrot.lane.b32.xlu0 %v1314, 64
  %v1700 = vpop.permute.xlu0 %1699
  %1701 = vrot.lane.b32.xlu0 %v1315, 64
  %v1702 = vpop.permute.xlu0 %1701
  %1703 = vrot.lane.b32.xlu0 %v1316, 64
  %v1704 = vpop.permute.xlu0 %1703
  %1705 = vrot.lane.b32.xlu0 %v1317, 64
  %v1706 = vpop.permute.xlu0 %1705
  %1707 = vrot.lane.b32.xlu0 %v1318, 64
  %v1708 = vpop.permute.xlu0 %1707
  %1709 = vrot.lane.b32.xlu0 %v1319, 64
  %v1710 = vpop.permute.xlu0 %1709
  %1711 = vrot.lane.b32.xlu0 %v1320, 64
  %v1712 = vpop.permute.xlu0 %1711
  %1713 = vrot.lane.b32.xlu0 %v1321, 64
  %v1714 = vpop.permute.xlu0 %1713
  %1715 = vrot.lane.b32.xlu0 %v1322, 64
  %v1716 = vpop.permute.xlu0 %1715
  %1717 = vrot.lane.b32.xlu0 %v1323, 64
  %v1718 = vpop.permute.xlu0 %1717
  %1719 = vrot.lane.b32.xlu0 %v1324, 64
  %v1720 = vpop.permute.xlu0 %1719
  %1721 = vrot.lane.b32.xlu0 %v1325, 64
  %v1722 = vpop.permute.xlu0 %1721
  %1723 = vrot.lane.b32.xlu0 %v1326, 64
  %v1724 = vpop.permute.xlu0 %1723
  %1725 = vrot.lane.b32.xlu0 %v1327, 64
  %v1726 = vpop.permute.xlu0 %1725
  %1727 = vrot.lane.b32.xlu0 %v1328, 64
  %v1728 = vpop.permute.xlu0 %1727
  %1729 = vrot.lane.b32.xlu0 %v1329, 64
  %v1730 = vpop.permute.xlu0 %1729
  %1731 = vrot.lane.b32.xlu0 %v1330, 64
  %v1732 = vpop.permute.xlu0 %1731
  %1733 = vrot.lane.b32.xlu0 %v1331, 64
  %v1734 = vpop.permute.xlu0 %1733
  %1735 = vrot.lane.b32.xlu0 %v1332, 64
  %v1736 = vpop.permute.xlu0 %1735
  %1737 = vrot.lane.b32.xlu0 %v1333, 64
  %v1738 = vpop.permute.xlu0 %1737
  %1739 = vrot.lane.b32.xlu0 %v1334, 64
  %v1740 = vpop.permute.xlu0 %1739
  %1741 = vrot.lane.b32.xlu0 %v1335, 64
  %v1742 = vpop.permute.xlu0 %1741
  %1743 = vrot.lane.b32.xlu0 %v1336, 64
  %v1744 = vpop.permute.xlu0 %1743
  %1745 = vrot.lane.b32.xlu0 %v1337, 64
  %v1746 = vpop.permute.xlu0 %1745
  %1747 = vrot.lane.b32.xlu0 %v1338, 64
  %v1748 = vpop.permute.xlu0 %1747
  %1749 = vrot.lane.b32.xlu0 %v1339, 64
  %v1750 = vpop.permute.xlu0 %1749
  %1751 = vrot.lane.b32.xlu0 %v1340, 64
  %v1752 = vpop.permute.xlu0 %1751
  %1753 = vrot.lane.b32.xlu0 %v1341, 64
  %v1754 = vpop.permute.xlu0 %1753
  %1755 = vrot.lane.b32.xlu0 %v1342, 64
  %v1756 = vpop.permute.xlu0 %1755
  %1757 = vrot.lane.b32.xlu0 %v1343, 64
  %v1758 = vpop.permute.xlu0 %1757
  %1759 = vrot.lane.b32.xlu0 %v1344, 64
  %v1760 = vpop.permute.xlu0 %1759
  %1761 = vrot.lane.b32.xlu0 %v1345, 64
  %v1762 = vpop.permute.xlu0 %1761
  %1763 = vrot.lane.b32.xlu0 %v1346, 64
  %v1764 = vpop.permute.xlu0 %1763
  %1765 = vrot.lane.b32.xlu0 %v1347, 64
  %v1766 = vpop.permute.xlu0 %1765
  %1767 = vrot.lane.b32.xlu0 %v1348, 64
  %v1768 = vpop.permute.xlu0 %1767
  %1769 = vrot.lane.b32.xlu0 %v1349, 64
  %v1770 = vpop.permute.xlu0 %1769
  %1771 = vrot.lane.b32.xlu0 %v1350, 64
  %v1772 = vpop.permute.xlu0 %1771
  %1773 = vrot.lane.b32.xlu0 %v1351, 64
  %v1774 = vpop.permute.xlu0 %1773
  %1775 = vrot.lane.b32.xlu0 %v1352, 64
  %v1776 = vpop.permute.xlu0 %1775
  %1777 = vrot.lane.b32.xlu0 %v1353, 64
  %v1778 = vpop.permute.xlu0 %1777
  %1779 = vrot.lane.b32.xlu0 %v1354, 64
  %v1780 = vpop.permute.xlu0 %1779
  %1781 = vrot.lane.b32.xlu0 %v1355, 64
  %v1782 = vpop.permute.xlu0 %1781
  %1783 = vrot.lane.b32.xlu0 %v1356, 64
  %v1784 = vpop.permute.xlu0 %1783
  %1785 = vrot.lane.b32.xlu0 %v1357, 64
  %v1786 = vpop.permute.xlu0 %1785
  %1787 = vrot.lane.b32.xlu0 %v1358, 64
  %v1788 = vpop.permute.xlu0 %1787
  %1789 = vrot.lane.b32.xlu0 %v1359, 64
  %v1790 = vpop.permute.xlu0 %1789
  %1791 = vrot.lane.b32.xlu0 %v1360, 64
  %v1792 = vpop.permute.xlu0 %1791
  %v1937 = vmax.f32 %v1217, %v1506
  %v1938 = vmax.f32 %v1218, %v1508
  %v1939 = vmax.f32 %v1219, %v1510
  %v1940 = vmax.f32 %v1220, %v1512
  %v1941 = vmax.f32 %v1221, %v1514
  %v1942 = vmax.f32 %v1222, %v1516
  %v1943 = vmax.f32 %v1223, %v1518
  %v1944 = vmax.f32 %v1224, %v1520
  %v1945 = vmax.f32 %v1225, %v1522
  %v1946 = vmax.f32 %v1226, %v1524
  %v1947 = vmax.f32 %v1227, %v1526
  %v1948 = vmax.f32 %v1228, %v1528
  %v1949 = vmax.f32 %v1229, %v1530
  %v1950 = vmax.f32 %v1230, %v1532
  %v1951 = vmax.f32 %v1231, %v1534
  %v1952 = vmax.f32 %v1232, %v1536
  %v1953 = vmax.f32 %v1233, %v1538
  %v1954 = vmax.f32 %v1234, %v1540
  %v1955 = vmax.f32 %v1235, %v1542
  %v1956 = vmax.f32 %v1236, %v1544
  %v1957 = vmax.f32 %v1237, %v1546
  %v1958 = vmax.f32 %v1238, %v1548
  %v1959 = vmax.f32 %v1239, %v1550
  %v1960 = vmax.f32 %v1240, %v1552
  %v1961 = vmax.f32 %v1241, %v1554
  %v1962 = vmax.f32 %v1242, %v1556
  %v1963 = vmax.f32 %v1243, %v1558
  %v1964 = vmax.f32 %v1244, %v1560
  %v1965 = vmax.f32 %v1245, %v1562
  %v1966 = vmax.f32 %v1246, %v1564
  %v1967 = vmax.f32 %v1247, %v1566
  %v1968 = vmax.f32 %v1248, %v1568
  %v1969 = vmax.f32 %v1249, %v1570
  %v1970 = vmax.f32 %v1250, %v1572
  %v1971 = vmax.f32 %v1251, %v1574
  %v1972 = vmax.f32 %v1252, %v1576
  %v1973 = vmax.f32 %v1253, %v1578
  %v1974 = vmax.f32 %v1254, %v1580
  %v1975 = vmax.f32 %v1255, %v1582
  %v1976 = vmax.f32 %v1256, %v1584
  %v1977 = vmax.f32 %v1257, %v1586
  %v1978 = vmax.f32 %v1258, %v1588
  %v1979 = vmax.f32 %v1259, %v1590
  %v1980 = vmax.f32 %v1260, %v1592
  %v1981 = vmax.f32 %v1261, %v1594
  %v1982 = vmax.f32 %v1262, %v1596
  %v1983 = vmax.f32 %v1263, %v1598
  %v1984 = vmax.f32 %v1264, %v1600
  %v1985 = vmax.f32 %v1265, %v1602
  %v1986 = vmax.f32 %v1266, %v1604
  %v1987 = vmax.f32 %v1267, %v1606
  %v1988 = vmax.f32 %v1268, %v1608
  %v1989 = vmax.f32 %v1269, %v1610
  %v1990 = vmax.f32 %v1270, %v1612
  %v1991 = vmax.f32 %v1271, %v1614
  %v1992 = vmax.f32 %v1272, %v1616
  %v1993 = vmax.f32 %v1273, %v1618
  %v1994 = vmax.f32 %v1274, %v1620
  %v1995 = vmax.f32 %v1275, %v1622
  %v1996 = vmax.f32 %v1276, %v1624
  %v1997 = vmax.f32 %v1277, %v1626
  %v1998 = vmax.f32 %v1278, %v1628
  %v1999 = vmax.f32 %v1279, %v1630
  %v2000 = vmax.f32 %v1280, %v1632
  %v2001 = vmax.f32 %v1281, %v1634
  %v2002 = vmax.f32 %v1282, %v1636
  %v2003 = vmax.f32 %v1283, %v1638
  %v2004 = vmax.f32 %v1284, %v1640
  %v2005 = vmax.f32 %v1285, %v1642
  %v2006 = vmax.f32 %v1286, %v1644
  %v2007 = vmax.f32 %v1287, %v1646
  %v2008 = vmax.f32 %v1288, %v1648
  %v2009 = vmax.f32 %v1289, %v1650
  %v2010 = vmax.f32 %v1290, %v1652
  %v2011 = vmax.f32 %v1291, %v1654
  %v2012 = vmax.f32 %v1292, %v1656
  %v2013 = vmax.f32 %v1293, %v1658
  %v2014 = vmax.f32 %v1294, %v1660
  %v2015 = vmax.f32 %v1295, %v1662
  %v2016 = vmax.f32 %v1296, %v1664
  %v2017 = vmax.f32 %v1297, %v1666
  %v2018 = vmax.f32 %v1298, %v1668
  %v2019 = vmax.f32 %v1299, %v1670
  %v2020 = vmax.f32 %v1300, %v1672
  %v2021 = vmax.f32 %v1301, %v1674
  %v2022 = vmax.f32 %v1302, %v1676
  %v2023 = vmax.f32 %v1303, %v1678
  %v2024 = vmax.f32 %v1304, %v1680
  %v2025 = vmax.f32 %v1305, %v1682
  %v2026 = vmax.f32 %v1306, %v1684
  %v2027 = vmax.f32 %v1307, %v1686
  %v2028 = vmax.f32 %v1308, %v1688
  %v2029 = vmax.f32 %v1309, %v1690
  %v2030 = vmax.f32 %v1310, %v1692
  %v2031 = vmax.f32 %v1311, %v1694
  %v2032 = vmax.f32 %v1312, %v1696
  %v2033 = vmax.f32 %v1313, %v1698
  %v2034 = vmax.f32 %v1314, %v1700
  %v2035 = vmax.f32 %v1315, %v1702
  %v2036 = vmax.f32 %v1316, %v1704
  %v2037 = vmax.f32 %v1317, %v1706
  %v2038 = vmax.f32 %v1318, %v1708
  %v2039 = vmax.f32 %v1319, %v1710
  %v2040 = vmax.f32 %v1320, %v1712
  %v2041 = vmax.f32 %v1321, %v1714
  %v2042 = vmax.f32 %v1322, %v1716
  %v2043 = vmax.f32 %v1323, %v1718
  %v2044 = vmax.f32 %v1324, %v1720
  %v2045 = vmax.f32 %v1325, %v1722
  %v2046 = vmax.f32 %v1326, %v1724
  %v2047 = vmax.f32 %v1327, %v1726
  %v2048 = vmax.f32 %v1328, %v1728
  %v2049 = vmax.f32 %v1329, %v1730
  %v2050 = vmax.f32 %v1330, %v1732
  %v2051 = vmax.f32 %v1331, %v1734
  %v2052 = vmax.f32 %v1332, %v1736
  %v2053 = vmax.f32 %v1333, %v1738
  %v2054 = vmax.f32 %v1334, %v1740
  %v2055 = vmax.f32 %v1335, %v1742
  %v2056 = vmax.f32 %v1336, %v1744
  %v2057 = vmax.f32 %v1337, %v1746
  %v2058 = vmax.f32 %v1338, %v1748
  %v2059 = vmax.f32 %v1339, %v1750
  %v2060 = vmax.f32 %v1340, %v1752
  %v2061 = vmax.f32 %v1341, %v1754
  %v2062 = vmax.f32 %v1342, %v1756
  %v2063 = vmax.f32 %v1343, %v1758
  %v2064 = vmax.f32 %v1344, %v1760
  %v2065 = vmax.f32 %v1345, %v1762
  %v2066 = vmax.f32 %v1346, %v1764
  %v2067 = vmax.f32 %v1347, %v1766
  %v2068 = vmax.f32 %v1348, %v1768
  %v2069 = vmax.f32 %v1349, %v1770
  %v2070 = vmax.f32 %v1350, %v1772
  %v2071 = vmax.f32 %v1351, %v1774
  %v2072 = vmax.f32 %v1352, %v1776
  %v2073 = vmax.f32 %v1353, %v1778
  %v2074 = vmax.f32 %v1354, %v1780
  %v2075 = vmax.f32 %v1355, %v1782
  %v2076 = vmax.f32 %v1356, %v1784
  %v2077 = vmax.f32 %v1357, %v1786
  %v2078 = vmax.f32 %v1358, %v1788
  %v2079 = vmax.f32 %v1359, %v1790
  %v2080 = vmax.f32 %v1360, %v1792
  %v2081 = vld [vmem:[%s2] sm:$0x1]
  %v2083 = vperm.slane %v2081, 0
  %v2085 = vadd.f32 %v1937, %v2083
  %v2086 = vadd.f32 %v1938, %v2083
  %v2087 = vadd.f32 %v1939, %v2083
  %v2088 = vadd.f32 %v1940, %v2083
  %v2089 = vadd.f32 %v1941, %v2083
  %v2090 = vadd.f32 %v1942, %v2083
  %v2091 = vadd.f32 %v1943, %v2083
  %v2092 = vadd.f32 %v1944, %v2083
  %v2093 = vadd.f32 %v1945, %v2083
  %v2094 = vadd.f32 %v1946, %v2083
  %v2095 = vadd.f32 %v1947, %v2083
  %v2096 = vadd.f32 %v1948, %v2083
  %v2097 = vadd.f32 %v1949, %v2083
  %v2098 = vadd.f32 %v1950, %v2083
  %v2099 = vadd.f32 %v1951, %v2083
  %v2100 = vadd.f32 %v1952, %v2083
  %v2101 = vadd.f32 %v1953, %v2083
  %v2102 = vadd.f32 %v1954, %v2083
  %v2103 = vadd.f32 %v1955, %v2083
  %v2104 = vadd.f32 %v1956, %v2083
  %v2105 = vadd.f32 %v1957, %v2083
  %v2106 = vadd.f32 %v1958, %v2083
  %v2107 = vadd.f32 %v1959, %v2083
  %v2108 = vadd.f32 %v1960, %v2083
  %v2109 = vadd.f32 %v1961, %v2083
  %v2110 = vadd.f32 %v1962, %v2083
  %v2111 = vadd.f32 %v1963, %v2083
  %v2112 = vadd.f32 %v1964, %v2083
  %v2113 = vadd.f32 %v1965, %v2083
  %v2114 = vadd.f32 %v1966, %v2083
  %v2115 = vadd.f32 %v1967, %v2083
  %v2116 = vadd.f32 %v1968, %v2083
  %v2117 = vadd.f32 %v1969, %v2083
  %v2118 = vadd.f32 %v1970, %v2083
  %v2119 = vadd.f32 %v1971, %v2083
  %v2120 = vadd.f32 %v1972, %v2083
  %v2121 = vadd.f32 %v1973, %v2083
  %v2122 = vadd.f32 %v1974, %v2083
  %v2123 = vadd.f32 %v1975, %v2083
  %v2124 = vadd.f32 %v1976, %v2083
  %v2125 = vadd.f32 %v1977, %v2083
  %v2126 = vadd.f32 %v1978, %v2083
  %v2127 = vadd.f32 %v1979, %v2083
  %v2128 = vadd.f32 %v1980, %v2083
  %v2129 = vadd.f32 %v1981, %v2083
  %v2130 = vadd.f32 %v1982, %v2083
  %v2131 = vadd.f32 %v1983, %v2083
  %v2132 = vadd.f32 %v1984, %v2083
  %v2133 = vadd.f32 %v1985, %v2083
  %v2134 = vadd.f32 %v1986, %v2083
  %v2135 = vadd.f32 %v1987, %v2083
  %v2136 = vadd.f32 %v1988, %v2083
  %v2137 = vadd.f32 %v1989, %v2083
  %v2138 = vadd.f32 %v1990, %v2083
  %v2139 = vadd.f32 %v1991, %v2083
  %v2140 = vadd.f32 %v1992, %v2083
  %v2141 = vadd.f32 %v1993, %v2083
  %v2142 = vadd.f32 %v1994, %v2083
  %v2143 = vadd.f32 %v1995, %v2083
  %v2144 = vadd.f32 %v1996, %v2083
  %v2145 = vadd.f32 %v1997, %v2083
  %v2146 = vadd.f32 %v1998, %v2083
  %v2147 = vadd.f32 %v1999, %v2083
  %v2148 = vadd.f32 %v2000, %v2083
  %v2149 = vadd.f32 %v2001, %v2083
  %v2150 = vadd.f32 %v2002, %v2083
  %v2151 = vadd.f32 %v2003, %v2083
  %v2152 = vadd.f32 %v2004, %v2083
  %v2153 = vadd.f32 %v2005, %v2083
  %v2154 = vadd.f32 %v2006, %v2083
  %v2155 = vadd.f32 %v2007, %v2083
  %v2156 = vadd.f32 %v2008, %v2083
  %v2157 = vadd.f32 %v2009, %v2083
  %v2158 = vadd.f32 %v2010, %v2083
  %v2159 = vadd.f32 %v2011, %v2083
  %v2160 = vadd.f32 %v2012, %v2083
  %v2161 = vadd.f32 %v2013, %v2083
  %v2162 = vadd.f32 %v2014, %v2083
  %v2163 = vadd.f32 %v2015, %v2083
  %v2164 = vadd.f32 %v2016, %v2083
  %v2165 = vadd.f32 %v2017, %v2083
  %v2166 = vadd.f32 %v2018, %v2083
  %v2167 = vadd.f32 %v2019, %v2083
  %v2168 = vadd.f32 %v2020, %v2083
  %v2169 = vadd.f32 %v2021, %v2083
  %v2170 = vadd.f32 %v2022, %v2083
  %v2171 = vadd.f32 %v2023, %v2083
  %v2172 = vadd.f32 %v2024, %v2083
  %v2173 = vadd.f32 %v2025, %v2083
  %v2174 = vadd.f32 %v2026, %v2083
  %v2175 = vadd.f32 %v2027, %v2083
  %v2176 = vadd.f32 %v2028, %v2083
  %v2177 = vadd.f32 %v2029, %v2083
  %v2178 = vadd.f32 %v2030, %v2083
  %v2179 = vadd.f32 %v2031, %v2083
  %v2180 = vadd.f32 %v2032, %v2083
  %v2181 = vadd.f32 %v2033, %v2083
  %v2182 = vadd.f32 %v2034, %v2083
  %v2183 = vadd.f32 %v2035, %v2083
  %v2184 = vadd.f32 %v2036, %v2083
  %v2185 = vadd.f32 %v2037, %v2083
  %v2186 = vadd.f32 %v2038, %v2083
  %v2187 = vadd.f32 %v2039, %v2083
  %v2188 = vadd.f32 %v2040, %v2083
  %v2189 = vadd.f32 %v2041, %v2083
  %v2190 = vadd.f32 %v2042, %v2083
  %v2191 = vadd.f32 %v2043, %v2083
  %v2192 = vadd.f32 %v2044, %v2083
  %v2193 = vadd.f32 %v2045, %v2083
  %v2194 = vadd.f32 %v2046, %v2083
  %v2195 = vadd.f32 %v2047, %v2083
  %v2196 = vadd.f32 %v2048, %v2083
  %v2197 = vadd.f32 %v2049, %v2083
  %v2198 = vadd.f32 %v2050, %v2083
  %v2199 = vadd.f32 %v2051, %v2083
  %v2200 = vadd.f32 %v2052, %v2083
  %v2201 = vadd.f32 %v2053, %v2083
  %v2202 = vadd.f32 %v2054, %v2083
  %v2203 = vadd.f32 %v2055, %v2083
  %v2204 = vadd.f32 %v2056, %v2083
  %v2205 = vadd.f32 %v2057, %v2083
  %v2206 = vadd.f32 %v2058, %v2083
  %v2207 = vadd.f32 %v2059, %v2083
  %v2208 = vadd.f32 %v2060, %v2083
  %v2209 = vadd.f32 %v2061, %v2083
  %v2210 = vadd.f32 %v2062, %v2083
  %v2211 = vadd.f32 %v2063, %v2083
  %v2212 = vadd.f32 %v2064, %v2083
  %v2213 = vadd.f32 %v2065, %v2083
  %v2214 = vadd.f32 %v2066, %v2083
  %v2215 = vadd.f32 %v2067, %v2083
  %v2216 = vadd.f32 %v2068, %v2083
  %v2217 = vadd.f32 %v2069, %v2083
  %v2218 = vadd.f32 %v2070, %v2083
  %v2219 = vadd.f32 %v2071, %v2083
  %v2220 = vadd.f32 %v2072, %v2083
  %v2221 = vadd.f32 %v2073, %v2083
  %v2222 = vadd.f32 %v2074, %v2083
  %v2223 = vadd.f32 %v2075, %v2083
  %v2224 = vadd.f32 %v2076, %v2083
  %v2225 = vadd.f32 %v2077, %v2083
  %v2226 = vadd.f32 %v2078, %v2083
  %v2227 = vadd.f32 %v2079, %v2083
  %v2228 = vadd.f32 %v2080, %v2083
  %v2229 = vmax.f32 %v2085, 0.0
  %v2230 = vmax.f32 %v2086, 0.0
  %v2231 = vmax.f32 %v2087, 0.0
  %v2232 = vmax.f32 %v2088, 0.0
  %v2233 = vmax.f32 %v2089, 0.0
  %v2234 = vmax.f32 %v2090, 0.0
  %v2235 = vmax.f32 %v2091, 0.0
  %v2236 = vmax.f32 %v2092, 0.0
  %v2237 = vmax.f32 %v2093, 0.0
  %v2238 = vmax.f32 %v2094, 0.0
  %v2239 = vmax.f32 %v2095, 0.0
  %v2240 = vmax.f32 %v2096, 0.0
  %v2241 = vmax.f32 %v2097, 0.0
  %v2242 = vmax.f32 %v2098, 0.0
  %v2243 = vmax.f32 %v2099, 0.0
  %v2244 = vmax.f32 %v2100, 0.0
  %v2245 = vmax.f32 %v2101, 0.0
  %v2246 = vmax.f32 %v2102, 0.0
  %v2247 = vmax.f32 %v2103, 0.0
  %v2248 = vmax.f32 %v2104, 0.0
  %v2249 = vmax.f32 %v2105, 0.0
  %v2250 = vmax.f32 %v2106, 0.0
  %v2251 = vmax.f32 %v2107, 0.0
  %v2252 = vmax.f32 %v2108, 0.0
  %v2253 = vmax.f32 %v2109, 0.0
  %v2254 = vmax.f32 %v2110, 0.0
  %v2255 = vmax.f32 %v2111, 0.0
  %v2256 = vmax.f32 %v2112, 0.0
  %v2257 = vmax.f32 %v2113, 0.0
  %v2258 = vmax.f32 %v2114, 0.0
  %v2259 = vmax.f32 %v2115, 0.0
  %v2260 = vmax.f32 %v2116, 0.0
  %v2261 = vmax.f32 %v2117, 0.0
  %v2262 = vmax.f32 %v2118, 0.0
  %v2263 = vmax.f32 %v2119, 0.0
  %v2264 = vmax.f32 %v2120, 0.0
  %v2265 = vmax.f32 %v2121, 0.0
  %v2266 = vmax.f32 %v2122, 0.0
  %v2267 = vmax.f32 %v2123, 0.0
  %v2268 = vmax.f32 %v2124, 0.0
  %v2269 = vmax.f32 %v2125, 0.0
  %v2270 = vmax.f32 %v2126, 0.0
  %v2271 = vmax.f32 %v2127, 0.0
  %v2272 = vmax.f32 %v2128, 0.0
  %v2273 = vmax.f32 %v2129, 0.0
  %v2274 = vmax.f32 %v2130, 0.0
  %v2275 = vmax.f32 %v2131, 0.0
  %v2276 = vmax.f32 %v2132, 0.0
  %v2277 = vmax.f32 %v2133, 0.0
  %v2278 = vmax.f32 %v2134, 0.0
  %v2279 = vmax.f32 %v2135, 0.0
  %v2280 = vmax.f32 %v2136, 0.0
  %v2281 = vmax.f32 %v2137, 0.0
  %v2282 = vmax.f32 %v2138, 0.0
  %v2283 = vmax.f32 %v2139, 0.0
  %v2284 = vmax.f32 %v2140, 0.0
  %v2285 = vmax.f32 %v2141, 0.0
  %v2286 = vmax.f32 %v2142, 0.0
  %v2287 = vmax.f32 %v2143, 0.0
  %v2288 = vmax.f32 %v2144, 0.0
  %v2289 = vmax.f32 %v2145, 0.0
  %v2290 = vmax.f32 %v2146, 0.0
  %v2291 = vmax.f32 %v2147, 0.0
  %v2292 = vmax.f32 %v2148, 0.0
  %v2293 = vmax.f32 %v2149, 0.0
  %v2294 = vmax.f32 %v2150, 0.0
  %v2295 = vmax.f32 %v2151, 0.0
  %v2296 = vmax.f32 %v2152, 0.0
  %v2297 = vmax.f32 %v2153, 0.0
  %v2298 = vmax.f32 %v2154, 0.0
  %v2299 = vmax.f32 %v2155, 0.0
  %v2300 = vmax.f32 %v2156, 0.0
  %v2301 = vmax.f32 %v2157, 0.0
  %v2302 = vmax.f32 %v2158, 0.0
  %v2303 = vmax.f32 %v2159, 0.0
  %v2304 = vmax.f32 %v2160, 0.0
  %v2305 = vmax.f32 %v2161, 0.0
  %v2306 = vmax.f32 %v2162, 0.0
  %v2307 = vmax.f32 %v2163, 0.0
  %v2308 = vmax.f32 %v2164, 0.0
  %v2309 = vmax.f32 %v2165, 0.0
  %v2310 = vmax.f32 %v2166, 0.0
  %v2311 = vmax.f32 %v2167, 0.0
  %v2312 = vmax.f32 %v2168, 0.0
  %v2313 = vmax.f32 %v2169, 0.0
  %v2314 = vmax.f32 %v2170, 0.0
  %v2315 = vmax.f32 %v2171, 0.0
  %v2316 = vmax.f32 %v2172, 0.0
  %v2317 = vmax.f32 %v2173, 0.0
  %v2318 = vmax.f32 %v2174, 0.0
  %v2319 = vmax.f32 %v2175, 0.0
  %v2320 = vmax.f32 %v2176, 0.0
  %v2321 = vmax.f32 %v2177, 0.0
  %v2322 = vmax.f32 %v2178, 0.0
  %v2323 = vmax.f32 %v2179, 0.0
  %v2324 = vmax.f32 %v2180, 0.0
  %v2325 = vmax.f32 %v2181, 0.0
  %v2326 = vmax.f32 %v2182, 0.0
  %v2327 = vmax.f32 %v2183, 0.0
  %v2328 = vmax.f32 %v2184, 0.0
  %v2329 = vmax.f32 %v2185, 0.0
  %v2330 = vmax.f32 %v2186, 0.0
  %v2331 = vmax.f32 %v2187, 0.0
  %v2332 = vmax.f32 %v2188, 0.0
  %v2333 = vmax.f32 %v2189, 0.0
  %v2334 = vmax.f32 %v2190, 0.0
  %v2335 = vmax.f32 %v2191, 0.0
  %v2336 = vmax.f32 %v2192, 0.0
  %v2337 = vmax.f32 %v2193, 0.0
  %v2338 = vmax.f32 %v2194, 0.0
  %v2339 = vmax.f32 %v2195, 0.0
  %v2340 = vmax.f32 %v2196, 0.0
  %v2341 = vmax.f32 %v2197, 0.0
  %v2342 = vmax.f32 %v2198, 0.0
  %v2343 = vmax.f32 %v2199, 0.0
  %v2344 = vmax.f32 %v2200, 0.0
  %v2345 = vmax.f32 %v2201, 0.0
  %v2346 = vmax.f32 %v2202, 0.0
  %v2347 = vmax.f32 %v2203, 0.0
  %v2348 = vmax.f32 %v2204, 0.0
  %v2349 = vmax.f32 %v2205, 0.0
  %v2350 = vmax.f32 %v2206, 0.0
  %v2351 = vmax.f32 %v2207, 0.0
  %v2352 = vmax.f32 %v2208, 0.0
  %v2353 = vmax.f32 %v2209, 0.0
  %v2354 = vmax.f32 %v2210, 0.0
  %v2355 = vmax.f32 %v2211, 0.0
  %v2356 = vmax.f32 %v2212, 0.0
  %v2357 = vmax.f32 %v2213, 0.0
  %v2358 = vmax.f32 %v2214, 0.0
  %v2359 = vmax.f32 %v2215, 0.0
  %v2360 = vmax.f32 %v2216, 0.0
  %v2361 = vmax.f32 %v2217, 0.0
  %v2362 = vmax.f32 %v2218, 0.0
  %v2363 = vmax.f32 %v2219, 0.0
  %v2364 = vmax.f32 %v2220, 0.0
  %v2365 = vmax.f32 %v2221, 0.0
  %v2366 = vmax.f32 %v2222, 0.0
  %v2367 = vmax.f32 %v2223, 0.0
  %v2368 = vmax.f32 %v2224, 0.0
  %v2369 = vmax.f32 %v2225, 0.0
  %v2370 = vmax.f32 %v2226, 0.0
  %v2371 = vmax.f32 %v2227, 0.0
  %v2372 = vmax.f32 %v2228, 0.0
  %v2373 = vld [vmem:[%s3] sm:$0xff]
  %v2374 = vld [vmem:[%s3 + $0x8] sm:$0xff]
  %v2375 = vld [vmem:[%s3 + $0x10] sm:$0xff]
  %v2376 = vld [vmem:[%s3 + $0x18] sm:$0xff]
  %s2377 = scalar_lea.vmem %s3, 32
  %v2378 = vld [vmem:[%s2377] sm:$0xff]
  %v2379 = vld [vmem:[%s2377 + $0x8] sm:$0xff]
  %v2380 = vld [vmem:[%s2377 + $0x10] sm:$0xff]
  %v2381 = vld [vmem:[%s2377 + $0x18] sm:$0xff]
  %vm2382 = vcmask 261120
  %v2384 = vsel %vm2382, %v2230, 0
  %v2387 = vsel %vm2382, %v2231, 0
  %v2390 = vsel %vm2382, %v2232, 0
  %v2393 = vsel %vm2382, %v2233, 0
  %v2396 = vsel %vm2382, %v2234, 0
  %v2399 = vsel %vm2382, %v2235, 0
  %v2402 = vsel %vm2382, %v2236, 0
  %v2405 = vsel %vm2382, %v2237, 0
  %v2408 = vsel %vm2382, %v2242, 0
  %v2411 = vsel %vm2382, %v2243, 0
  %v2414 = vsel %vm2382, %v2244, 0
  %v2417 = vsel %vm2382, %v2245, 0
  %v2420 = vsel %vm2382, %v2246, 0
  %v2423 = vsel %vm2382, %v2247, 0
  %v2426 = vsel %vm2382, %v2248, 0
  %v2429 = vsel %vm2382, %v2249, 0
  %v2432 = vsel %vm2382, %v2254, 0
  %v2435 = vsel %vm2382, %v2255, 0
  %v2438 = vsel %vm2382, %v2256, 0
  %v2441 = vsel %vm2382, %v2257, 0
  %v2444 = vsel %vm2382, %v2258, 0
  %v2447 = vsel %vm2382, %v2259, 0
  %v2450 = vsel %vm2382, %v2260, 0
  %v2453 = vsel %vm2382, %v2261, 0
  %v2456 = vsel %vm2382, %v2266, 0
  %v2459 = vsel %vm2382, %v2267, 0
  %v2462 = vsel %vm2382, %v2268, 0
  %v2465 = vsel %vm2382, %v2269, 0
  %v2468 = vsel %vm2382, %v2270, 0
  %v2471 = vsel %vm2382, %v2271, 0
  %v2474 = vsel %vm2382, %v2272, 0
  %v2477 = vsel %vm2382, %v2273, 0
  %v2480 = vsel %vm2382, %v2278, 0
  %v2483 = vsel %vm2382, %v2279, 0
  %v2486 = vsel %vm2382, %v2280, 0
  %v2489 = vsel %vm2382, %v2281, 0
  %v2492 = vsel %vm2382, %v2282, 0
  %v2495 = vsel %vm2382, %v2283, 0
  %v2498 = vsel %vm2382, %v2284, 0
  %v2501 = vsel %vm2382, %v2285, 0
  %v2504 = vsel %vm2382, %v2290, 0
  %v2507 = vsel %vm2382, %v2291, 0
  %v2510 = vsel %vm2382, %v2292, 0
  %v2513 = vsel %vm2382, %v2293, 0
  %v2516 = vsel %vm2382, %v2294, 0
  %v2519 = vsel %vm2382, %v2295, 0
  %v2522 = vsel %vm2382, %v2296, 0
  %v2525 = vsel %vm2382, %v2297, 0
  %v2528 = vsel %vm2382, %v2302, 0
  %v2531 = vsel %vm2382, %v2303, 0
  %v2534 = vsel %vm2382, %v2304, 0
  %v2537 = vsel %vm2382, %v2305, 0
  %v2540 = vsel %vm2382, %v2306, 0
  %v2543 = vsel %vm2382, %v2307, 0
  %v2546 = vsel %vm2382, %v2308, 0
  %v2549 = vsel %vm2382, %v2309, 0
  %v2552 = vsel %vm2382, %v2314, 0
  %v2555 = vsel %vm2382, %v2315, 0
  %v2558 = vsel %vm2382, %v2316, 0
  %v2561 = vsel %vm2382, %v2317, 0
  %v2564 = vsel %vm2382, %v2318, 0
  %v2567 = vsel %vm2382, %v2319, 0
  %v2570 = vsel %vm2382, %v2320, 0
  %v2573 = vsel %vm2382, %v2321, 0
  %2575 = vmatpush.msra.mxu0 0.0
  %2576 = vmatpush.msra.mxu0 0.0
  %2577 = vmatpush.msra.mxu0 0.0
  %2578 = vmatpush.msra.mxu0 0.0
  %2579 = vmatpush.msra.mxu0 0.0
  %2580 = vmatpush.msra.mxu0 0.0
  %2581 = vmatpush.msra.mxu0 0.0
  %2582 = vmatpush.msra.mxu0 0.0
  %2583 = vmatpush.msra.mxu0 0.0
  %2584 = vmatpush.msra.mxu0 0.0
  %2585 = vmatpush.msra.mxu0 0.0
  %2586 = vmatpush.msra.mxu0 0.0
  %2587 = vmatpush.msra.mxu0 %v2381
  %2588 = vmatpush.msra.mxu0 %v2380
  %2589 = vmatpush.msra.mxu0 %v2379
  %2590 = vmatpush.msra.mxu0 %v2378
  %2591 = vmatmul.f32.gmra.mxu0 %v2384
  %v2592 = vpop.f32.mrf.mxu0
  %v2593 = vadd.f32 0.0, %v2592
  %2594 = vmatmul.f32.gmra.mxu0 %v2387
  %v2595 = vpop.f32.mrf.mxu0
  %v2596 = vadd.f32 0.0, %v2595
  %2597 = vmatmul.f32.gmra.mxu0 %v2390
  %v2598 = vpop.f32.mrf.mxu0
  %v2599 = vadd.f32 0.0, %v2598
  %2600 = vmatmul.f32.gmra.mxu0 %v2393
  %v2601 = vpop.f32.mrf.mxu0
  %v2602 = vadd.f32 0.0, %v2601
  %2603 = vmatmul.f32.gmra.mxu0 %v2396
  %v2604 = vpop.f32.mrf.mxu0
  %v2605 = vadd.f32 0.0, %v2604
  %2606 = vmatmul.f32.gmra.mxu0 %v2399
  %v2607 = vpop.f32.mrf.mxu0
  %v2608 = vadd.f32 0.0, %v2607
  %2609 = vmatmul.f32.gmra.mxu0 %v2402
  %v2610 = vpop.f32.mrf.mxu0
  %v2611 = vadd.f32 0.0, %v2610
  %2612 = vmatmul.f32.gmra.mxu0 %v2405
  %v2613 = vpop.f32.mrf.mxu0
  %v2614 = vadd.f32 0.0, %v2613
  %2615 = vmatmul.f32.gmra.mxu0 %v2408
  %v2616 = vpop.f32.mrf.mxu0
  %v2617 = vadd.f32 0.0, %v2616
  %2618 = vmatmul.f32.gmra.mxu0 %v2411
  %v2619 = vpop.f32.mrf.mxu0
  %v2620 = vadd.f32 0.0, %v2619
  %2621 = vmatmul.f32.gmra.mxu0 %v2414
  %v2622 = vpop.f32.mrf.mxu0
  %v2623 = vadd.f32 0.0, %v2622
  %2624 = vmatmul.f32.gmra.mxu0 %v2417
  %v2625 = vpop.f32.mrf.mxu0
  %v2626 = vadd.f32 0.0, %v2625
  %2627 = vmatmul.f32.gmra.mxu0 %v2420
  %v2628 = vpop.f32.mrf.mxu0
  %v2629 = vadd.f32 0.0, %v2628
  %2630 = vmatmul.f32.gmra.mxu0 %v2423
  %v2631 = vpop.f32.mrf.mxu0
  %v2632 = vadd.f32 0.0, %v2631
  %2633 = vmatmul.f32.gmra.mxu0 %v2426
  %v2634 = vpop.f32.mrf.mxu0
  %v2635 = vadd.f32 0.0, %v2634
  %2636 = vmatmul.f32.gmra.mxu0 %v2429
  %v2637 = vpop.f32.mrf.mxu0
  %v2638 = vadd.f32 0.0, %v2637
  %2639 = vmatmul.f32.gmra.mxu0 %v2432
  %v2640 = vpop.f32.mrf.mxu0
  %v2641 = vadd.f32 0.0, %v2640
  %2642 = vmatmul.f32.gmra.mxu0 %v2435
  %v2643 = vpop.f32.mrf.mxu0
  %v2644 = vadd.f32 0.0, %v2643
  %2645 = vmatmul.f32.gmra.mxu0 %v2438
  %v2646 = vpop.f32.mrf.mxu0
  %v2647 = vadd.f32 0.0, %v2646
  %2648 = vmatmul.f32.gmra.mxu0 %v2441
  %v2649 = vpop.f32.mrf.mxu0
  %v2650 = vadd.f32 0.0, %v2649
  %2651 = vmatmul.f32.gmra.mxu0 %v2444
  %v2652 = vpop.f32.mrf.mxu0
  %v2653 = vadd.f32 0.0, %v2652
  %2654 = vmatmul.f32.gmra.mxu0 %v2447
  %v2655 = vpop.f32.mrf.mxu0
  %v2656 = vadd.f32 0.0, %v2655
  %2657 = vmatmul.f32.gmra.mxu0 %v2450
  %v2658 = vpop.f32.mrf.mxu0
  %v2659 = vadd.f32 0.0, %v2658
  %2660 = vmatmul.f32.gmra.mxu0 %v2453
  %v2661 = vpop.f32.mrf.mxu0
  %v2662 = vadd.f32 0.0, %v2661
  %2663 = vmatmul.f32.gmra.mxu0 %v2456
  %v2664 = vpop.f32.mrf.mxu0
  %v2665 = vadd.f32 0.0, %v2664
  %2666 = vmatmul.f32.gmra.mxu0 %v2459
  %v2667 = vpop.f32.mrf.mxu0
  %v2668 = vadd.f32 0.0, %v2667
  %2669 = vmatmul.f32.gmra.mxu0 %v2462
  %v2670 = vpop.f32.mrf.mxu0
  %v2671 = vadd.f32 0.0, %v2670
  %2672 = vmatmul.f32.gmra.mxu0 %v2465
  %v2673 = vpop.f32.mrf.mxu0
  %v2674 = vadd.f32 0.0, %v2673
  %2675 = vmatmul.f32.gmra.mxu0 %v2468
  %v2676 = vpop.f32.mrf.mxu0
  %v2677 = vadd.f32 0.0, %v2676
  %2678 = vmatmul.f32.gmra.mxu0 %v2471
  %v2679 = vpop.f32.mrf.mxu0
  %v2680 = vadd.f32 0.0, %v2679
  %2681 = vmatmul.f32.gmra.mxu0 %v2474
  %v2682 = vpop.f32.mrf.mxu0
  %v2683 = vadd.f32 0.0, %v2682
  %2684 = vmatmul.f32.gmra.mxu0 %v2477
  %v2685 = vpop.f32.mrf.mxu0
  %v2686 = vadd.f32 0.0, %v2685
  %2687 = vmatmul.f32.gmra.mxu0 %v2480
  %v2688 = vpop.f32.mrf.mxu0
  %v2689 = vadd.f32 0.0, %v2688
  %2690 = vmatmul.f32.gmra.mxu0 %v2483
  %v2691 = vpop.f32.mrf.mxu0
  %v2692 = vadd.f32 0.0, %v2691
  %2693 = vmatmul.f32.gmra.mxu0 %v2486
  %v2694 = vpop.f32.mrf.mxu0
  %v2695 = vadd.f32 0.0, %v2694
  %2696 = vmatmul.f32.gmra.mxu0 %v2489
  %v2697 = vpop.f32.mrf.mxu0
  %v2698 = vadd.f32 0.0, %v2697
  %2699 = vmatmul.f32.gmra.mxu0 %v2492
  %v2700 = vpop.f32.mrf.mxu0
  %v2701 = vadd.f32 0.0, %v2700
  %2702 = vmatmul.f32.gmra.mxu0 %v2495
  %v2703 = vpop.f32.mrf.mxu0
  %v2704 = vadd.f32 0.0, %v2703
  %2705 = vmatmul.f32.gmra.mxu0 %v2498
  %v2706 = vpop.f32.mrf.mxu0
  %v2707 = vadd.f32 0.0, %v2706
  %2708 = vmatmul.f32.gmra.mxu0 %v2501
  %v2709 = vpop.f32.mrf.mxu0
  %v2710 = vadd.f32 0.0, %v2709
  %2711 = vmatmul.f32.gmra.mxu0 %v2504
  %v2712 = vpop.f32.mrf.mxu0
  %v2713 = vadd.f32 0.0, %v2712
  %2714 = vmatmul.f32.gmra.mxu0 %v2507
  %v2715 = vpop.f32.mrf.mxu0
  %v2716 = vadd.f32 0.0, %v2715
  %2717 = vmatmul.f32.gmra.mxu0 %v2510
  %v2718 = vpop.f32.mrf.mxu0
  %v2719 = vadd.f32 0.0, %v2718
  %2720 = vmatmul.f32.gmra.mxu0 %v2513
  %v2721 = vpop.f32.mrf.mxu0
  %v2722 = vadd.f32 0.0, %v2721
  %2723 = vmatmul.f32.gmra.mxu0 %v2516
  %v2724 = vpop.f32.mrf.mxu0
  %v2725 = vadd.f32 0.0, %v2724
  %2726 = vmatmul.f32.gmra.mxu0 %v2519
  %v2727 = vpop.f32.mrf.mxu0
  %v2728 = vadd.f32 0.0, %v2727
  %2729 = vmatmul.f32.gmra.mxu0 %v2522
  %v2730 = vpop.f32.mrf.mxu0
  %v2731 = vadd.f32 0.0, %v2730
  %2732 = vmatmul.f32.gmra.mxu0 %v2525
  %v2733 = vpop.f32.mrf.mxu0
  %v2734 = vadd.f32 0.0, %v2733
  %2735 = vmatmul.f32.gmra.mxu0 %v2528
  %v2736 = vpop.f32.mrf.mxu0
  %v2737 = vadd.f32 0.0, %v2736
  %2738 = vmatmul.f32.gmra.mxu0 %v2531
  %v2739 = vpop.f32.mrf.mxu0
  %v2740 = vadd.f32 0.0, %v2739
  %2741 = vmatmul.f32.gmra.mxu0 %v2534
  %v2742 = vpop.f32.mrf.mxu0
  %v2743 = vadd.f32 0.0, %v2742
  %2744 = vmatmul.f32.gmra.mxu0 %v2537
  %v2745 = vpop.f32.mrf.mxu0
  %v2746 = vadd.f32 0.0, %v2745
  %2747 = vmatmul.f32.gmra.mxu0 %v2540
  %v2748 = vpop.f32.mrf.mxu0
  %v2749 = vadd.f32 0.0, %v2748
  %2750 = vmatmul.f32.gmra.mxu0 %v2543
  %v2751 = vpop.f32.mrf.mxu0
  %v2752 = vadd.f32 0.0, %v2751
  %2753 = vmatmul.f32.gmra.mxu0 %v2546
  %v2754 = vpop.f32.mrf.mxu0
  %v2755 = vadd.f32 0.0, %v2754
  %2756 = vmatmul.f32.gmra.mxu0 %v2549
  %v2757 = vpop.f32.mrf.mxu0
  %v2758 = vadd.f32 0.0, %v2757
  %2759 = vmatmul.f32.gmra.mxu0 %v2552
  %v2760 = vpop.f32.mrf.mxu0
  %v2761 = vadd.f32 0.0, %v2760
  %2762 = vmatmul.f32.gmra.mxu0 %v2555
  %v2763 = vpop.f32.mrf.mxu0
  %v2764 = vadd.f32 0.0, %v2763
  %2765 = vmatmul.f32.gmra.mxu0 %v2558
  %v2766 = vpop.f32.mrf.mxu0
  %v2767 = vadd.f32 0.0, %v2766
  %2768 = vmatmul.f32.gmra.mxu0 %v2561
  %v2769 = vpop.f32.mrf.mxu0
  %v2770 = vadd.f32 0.0, %v2769
  %2771 = vmatmul.f32.gmra.mxu0 %v2564
  %v2772 = vpop.f32.mrf.mxu0
  %v2773 = vadd.f32 0.0, %v2772
  %2774 = vmatmul.f32.gmra.mxu0 %v2567
  %v2775 = vpop.f32.mrf.mxu0
  %v2776 = vadd.f32 0.0, %v2775
  %2777 = vmatmul.f32.gmra.mxu0 %v2570
  %v2778 = vpop.f32.mrf.mxu0
  %v2779 = vadd.f32 0.0, %v2778
  %2780 = vmatmul.f32.gmra.mxu0 %v2573
  %v2781 = vpop.f32.mrf.mxu0
  %v2782 = vadd.f32 0.0, %v2781
  %2783 = vdwg.mxu0
  %v2785 = vsel %vm2382, %v2229, 0
  %v2788 = vsel %vm2382, %v2241, 0
  %v2791 = vsel %vm2382, %v2253, 0
  %v2794 = vsel %vm2382, %v2265, 0
  %v2797 = vsel %vm2382, %v2277, 0
  %v2800 = vsel %vm2382, %v2289, 0
  %v2803 = vsel %vm2382, %v2301, 0
  %v2806 = vsel %vm2382, %v2313, 0
  %2808 = vmatpush.msra.mxu0 0.0
  %2809 = vmatpush.msra.mxu0 0.0
  %2810 = vmatpush.msra.mxu0 0.0
  %2811 = vmatpush.msra.mxu0 0.0
  %2812 = vmatpush.msra.mxu0 0.0
  %2813 = vmatpush.msra.mxu0 0.0
  %2814 = vmatpush.msra.mxu0 0.0
  %2815 = vmatpush.msra.mxu0 0.0
  %2816 = vmatpush.msra.mxu0 0.0
  %2817 = vmatpush.msra.mxu0 0.0
  %2818 = vmatpush.msra.mxu0 0.0
  %2819 = vmatpush.msra.mxu0 0.0
  %2820 = vmatpush.msra.mxu0 %v2376
  %2821 = vmatpush.msra.mxu0 %v2375
  %2822 = vmatpush.msra.mxu0 %v2374
  %2823 = vmatpush.msra.mxu0 %v2373
  %2824 = vmatmul.f32.gmra.mxu0 %v2785
  %v2825 = vpop.f32.mrf.mxu0
  %v2826 = vadd.f32 %v2593, %v2825
  %2827 = vmatmul.f32.gmra.mxu0 %v2384
  %v2828 = vpop.f32.mrf.mxu0
  %v2829 = vadd.f32 %v2596, %v2828
  %2830 = vmatmul.f32.gmra.mxu0 %v2387
  %v2831 = vpop.f32.mrf.mxu0
  %v2832 = vadd.f32 %v2599, %v2831
  %2833 = vmatmul.f32.gmra.mxu0 %v2390
  %v2834 = vpop.f32.mrf.mxu0
  %v2835 = vadd.f32 %v2602, %v2834
  %2836 = vmatmul.f32.gmra.mxu0 %v2393
  %v2837 = vpop.f32.mrf.mxu0
  %v2838 = vadd.f32 %v2605, %v2837
  %2839 = vmatmul.f32.gmra.mxu0 %v2396
  %v2840 = vpop.f32.mrf.mxu0
  %v2841 = vadd.f32 %v2608, %v2840
  %2842 = vmatmul.f32.gmra.mxu0 %v2399
  %v2843 = vpop.f32.mrf.mxu0
  %v2844 = vadd.f32 %v2611, %v2843
  %2845 = vmatmul.f32.gmra.mxu0 %v2402
  %v2846 = vpop.f32.mrf.mxu0
  %v2847 = vadd.f32 %v2614, %v2846
  %2848 = vmatmul.f32.gmra.mxu0 %v2788
  %v2849 = vpop.f32.mrf.mxu0
  %v2850 = vadd.f32 %v2617, %v2849
  %2851 = vmatmul.f32.gmra.mxu0 %v2408
  %v2852 = vpop.f32.mrf.mxu0
  %v2853 = vadd.f32 %v2620, %v2852
  %2854 = vmatmul.f32.gmra.mxu0 %v2411
  %v2855 = vpop.f32.mrf.mxu0
  %v2856 = vadd.f32 %v2623, %v2855
  %2857 = vmatmul.f32.gmra.mxu0 %v2414
  %v2858 = vpop.f32.mrf.mxu0
  %v2859 = vadd.f32 %v2626, %v2858
  %2860 = vmatmul.f32.gmra.mxu0 %v2417
  %v2861 = vpop.f32.mrf.mxu0
  %v2862 = vadd.f32 %v2629, %v2861
  %2863 = vmatmul.f32.gmra.mxu0 %v2420
  %v2864 = vpop.f32.mrf.mxu0
  %v2865 = vadd.f32 %v2632, %v2864
  %2866 = vmatmul.f32.gmra.mxu0 %v2423
  %v2867 = vpop.f32.mrf.mxu0
  %v2868 = vadd.f32 %v2635, %v2867
  %2869 = vmatmul.f32.gmra.mxu0 %v2426
  %v2870 = vpop.f32.mrf.mxu0
  %v2871 = vadd.f32 %v2638, %v2870
  %2872 = vmatmul.f32.gmra.mxu0 %v2791
  %v2873 = vpop.f32.mrf.mxu0
  %v2874 = vadd.f32 %v2641, %v2873
  %2875 = vmatmul.f32.gmra.mxu0 %v2432
  %v2876 = vpop.f32.mrf.mxu0
  %v2877 = vadd.f32 %v2644, %v2876
  %2878 = vmatmul.f32.gmra.mxu0 %v2435
  %v2879 = vpop.f32.mrf.mxu0
  %v2880 = vadd.f32 %v2647, %v2879
  %2881 = vmatmul.f32.gmra.mxu0 %v2438
  %v2882 = vpop.f32.mrf.mxu0
  %v2883 = vadd.f32 %v2650, %v2882
  %2884 = vmatmul.f32.gmra.mxu0 %v2441
  %v2885 = vpop.f32.mrf.mxu0
  %v2886 = vadd.f32 %v2653, %v2885
  %2887 = vmatmul.f32.gmra.mxu0 %v2444
  %v2888 = vpop.f32.mrf.mxu0
  %v2889 = vadd.f32 %v2656, %v2888
  %2890 = vmatmul.f32.gmra.mxu0 %v2447
  %v2891 = vpop.f32.mrf.mxu0
  %v2892 = vadd.f32 %v2659, %v2891
  %2893 = vmatmul.f32.gmra.mxu0 %v2450
  %v2894 = vpop.f32.mrf.mxu0
  %v2895 = vadd.f32 %v2662, %v2894
  %2896 = vmatmul.f32.gmra.mxu0 %v2794
  %v2897 = vpop.f32.mrf.mxu0
  %v2898 = vadd.f32 %v2665, %v2897
  %2899 = vmatmul.f32.gmra.mxu0 %v2456
  %v2900 = vpop.f32.mrf.mxu0
  %v2901 = vadd.f32 %v2668, %v2900
  %2902 = vmatmul.f32.gmra.mxu0 %v2459
  %v2903 = vpop.f32.mrf.mxu0
  %v2904 = vadd.f32 %v2671, %v2903
  %2905 = vmatmul.f32.gmra.mxu0 %v2462
  %v2906 = vpop.f32.mrf.mxu0
  %v2907 = vadd.f32 %v2674, %v2906
  %2908 = vmatmul.f32.gmra.mxu0 %v2465
  %v2909 = vpop.f32.mrf.mxu0
  %v2910 = vadd.f32 %v2677, %v2909
  %2911 = vmatmul.f32.gmra.mxu0 %v2468
  %v2912 = vpop.f32.mrf.mxu0
  %v2913 = vadd.f32 %v2680, %v2912
  %2914 = vmatmul.f32.gmra.mxu0 %v2471
  %v2915 = vpop.f32.mrf.mxu0
  %v2916 = vadd.f32 %v2683, %v2915
  %2917 = vmatmul.f32.gmra.mxu0 %v2474
  %v2918 = vpop.f32.mrf.mxu0
  %v2919 = vadd.f32 %v2686, %v2918
  %2920 = vmatmul.f32.gmra.mxu0 %v2797
  %v2921 = vpop.f32.mrf.mxu0
  %v2922 = vadd.f32 %v2689, %v2921
  %2923 = vmatmul.f32.gmra.mxu0 %v2480
  %v2924 = vpop.f32.mrf.mxu0
  %v2925 = vadd.f32 %v2692, %v2924
  %2926 = vmatmul.f32.gmra.mxu0 %v2483
  %v2927 = vpop.f32.mrf.mxu0
  %v2928 = vadd.f32 %v2695, %v2927
  %2929 = vmatmul.f32.gmra.mxu0 %v2486
  %v2930 = vpop.f32.mrf.mxu0
  %v2931 = vadd.f32 %v2698, %v2930
  %2932 = vmatmul.f32.gmra.mxu0 %v2489
  %v2933 = vpop.f32.mrf.mxu0
  %v2934 = vadd.f32 %v2701, %v2933
  %2935 = vmatmul.f32.gmra.mxu0 %v2492
  %v2936 = vpop.f32.mrf.mxu0
  %v2937 = vadd.f32 %v2704, %v2936
  %2938 = vmatmul.f32.gmra.mxu0 %v2495
  %v2939 = vpop.f32.mrf.mxu0
  %v2940 = vadd.f32 %v2707, %v2939
  %2941 = vmatmul.f32.gmra.mxu0 %v2498
  %v2942 = vpop.f32.mrf.mxu0
  %v2943 = vadd.f32 %v2710, %v2942
  %2944 = vmatmul.f32.gmra.mxu0 %v2800
  %v2945 = vpop.f32.mrf.mxu0
  %v2946 = vadd.f32 %v2713, %v2945
  %2947 = vmatmul.f32.gmra.mxu0 %v2504
  %v2948 = vpop.f32.mrf.mxu0
  %v2949 = vadd.f32 %v2716, %v2948
  %2950 = vmatmul.f32.gmra.mxu0 %v2507
  %v2951 = vpop.f32.mrf.mxu0
  %v2952 = vadd.f32 %v2719, %v2951
  %2953 = vmatmul.f32.gmra.mxu0 %v2510
  %v2954 = vpop.f32.mrf.mxu0
  %v2955 = vadd.f32 %v2722, %v2954
  %2956 = vmatmul.f32.gmra.mxu0 %v2513
  %v2957 = vpop.f32.mrf.mxu0
  %v2958 = vadd.f32 %v2725, %v2957
  %2959 = vmatmul.f32.gmra.mxu0 %v2516
  %v2960 = vpop.f32.mrf.mxu0
  %v2961 = vadd.f32 %v2728, %v2960
  %2962 = vmatmul.f32.gmra.mxu0 %v2519
  %v2963 = vpop.f32.mrf.mxu0
  %v2964 = vadd.f32 %v2731, %v2963
  %2965 = vmatmul.f32.gmra.mxu0 %v2522
  %v2966 = vpop.f32.mrf.mxu0
  %v2967 = vadd.f32 %v2734, %v2966
  %2968 = vmatmul.f32.gmra.mxu0 %v2803
  %v2969 = vpop.f32.mrf.mxu0
  %v2970 = vadd.f32 %v2737, %v2969
  %2971 = vmatmul.f32.gmra.mxu0 %v2528
  %v2972 = vpop.f32.mrf.mxu0
  %v2973 = vadd.f32 %v2740, %v2972
  %2974 = vmatmul.f32.gmra.mxu0 %v2531
  %v2975 = vpop.f32.mrf.mxu0
  %v2976 = vadd.f32 %v2743, %v2975
  %2977 = vmatmul.f32.gmra.mxu0 %v2534
  %v2978 = vpop.f32.mrf.mxu0
  %v2979 = vadd.f32 %v2746, %v2978
  %2980 = vmatmul.f32.gmra.mxu0 %v2537
  %v2981 = vpop.f32.mrf.mxu0
  %v2982 = vadd.f32 %v2749, %v2981
  %2983 = vmatmul.f32.gmra.mxu0 %v2540
  %v2984 = vpop.f32.mrf.mxu0
  %v2985 = vadd.f32 %v2752, %v2984
  %2986 = vmatmul.f32.gmra.mxu0 %v2543
  %v2987 = vpop.f32.mrf.mxu0
  %v2988 = vadd.f32 %v2755, %v2987
  %2989 = vmatmul.f32.gmra.mxu0 %v2546
  %v2990 = vpop.f32.mrf.mxu0
  %v2991 = vadd.f32 %v2758, %v2990
  %2992 = vmatmul.f32.gmra.mxu0 %v2806
  %v2993 = vpop.f32.mrf.mxu0
  %v2994 = vadd.f32 %v2761, %v2993
  %2995 = vmatmul.f32.gmra.mxu0 %v2552
  %v2996 = vpop.f32.mrf.mxu0
  %v2997 = vadd.f32 %v2764, %v2996
  %2998 = vmatmul.f32.gmra.mxu0 %v2555
  %v2999 = vpop.f32.mrf.mxu0
  %v3000 = vadd.f32 %v2767, %v2999
  %3001 = vmatmul.f32.gmra.mxu0 %v2558
  %v3002 = vpop.f32.mrf.mxu0
  %v3003 = vadd.f32 %v2770, %v3002
  %3004 = vmatmul.f32.gmra.mxu0 %v2561
  %v3005 = vpop.f32.mrf.mxu0
  %v3006 = vadd.f32 %v2773, %v3005
  %3007 = vmatmul.f32.gmra.mxu0 %v2564
  %v3008 = vpop.f32.mrf.mxu0
  %v3009 = vadd.f32 %v2776, %v3008
  %3010 = vmatmul.f32.gmra.mxu0 %v2567
  %v3011 = vpop.f32.mrf.mxu0
  %v3012 = vadd.f32 %v2779, %v3011
  %3013 = vmatmul.f32.gmra.mxu0 %v2570
  %v3014 = vpop.f32.mrf.mxu0
  %v3015 = vadd.f32 %v2782, %v3014
  %3016 = vdwg.mxu0
  %s3017 = scalar_lea.vmem %s3, 64
  %v3018 = vld [vmem:[%s3017] sm:$0xff]
  %v3019 = vld [vmem:[%s3017 + $0x8] sm:$0xff]
  %v3020 = vld [vmem:[%s3017 + $0x10] sm:$0xff]
  %v3021 = vld [vmem:[%s3017 + $0x18] sm:$0xff]
  %v3023 = vsel %vm2382, %v2238, 0
  %v3026 = vsel %vm2382, %v2250, 0
  %v3029 = vsel %vm2382, %v2262, 0
  %v3032 = vsel %vm2382, %v2274, 0
  %v3035 = vsel %vm2382, %v2286, 0
  %v3038 = vsel %vm2382, %v2298, 0
  %v3041 = vsel %vm2382, %v2310, 0
  %v3044 = vsel %vm2382, %v2322, 0
  %3046 = vmatpush.msra.mxu0 0.0
  %3047 = vmatpush.msra.mxu0 0.0
  %3048 = vmatpush.msra.mxu0 0.0
  %3049 = vmatpush.msra.mxu0 0.0
  %3050 = vmatpush.msra.mxu0 0.0
  %3051 = vmatpush.msra.mxu0 0.0
  %3052 = vmatpush.msra.mxu0 0.0
  %3053 = vmatpush.msra.mxu0 0.0
  %3054 = vmatpush.msra.mxu0 0.0
  %3055 = vmatpush.msra.mxu0 0.0
  %3056 = vmatpush.msra.mxu0 0.0
  %3057 = vmatpush.msra.mxu0 0.0
  %3058 = vmatpush.msra.mxu0 %v3021
  %3059 = vmatpush.msra.mxu0 %v3020
  %3060 = vmatpush.msra.mxu0 %v3019
  %3061 = vmatpush.msra.mxu0 %v3018
  %3062 = vmatmul.f32.gmra.mxu0 %v2387
  %v3063 = vpop.f32.mrf.mxu0
  %v3064 = vadd.f32 0.0, %v3063
  %3065 = vmatmul.f32.gmra.mxu0 %v2390
  %v3066 = vpop.f32.mrf.mxu0
  %v3067 = vadd.f32 0.0, %v3066
  %3068 = vmatmul.f32.gmra.mxu0 %v2393
  %v3069 = vpop.f32.mrf.mxu0
  %v3070 = vadd.f32 0.0, %v3069
  %3071 = vmatmul.f32.gmra.mxu0 %v2396
  %v3072 = vpop.f32.mrf.mxu0
  %v3073 = vadd.f32 0.0, %v3072
  %3074 = vmatmul.f32.gmra.mxu0 %v2399
  %v3075 = vpop.f32.mrf.mxu0
  %v3076 = vadd.f32 0.0, %v3075
  %3077 = vmatmul.f32.gmra.mxu0 %v2402
  %v3078 = vpop.f32.mrf.mxu0
  %v3079 = vadd.f32 0.0, %v3078
  %3080 = vmatmul.f32.gmra.mxu0 %v2405
  %v3081 = vpop.f32.mrf.mxu0
  %v3082 = vadd.f32 0.0, %v3081
  %3083 = vmatmul.f32.gmra.mxu0 %v3023
  %v3084 = vpop.f32.mrf.mxu0
  %v3085 = vadd.f32 0.0, %v3084
  %3086 = vmatmul.f32.gmra.mxu0 %v2411
  %v3087 = vpop.f32.mrf.mxu0
  %v3088 = vadd.f32 0.0, %v3087
  %3089 = vmatmul.f32.gmra.mxu0 %v2414
  %v3090 = vpop.f32.mrf.mxu0
  %v3091 = vadd.f32 0.0, %v3090
  %3092 = vmatmul.f32.gmra.mxu0 %v2417
  %v3093 = vpop.f32.mrf.mxu0
  %v3094 = vadd.f32 0.0, %v3093
  %3095 = vmatmul.f32.gmra.mxu0 %v2420
  %v3096 = vpop.f32.mrf.mxu0
  %v3097 = vadd.f32 0.0, %v3096
  %3098 = vmatmul.f32.gmra.mxu0 %v2423
  %v3099 = vpop.f32.mrf.mxu0
  %v3100 = vadd.f32 0.0, %v3099
  %3101 = vmatmul.f32.gmra.mxu0 %v2426
  %v3102 = vpop.f32.mrf.mxu0
  %v3103 = vadd.f32 0.0, %v3102
  %3104 = vmatmul.f32.gmra.mxu0 %v2429
  %v3105 = vpop.f32.mrf.mxu0
  %v3106 = vadd.f32 0.0, %v3105
  %3107 = vmatmul.f32.gmra.mxu0 %v3026
  %v3108 = vpop.f32.mrf.mxu0
  %v3109 = vadd.f32 0.0, %v3108
  %3110 = vmatmul.f32.gmra.mxu0 %v2435
  %v3111 = vpop.f32.mrf.mxu0
  %v3112 = vadd.f32 0.0, %v3111
  %3113 = vmatmul.f32.gmra.mxu0 %v2438
  %v3114 = vpop.f32.mrf.mxu0
  %v3115 = vadd.f32 0.0, %v3114
  %3116 = vmatmul.f32.gmra.mxu0 %v2441
  %v3117 = vpop.f32.mrf.mxu0
  %v3118 = vadd.f32 0.0, %v3117
  %3119 = vmatmul.f32.gmra.mxu0 %v2444
  %v3120 = vpop.f32.mrf.mxu0
  %v3121 = vadd.f32 0.0, %v3120
  %3122 = vmatmul.f32.gmra.mxu0 %v2447
  %v3123 = vpop.f32.mrf.mxu0
  %v3124 = vadd.f32 0.0, %v3123
  %3125 = vmatmul.f32.gmra.mxu0 %v2450
  %v3126 = vpop.f32.mrf.mxu0
  %v3127 = vadd.f32 0.0, %v3126
  %3128 = vmatmul.f32.gmra.mxu0 %v2453
  %v3129 = vpop.f32.mrf.mxu0
  %v3130 = vadd.f32 0.0, %v3129
  %3131 = vmatmul.f32.gmra.mxu0 %v3029
  %v3132 = vpop.f32.mrf.mxu0
  %v3133 = vadd.f32 0.0, %v3132
  %3134 = vmatmul.f32.gmra.mxu0 %v2459
  %v3135 = vpop.f32.mrf.mxu0
  %v3136 = vadd.f32 0.0, %v3135
  %3137 = vmatmul.f32.gmra.mxu0 %v2462
  %v3138 = vpop.f32.mrf.mxu0
  %v3139 = vadd.f32 0.0, %v3138
  %3140 = vmatmul.f32.gmra.mxu0 %v2465
  %v3141 = vpop.f32.mrf.mxu0
  %v3142 = vadd.f32 0.0, %v3141
  %3143 = vmatmul.f32.gmra.mxu0 %v2468
  %v3144 = vpop.f32.mrf.mxu0
  %v3145 = vadd.f32 0.0, %v3144
  %3146 = vmatmul.f32.gmra.mxu0 %v2471
  %v3147 = vpop.f32.mrf.mxu0
  %v3148 = vadd.f32 0.0, %v3147
  %3149 = vmatmul.f32.gmra.mxu0 %v2474
  %v3150 = vpop.f32.mrf.mxu0
  %v3151 = vadd.f32 0.0, %v3150
  %3152 = vmatmul.f32.gmra.mxu0 %v2477
  %v3153 = vpop.f32.mrf.mxu0
  %v3154 = vadd.f32 0.0, %v3153
  %3155 = vmatmul.f32.gmra.mxu0 %v3032
  %v3156 = vpop.f32.mrf.mxu0
  %v3157 = vadd.f32 0.0, %v3156
  %3158 = vmatmul.f32.gmra.mxu0 %v2483
  %v3159 = vpop.f32.mrf.mxu0
  %v3160 = vadd.f32 0.0, %v3159
  %3161 = vmatmul.f32.gmra.mxu0 %v2486
  %v3162 = vpop.f32.mrf.mxu0
  %v3163 = vadd.f32 0.0, %v3162
  %3164 = vmatmul.f32.gmra.mxu0 %v2489
  %v3165 = vpop.f32.mrf.mxu0
  %v3166 = vadd.f32 0.0, %v3165
  %3167 = vmatmul.f32.gmra.mxu0 %v2492
  %v3168 = vpop.f32.mrf.mxu0
  %v3169 = vadd.f32 0.0, %v3168
  %3170 = vmatmul.f32.gmra.mxu0 %v2495
  %v3171 = vpop.f32.mrf.mxu0
  %v3172 = vadd.f32 0.0, %v3171
  %3173 = vmatmul.f32.gmra.mxu0 %v2498
  %v3174 = vpop.f32.mrf.mxu0
  %v3175 = vadd.f32 0.0, %v3174
  %3176 = vmatmul.f32.gmra.mxu0 %v2501
  %v3177 = vpop.f32.mrf.mxu0
  %v3178 = vadd.f32 0.0, %v3177
  %3179 = vmatmul.f32.gmra.mxu0 %v3035
  %v3180 = vpop.f32.mrf.mxu0
  %v3181 = vadd.f32 0.0, %v3180
  %3182 = vmatmul.f32.gmra.mxu0 %v2507
  %v3183 = vpop.f32.mrf.mxu0
  %v3184 = vadd.f32 0.0, %v3183
  %3185 = vmatmul.f32.gmra.mxu0 %v2510
  %v3186 = vpop.f32.mrf.mxu0
  %v3187 = vadd.f32 0.0, %v3186
  %3188 = vmatmul.f32.gmra.mxu0 %v2513
  %v3189 = vpop.f32.mrf.mxu0
  %v3190 = vadd.f32 0.0, %v3189
  %3191 = vmatmul.f32.gmra.mxu0 %v2516
  %v3192 = vpop.f32.mrf.mxu0
  %v3193 = vadd.f32 0.0, %v3192
  %3194 = vmatmul.f32.gmra.mxu0 %v2519
  %v3195 = vpop.f32.mrf.mxu0
  %v3196 = vadd.f32 0.0, %v3195
  %3197 = vmatmul.f32.gmra.mxu0 %v2522
  %v3198 = vpop.f32.mrf.mxu0
  %v3199 = vadd.f32 0.0, %v3198
  %3200 = vmatmul.f32.gmra.mxu0 %v2525
  %v3201 = vpop.f32.mrf.mxu0
  %v3202 = vadd.f32 0.0, %v3201
  %3203 = vmatmul.f32.gmra.mxu0 %v3038
  %v3204 = vpop.f32.mrf.mxu0
  %v3205 = vadd.f32 0.0, %v3204
  %3206 = vmatmul.f32.gmra.mxu0 %v2531
  %v3207 = vpop.f32.mrf.mxu0
  %v3208 = vadd.f32 0.0, %v3207
  %3209 = vmatmul.f32.gmra.mxu0 %v2534
  %v3210 = vpop.f32.mrf.mxu0
  %v3211 = vadd.f32 0.0, %v3210
  %3212 = vmatmul.f32.gmra.mxu0 %v2537
  %v3213 = vpop.f32.mrf.mxu0
  %v3214 = vadd.f32 0.0, %v3213
  %3215 = vmatmul.f32.gmra.mxu0 %v2540
  %v3216 = vpop.f32.mrf.mxu0
  %v3217 = vadd.f32 0.0, %v3216
  %3218 = vmatmul.f32.gmra.mxu0 %v2543
  %v3219 = vpop.f32.mrf.mxu0
  %v3220 = vadd.f32 0.0, %v3219
  %3221 = vmatmul.f32.gmra.mxu0 %v2546
  %v3222 = vpop.f32.mrf.mxu0
  %v3223 = vadd.f32 0.0, %v3222
  %3224 = vmatmul.f32.gmra.mxu0 %v2549
  %v3225 = vpop.f32.mrf.mxu0
  %v3226 = vadd.f32 0.0, %v3225
  %3227 = vmatmul.f32.gmra.mxu0 %v3041
  %v3228 = vpop.f32.mrf.mxu0
  %v3229 = vadd.f32 0.0, %v3228
  %3230 = vmatmul.f32.gmra.mxu0 %v2555
  %v3231 = vpop.f32.mrf.mxu0
  %v3232 = vadd.f32 0.0, %v3231
  %3233 = vmatmul.f32.gmra.mxu0 %v2558
  %v3234 = vpop.f32.mrf.mxu0
  %v3235 = vadd.f32 0.0, %v3234
  %3236 = vmatmul.f32.gmra.mxu0 %v2561
  %v3237 = vpop.f32.mrf.mxu0
  %v3238 = vadd.f32 0.0, %v3237
  %3239 = vmatmul.f32.gmra.mxu0 %v2564
  %v3240 = vpop.f32.mrf.mxu0
  %v3241 = vadd.f32 0.0, %v3240
  %3242 = vmatmul.f32.gmra.mxu0 %v2567
  %v3243 = vpop.f32.mrf.mxu0
  %v3244 = vadd.f32 0.0, %v3243
  %3245 = vmatmul.f32.gmra.mxu0 %v2570
  %v3246 = vpop.f32.mrf.mxu0
  %v3247 = vadd.f32 0.0, %v3246
  %3248 = vmatmul.f32.gmra.mxu0 %v2573
  %v3249 = vpop.f32.mrf.mxu0
  %v3250 = vadd.f32 0.0, %v3249
  %3251 = vmatmul.f32.gmra.mxu0 %v3044
  %v3252 = vpop.f32.mrf.mxu0
  %v3253 = vadd.f32 0.0, %v3252
  %3254 = vdwg.mxu0
  %v3255 = vadd.f32 %v2826, %v3064
  %v3256 = vadd.f32 %v2829, %v3067
  %v3257 = vadd.f32 %v2832, %v3070
  %v3258 = vadd.f32 %v2835, %v3073
  %v3259 = vadd.f32 %v2838, %v3076
  %v3260 = vadd.f32 %v2841, %v3079
  %v3261 = vadd.f32 %v2844, %v3082
  %v3262 = vadd.f32 %v2847, %v3085
  %v3263 = vadd.f32 %v2850, %v3088
  %v3264 = vadd.f32 %v2853, %v3091
  %v3265 = vadd.f32 %v2856, %v3094
  %v3266 = vadd.f32 %v2859, %v3097
  %v3267 = vadd.f32 %v2862, %v3100
  %v3268 = vadd.f32 %v2865, %v3103
  %v3269 = vadd.f32 %v2868, %v3106
  %v3270 = vadd.f32 %v2871, %v3109
  %v3271 = vadd.f32 %v2874, %v3112
  %v3272 = vadd.f32 %v2877, %v3115
  %v3273 = vadd.f32 %v2880, %v3118
  %v3274 = vadd.f32 %v2883, %v3121
  %v3275 = vadd.f32 %v2886, %v3124
  %v3276 = vadd.f32 %v2889, %v3127
  %v3277 = vadd.f32 %v2892, %v3130
  %v3278 = vadd.f32 %v2895, %v3133
  %v3279 = vadd.f32 %v2898, %v3136
  %v3280 = vadd.f32 %v2901, %v3139
  %v3281 = vadd.f32 %v2904, %v3142
  %v3282 = vadd.f32 %v2907, %v3145
  %v3283 = vadd.f32 %v2910, %v3148
  %v3284 = vadd.f32 %v2913, %v3151
  %v3285 = vadd.f32 %v2916, %v3154
  %v3286 = vadd.f32 %v2919, %v3157
  %v3287 = vadd.f32 %v2922, %v3160
  %v3288 = vadd.f32 %v2925, %v3163
  %v3289 = vadd.f32 %v2928, %v3166
  %v3290 = vadd.f32 %v2931, %v3169
  %v3291 = vadd.f32 %v2934, %v3172
  %v3292 = vadd.f32 %v2937, %v3175
  %v3293 = vadd.f32 %v2940, %v3178
  %v3294 = vadd.f32 %v2943, %v3181
  %v3295 = vadd.f32 %v2946, %v3184
  %v3296 = vadd.f32 %v2949, %v3187
  %v3297 = vadd.f32 %v2952, %v3190
  %v3298 = vadd.f32 %v2955, %v3193
  %v3299 = vadd.f32 %v2958, %v3196
  %v3300 = vadd.f32 %v2961, %v3199
  %v3301 = vadd.f32 %v2964, %v3202
  %v3302 = vadd.f32 %v2967, %v3205
  %v3303 = vadd.f32 %v2970, %v3208
  %v3304 = vadd.f32 %v2973, %v3211
  %v3305 = vadd.f32 %v2976, %v3214
  %v3306 = vadd.f32 %v2979, %v3217
  %v3307 = vadd.f32 %v2982, %v3220
  %v3308 = vadd.f32 %v2985, %v3223
  %v3309 = vadd.f32 %v2988, %v3226
  %v3310 = vadd.f32 %v2991, %v3229
  %v3311 = vadd.f32 %v2994, %v3232
  %v3312 = vadd.f32 %v2997, %v3235
  %v3313 = vadd.f32 %v3000, %v3238
  %v3314 = vadd.f32 %v3003, %v3241
  %v3315 = vadd.f32 %v3006, %v3244
  %v3316 = vadd.f32 %v3009, %v3247
  %v3317 = vadd.f32 %v3012, %v3250
  %v3318 = vadd.f32 %v3015, %v3253
  %s3319 = scalar_lea.vmem %s3, 96
  %v3320 = vld [vmem:[%s3319] sm:$0xff]
  %v3321 = vld [vmem:[%s3319 + $0x8] sm:$0xff]
  %v3322 = vld [vmem:[%s3319 + $0x10] sm:$0xff]
  %v3323 = vld [vmem:[%s3319 + $0x18] sm:$0xff]
  %v3325 = vsel %vm2382, %v2239, 0
  %v3328 = vsel %vm2382, %v2251, 0
  %v3331 = vsel %vm2382, %v2263, 0
  %v3334 = vsel %vm2382, %v2275, 0
  %v3337 = vsel %vm2382, %v2287, 0
  %v3340 = vsel %vm2382, %v2299, 0
  %v3343 = vsel %vm2382, %v2311, 0
  %v3346 = vsel %vm2382, %v2323, 0
  %3348 = vmatpush.msra.mxu0 0.0
  %3349 = vmatpush.msra.mxu0 0.0
  %3350 = vmatpush.msra.mxu0 0.0
  %3351 = vmatpush.msra.mxu0 0.0
  %3352 = vmatpush.msra.mxu0 0.0
  %3353 = vmatpush.msra.mxu0 0.0
  %3354 = vmatpush.msra.mxu0 0.0
  %3355 = vmatpush.msra.mxu0 0.0
  %3356 = vmatpush.msra.mxu0 0.0
  %3357 = vmatpush.msra.mxu0 0.0
  %3358 = vmatpush.msra.mxu0 0.0
  %3359 = vmatpush.msra.mxu0 0.0
  %3360 = vmatpush.msra.mxu0 %v3323
  %3361 = vmatpush.msra.mxu0 %v3322
  %3362 = vmatpush.msra.mxu0 %v3321
  %3363 = vmatpush.msra.mxu0 %v3320
  %3364 = vmatmul.f32.gmra.mxu0 %v2390
  %v3365 = vpop.f32.mrf.mxu0
  %v3366 = vadd.f32 0.0, %v3365
  %3367 = vmatmul.f32.gmra.mxu0 %v2393
  %v3368 = vpop.f32.mrf.mxu0
  %v3369 = vadd.f32 0.0, %v3368
  %3370 = vmatmul.f32.gmra.mxu0 %v2396
  %v3371 = vpop.f32.mrf.mxu0
  %v3372 = vadd.f32 0.0, %v3371
  %3373 = vmatmul.f32.gmra.mxu0 %v2399
  %v3374 = vpop.f32.mrf.mxu0
  %v3375 = vadd.f32 0.0, %v3374
  %3376 = vmatmul.f32.gmra.mxu0 %v2402
  %v3377 = vpop.f32.mrf.mxu0
  %v3378 = vadd.f32 0.0, %v3377
  %3379 = vmatmul.f32.gmra.mxu0 %v2405
  %v3380 = vpop.f32.mrf.mxu0
  %v3381 = vadd.f32 0.0, %v3380
  %3382 = vmatmul.f32.gmra.mxu0 %v3023
  %v3383 = vpop.f32.mrf.mxu0
  %v3384 = vadd.f32 0.0, %v3383
  %3385 = vmatmul.f32.gmra.mxu0 %v3325
  %v3386 = vpop.f32.mrf.mxu0
  %v3387 = vadd.f32 0.0, %v3386
  %3388 = vmatmul.f32.gmra.mxu0 %v2414
  %v3389 = vpop.f32.mrf.mxu0
  %v3390 = vadd.f32 0.0, %v3389
  %3391 = vmatmul.f32.gmra.mxu0 %v2417
  %v3392 = vpop.f32.mrf.mxu0
  %v3393 = vadd.f32 0.0, %v3392
  %3394 = vmatmul.f32.gmra.mxu0 %v2420
  %v3395 = vpop.f32.mrf.mxu0
  %v3396 = vadd.f32 0.0, %v3395
  %3397 = vmatmul.f32.gmra.mxu0 %v2423
  %v3398 = vpop.f32.mrf.mxu0
  %v3399 = vadd.f32 0.0, %v3398
  %3400 = vmatmul.f32.gmra.mxu0 %v2426
  %v3401 = vpop.f32.mrf.mxu0
  %v3402 = vadd.f32 0.0, %v3401
  %3403 = vmatmul.f32.gmra.mxu0 %v2429
  %v3404 = vpop.f32.mrf.mxu0
  %v3405 = vadd.f32 0.0, %v3404
  %3406 = vmatmul.f32.gmra.mxu0 %v3026
  %v3407 = vpop.f32.mrf.mxu0
  %v3408 = vadd.f32 0.0, %v3407
  %3409 = vmatmul.f32.gmra.mxu0 %v3328
  %v3410 = vpop.f32.mrf.mxu0
  %v3411 = vadd.f32 0.0, %v3410
  %3412 = vmatmul.f32.gmra.mxu0 %v2438
  %v3413 = vpop.f32.mrf.mxu0
  %v3414 = vadd.f32 0.0, %v3413
  %3415 = vmatmul.f32.gmra.mxu0 %v2441
  %v3416 = vpop.f32.mrf.mxu0
  %v3417 = vadd.f32 0.0, %v3416
  %3418 = vmatmul.f32.gmra.mxu0 %v2444
  %v3419 = vpop.f32.mrf.mxu0
  %v3420 = vadd.f32 0.0, %v3419
  %3421 = vmatmul.f32.gmra.mxu0 %v2447
  %v3422 = vpop.f32.mrf.mxu0
  %v3423 = vadd.f32 0.0, %v3422
  %3424 = vmatmul.f32.gmra.mxu0 %v2450
  %v3425 = vpop.f32.mrf.mxu0
  %v3426 = vadd.f32 0.0, %v3425
  %3427 = vmatmul.f32.gmra.mxu0 %v2453
  %v3428 = vpop.f32.mrf.mxu0
  %v3429 = vadd.f32 0.0, %v3428
  %3430 = vmatmul.f32.gmra.mxu0 %v3029
  %v3431 = vpop.f32.mrf.mxu0
  %v3432 = vadd.f32 0.0, %v3431
  %3433 = vmatmul.f32.gmra.mxu0 %v3331
  %v3434 = vpop.f32.mrf.mxu0
  %v3435 = vadd.f32 0.0, %v3434
  %3436 = vmatmul.f32.gmra.mxu0 %v2462
  %v3437 = vpop.f32.mrf.mxu0
  %v3438 = vadd.f32 0.0, %v3437
  %3439 = vmatmul.f32.gmra.mxu0 %v2465
  %v3440 = vpop.f32.mrf.mxu0
  %v3441 = vadd.f32 0.0, %v3440
  %3442 = vmatmul.f32.gmra.mxu0 %v2468
  %v3443 = vpop.f32.mrf.mxu0
  %v3444 = vadd.f32 0.0, %v3443
  %3445 = vmatmul.f32.gmra.mxu0 %v2471
  %v3446 = vpop.f32.mrf.mxu0
  %v3447 = vadd.f32 0.0, %v3446
  %3448 = vmatmul.f32.gmra.mxu0 %v2474
  %v3449 = vpop.f32.mrf.mxu0
  %v3450 = vadd.f32 0.0, %v3449
  %3451 = vmatmul.f32.gmra.mxu0 %v2477
  %v3452 = vpop.f32.mrf.mxu0
  %v3453 = vadd.f32 0.0, %v3452
  %3454 = vmatmul.f32.gmra.mxu0 %v3032
  %v3455 = vpop.f32.mrf.mxu0
  %v3456 = vadd.f32 0.0, %v3455
  %3457 = vmatmul.f32.gmra.mxu0 %v3334
  %v3458 = vpop.f32.mrf.mxu0
  %v3459 = vadd.f32 0.0, %v3458
  %3460 = vmatmul.f32.gmra.mxu0 %v2486
  %v3461 = vpop.f32.mrf.mxu0
  %v3462 = vadd.f32 0.0, %v3461
  %3463 = vmatmul.f32.gmra.mxu0 %v2489
  %v3464 = vpop.f32.mrf.mxu0
  %v3465 = vadd.f32 0.0, %v3464
  %3466 = vmatmul.f32.gmra.mxu0 %v2492
  %v3467 = vpop.f32.mrf.mxu0
  %v3468 = vadd.f32 0.0, %v3467
  %3469 = vmatmul.f32.gmra.mxu0 %v2495
  %v3470 = vpop.f32.mrf.mxu0
  %v3471 = vadd.f32 0.0, %v3470
  %3472 = vmatmul.f32.gmra.mxu0 %v2498
  %v3473 = vpop.f32.mrf.mxu0
  %v3474 = vadd.f32 0.0, %v3473
  %3475 = vmatmul.f32.gmra.mxu0 %v2501
  %v3476 = vpop.f32.mrf.mxu0
  %v3477 = vadd.f32 0.0, %v3476
  %3478 = vmatmul.f32.gmra.mxu0 %v3035
  %v3479 = vpop.f32.mrf.mxu0
  %v3480 = vadd.f32 0.0, %v3479
  %3481 = vmatmul.f32.gmra.mxu0 %v3337
  %v3482 = vpop.f32.mrf.mxu0
  %v3483 = vadd.f32 0.0, %v3482
  %3484 = vmatmul.f32.gmra.mxu0 %v2510
  %v3485 = vpop.f32.mrf.mxu0
  %v3486 = vadd.f32 0.0, %v3485
  %3487 = vmatmul.f32.gmra.mxu0 %v2513
  %v3488 = vpop.f32.mrf.mxu0
  %v3489 = vadd.f32 0.0, %v3488
  %3490 = vmatmul.f32.gmra.mxu0 %v2516
  %v3491 = vpop.f32.mrf.mxu0
  %v3492 = vadd.f32 0.0, %v3491
  %3493 = vmatmul.f32.gmra.mxu0 %v2519
  %v3494 = vpop.f32.mrf.mxu0
  %v3495 = vadd.f32 0.0, %v3494
  %3496 = vmatmul.f32.gmra.mxu0 %v2522
  %v3497 = vpop.f32.mrf.mxu0
  %v3498 = vadd.f32 0.0, %v3497
  %3499 = vmatmul.f32.gmra.mxu0 %v2525
  %v3500 = vpop.f32.mrf.mxu0
  %v3501 = vadd.f32 0.0, %v3500
  %3502 = vmatmul.f32.gmra.mxu0 %v3038
  %v3503 = vpop.f32.mrf.mxu0
  %v3504 = vadd.f32 0.0, %v3503
  %3505 = vmatmul.f32.gmra.mxu0 %v3340
  %v3506 = vpop.f32.mrf.mxu0
  %v3507 = vadd.f32 0.0, %v3506
  %3508 = vmatmul.f32.gmra.mxu0 %v2534
  %v3509 = vpop.f32.mrf.mxu0
  %v3510 = vadd.f32 0.0, %v3509
  %3511 = vmatmul.f32.gmra.mxu0 %v2537
  %v3512 = vpop.f32.mrf.mxu0
  %v3513 = vadd.f32 0.0, %v3512
  %3514 = vmatmul.f32.gmra.mxu0 %v2540
  %v3515 = vpop.f32.mrf.mxu0
  %v3516 = vadd.f32 0.0, %v3515
  %3517 = vmatmul.f32.gmra.mxu0 %v2543
  %v3518 = vpop.f32.mrf.mxu0
  %v3519 = vadd.f32 0.0, %v3518
  %3520 = vmatmul.f32.gmra.mxu0 %v2546
  %v3521 = vpop.f32.mrf.mxu0
  %v3522 = vadd.f32 0.0, %v3521
  %3523 = vmatmul.f32.gmra.mxu0 %v2549
  %v3524 = vpop.f32.mrf.mxu0
  %v3525 = vadd.f32 0.0, %v3524
  %3526 = vmatmul.f32.gmra.mxu0 %v3041
  %v3527 = vpop.f32.mrf.mxu0
  %v3528 = vadd.f32 0.0, %v3527
  %3529 = vmatmul.f32.gmra.mxu0 %v3343
  %v3530 = vpop.f32.mrf.mxu0
  %v3531 = vadd.f32 0.0, %v3530
  %3532 = vmatmul.f32.gmra.mxu0 %v2558
  %v3533 = vpop.f32.mrf.mxu0
  %v3534 = vadd.f32 0.0, %v3533
  %3535 = vmatmul.f32.gmra.mxu0 %v2561
  %v3536 = vpop.f32.mrf.mxu0
  %v3537 = vadd.f32 0.0, %v3536
  %3538 = vmatmul.f32.gmra.mxu0 %v2564
  %v3539 = vpop.f32.mrf.mxu0
  %v3540 = vadd.f32 0.0, %v3539
  %3541 = vmatmul.f32.gmra.mxu0 %v2567
  %v3542 = vpop.f32.mrf.mxu0
  %v3543 = vadd.f32 0.0, %v3542
  %3544 = vmatmul.f32.gmra.mxu0 %v2570
  %v3545 = vpop.f32.mrf.mxu0
  %v3546 = vadd.f32 0.0, %v3545
  %3547 = vmatmul.f32.gmra.mxu0 %v2573
  %v3548 = vpop.f32.mrf.mxu0
  %v3549 = vadd.f32 0.0, %v3548
  %3550 = vmatmul.f32.gmra.mxu0 %v3044
  %v3551 = vpop.f32.mrf.mxu0
  %v3552 = vadd.f32 0.0, %v3551
  %3553 = vmatmul.f32.gmra.mxu0 %v3346
  %v3554 = vpop.f32.mrf.mxu0
  %v3555 = vadd.f32 0.0, %v3554
  %3556 = vdwg.mxu0
  %v3557 = vadd.f32 %v3255, %v3366
  %v3558 = vadd.f32 %v3256, %v3369
  %v3559 = vadd.f32 %v3257, %v3372
  %v3560 = vadd.f32 %v3258, %v3375
  %v3561 = vadd.f32 %v3259, %v3378
  %v3562 = vadd.f32 %v3260, %v3381
  %v3563 = vadd.f32 %v3261, %v3384
  %v3564 = vadd.f32 %v3262, %v3387
  %v3565 = vadd.f32 %v3263, %v3390
  %v3566 = vadd.f32 %v3264, %v3393
  %v3567 = vadd.f32 %v3265, %v3396
  %v3568 = vadd.f32 %v3266, %v3399
  %v3569 = vadd.f32 %v3267, %v3402
  %v3570 = vadd.f32 %v3268, %v3405
  %v3571 = vadd.f32 %v3269, %v3408
  %v3572 = vadd.f32 %v3270, %v3411
  %v3573 = vadd.f32 %v3271, %v3414
  %v3574 = vadd.f32 %v3272, %v3417
  %v3575 = vadd.f32 %v3273, %v3420
  %v3576 = vadd.f32 %v3274, %v3423
  %v3577 = vadd.f32 %v3275, %v3426
  %v3578 = vadd.f32 %v3276, %v3429
  %v3579 = vadd.f32 %v3277, %v3432
  %v3580 = vadd.f32 %v3278, %v3435
  %v3581 = vadd.f32 %v3279, %v3438
  %v3582 = vadd.f32 %v3280, %v3441
  %v3583 = vadd.f32 %v3281, %v3444
  %v3584 = vadd.f32 %v3282, %v3447
  %v3585 = vadd.f32 %v3283, %v3450
  %v3586 = vadd.f32 %v3284, %v3453
  %v3587 = vadd.f32 %v3285, %v3456
  %v3588 = vadd.f32 %v3286, %v3459
  %v3589 = vadd.f32 %v3287, %v3462
  %v3590 = vadd.f32 %v3288, %v3465
  %v3591 = vadd.f32 %v3289, %v3468
  %v3592 = vadd.f32 %v3290, %v3471
  %v3593 = vadd.f32 %v3291, %v3474
  %v3594 = vadd.f32 %v3292, %v3477
  %v3595 = vadd.f32 %v3293, %v3480
  %v3596 = vadd.f32 %v3294, %v3483
  %v3597 = vadd.f32 %v3295, %v3486
  %v3598 = vadd.f32 %v3296, %v3489
  %v3599 = vadd.f32 %v3297, %v3492
  %v3600 = vadd.f32 %v3298, %v3495
  %v3601 = vadd.f32 %v3299, %v3498
  %v3602 = vadd.f32 %v3300, %v3501
  %v3603 = vadd.f32 %v3301, %v3504
  %v3604 = vadd.f32 %v3302, %v3507
  %v3605 = vadd.f32 %v3303, %v3510
  %v3606 = vadd.f32 %v3304, %v3513
  %v3607 = vadd.f32 %v3305, %v3516
  %v3608 = vadd.f32 %v3306, %v3519
  %v3609 = vadd.f32 %v3307, %v3522
  %v3610 = vadd.f32 %v3308, %v3525
  %v3611 = vadd.f32 %v3309, %v3528
  %v3612 = vadd.f32 %v3310, %v3531
  %v3613 = vadd.f32 %v3311, %v3534
  %v3614 = vadd.f32 %v3312, %v3537
  %v3615 = vadd.f32 %v3313, %v3540
  %v3616 = vadd.f32 %v3314, %v3543
  %v3617 = vadd.f32 %v3315, %v3546
  %v3618 = vadd.f32 %v3316, %v3549
  %v3619 = vadd.f32 %v3317, %v3552
  %v3620 = vadd.f32 %v3318, %v3555
  %s3621 = scalar_lea.vmem %s3, 128
  %v3622 = vld [vmem:[%s3621] sm:$0xff]
  %v3623 = vld [vmem:[%s3621 + $0x8] sm:$0xff]
  %v3624 = vld [vmem:[%s3621 + $0x10] sm:$0xff]
  %v3625 = vld [vmem:[%s3621 + $0x18] sm:$0xff]
  %v3627 = vsel %vm2382, %v2240, 0
  %v3630 = vsel %vm2382, %v2252, 0
  %v3633 = vsel %vm2382, %v2264, 0
  %v3636 = vsel %vm2382, %v2276, 0
  %v3639 = vsel %vm2382, %v2288, 0
  %v3642 = vsel %vm2382, %v2300, 0
  %v3645 = vsel %vm2382, %v2312, 0
  %v3648 = vsel %vm2382, %v2324, 0
  %3650 = vmatpush.msra.mxu0 0.0
  %3651 = vmatpush.msra.mxu0 0.0
  %3652 = vmatpush.msra.mxu0 0.0
  %3653 = vmatpush.msra.mxu0 0.0
  %3654 = vmatpush.msra.mxu0 0.0
  %3655 = vmatpush.msra.mxu0 0.0
  %3656 = vmatpush.msra.mxu0 0.0
  %3657 = vmatpush.msra.mxu0 0.0
  %3658 = vmatpush.msra.mxu0 0.0
  %3659 = vmatpush.msra.mxu0 0.0
  %3660 = vmatpush.msra.mxu0 0.0
  %3661 = vmatpush.msra.mxu0 0.0
  %3662 = vmatpush.msra.mxu0 %v3625
  %3663 = vmatpush.msra.mxu0 %v3624
  %3664 = vmatpush.msra.mxu0 %v3623
  %3665 = vmatpush.msra.mxu0 %v3622
  %3666 = vmatmul.f32.gmra.mxu0 %v2393
  %v3667 = vpop.f32.mrf.mxu0
  %v3668 = vadd.f32 0.0, %v3667
  %3669 = vmatmul.f32.gmra.mxu0 %v2396
  %v3670 = vpop.f32.mrf.mxu0
  %v3671 = vadd.f32 0.0, %v3670
  %3672 = vmatmul.f32.gmra.mxu0 %v2399
  %v3673 = vpop.f32.mrf.mxu0
  %v3674 = vadd.f32 0.0, %v3673
  %3675 = vmatmul.f32.gmra.mxu0 %v2402
  %v3676 = vpop.f32.mrf.mxu0
  %v3677 = vadd.f32 0.0, %v3676
  %3678 = vmatmul.f32.gmra.mxu0 %v2405
  %v3679 = vpop.f32.mrf.mxu0
  %v3680 = vadd.f32 0.0, %v3679
  %3681 = vmatmul.f32.gmra.mxu0 %v3023
  %v3682 = vpop.f32.mrf.mxu0
  %v3683 = vadd.f32 0.0, %v3682
  %3684 = vmatmul.f32.gmra.mxu0 %v3325
  %v3685 = vpop.f32.mrf.mxu0
  %v3686 = vadd.f32 0.0, %v3685
  %3687 = vmatmul.f32.gmra.mxu0 %v3627
  %v3688 = vpop.f32.mrf.mxu0
  %v3689 = vadd.f32 0.0, %v3688
  %3690 = vmatmul.f32.gmra.mxu0 %v2417
  %v3691 = vpop.f32.mrf.mxu0
  %v3692 = vadd.f32 0.0, %v3691
  %3693 = vmatmul.f32.gmra.mxu0 %v2420
  %v3694 = vpop.f32.mrf.mxu0
  %v3695 = vadd.f32 0.0, %v3694
  %3696 = vmatmul.f32.gmra.mxu0 %v2423
  %v3697 = vpop.f32.mrf.mxu0
  %v3698 = vadd.f32 0.0, %v3697
  %3699 = vmatmul.f32.gmra.mxu0 %v2426
  %v3700 = vpop.f32.mrf.mxu0
  %v3701 = vadd.f32 0.0, %v3700
  %3702 = vmatmul.f32.gmra.mxu0 %v2429
  %v3703 = vpop.f32.mrf.mxu0
  %v3704 = vadd.f32 0.0, %v3703
  %3705 = vmatmul.f32.gmra.mxu0 %v3026
  %v3706 = vpop.f32.mrf.mxu0
  %v3707 = vadd.f32 0.0, %v3706
  %3708 = vmatmul.f32.gmra.mxu0 %v3328
  %v3709 = vpop.f32.mrf.mxu0
  %v3710 = vadd.f32 0.0, %v3709
  %3711 = vmatmul.f32.gmra.mxu0 %v3630
  %v3712 = vpop.f32.mrf.mxu0
  %v3713 = vadd.f32 0.0, %v3712
  %3714 = vmatmul.f32.gmra.mxu0 %v2441
  %v3715 = vpop.f32.mrf.mxu0
  %v3716 = vadd.f32 0.0, %v3715
  %3717 = vmatmul.f32.gmra.mxu0 %v2444
  %v3718 = vpop.f32.mrf.mxu0
  %v3719 = vadd.f32 0.0, %v3718
  %3720 = vmatmul.f32.gmra.mxu0 %v2447
  %v3721 = vpop.f32.mrf.mxu0
  %v3722 = vadd.f32 0.0, %v3721
  %3723 = vmatmul.f32.gmra.mxu0 %v2450
  %v3724 = vpop.f32.mrf.mxu0
  %v3725 = vadd.f32 0.0, %v3724
  %3726 = vmatmul.f32.gmra.mxu0 %v2453
  %v3727 = vpop.f32.mrf.mxu0
  %v3728 = vadd.f32 0.0, %v3727
  %3729 = vmatmul.f32.gmra.mxu0 %v3029
  %v3730 = vpop.f32.mrf.mxu0
  %v3731 = vadd.f32 0.0, %v3730
  %3732 = vmatmul.f32.gmra.mxu0 %v3331
  %v3733 = vpop.f32.mrf.mxu0
  %v3734 = vadd.f32 0.0, %v3733
  %3735 = vmatmul.f32.gmra.mxu0 %v3633
  %v3736 = vpop.f32.mrf.mxu0
  %v3737 = vadd.f32 0.0, %v3736
  %3738 = vmatmul.f32.gmra.mxu0 %v2465
  %v3739 = vpop.f32.mrf.mxu0
  %v3740 = vadd.f32 0.0, %v3739
  %3741 = vmatmul.f32.gmra.mxu0 %v2468
  %v3742 = vpop.f32.mrf.mxu0
  %v3743 = vadd.f32 0.0, %v3742
  %3744 = vmatmul.f32.gmra.mxu0 %v2471
  %v3745 = vpop.f32.mrf.mxu0
  %v3746 = vadd.f32 0.0, %v3745
  %3747 = vmatmul.f32.gmra.mxu0 %v2474
  %v3748 = vpop.f32.mrf.mxu0
  %v3749 = vadd.f32 0.0, %v3748
  %3750 = vmatmul.f32.gmra.mxu0 %v2477
  %v3751 = vpop.f32.mrf.mxu0
  %v3752 = vadd.f32 0.0, %v3751
  %3753 = vmatmul.f32.gmra.mxu0 %v3032
  %v3754 = vpop.f32.mrf.mxu0
  %v3755 = vadd.f32 0.0, %v3754
  %3756 = vmatmul.f32.gmra.mxu0 %v3334
  %v3757 = vpop.f32.mrf.mxu0
  %v3758 = vadd.f32 0.0, %v3757
  %3759 = vmatmul.f32.gmra.mxu0 %v3636
  %v3760 = vpop.f32.mrf.mxu0
  %v3761 = vadd.f32 0.0, %v3760
  %3762 = vmatmul.f32.gmra.mxu0 %v2489
  %v3763 = vpop.f32.mrf.mxu0
  %v3764 = vadd.f32 0.0, %v3763
  %3765 = vmatmul.f32.gmra.mxu0 %v2492
  %v3766 = vpop.f32.mrf.mxu0
  %v3767 = vadd.f32 0.0, %v3766
  %3768 = vmatmul.f32.gmra.mxu0 %v2495
  %v3769 = vpop.f32.mrf.mxu0
  %v3770 = vadd.f32 0.0, %v3769
  %3771 = vmatmul.f32.gmra.mxu0 %v2498
  %v3772 = vpop.f32.mrf.mxu0
  %v3773 = vadd.f32 0.0, %v3772
  %3774 = vmatmul.f32.gmra.mxu0 %v2501
  %v3775 = vpop.f32.mrf.mxu0
  %v3776 = vadd.f32 0.0, %v3775
  %3777 = vmatmul.f32.gmra.mxu0 %v3035
  %v3778 = vpop.f32.mrf.mxu0
  %v3779 = vadd.f32 0.0, %v3778
  %3780 = vmatmul.f32.gmra.mxu0 %v3337
  %v3781 = vpop.f32.mrf.mxu0
  %v3782 = vadd.f32 0.0, %v3781
  %3783 = vmatmul.f32.gmra.mxu0 %v3639
  %v3784 = vpop.f32.mrf.mxu0
  %v3785 = vadd.f32 0.0, %v3784
  %3786 = vmatmul.f32.gmra.mxu0 %v2513
  %v3787 = vpop.f32.mrf.mxu0
  %v3788 = vadd.f32 0.0, %v3787
  %3789 = vmatmul.f32.gmra.mxu0 %v2516
  %v3790 = vpop.f32.mrf.mxu0
  %v3791 = vadd.f32 0.0, %v3790
  %3792 = vmatmul.f32.gmra.mxu0 %v2519
  %v3793 = vpop.f32.mrf.mxu0
  %v3794 = vadd.f32 0.0, %v3793
  %3795 = vmatmul.f32.gmra.mxu0 %v2522
  %v3796 = vpop.f32.mrf.mxu0
  %v3797 = vadd.f32 0.0, %v3796
  %3798 = vmatmul.f32.gmra.mxu0 %v2525
  %v3799 = vpop.f32.mrf.mxu0
  %v3800 = vadd.f32 0.0, %v3799
  %3801 = vmatmul.f32.gmra.mxu0 %v3038
  %v3802 = vpop.f32.mrf.mxu0
  %v3803 = vadd.f32 0.0, %v3802
  %3804 = vmatmul.f32.gmra.mxu0 %v3340
  %v3805 = vpop.f32.mrf.mxu0
  %v3806 = vadd.f32 0.0, %v3805
  %3807 = vmatmul.f32.gmra.mxu0 %v3642
  %v3808 = vpop.f32.mrf.mxu0
  %v3809 = vadd.f32 0.0, %v3808
  %3810 = vmatmul.f32.gmra.mxu0 %v2537
  %v3811 = vpop.f32.mrf.mxu0
  %v3812 = vadd.f32 0.0, %v3811
  %3813 = vmatmul.f32.gmra.mxu0 %v2540
  %v3814 = vpop.f32.mrf.mxu0
  %v3815 = vadd.f32 0.0, %v3814
  %3816 = vmatmul.f32.gmra.mxu0 %v2543
  %v3817 = vpop.f32.mrf.mxu0
  %v3818 = vadd.f32 0.0, %v3817
  %3819 = vmatmul.f32.gmra.mxu0 %v2546
  %v3820 = vpop.f32.mrf.mxu0
  %v3821 = vadd.f32 0.0, %v3820
  %3822 = vmatmul.f32.gmra.mxu0 %v2549
  %v3823 = vpop.f32.mrf.mxu0
  %v3824 = vadd.f32 0.0, %v3823
  %3825 = vmatmul.f32.gmra.mxu0 %v3041
  %v3826 = vpop.f32.mrf.mxu0
  %v3827 = vadd.f32 0.0, %v3826
  %3828 = vmatmul.f32.gmra.mxu0 %v3343
  %v3829 = vpop.f32.mrf.mxu0
  %v3830 = vadd.f32 0.0, %v3829
  %3831 = vmatmul.f32.gmra.mxu0 %v3645
  %v3832 = vpop.f32.mrf.mxu0
  %v3833 = vadd.f32 0.0, %v3832
  %3834 = vmatmul.f32.gmra.mxu0 %v2561
  %v3835 = vpop.f32.mrf.mxu0
  %v3836 = vadd.f32 0.0, %v3835
  %3837 = vmatmul.f32.gmra.mxu0 %v2564
  %v3838 = vpop.f32.mrf.mxu0
  %v3839 = vadd.f32 0.0, %v3838
  %3840 = vmatmul.f32.gmra.mxu0 %v2567
  %v3841 = vpop.f32.mrf.mxu0
  %v3842 = vadd.f32 0.0, %v3841
  %3843 = vmatmul.f32.gmra.mxu0 %v2570
  %v3844 = vpop.f32.mrf.mxu0
  %v3845 = vadd.f32 0.0, %v3844
  %3846 = vmatmul.f32.gmra.mxu0 %v2573
  %v3847 = vpop.f32.mrf.mxu0
  %v3848 = vadd.f32 0.0, %v3847
  %3849 = vmatmul.f32.gmra.mxu0 %v3044
  %v3850 = vpop.f32.mrf.mxu0
  %v3851 = vadd.f32 0.0, %v3850
  %3852 = vmatmul.f32.gmra.mxu0 %v3346
  %v3853 = vpop.f32.mrf.mxu0
  %v3854 = vadd.f32 0.0, %v3853
  %3855 = vmatmul.f32.gmra.mxu0 %v3648
  %v3856 = vpop.f32.mrf.mxu0
  %v3857 = vadd.f32 0.0, %v3856
  %3858 = vdwg.mxu0
  %v3859 = vadd.f32 %v3557, %v3668
  %v3860 = vadd.f32 %v3558, %v3671
  %v3861 = vadd.f32 %v3559, %v3674
  %v3862 = vadd.f32 %v3560, %v3677
  %v3863 = vadd.f32 %v3561, %v3680
  %v3864 = vadd.f32 %v3562, %v3683
  %v3865 = vadd.f32 %v3563, %v3686
  %v3866 = vadd.f32 %v3564, %v3689
  %v3867 = vadd.f32 %v3565, %v3692
  %v3868 = vadd.f32 %v3566, %v3695
  %v3869 = vadd.f32 %v3567, %v3698
  %v3870 = vadd.f32 %v3568, %v3701
  %v3871 = vadd.f32 %v3569, %v3704
  %v3872 = vadd.f32 %v3570, %v3707
  %v3873 = vadd.f32 %v3571, %v3710
  %v3874 = vadd.f32 %v3572, %v3713
  %v3875 = vadd.f32 %v3573, %v3716
  %v3876 = vadd.f32 %v3574, %v3719
  %v3877 = vadd.f32 %v3575, %v3722
  %v3878 = vadd.f32 %v3576, %v3725
  %v3879 = vadd.f32 %v3577, %v3728
  %v3880 = vadd.f32 %v3578, %v3731
  %v3881 = vadd.f32 %v3579, %v3734
  %v3882 = vadd.f32 %v3580, %v3737
  %v3883 = vadd.f32 %v3581, %v3740
  %v3884 = vadd.f32 %v3582, %v3743
  %v3885 = vadd.f32 %v3583, %v3746
  %v3886 = vadd.f32 %v3584, %v3749
  %v3887 = vadd.f32 %v3585, %v3752
  %v3888 = vadd.f32 %v3586, %v3755
  %v3889 = vadd.f32 %v3587, %v3758
  %v3890 = vadd.f32 %v3588, %v3761
  %v3891 = vadd.f32 %v3589, %v3764
  %v3892 = vadd.f32 %v3590, %v3767
  %v3893 = vadd.f32 %v3591, %v3770
  %v3894 = vadd.f32 %v3592, %v3773
  %v3895 = vadd.f32 %v3593, %v3776
  %v3896 = vadd.f32 %v3594, %v3779
  %v3897 = vadd.f32 %v3595, %v3782
  %v3898 = vadd.f32 %v3596, %v3785
  %v3899 = vadd.f32 %v3597, %v3788
  %v3900 = vadd.f32 %v3598, %v3791
  %v3901 = vadd.f32 %v3599, %v3794
  %v3902 = vadd.f32 %v3600, %v3797
  %v3903 = vadd.f32 %v3601, %v3800
  %v3904 = vadd.f32 %v3602, %v3803
  %v3905 = vadd.f32 %v3603, %v3806
  %v3906 = vadd.f32 %v3604, %v3809
  %v3907 = vadd.f32 %v3605, %v3812
  %v3908 = vadd.f32 %v3606, %v3815
  %v3909 = vadd.f32 %v3607, %v3818
  %v3910 = vadd.f32 %v3608, %v3821
  %v3911 = vadd.f32 %v3609, %v3824
  %v3912 = vadd.f32 %v3610, %v3827
  %v3913 = vadd.f32 %v3611, %v3830
  %v3914 = vadd.f32 %v3612, %v3833
  %v3915 = vadd.f32 %v3613, %v3836
  %v3916 = vadd.f32 %v3614, %v3839
  %v3917 = vadd.f32 %v3615, %v3842
  %v3918 = vadd.f32 %v3616, %v3845
  %v3919 = vadd.f32 %v3617, %v3848
  %v3920 = vadd.f32 %v3618, %v3851
  %v3921 = vadd.f32 %v3619, %v3854
  %v3922 = vadd.f32 %v3620, %v3857
  %s3923 = scalar_lea.vmem %s3, 160
  %v3924 = vld [vmem:[%s3923] sm:$0xff]
  %v3925 = vld [vmem:[%s3923 + $0x8] sm:$0xff]
  %v3926 = vld [vmem:[%s3923 + $0x10] sm:$0xff]
  %v3927 = vld [vmem:[%s3923 + $0x18] sm:$0xff]
  %s3928 = scalar_lea.vmem %s3, 192
  %v3929 = vld [vmem:[%s3928] sm:$0xff]
  %v3930 = vld [vmem:[%s3928 + $0x8] sm:$0xff]
  %v3931 = vld [vmem:[%s3928 + $0x10] sm:$0xff]
  %v3932 = vld [vmem:[%s3928 + $0x18] sm:$0xff]
  %v3934 = vsel %vm2382, %v2326, 0
  %v3937 = vsel %vm2382, %v2327, 0
  %v3940 = vsel %vm2382, %v2328, 0
  %v3943 = vsel %vm2382, %v2329, 0
  %v3946 = vsel %vm2382, %v2330, 0
  %v3949 = vsel %vm2382, %v2331, 0
  %v3952 = vsel %vm2382, %v2332, 0
  %v3955 = vsel %vm2382, %v2333, 0
  %3957 = vmatpush.msra.mxu0 0.0
  %3958 = vmatpush.msra.mxu0 0.0
  %3959 = vmatpush.msra.mxu0 0.0
  %3960 = vmatpush.msra.mxu0 0.0
  %3961 = vmatpush.msra.mxu0 0.0
  %3962 = vmatpush.msra.mxu0 0.0
  %3963 = vmatpush.msra.mxu0 0.0
  %3964 = vmatpush.msra.mxu0 0.0
  %3965 = vmatpush.msra.mxu0 0.0
  %3966 = vmatpush.msra.mxu0 0.0
  %3967 = vmatpush.msra.mxu0 0.0
  %3968 = vmatpush.msra.mxu0 0.0
  %3969 = vmatpush.msra.mxu0 %v3932
  %3970 = vmatpush.msra.mxu0 %v3931
  %3971 = vmatpush.msra.mxu0 %v3930
  %3972 = vmatpush.msra.mxu0 %v3929
  %3973 = vmatmul.f32.gmra.mxu0 %v2408
  %v3974 = vpop.f32.mrf.mxu0
  %v3975 = vadd.f32 0.0, %v3974
  %3976 = vmatmul.f32.gmra.mxu0 %v2411
  %v3977 = vpop.f32.mrf.mxu0
  %v3978 = vadd.f32 0.0, %v3977
  %3979 = vmatmul.f32.gmra.mxu0 %v2414
  %v3980 = vpop.f32.mrf.mxu0
  %v3981 = vadd.f32 0.0, %v3980
  %3982 = vmatmul.f32.gmra.mxu0 %v2417
  %v3983 = vpop.f32.mrf.mxu0
  %v3984 = vadd.f32 0.0, %v3983
  %3985 = vmatmul.f32.gmra.mxu0 %v2420
  %v3986 = vpop.f32.mrf.mxu0
  %v3987 = vadd.f32 0.0, %v3986
  %3988 = vmatmul.f32.gmra.mxu0 %v2423
  %v3989 = vpop.f32.mrf.mxu0
  %v3990 = vadd.f32 0.0, %v3989
  %3991 = vmatmul.f32.gmra.mxu0 %v2426
  %v3992 = vpop.f32.mrf.mxu0
  %v3993 = vadd.f32 0.0, %v3992
  %3994 = vmatmul.f32.gmra.mxu0 %v2429
  %v3995 = vpop.f32.mrf.mxu0
  %v3996 = vadd.f32 0.0, %v3995
  %3997 = vmatmul.f32.gmra.mxu0 %v2432
  %v3998 = vpop.f32.mrf.mxu0
  %v3999 = vadd.f32 0.0, %v3998
  %4000 = vmatmul.f32.gmra.mxu0 %v2435
  %v4001 = vpop.f32.mrf.mxu0
  %v4002 = vadd.f32 0.0, %v4001
  %4003 = vmatmul.f32.gmra.mxu0 %v2438
  %v4004 = vpop.f32.mrf.mxu0
  %v4005 = vadd.f32 0.0, %v4004
  %4006 = vmatmul.f32.gmra.mxu0 %v2441
  %v4007 = vpop.f32.mrf.mxu0
  %v4008 = vadd.f32 0.0, %v4007
  %4009 = vmatmul.f32.gmra.mxu0 %v2444
  %v4010 = vpop.f32.mrf.mxu0
  %v4011 = vadd.f32 0.0, %v4010
  %4012 = vmatmul.f32.gmra.mxu0 %v2447
  %v4013 = vpop.f32.mrf.mxu0
  %v4014 = vadd.f32 0.0, %v4013
  %4015 = vmatmul.f32.gmra.mxu0 %v2450
  %v4016 = vpop.f32.mrf.mxu0
  %v4017 = vadd.f32 0.0, %v4016
  %4018 = vmatmul.f32.gmra.mxu0 %v2453
  %v4019 = vpop.f32.mrf.mxu0
  %v4020 = vadd.f32 0.0, %v4019
  %4021 = vmatmul.f32.gmra.mxu0 %v2456
  %v4022 = vpop.f32.mrf.mxu0
  %v4023 = vadd.f32 0.0, %v4022
  %4024 = vmatmul.f32.gmra.mxu0 %v2459
  %v4025 = vpop.f32.mrf.mxu0
  %v4026 = vadd.f32 0.0, %v4025
  %4027 = vmatmul.f32.gmra.mxu0 %v2462
  %v4028 = vpop.f32.mrf.mxu0
  %v4029 = vadd.f32 0.0, %v4028
  %4030 = vmatmul.f32.gmra.mxu0 %v2465
  %v4031 = vpop.f32.mrf.mxu0
  %v4032 = vadd.f32 0.0, %v4031
  %4033 = vmatmul.f32.gmra.mxu0 %v2468
  %v4034 = vpop.f32.mrf.mxu0
  %v4035 = vadd.f32 0.0, %v4034
  %4036 = vmatmul.f32.gmra.mxu0 %v2471
  %v4037 = vpop.f32.mrf.mxu0
  %v4038 = vadd.f32 0.0, %v4037
  %4039 = vmatmul.f32.gmra.mxu0 %v2474
  %v4040 = vpop.f32.mrf.mxu0
  %v4041 = vadd.f32 0.0, %v4040
  %4042 = vmatmul.f32.gmra.mxu0 %v2477
  %v4043 = vpop.f32.mrf.mxu0
  %v4044 = vadd.f32 0.0, %v4043
  %4045 = vmatmul.f32.gmra.mxu0 %v2480
  %v4046 = vpop.f32.mrf.mxu0
  %v4047 = vadd.f32 0.0, %v4046
  %4048 = vmatmul.f32.gmra.mxu0 %v2483
  %v4049 = vpop.f32.mrf.mxu0
  %v4050 = vadd.f32 0.0, %v4049
  %4051 = vmatmul.f32.gmra.mxu0 %v2486
  %v4052 = vpop.f32.mrf.mxu0
  %v4053 = vadd.f32 0.0, %v4052
  %4054 = vmatmul.f32.gmra.mxu0 %v2489
  %v4055 = vpop.f32.mrf.mxu0
  %v4056 = vadd.f32 0.0, %v4055
  %4057 = vmatmul.f32.gmra.mxu0 %v2492
  %v4058 = vpop.f32.mrf.mxu0
  %v4059 = vadd.f32 0.0, %v4058
  %4060 = vmatmul.f32.gmra.mxu0 %v2495
  %v4061 = vpop.f32.mrf.mxu0
  %v4062 = vadd.f32 0.0, %v4061
  %4063 = vmatmul.f32.gmra.mxu0 %v2498
  %v4064 = vpop.f32.mrf.mxu0
  %v4065 = vadd.f32 0.0, %v4064
  %4066 = vmatmul.f32.gmra.mxu0 %v2501
  %v4067 = vpop.f32.mrf.mxu0
  %v4068 = vadd.f32 0.0, %v4067
  %4069 = vmatmul.f32.gmra.mxu0 %v2504
  %v4070 = vpop.f32.mrf.mxu0
  %v4071 = vadd.f32 0.0, %v4070
  %4072 = vmatmul.f32.gmra.mxu0 %v2507
  %v4073 = vpop.f32.mrf.mxu0
  %v4074 = vadd.f32 0.0, %v4073
  %4075 = vmatmul.f32.gmra.mxu0 %v2510
  %v4076 = vpop.f32.mrf.mxu0
  %v4077 = vadd.f32 0.0, %v4076
  %4078 = vmatmul.f32.gmra.mxu0 %v2513
  %v4079 = vpop.f32.mrf.mxu0
  %v4080 = vadd.f32 0.0, %v4079
  %4081 = vmatmul.f32.gmra.mxu0 %v2516
  %v4082 = vpop.f32.mrf.mxu0
  %v4083 = vadd.f32 0.0, %v4082
  %4084 = vmatmul.f32.gmra.mxu0 %v2519
  %v4085 = vpop.f32.mrf.mxu0
  %v4086 = vadd.f32 0.0, %v4085
  %4087 = vmatmul.f32.gmra.mxu0 %v2522
  %v4088 = vpop.f32.mrf.mxu0
  %v4089 = vadd.f32 0.0, %v4088
  %4090 = vmatmul.f32.gmra.mxu0 %v2525
  %v4091 = vpop.f32.mrf.mxu0
  %v4092 = vadd.f32 0.0, %v4091
  %4093 = vmatmul.f32.gmra.mxu0 %v2528
  %v4094 = vpop.f32.mrf.mxu0
  %v4095 = vadd.f32 0.0, %v4094
  %4096 = vmatmul.f32.gmra.mxu0 %v2531
  %v4097 = vpop.f32.mrf.mxu0
  %v4098 = vadd.f32 0.0, %v4097
  %4099 = vmatmul.f32.gmra.mxu0 %v2534
  %v4100 = vpop.f32.mrf.mxu0
  %v4101 = vadd.f32 0.0, %v4100
  %4102 = vmatmul.f32.gmra.mxu0 %v2537
  %v4103 = vpop.f32.mrf.mxu0
  %v4104 = vadd.f32 0.0, %v4103
  %4105 = vmatmul.f32.gmra.mxu0 %v2540
  %v4106 = vpop.f32.mrf.mxu0
  %v4107 = vadd.f32 0.0, %v4106
  %4108 = vmatmul.f32.gmra.mxu0 %v2543
  %v4109 = vpop.f32.mrf.mxu0
  %v4110 = vadd.f32 0.0, %v4109
  %4111 = vmatmul.f32.gmra.mxu0 %v2546
  %v4112 = vpop.f32.mrf.mxu0
  %v4113 = vadd.f32 0.0, %v4112
  %4114 = vmatmul.f32.gmra.mxu0 %v2549
  %v4115 = vpop.f32.mrf.mxu0
  %v4116 = vadd.f32 0.0, %v4115
  %4117 = vmatmul.f32.gmra.mxu0 %v2552
  %v4118 = vpop.f32.mrf.mxu0
  %v4119 = vadd.f32 0.0, %v4118
  %4120 = vmatmul.f32.gmra.mxu0 %v2555
  %v4121 = vpop.f32.mrf.mxu0
  %v4122 = vadd.f32 0.0, %v4121
  %4123 = vmatmul.f32.gmra.mxu0 %v2558
  %v4124 = vpop.f32.mrf.mxu0
  %v4125 = vadd.f32 0.0, %v4124
  %4126 = vmatmul.f32.gmra.mxu0 %v2561
  %v4127 = vpop.f32.mrf.mxu0
  %v4128 = vadd.f32 0.0, %v4127
  %4129 = vmatmul.f32.gmra.mxu0 %v2564
  %v4130 = vpop.f32.mrf.mxu0
  %v4131 = vadd.f32 0.0, %v4130
  %4132 = vmatmul.f32.gmra.mxu0 %v2567
  %v4133 = vpop.f32.mrf.mxu0
  %v4134 = vadd.f32 0.0, %v4133
  %4135 = vmatmul.f32.gmra.mxu0 %v2570
  %v4136 = vpop.f32.mrf.mxu0
  %v4137 = vadd.f32 0.0, %v4136
  %4138 = vmatmul.f32.gmra.mxu0 %v2573
  %v4139 = vpop.f32.mrf.mxu0
  %v4140 = vadd.f32 0.0, %v4139
  %4141 = vmatmul.f32.gmra.mxu0 %v3934
  %v4142 = vpop.f32.mrf.mxu0
  %v4143 = vadd.f32 0.0, %v4142
  %4144 = vmatmul.f32.gmra.mxu0 %v3937
  %v4145 = vpop.f32.mrf.mxu0
  %v4146 = vadd.f32 0.0, %v4145
  %4147 = vmatmul.f32.gmra.mxu0 %v3940
  %v4148 = vpop.f32.mrf.mxu0
  %v4149 = vadd.f32 0.0, %v4148
  %4150 = vmatmul.f32.gmra.mxu0 %v3943
  %v4151 = vpop.f32.mrf.mxu0
  %v4152 = vadd.f32 0.0, %v4151
  %4153 = vmatmul.f32.gmra.mxu0 %v3946
  %v4154 = vpop.f32.mrf.mxu0
  %v4155 = vadd.f32 0.0, %v4154
  %4156 = vmatmul.f32.gmra.mxu0 %v3949
  %v4157 = vpop.f32.mrf.mxu0
  %v4158 = vadd.f32 0.0, %v4157
  %4159 = vmatmul.f32.gmra.mxu0 %v3952
  %v4160 = vpop.f32.mrf.mxu0
  %v4161 = vadd.f32 0.0, %v4160
  %4162 = vmatmul.f32.gmra.mxu0 %v3955
  %v4163 = vpop.f32.mrf.mxu0
  %v4164 = vadd.f32 0.0, %v4163
  %4165 = vdwg.mxu0
  %v4167 = vsel %vm2382, %v2325, 0
  %4169 = vmatpush.msra.mxu0 0.0
  %4170 = vmatpush.msra.mxu0 0.0
  %4171 = vmatpush.msra.mxu0 0.0
  %4172 = vmatpush.msra.mxu0 0.0
  %4173 = vmatpush.msra.mxu0 0.0
  %4174 = vmatpush.msra.mxu0 0.0
  %4175 = vmatpush.msra.mxu0 0.0
  %4176 = vmatpush.msra.mxu0 0.0
  %4177 = vmatpush.msra.mxu0 0.0
  %4178 = vmatpush.msra.mxu0 0.0
  %4179 = vmatpush.msra.mxu0 0.0
  %4180 = vmatpush.msra.mxu0 0.0
  %4181 = vmatpush.msra.mxu0 %v3927
  %4182 = vmatpush.msra.mxu0 %v3926
  %4183 = vmatpush.msra.mxu0 %v3925
  %4184 = vmatpush.msra.mxu0 %v3924
  %4185 = vmatmul.f32.gmra.mxu0 %v2788
  %v4186 = vpop.f32.mrf.mxu0
  %v4187 = vadd.f32 %v3975, %v4186
  %4188 = vmatmul.f32.gmra.mxu0 %v2408
  %v4189 = vpop.f32.mrf.mxu0
  %v4190 = vadd.f32 %v3978, %v4189
  %4191 = vmatmul.f32.gmra.mxu0 %v2411
  %v4192 = vpop.f32.mrf.mxu0
  %v4193 = vadd.f32 %v3981, %v4192
  %4194 = vmatmul.f32.gmra.mxu0 %v2414
  %v4195 = vpop.f32.mrf.mxu0
  %v4196 = vadd.f32 %v3984, %v4195
  %4197 = vmatmul.f32.gmra.mxu0 %v2417
  %v4198 = vpop.f32.mrf.mxu0
  %v4199 = vadd.f32 %v3987, %v4198
  %4200 = vmatmul.f32.gmra.mxu0 %v2420
  %v4201 = vpop.f32.mrf.mxu0
  %v4202 = vadd.f32 %v3990, %v4201
  %4203 = vmatmul.f32.gmra.mxu0 %v2423
  %v4204 = vpop.f32.mrf.mxu0
  %v4205 = vadd.f32 %v3993, %v4204
  %4206 = vmatmul.f32.gmra.mxu0 %v2426
  %v4207 = vpop.f32.mrf.mxu0
  %v4208 = vadd.f32 %v3996, %v4207
  %4209 = vmatmul.f32.gmra.mxu0 %v2791
  %v4210 = vpop.f32.mrf.mxu0
  %v4211 = vadd.f32 %v3999, %v4210
  %4212 = vmatmul.f32.gmra.mxu0 %v2432
  %v4213 = vpop.f32.mrf.mxu0
  %v4214 = vadd.f32 %v4002, %v4213
  %4215 = vmatmul.f32.gmra.mxu0 %v2435
  %v4216 = vpop.f32.mrf.mxu0
  %v4217 = vadd.f32 %v4005, %v4216
  %4218 = vmatmul.f32.gmra.mxu0 %v2438
  %v4219 = vpop.f32.mrf.mxu0
  %v4220 = vadd.f32 %v4008, %v4219
  %4221 = vmatmul.f32.gmra.mxu0 %v2441
  %v4222 = vpop.f32.mrf.mxu0
  %v4223 = vadd.f32 %v4011, %v4222
  %4224 = vmatmul.f32.gmra.mxu0 %v2444
  %v4225 = vpop.f32.mrf.mxu0
  %v4226 = vadd.f32 %v4014, %v4225
  %4227 = vmatmul.f32.gmra.mxu0 %v2447
  %v4228 = vpop.f32.mrf.mxu0
  %v4229 = vadd.f32 %v4017, %v4228
  %4230 = vmatmul.f32.gmra.mxu0 %v2450
  %v4231 = vpop.f32.mrf.mxu0
  %v4232 = vadd.f32 %v4020, %v4231
  %4233 = vmatmul.f32.gmra.mxu0 %v2794
  %v4234 = vpop.f32.mrf.mxu0
  %v4235 = vadd.f32 %v4023, %v4234
  %4236 = vmatmul.f32.gmra.mxu0 %v2456
  %v4237 = vpop.f32.mrf.mxu0
  %v4238 = vadd.f32 %v4026, %v4237
  %4239 = vmatmul.f32.gmra.mxu0 %v2459
  %v4240 = vpop.f32.mrf.mxu0
  %v4241 = vadd.f32 %v4029, %v4240
  %4242 = vmatmul.f32.gmra.mxu0 %v2462
  %v4243 = vpop.f32.mrf.mxu0
  %v4244 = vadd.f32 %v4032, %v4243
  %4245 = vmatmul.f32.gmra.mxu0 %v2465
  %v4246 = vpop.f32.mrf.mxu0
  %v4247 = vadd.f32 %v4035, %v4246
  %4248 = vmatmul.f32.gmra.mxu0 %v2468
  %v4249 = vpop.f32.mrf.mxu0
  %v4250 = vadd.f32 %v4038, %v4249
  %4251 = vmatmul.f32.gmra.mxu0 %v2471
  %v4252 = vpop.f32.mrf.mxu0
  %v4253 = vadd.f32 %v4041, %v4252
  %4254 = vmatmul.f32.gmra.mxu0 %v2474
  %v4255 = vpop.f32.mrf.mxu0
  %v4256 = vadd.f32 %v4044, %v4255
  %4257 = vmatmul.f32.gmra.mxu0 %v2797
  %v4258 = vpop.f32.mrf.mxu0
  %v4259 = vadd.f32 %v4047, %v4258
  %4260 = vmatmul.f32.gmra.mxu0 %v2480
  %v4261 = vpop.f32.mrf.mxu0
  %v4262 = vadd.f32 %v4050, %v4261
  %4263 = vmatmul.f32.gmra.mxu0 %v2483
  %v4264 = vpop.f32.mrf.mxu0
  %v4265 = vadd.f32 %v4053, %v4264
  %4266 = vmatmul.f32.gmra.mxu0 %v2486
  %v4267 = vpop.f32.mrf.mxu0
  %v4268 = vadd.f32 %v4056, %v4267
  %4269 = vmatmul.f32.gmra.mxu0 %v2489
  %v4270 = vpop.f32.mrf.mxu0
  %v4271 = vadd.f32 %v4059, %v4270
  %4272 = vmatmul.f32.gmra.mxu0 %v2492
  %v4273 = vpop.f32.mrf.mxu0
  %v4274 = vadd.f32 %v4062, %v4273
  %4275 = vmatmul.f32.gmra.mxu0 %v2495
  %v4276 = vpop.f32.mrf.mxu0
  %v4277 = vadd.f32 %v4065, %v4276
  %4278 = vmatmul.f32.gmra.mxu0 %v2498
  %v4279 = vpop.f32.mrf.mxu0
  %v4280 = vadd.f32 %v4068, %v4279
  %4281 = vmatmul.f32.gmra.mxu0 %v2800
  %v4282 = vpop.f32.mrf.mxu0
  %v4283 = vadd.f32 %v4071, %v4282
  %4284 = vmatmul.f32.gmra.mxu0 %v2504
  %v4285 = vpop.f32.mrf.mxu0
  %v4286 = vadd.f32 %v4074, %v4285
  %4287 = vmatmul.f32.gmra.mxu0 %v2507
  %v4288 = vpop.f32.mrf.mxu0
  %v4289 = vadd.f32 %v4077, %v4288
  %4290 = vmatmul.f32.gmra.mxu0 %v2510
  %v4291 = vpop.f32.mrf.mxu0
  %v4292 = vadd.f32 %v4080, %v4291
  %4293 = vmatmul.f32.gmra.mxu0 %v2513
  %v4294 = vpop.f32.mrf.mxu0
  %v4295 = vadd.f32 %v4083, %v4294
  %4296 = vmatmul.f32.gmra.mxu0 %v2516
  %v4297 = vpop.f32.mrf.mxu0
  %v4298 = vadd.f32 %v4086, %v4297
  %4299 = vmatmul.f32.gmra.mxu0 %v2519
  %v4300 = vpop.f32.mrf.mxu0
  %v4301 = vadd.f32 %v4089, %v4300
  %4302 = vmatmul.f32.gmra.mxu0 %v2522
  %v4303 = vpop.f32.mrf.mxu0
  %v4304 = vadd.f32 %v4092, %v4303
  %4305 = vmatmul.f32.gmra.mxu0 %v2803
  %v4306 = vpop.f32.mrf.mxu0
  %v4307 = vadd.f32 %v4095, %v4306
  %4308 = vmatmul.f32.gmra.mxu0 %v2528
  %v4309 = vpop.f32.mrf.mxu0
  %v4310 = vadd.f32 %v4098, %v4309
  %4311 = vmatmul.f32.gmra.mxu0 %v2531
  %v4312 = vpop.f32.mrf.mxu0
  %v4313 = vadd.f32 %v4101, %v4312
  %4314 = vmatmul.f32.gmra.mxu0 %v2534
  %v4315 = vpop.f32.mrf.mxu0
  %v4316 = vadd.f32 %v4104, %v4315
  %4317 = vmatmul.f32.gmra.mxu0 %v2537
  %v4318 = vpop.f32.mrf.mxu0
  %v4319 = vadd.f32 %v4107, %v4318
  %4320 = vmatmul.f32.gmra.mxu0 %v2540
  %v4321 = vpop.f32.mrf.mxu0
  %v4322 = vadd.f32 %v4110, %v4321
  %4323 = vmatmul.f32.gmra.mxu0 %v2543
  %v4324 = vpop.f32.mrf.mxu0
  %v4325 = vadd.f32 %v4113, %v4324
  %4326 = vmatmul.f32.gmra.mxu0 %v2546
  %v4327 = vpop.f32.mrf.mxu0
  %v4328 = vadd.f32 %v4116, %v4327
  %4329 = vmatmul.f32.gmra.mxu0 %v2806
  %v4330 = vpop.f32.mrf.mxu0
  %v4331 = vadd.f32 %v4119, %v4330
  %4332 = vmatmul.f32.gmra.mxu0 %v2552
  %v4333 = vpop.f32.mrf.mxu0
  %v4334 = vadd.f32 %v4122, %v4333
  %4335 = vmatmul.f32.gmra.mxu0 %v2555
  %v4336 = vpop.f32.mrf.mxu0
  %v4337 = vadd.f32 %v4125, %v4336
  %4338 = vmatmul.f32.gmra.mxu0 %v2558
  %v4339 = vpop.f32.mrf.mxu0
  %v4340 = vadd.f32 %v4128, %v4339
  %4341 = vmatmul.f32.gmra.mxu0 %v2561
  %v4342 = vpop.f32.mrf.mxu0
  %v4343 = vadd.f32 %v4131, %v4342
  %4344 = vmatmul.f32.gmra.mxu0 %v2564
  %v4345 = vpop.f32.mrf.mxu0
  %v4346 = vadd.f32 %v4134, %v4345
  %4347 = vmatmul.f32.gmra.mxu0 %v2567
  %v4348 = vpop.f32.mrf.mxu0
  %v4349 = vadd.f32 %v4137, %v4348
  %4350 = vmatmul.f32.gmra.mxu0 %v2570
  %v4351 = vpop.f32.mrf.mxu0
  %v4352 = vadd.f32 %v4140, %v4351
  %4353 = vmatmul.f32.gmra.mxu0 %v4167
  %v4354 = vpop.f32.mrf.mxu0
  %v4355 = vadd.f32 %v4143, %v4354
  %4356 = vmatmul.f32.gmra.mxu0 %v3934
  %v4357 = vpop.f32.mrf.mxu0
  %v4358 = vadd.f32 %v4146, %v4357
  %4359 = vmatmul.f32.gmra.mxu0 %v3937
  %v4360 = vpop.f32.mrf.mxu0
  %v4361 = vadd.f32 %v4149, %v4360
  %4362 = vmatmul.f32.gmra.mxu0 %v3940
  %v4363 = vpop.f32.mrf.mxu0
  %v4364 = vadd.f32 %v4152, %v4363
  %4365 = vmatmul.f32.gmra.mxu0 %v3943
  %v4366 = vpop.f32.mrf.mxu0
  %v4367 = vadd.f32 %v4155, %v4366
  %4368 = vmatmul.f32.gmra.mxu0 %v3946
  %v4369 = vpop.f32.mrf.mxu0
  %v4370 = vadd.f32 %v4158, %v4369
  %4371 = vmatmul.f32.gmra.mxu0 %v3949
  %v4372 = vpop.f32.mrf.mxu0
  %v4373 = vadd.f32 %v4161, %v4372
  %4374 = vmatmul.f32.gmra.mxu0 %v3952
  %v4375 = vpop.f32.mrf.mxu0
  %v4376 = vadd.f32 %v4164, %v4375
  %4377 = vdwg.mxu0
  %s4378 = scalar_lea.vmem %s3, 224
  %v4379 = vld [vmem:[%s4378] sm:$0xff]
  %v4380 = vld [vmem:[%s4378 + $0x8] sm:$0xff]
  %v4381 = vld [vmem:[%s4378 + $0x10] sm:$0xff]
  %v4382 = vld [vmem:[%s4378 + $0x18] sm:$0xff]
  %v4384 = vsel %vm2382, %v2334, 0
  %4386 = vmatpush.msra.mxu0 0.0
  %4387 = vmatpush.msra.mxu0 0.0
  %4388 = vmatpush.msra.mxu0 0.0
  %4389 = vmatpush.msra.mxu0 0.0
  %4390 = vmatpush.msra.mxu0 0.0
  %4391 = vmatpush.msra.mxu0 0.0
  %4392 = vmatpush.msra.mxu0 0.0
  %4393 = vmatpush.msra.mxu0 0.0
  %4394 = vmatpush.msra.mxu0 0.0
  %4395 = vmatpush.msra.mxu0 0.0
  %4396 = vmatpush.msra.mxu0 0.0
  %4397 = vmatpush.msra.mxu0 0.0
  %4398 = vmatpush.msra.mxu0 %v4382
  %4399 = vmatpush.msra.mxu0 %v4381
  %4400 = vmatpush.msra.mxu0 %v4380
  %4401 = vmatpush.msra.mxu0 %v4379
  %4402 = vmatmul.f32.gmra.mxu0 %v2411
  %v4403 = vpop.f32.mrf.mxu0
  %v4404 = vadd.f32 0.0, %v4403
  %4405 = vmatmul.f32.gmra.mxu0 %v2414
  %v4406 = vpop.f32.mrf.mxu0
  %v4407 = vadd.f32 0.0, %v4406
  %4408 = vmatmul.f32.gmra.mxu0 %v2417
  %v4409 = vpop.f32.mrf.mxu0
  %v4410 = vadd.f32 0.0, %v4409
  %4411 = vmatmul.f32.gmra.mxu0 %v2420
  %v4412 = vpop.f32.mrf.mxu0
  %v4413 = vadd.f32 0.0, %v4412
  %4414 = vmatmul.f32.gmra.mxu0 %v2423
  %v4415 = vpop.f32.mrf.mxu0
  %v4416 = vadd.f32 0.0, %v4415
  %4417 = vmatmul.f32.gmra.mxu0 %v2426
  %v4418 = vpop.f32.mrf.mxu0
  %v4419 = vadd.f32 0.0, %v4418
  %4420 = vmatmul.f32.gmra.mxu0 %v2429
  %v4421 = vpop.f32.mrf.mxu0
  %v4422 = vadd.f32 0.0, %v4421
  %4423 = vmatmul.f32.gmra.mxu0 %v3026
  %v4424 = vpop.f32.mrf.mxu0
  %v4425 = vadd.f32 0.0, %v4424
  %4426 = vmatmul.f32.gmra.mxu0 %v2435
  %v4427 = vpop.f32.mrf.mxu0
  %v4428 = vadd.f32 0.0, %v4427
  %4429 = vmatmul.f32.gmra.mxu0 %v2438
  %v4430 = vpop.f32.mrf.mxu0
  %v4431 = vadd.f32 0.0, %v4430
  %4432 = vmatmul.f32.gmra.mxu0 %v2441
  %v4433 = vpop.f32.mrf.mxu0
  %v4434 = vadd.f32 0.0, %v4433
  %4435 = vmatmul.f32.gmra.mxu0 %v2444
  %v4436 = vpop.f32.mrf.mxu0
  %v4437 = vadd.f32 0.0, %v4436
  %4438 = vmatmul.f32.gmra.mxu0 %v2447
  %v4439 = vpop.f32.mrf.mxu0
  %v4440 = vadd.f32 0.0, %v4439
  %4441 = vmatmul.f32.gmra.mxu0 %v2450
  %v4442 = vpop.f32.mrf.mxu0
  %v4443 = vadd.f32 0.0, %v4442
  %4444 = vmatmul.f32.gmra.mxu0 %v2453
  %v4445 = vpop.f32.mrf.mxu0
  %v4446 = vadd.f32 0.0, %v4445
  %4447 = vmatmul.f32.gmra.mxu0 %v3029
  %v4448 = vpop.f32.mrf.mxu0
  %v4449 = vadd.f32 0.0, %v4448
  %4450 = vmatmul.f32.gmra.mxu0 %v2459
  %v4451 = vpop.f32.mrf.mxu0
  %v4452 = vadd.f32 0.0, %v4451
  %4453 = vmatmul.f32.gmra.mxu0 %v2462
  %v4454 = vpop.f32.mrf.mxu0
  %v4455 = vadd.f32 0.0, %v4454
  %4456 = vmatmul.f32.gmra.mxu0 %v2465
  %v4457 = vpop.f32.mrf.mxu0
  %v4458 = vadd.f32 0.0, %v4457
  %4459 = vmatmul.f32.gmra.mxu0 %v2468
  %v4460 = vpop.f32.mrf.mxu0
  %v4461 = vadd.f32 0.0, %v4460
  %4462 = vmatmul.f32.gmra.mxu0 %v2471
  %v4463 = vpop.f32.mrf.mxu0
  %v4464 = vadd.f32 0.0, %v4463
  %4465 = vmatmul.f32.gmra.mxu0 %v2474
  %v4466 = vpop.f32.mrf.mxu0
  %v4467 = vadd.f32 0.0, %v4466
  %4468 = vmatmul.f32.gmra.mxu0 %v2477
  %v4469 = vpop.f32.mrf.mxu0
  %v4470 = vadd.f32 0.0, %v4469
  %4471 = vmatmul.f32.gmra.mxu0 %v3032
  %v4472 = vpop.f32.mrf.mxu0
  %v4473 = vadd.f32 0.0, %v4472
  %4474 = vmatmul.f32.gmra.mxu0 %v2483
  %v4475 = vpop.f32.mrf.mxu0
  %v4476 = vadd.f32 0.0, %v4475
  %4477 = vmatmul.f32.gmra.mxu0 %v2486
  %v4478 = vpop.f32.mrf.mxu0
  %v4479 = vadd.f32 0.0, %v4478
  %4480 = vmatmul.f32.gmra.mxu0 %v2489
  %v4481 = vpop.f32.mrf.mxu0
  %v4482 = vadd.f32 0.0, %v4481
  %4483 = vmatmul.f32.gmra.mxu0 %v2492
  %v4484 = vpop.f32.mrf.mxu0
  %v4485 = vadd.f32 0.0, %v4484
  %4486 = vmatmul.f32.gmra.mxu0 %v2495
  %v4487 = vpop.f32.mrf.mxu0
  %v4488 = vadd.f32 0.0, %v4487
  %4489 = vmatmul.f32.gmra.mxu0 %v2498
  %v4490 = vpop.f32.mrf.mxu0
  %v4491 = vadd.f32 0.0, %v4490
  %4492 = vmatmul.f32.gmra.mxu0 %v2501
  %v4493 = vpop.f32.mrf.mxu0
  %v4494 = vadd.f32 0.0, %v4493
  %4495 = vmatmul.f32.gmra.mxu0 %v3035
  %v4496 = vpop.f32.mrf.mxu0
  %v4497 = vadd.f32 0.0, %v4496
  %4498 = vmatmul.f32.gmra.mxu0 %v2507
  %v4499 = vpop.f32.mrf.mxu0
  %v4500 = vadd.f32 0.0, %v4499
  %4501 = vmatmul.f32.gmra.mxu0 %v2510
  %v4502 = vpop.f32.mrf.mxu0
  %v4503 = vadd.f32 0.0, %v4502
  %4504 = vmatmul.f32.gmra.mxu0 %v2513
  %v4505 = vpop.f32.mrf.mxu0
  %v4506 = vadd.f32 0.0, %v4505
  %4507 = vmatmul.f32.gmra.mxu0 %v2516
  %v4508 = vpop.f32.mrf.mxu0
  %v4509 = vadd.f32 0.0, %v4508
  %4510 = vmatmul.f32.gmra.mxu0 %v2519
  %v4511 = vpop.f32.mrf.mxu0
  %v4512 = vadd.f32 0.0, %v4511
  %4513 = vmatmul.f32.gmra.mxu0 %v2522
  %v4514 = vpop.f32.mrf.mxu0
  %v4515 = vadd.f32 0.0, %v4514
  %4516 = vmatmul.f32.gmra.mxu0 %v2525
  %v4517 = vpop.f32.mrf.mxu0
  %v4518 = vadd.f32 0.0, %v4517
  %4519 = vmatmul.f32.gmra.mxu0 %v3038
  %v4520 = vpop.f32.mrf.mxu0
  %v4521 = vadd.f32 0.0, %v4520
  %4522 = vmatmul.f32.gmra.mxu0 %v2531
  %v4523 = vpop.f32.mrf.mxu0
  %v4524 = vadd.f32 0.0, %v4523
  %4525 = vmatmul.f32.gmra.mxu0 %v2534
  %v4526 = vpop.f32.mrf.mxu0
  %v4527 = vadd.f32 0.0, %v4526
  %4528 = vmatmul.f32.gmra.mxu0 %v2537
  %v4529 = vpop.f32.mrf.mxu0
  %v4530 = vadd.f32 0.0, %v4529
  %4531 = vmatmul.f32.gmra.mxu0 %v2540
  %v4532 = vpop.f32.mrf.mxu0
  %v4533 = vadd.f32 0.0, %v4532
  %4534 = vmatmul.f32.gmra.mxu0 %v2543
  %v4535 = vpop.f32.mrf.mxu0
  %v4536 = vadd.f32 0.0, %v4535
  %4537 = vmatmul.f32.gmra.mxu0 %v2546
  %v4538 = vpop.f32.mrf.mxu0
  %v4539 = vadd.f32 0.0, %v4538
  %4540 = vmatmul.f32.gmra.mxu0 %v2549
  %v4541 = vpop.f32.mrf.mxu0
  %v4542 = vadd.f32 0.0, %v4541
  %4543 = vmatmul.f32.gmra.mxu0 %v3041
  %v4544 = vpop.f32.mrf.mxu0
  %v4545 = vadd.f32 0.0, %v4544
  %4546 = vmatmul.f32.gmra.mxu0 %v2555
  %v4547 = vpop.f32.mrf.mxu0
  %v4548 = vadd.f32 0.0, %v4547
  %4549 = vmatmul.f32.gmra.mxu0 %v2558
  %v4550 = vpop.f32.mrf.mxu0
  %v4551 = vadd.f32 0.0, %v4550
  %4552 = vmatmul.f32.gmra.mxu0 %v2561
  %v4553 = vpop.f32.mrf.mxu0
  %v4554 = vadd.f32 0.0, %v4553
  %4555 = vmatmul.f32.gmra.mxu0 %v2564
  %v4556 = vpop.f32.mrf.mxu0
  %v4557 = vadd.f32 0.0, %v4556
  %4558 = vmatmul.f32.gmra.mxu0 %v2567
  %v4559 = vpop.f32.mrf.mxu0
  %v4560 = vadd.f32 0.0, %v4559
  %4561 = vmatmul.f32.gmra.mxu0 %v2570
  %v4562 = vpop.f32.mrf.mxu0
  %v4563 = vadd.f32 0.0, %v4562
  %4564 = vmatmul.f32.gmra.mxu0 %v2573
  %v4565 = vpop.f32.mrf.mxu0
  %v4566 = vadd.f32 0.0, %v4565
  %4567 = vmatmul.f32.gmra.mxu0 %v3044
  %v4568 = vpop.f32.mrf.mxu0
  %v4569 = vadd.f32 0.0, %v4568
  %4570 = vmatmul.f32.gmra.mxu0 %v3937
  %v4571 = vpop.f32.mrf.mxu0
  %v4572 = vadd.f32 0.0, %v4571
  %4573 = vmatmul.f32.gmra.mxu0 %v3940
  %v4574 = vpop.f32.mrf.mxu0
  %v4575 = vadd.f32 0.0, %v4574
  %4576 = vmatmul.f32.gmra.mxu0 %v3943
  %v4577 = vpop.f32.mrf.mxu0
  %v4578 = vadd.f32 0.0, %v4577
  %4579 = vmatmul.f32.gmra.mxu0 %v3946
  %v4580 = vpop.f32.mrf.mxu0
  %v4581 = vadd.f32 0.0, %v4580
  %4582 = vmatmul.f32.gmra.mxu0 %v3949
  %v4583 = vpop.f32.mrf.mxu0
  %v4584 = vadd.f32 0.0, %v4583
  %4585 = vmatmul.f32.gmra.mxu0 %v3952
  %v4586 = vpop.f32.mrf.mxu0
  %v4587 = vadd.f32 0.0, %v4586
  %4588 = vmatmul.f32.gmra.mxu0 %v3955
  %v4589 = vpop.f32.mrf.mxu0
  %v4590 = vadd.f32 0.0, %v4589
  %4591 = vmatmul.f32.gmra.mxu0 %v4384
  %v4592 = vpop.f32.mrf.mxu0
  %v4593 = vadd.f32 0.0, %v4592
  %4594 = vdwg.mxu0
  %v4595 = vadd.f32 %v4187, %v4404
  %v4596 = vadd.f32 %v4190, %v4407
  %v4597 = vadd.f32 %v4193, %v4410
  %v4598 = vadd.f32 %v4196, %v4413
  %v4599 = vadd.f32 %v4199, %v4416
  %v4600 = vadd.f32 %v4202, %v4419
  %v4601 = vadd.f32 %v4205, %v4422
  %v4602 = vadd.f32 %v4208, %v4425
  %v4603 = vadd.f32 %v4211, %v4428
  %v4604 = vadd.f32 %v4214, %v4431
  %v4605 = vadd.f32 %v4217, %v4434
  %v4606 = vadd.f32 %v4220, %v4437
  %v4607 = vadd.f32 %v4223, %v4440
  %v4608 = vadd.f32 %v4226, %v4443
  %v4609 = vadd.f32 %v4229, %v4446
  %v4610 = vadd.f32 %v4232, %v4449
  %v4611 = vadd.f32 %v4235, %v4452
  %v4612 = vadd.f32 %v4238, %v4455
  %v4613 = vadd.f32 %v4241, %v4458
  %v4614 = vadd.f32 %v4244, %v4461
  %v4615 = vadd.f32 %v4247, %v4464
  %v4616 = vadd.f32 %v4250, %v4467
  %v4617 = vadd.f32 %v4253, %v4470
  %v4618 = vadd.f32 %v4256, %v4473
  %v4619 = vadd.f32 %v4259, %v4476
  %v4620 = vadd.f32 %v4262, %v4479
  %v4621 = vadd.f32 %v4265, %v4482
  %v4622 = vadd.f32 %v4268, %v4485
  %v4623 = vadd.f32 %v4271, %v4488
  %v4624 = vadd.f32 %v4274, %v4491
  %v4625 = vadd.f32 %v4277, %v4494
  %v4626 = vadd.f32 %v4280, %v4497
  %v4627 = vadd.f32 %v4283, %v4500
  %v4628 = vadd.f32 %v4286, %v4503
  %v4629 = vadd.f32 %v4289, %v4506
  %v4630 = vadd.f32 %v4292, %v4509
  %v4631 = vadd.f32 %v4295, %v4512
  %v4632 = vadd.f32 %v4298, %v4515
  %v4633 = vadd.f32 %v4301, %v4518
  %v4634 = vadd.f32 %v4304, %v4521
  %v4635 = vadd.f32 %v4307, %v4524
  %v4636 = vadd.f32 %v4310, %v4527
  %v4637 = vadd.f32 %v4313, %v4530
  %v4638 = vadd.f32 %v4316, %v4533
  %v4639 = vadd.f32 %v4319, %v4536
  %v4640 = vadd.f32 %v4322, %v4539
  %v4641 = vadd.f32 %v4325, %v4542
  %v4642 = vadd.f32 %v4328, %v4545
  %v4643 = vadd.f32 %v4331, %v4548
  %v4644 = vadd.f32 %v4334, %v4551
  %v4645 = vadd.f32 %v4337, %v4554
  %v4646 = vadd.f32 %v4340, %v4557
  %v4647 = vadd.f32 %v4343, %v4560
  %v4648 = vadd.f32 %v4346, %v4563
  %v4649 = vadd.f32 %v4349, %v4566
  %v4650 = vadd.f32 %v4352, %v4569
  %v4651 = vadd.f32 %v4355, %v4572
  %v4652 = vadd.f32 %v4358, %v4575
  %v4653 = vadd.f32 %v4361, %v4578
  %v4654 = vadd.f32 %v4364, %v4581
  %v4655 = vadd.f32 %v4367, %v4584
  %v4656 = vadd.f32 %v4370, %v4587
  %v4657 = vadd.f32 %v4373, %v4590
  %v4658 = vadd.f32 %v4376, %v4593
  %s4659 = scalar_lea.vmem %s3, 256
  %v4660 = vld [vmem:[%s4659] sm:$0xff]
  %v4661 = vld [vmem:[%s4659 + $0x8] sm:$0xff]
  %v4662 = vld [vmem:[%s4659 + $0x10] sm:$0xff]
  %v4663 = vld [vmem:[%s4659 + $0x18] sm:$0xff]
  %v4665 = vsel %vm2382, %v2335, 0
  %4667 = vmatpush.msra.mxu0 0.0
  %4668 = vmatpush.msra.mxu0 0.0
  %4669 = vmatpush.msra.mxu0 0.0
  %4670 = vmatpush.msra.mxu0 0.0
  %4671 = vmatpush.msra.mxu0 0.0
  %4672 = vmatpush.msra.mxu0 0.0
  %4673 = vmatpush.msra.mxu0 0.0
  %4674 = vmatpush.msra.mxu0 0.0
  %4675 = vmatpush.msra.mxu0 0.0
  %4676 = vmatpush.msra.mxu0 0.0
  %4677 = vmatpush.msra.mxu0 0.0
  %4678 = vmatpush.msra.mxu0 0.0
  %4679 = vmatpush.msra.mxu0 %v4663
  %4680 = vmatpush.msra.mxu0 %v4662
  %4681 = vmatpush.msra.mxu0 %v4661
  %4682 = vmatpush.msra.mxu0 %v4660
  %4683 = vmatmul.f32.gmra.mxu0 %v2414
  %v4684 = vpop.f32.mrf.mxu0
  %v4685 = vadd.f32 0.0, %v4684
  %4686 = vmatmul.f32.gmra.mxu0 %v2417
  %v4687 = vpop.f32.mrf.mxu0
  %v4688 = vadd.f32 0.0, %v4687
  %4689 = vmatmul.f32.gmra.mxu0 %v2420
  %v4690 = vpop.f32.mrf.mxu0
  %v4691 = vadd.f32 0.0, %v4690
  %4692 = vmatmul.f32.gmra.mxu0 %v2423
  %v4693 = vpop.f32.mrf.mxu0
  %v4694 = vadd.f32 0.0, %v4693
  %4695 = vmatmul.f32.gmra.mxu0 %v2426
  %v4696 = vpop.f32.mrf.mxu0
  %v4697 = vadd.f32 0.0, %v4696
  %4698 = vmatmul.f32.gmra.mxu0 %v2429
  %v4699 = vpop.f32.mrf.mxu0
  %v4700 = vadd.f32 0.0, %v4699
  %4701 = vmatmul.f32.gmra.mxu0 %v3026
  %v4702 = vpop.f32.mrf.mxu0
  %v4703 = vadd.f32 0.0, %v4702
  %4704 = vmatmul.f32.gmra.mxu0 %v3328
  %v4705 = vpop.f32.mrf.mxu0
  %v4706 = vadd.f32 0.0, %v4705
  %4707 = vmatmul.f32.gmra.mxu0 %v2438
  %v4708 = vpop.f32.mrf.mxu0
  %v4709 = vadd.f32 0.0, %v4708
  %4710 = vmatmul.f32.gmra.mxu0 %v2441
  %v4711 = vpop.f32.mrf.mxu0
  %v4712 = vadd.f32 0.0, %v4711
  %4713 = vmatmul.f32.gmra.mxu0 %v2444
  %v4714 = vpop.f32.mrf.mxu0
  %v4715 = vadd.f32 0.0, %v4714
  %4716 = vmatmul.f32.gmra.mxu0 %v2447
  %v4717 = vpop.f32.mrf.mxu0
  %v4718 = vadd.f32 0.0, %v4717
  %4719 = vmatmul.f32.gmra.mxu0 %v2450
  %v4720 = vpop.f32.mrf.mxu0
  %v4721 = vadd.f32 0.0, %v4720
  %4722 = vmatmul.f32.gmra.mxu0 %v2453
  %v4723 = vpop.f32.mrf.mxu0
  %v4724 = vadd.f32 0.0, %v4723
  %4725 = vmatmul.f32.gmra.mxu0 %v3029
  %v4726 = vpop.f32.mrf.mxu0
  %v4727 = vadd.f32 0.0, %v4726
  %4728 = vmatmul.f32.gmra.mxu0 %v3331
  %v4729 = vpop.f32.mrf.mxu0
  %v4730 = vadd.f32 0.0, %v4729
  %4731 = vmatmul.f32.gmra.mxu0 %v2462
  %v4732 = vpop.f32.mrf.mxu0
  %v4733 = vadd.f32 0.0, %v4732
  %4734 = vmatmul.f32.gmra.mxu0 %v2465
  %v4735 = vpop.f32.mrf.mxu0
  %v4736 = vadd.f32 0.0, %v4735
  %4737 = vmatmul.f32.gmra.mxu0 %v2468
  %v4738 = vpop.f32.mrf.mxu0
  %v4739 = vadd.f32 0.0, %v4738
  %4740 = vmatmul.f32.gmra.mxu0 %v2471
  %v4741 = vpop.f32.mrf.mxu0
  %v4742 = vadd.f32 0.0, %v4741
  %4743 = vmatmul.f32.gmra.mxu0 %v2474
  %v4744 = vpop.f32.mrf.mxu0
  %v4745 = vadd.f32 0.0, %v4744
  %4746 = vmatmul.f32.gmra.mxu0 %v2477
  %v4747 = vpop.f32.mrf.mxu0
  %v4748 = vadd.f32 0.0, %v4747
  %4749 = vmatmul.f32.gmra.mxu0 %v3032
  %v4750 = vpop.f32.mrf.mxu0
  %v4751 = vadd.f32 0.0, %v4750
  %4752 = vmatmul.f32.gmra.mxu0 %v3334
  %v4753 = vpop.f32.mrf.mxu0
  %v4754 = vadd.f32 0.0, %v4753
  %4755 = vmatmul.f32.gmra.mxu0 %v2486
  %v4756 = vpop.f32.mrf.mxu0
  %v4757 = vadd.f32 0.0, %v4756
  %4758 = vmatmul.f32.gmra.mxu0 %v2489
  %v4759 = vpop.f32.mrf.mxu0
  %v4760 = vadd.f32 0.0, %v4759
  %4761 = vmatmul.f32.gmra.mxu0 %v2492
  %v4762 = vpop.f32.mrf.mxu0
  %v4763 = vadd.f32 0.0, %v4762
  %4764 = vmatmul.f32.gmra.mxu0 %v2495
  %v4765 = vpop.f32.mrf.mxu0
  %v4766 = vadd.f32 0.0, %v4765
  %4767 = vmatmul.f32.gmra.mxu0 %v2498
  %v4768 = vpop.f32.mrf.mxu0
  %v4769 = vadd.f32 0.0, %v4768
  %4770 = vmatmul.f32.gmra.mxu0 %v2501
  %v4771 = vpop.f32.mrf.mxu0
  %v4772 = vadd.f32 0.0, %v4771
  %4773 = vmatmul.f32.gmra.mxu0 %v3035
  %v4774 = vpop.f32.mrf.mxu0
  %v4775 = vadd.f32 0.0, %v4774
  %4776 = vmatmul.f32.gmra.mxu0 %v3337
  %v4777 = vpop.f32.mrf.mxu0
  %v4778 = vadd.f32 0.0, %v4777
  %4779 = vmatmul.f32.gmra.mxu0 %v2510
  %v4780 = vpop.f32.mrf.mxu0
  %v4781 = vadd.f32 0.0, %v4780
  %4782 = vmatmul.f32.gmra.mxu0 %v2513
  %v4783 = vpop.f32.mrf.mxu0
  %v4784 = vadd.f32 0.0, %v4783
  %4785 = vmatmul.f32.gmra.mxu0 %v2516
  %v4786 = vpop.f32.mrf.mxu0
  %v4787 = vadd.f32 0.0, %v4786
  %4788 = vmatmul.f32.gmra.mxu0 %v2519
  %v4789 = vpop.f32.mrf.mxu0
  %v4790 = vadd.f32 0.0, %v4789
  %4791 = vmatmul.f32.gmra.mxu0 %v2522
  %v4792 = vpop.f32.mrf.mxu0
  %v4793 = vadd.f32 0.0, %v4792
  %4794 = vmatmul.f32.gmra.mxu0 %v2525
  %v4795 = vpop.f32.mrf.mxu0
  %v4796 = vadd.f32 0.0, %v4795
  %4797 = vmatmul.f32.gmra.mxu0 %v3038
  %v4798 = vpop.f32.mrf.mxu0
  %v4799 = vadd.f32 0.0, %v4798
  %4800 = vmatmul.f32.gmra.mxu0 %v3340
  %v4801 = vpop.f32.mrf.mxu0
  %v4802 = vadd.f32 0.0, %v4801
  %4803 = vmatmul.f32.gmra.mxu0 %v2534
  %v4804 = vpop.f32.mrf.mxu0
  %v4805 = vadd.f32 0.0, %v4804
  %4806 = vmatmul.f32.gmra.mxu0 %v2537
  %v4807 = vpop.f32.mrf.mxu0
  %v4808 = vadd.f32 0.0, %v4807
  %4809 = vmatmul.f32.gmra.mxu0 %v2540
  %v4810 = vpop.f32.mrf.mxu0
  %v4811 = vadd.f32 0.0, %v4810
  %4812 = vmatmul.f32.gmra.mxu0 %v2543
  %v4813 = vpop.f32.mrf.mxu0
  %v4814 = vadd.f32 0.0, %v4813
  %4815 = vmatmul.f32.gmra.mxu0 %v2546
  %v4816 = vpop.f32.mrf.mxu0
  %v4817 = vadd.f32 0.0, %v4816
  %4818 = vmatmul.f32.gmra.mxu0 %v2549
  %v4819 = vpop.f32.mrf.mxu0
  %v4820 = vadd.f32 0.0, %v4819
  %4821 = vmatmul.f32.gmra.mxu0 %v3041
  %v4822 = vpop.f32.mrf.mxu0
  %v4823 = vadd.f32 0.0, %v4822
  %4824 = vmatmul.f32.gmra.mxu0 %v3343
  %v4825 = vpop.f32.mrf.mxu0
  %v4826 = vadd.f32 0.0, %v4825
  %4827 = vmatmul.f32.gmra.mxu0 %v2558
  %v4828 = vpop.f32.mrf.mxu0
  %v4829 = vadd.f32 0.0, %v4828
  %4830 = vmatmul.f32.gmra.mxu0 %v2561
  %v4831 = vpop.f32.mrf.mxu0
  %v4832 = vadd.f32 0.0, %v4831
  %4833 = vmatmul.f32.gmra.mxu0 %v2564
  %v4834 = vpop.f32.mrf.mxu0
  %v4835 = vadd.f32 0.0, %v4834
  %4836 = vmatmul.f32.gmra.mxu0 %v2567
  %v4837 = vpop.f32.mrf.mxu0
  %v4838 = vadd.f32 0.0, %v4837
  %4839 = vmatmul.f32.gmra.mxu0 %v2570
  %v4840 = vpop.f32.mrf.mxu0
  %v4841 = vadd.f32 0.0, %v4840
  %4842 = vmatmul.f32.gmra.mxu0 %v2573
  %v4843 = vpop.f32.mrf.mxu0
  %v4844 = vadd.f32 0.0, %v4843
  %4845 = vmatmul.f32.gmra.mxu0 %v3044
  %v4846 = vpop.f32.mrf.mxu0
  %v4847 = vadd.f32 0.0, %v4846
  %4848 = vmatmul.f32.gmra.mxu0 %v3346
  %v4849 = vpop.f32.mrf.mxu0
  %v4850 = vadd.f32 0.0, %v4849
  %4851 = vmatmul.f32.gmra.mxu0 %v3940
  %v4852 = vpop.f32.mrf.mxu0
  %v4853 = vadd.f32 0.0, %v4852
  %4854 = vmatmul.f32.gmra.mxu0 %v3943
  %v4855 = vpop.f32.mrf.mxu0
  %v4856 = vadd.f32 0.0, %v4855
  %4857 = vmatmul.f32.gmra.mxu0 %v3946
  %v4858 = vpop.f32.mrf.mxu0
  %v4859 = vadd.f32 0.0, %v4858
  %4860 = vmatmul.f32.gmra.mxu0 %v3949
  %v4861 = vpop.f32.mrf.mxu0
  %v4862 = vadd.f32 0.0, %v4861
  %4863 = vmatmul.f32.gmra.mxu0 %v3952
  %v4864 = vpop.f32.mrf.mxu0
  %v4865 = vadd.f32 0.0, %v4864
  %4866 = vmatmul.f32.gmra.mxu0 %v3955
  %v4867 = vpop.f32.mrf.mxu0
  %v4868 = vadd.f32 0.0, %v4867
  %4869 = vmatmul.f32.gmra.mxu0 %v4384
  %v4870 = vpop.f32.mrf.mxu0
  %v4871 = vadd.f32 0.0, %v4870
  %4872 = vmatmul.f32.gmra.mxu0 %v4665
  %v4873 = vpop.f32.mrf.mxu0
  %v4874 = vadd.f32 0.0, %v4873
  %4875 = vdwg.mxu0
  %v4876 = vadd.f32 %v4595, %v4685
  %v4877 = vadd.f32 %v4596, %v4688
  %v4878 = vadd.f32 %v4597, %v4691
  %v4879 = vadd.f32 %v4598, %v4694
  %v4880 = vadd.f32 %v4599, %v4697
  %v4881 = vadd.f32 %v4600, %v4700
  %v4882 = vadd.f32 %v4601, %v4703
  %v4883 = vadd.f32 %v4602, %v4706
  %v4884 = vadd.f32 %v4603, %v4709
  %v4885 = vadd.f32 %v4604, %v4712
  %v4886 = vadd.f32 %v4605, %v4715
  %v4887 = vadd.f32 %v4606, %v4718
  %v4888 = vadd.f32 %v4607, %v4721
  %v4889 = vadd.f32 %v4608, %v4724
  %v4890 = vadd.f32 %v4609, %v4727
  %v4891 = vadd.f32 %v4610, %v4730
  %v4892 = vadd.f32 %v4611, %v4733
  %v4893 = vadd.f32 %v4612, %v4736
  %v4894 = vadd.f32 %v4613, %v4739
  %v4895 = vadd.f32 %v4614, %v4742
  %v4896 = vadd.f32 %v4615, %v4745
  %v4897 = vadd.f32 %v4616, %v4748
  %v4898 = vadd.f32 %v4617, %v4751
  %v4899 = vadd.f32 %v4618, %v4754
  %v4900 = vadd.f32 %v4619, %v4757
  %v4901 = vadd.f32 %v4620, %v4760
  %v4902 = vadd.f32 %v4621, %v4763
  %v4903 = vadd.f32 %v4622, %v4766
  %v4904 = vadd.f32 %v4623, %v4769
  %v4905 = vadd.f32 %v4624, %v4772
  %v4906 = vadd.f32 %v4625, %v4775
  %v4907 = vadd.f32 %v4626, %v4778
  %v4908 = vadd.f32 %v4627, %v4781
  %v4909 = vadd.f32 %v4628, %v4784
  %v4910 = vadd.f32 %v4629, %v4787
  %v4911 = vadd.f32 %v4630, %v4790
  %v4912 = vadd.f32 %v4631, %v4793
  %v4913 = vadd.f32 %v4632, %v4796
  %v4914 = vadd.f32 %v4633, %v4799
  %v4915 = vadd.f32 %v4634, %v4802
  %v4916 = vadd.f32 %v4635, %v4805
  %v4917 = vadd.f32 %v4636, %v4808
  %v4918 = vadd.f32 %v4637, %v4811
  %v4919 = vadd.f32 %v4638, %v4814
  %v4920 = vadd.f32 %v4639, %v4817
  %v4921 = vadd.f32 %v4640, %v4820
  %v4922 = vadd.f32 %v4641, %v4823
  %v4923 = vadd.f32 %v4642, %v4826
  %v4924 = vadd.f32 %v4643, %v4829
  %v4925 = vadd.f32 %v4644, %v4832
  %v4926 = vadd.f32 %v4645, %v4835
  %v4927 = vadd.f32 %v4646, %v4838
  %v4928 = vadd.f32 %v4647, %v4841
  %v4929 = vadd.f32 %v4648, %v4844
  %v4930 = vadd.f32 %v4649, %v4847
  %v4931 = vadd.f32 %v4650, %v4850
  %v4932 = vadd.f32 %v4651, %v4853
  %v4933 = vadd.f32 %v4652, %v4856
  %v4934 = vadd.f32 %v4653, %v4859
  %v4935 = vadd.f32 %v4654, %v4862
  %v4936 = vadd.f32 %v4655, %v4865
  %v4937 = vadd.f32 %v4656, %v4868
  %v4938 = vadd.f32 %v4657, %v4871
  %v4939 = vadd.f32 %v4658, %v4874
  %s4940 = scalar_lea.vmem %s3, 288
  %v4941 = vld [vmem:[%s4940] sm:$0xff]
  %v4942 = vld [vmem:[%s4940 + $0x8] sm:$0xff]
  %v4943 = vld [vmem:[%s4940 + $0x10] sm:$0xff]
  %v4944 = vld [vmem:[%s4940 + $0x18] sm:$0xff]
  %v4946 = vsel %vm2382, %v2336, 0
  %4948 = vmatpush.msra.mxu0 0.0
  %4949 = vmatpush.msra.mxu0 0.0
  %4950 = vmatpush.msra.mxu0 0.0
  %4951 = vmatpush.msra.mxu0 0.0
  %4952 = vmatpush.msra.mxu0 0.0
  %4953 = vmatpush.msra.mxu0 0.0
  %4954 = vmatpush.msra.mxu0 0.0
  %4955 = vmatpush.msra.mxu0 0.0
  %4956 = vmatpush.msra.mxu0 0.0
  %4957 = vmatpush.msra.mxu0 0.0
  %4958 = vmatpush.msra.mxu0 0.0
  %4959 = vmatpush.msra.mxu0 0.0
  %4960 = vmatpush.msra.mxu0 %v4944
  %4961 = vmatpush.msra.mxu0 %v4943
  %4962 = vmatpush.msra.mxu0 %v4942
  %4963 = vmatpush.msra.mxu0 %v4941
  %4964 = vmatmul.f32.gmra.mxu0 %v2417
  %v4965 = vpop.f32.mrf.mxu0
  %v4966 = vadd.f32 0.0, %v4965
  %4967 = vmatmul.f32.gmra.mxu0 %v2420
  %v4968 = vpop.f32.mrf.mxu0
  %v4969 = vadd.f32 0.0, %v4968
  %4970 = vmatmul.f32.gmra.mxu0 %v2423
  %v4971 = vpop.f32.mrf.mxu0
  %v4972 = vadd.f32 0.0, %v4971
  %4973 = vmatmul.f32.gmra.mxu0 %v2426
  %v4974 = vpop.f32.mrf.mxu0
  %v4975 = vadd.f32 0.0, %v4974
  %4976 = vmatmul.f32.gmra.mxu0 %v2429
  %v4977 = vpop.f32.mrf.mxu0
  %v4978 = vadd.f32 0.0, %v4977
  %4979 = vmatmul.f32.gmra.mxu0 %v3026
  %v4980 = vpop.f32.mrf.mxu0
  %v4981 = vadd.f32 0.0, %v4980
  %4982 = vmatmul.f32.gmra.mxu0 %v3328
  %v4983 = vpop.f32.mrf.mxu0
  %v4984 = vadd.f32 0.0, %v4983
  %4985 = vmatmul.f32.gmra.mxu0 %v3630
  %v4986 = vpop.f32.mrf.mxu0
  %v4987 = vadd.f32 0.0, %v4986
  %4988 = vmatmul.f32.gmra.mxu0 %v2441
  %v4989 = vpop.f32.mrf.mxu0
  %v4990 = vadd.f32 0.0, %v4989
  %4991 = vmatmul.f32.gmra.mxu0 %v2444
  %v4992 = vpop.f32.mrf.mxu0
  %v4993 = vadd.f32 0.0, %v4992
  %4994 = vmatmul.f32.gmra.mxu0 %v2447
  %v4995 = vpop.f32.mrf.mxu0
  %v4996 = vadd.f32 0.0, %v4995
  %4997 = vmatmul.f32.gmra.mxu0 %v2450
  %v4998 = vpop.f32.mrf.mxu0
  %v4999 = vadd.f32 0.0, %v4998
  %5000 = vmatmul.f32.gmra.mxu0 %v2453
  %v5001 = vpop.f32.mrf.mxu0
  %v5002 = vadd.f32 0.0, %v5001
  %5003 = vmatmul.f32.gmra.mxu0 %v3029
  %v5004 = vpop.f32.mrf.mxu0
  %v5005 = vadd.f32 0.0, %v5004
  %5006 = vmatmul.f32.gmra.mxu0 %v3331
  %v5007 = vpop.f32.mrf.mxu0
  %v5008 = vadd.f32 0.0, %v5007
  %5009 = vmatmul.f32.gmra.mxu0 %v3633
  %v5010 = vpop.f32.mrf.mxu0
  %v5011 = vadd.f32 0.0, %v5010
  %5012 = vmatmul.f32.gmra.mxu0 %v2465
  %v5013 = vpop.f32.mrf.mxu0
  %v5014 = vadd.f32 0.0, %v5013
  %5015 = vmatmul.f32.gmra.mxu0 %v2468
  %v5016 = vpop.f32.mrf.mxu0
  %v5017 = vadd.f32 0.0, %v5016
  %5018 = vmatmul.f32.gmra.mxu0 %v2471
  %v5019 = vpop.f32.mrf.mxu0
  %v5020 = vadd.f32 0.0, %v5019
  %5021 = vmatmul.f32.gmra.mxu0 %v2474
  %v5022 = vpop.f32.mrf.mxu0
  %v5023 = vadd.f32 0.0, %v5022
  %5024 = vmatmul.f32.gmra.mxu0 %v2477
  %v5025 = vpop.f32.mrf.mxu0
  %v5026 = vadd.f32 0.0, %v5025
  %5027 = vmatmul.f32.gmra.mxu0 %v3032
  %v5028 = vpop.f32.mrf.mxu0
  %v5029 = vadd.f32 0.0, %v5028
  %5030 = vmatmul.f32.gmra.mxu0 %v3334
  %v5031 = vpop.f32.mrf.mxu0
  %v5032 = vadd.f32 0.0, %v5031
  %5033 = vmatmul.f32.gmra.mxu0 %v3636
  %v5034 = vpop.f32.mrf.mxu0
  %v5035 = vadd.f32 0.0, %v5034
  %5036 = vmatmul.f32.gmra.mxu0 %v2489
  %v5037 = vpop.f32.mrf.mxu0
  %v5038 = vadd.f32 0.0, %v5037
  %5039 = vmatmul.f32.gmra.mxu0 %v2492
  %v5040 = vpop.f32.mrf.mxu0
  %v5041 = vadd.f32 0.0, %v5040
  %5042 = vmatmul.f32.gmra.mxu0 %v2495
  %v5043 = vpop.f32.mrf.mxu0
  %v5044 = vadd.f32 0.0, %v5043
  %5045 = vmatmul.f32.gmra.mxu0 %v2498
  %v5046 = vpop.f32.mrf.mxu0
  %v5047 = vadd.f32 0.0, %v5046
  %5048 = vmatmul.f32.gmra.mxu0 %v2501
  %v5049 = vpop.f32.mrf.mxu0
  %v5050 = vadd.f32 0.0, %v5049
  %5051 = vmatmul.f32.gmra.mxu0 %v3035
  %v5052 = vpop.f32.mrf.mxu0
  %v5053 = vadd.f32 0.0, %v5052
  %5054 = vmatmul.f32.gmra.mxu0 %v3337
  %v5055 = vpop.f32.mrf.mxu0
  %v5056 = vadd.f32 0.0, %v5055
  %5057 = vmatmul.f32.gmra.mxu0 %v3639
  %v5058 = vpop.f32.mrf.mxu0
  %v5059 = vadd.f32 0.0, %v5058
  %5060 = vmatmul.f32.gmra.mxu0 %v2513
  %v5061 = vpop.f32.mrf.mxu0
  %v5062 = vadd.f32 0.0, %v5061
  %5063 = vmatmul.f32.gmra.mxu0 %v2516
  %v5064 = vpop.f32.mrf.mxu0
  %v5065 = vadd.f32 0.0, %v5064
  %5066 = vmatmul.f32.gmra.mxu0 %v2519
  %v5067 = vpop.f32.mrf.mxu0
  %v5068 = vadd.f32 0.0, %v5067
  %5069 = vmatmul.f32.gmra.mxu0 %v2522
  %v5070 = vpop.f32.mrf.mxu0
  %v5071 = vadd.f32 0.0, %v5070
  %5072 = vmatmul.f32.gmra.mxu0 %v2525
  %v5073 = vpop.f32.mrf.mxu0
  %v5074 = vadd.f32 0.0, %v5073
  %5075 = vmatmul.f32.gmra.mxu0 %v3038
  %v5076 = vpop.f32.mrf.mxu0
  %v5077 = vadd.f32 0.0, %v5076
  %5078 = vmatmul.f32.gmra.mxu0 %v3340
  %v5079 = vpop.f32.mrf.mxu0
  %v5080 = vadd.f32 0.0, %v5079
  %5081 = vmatmul.f32.gmra.mxu0 %v3642
  %v5082 = vpop.f32.mrf.mxu0
  %v5083 = vadd.f32 0.0, %v5082
  %5084 = vmatmul.f32.gmra.mxu0 %v2537
  %v5085 = vpop.f32.mrf.mxu0
  %v5086 = vadd.f32 0.0, %v5085
  %5087 = vmatmul.f32.gmra.mxu0 %v2540
  %v5088 = vpop.f32.mrf.mxu0
  %v5089 = vadd.f32 0.0, %v5088
  %5090 = vmatmul.f32.gmra.mxu0 %v2543
  %v5091 = vpop.f32.mrf.mxu0
  %v5092 = vadd.f32 0.0, %v5091
  %5093 = vmatmul.f32.gmra.mxu0 %v2546
  %v5094 = vpop.f32.mrf.mxu0
  %v5095 = vadd.f32 0.0, %v5094
  %5096 = vmatmul.f32.gmra.mxu0 %v2549
  %v5097 = vpop.f32.mrf.mxu0
  %v5098 = vadd.f32 0.0, %v5097
  %5099 = vmatmul.f32.gmra.mxu0 %v3041
  %v5100 = vpop.f32.mrf.mxu0
  %v5101 = vadd.f32 0.0, %v5100
  %5102 = vmatmul.f32.gmra.mxu0 %v3343
  %v5103 = vpop.f32.mrf.mxu0
  %v5104 = vadd.f32 0.0, %v5103
  %5105 = vmatmul.f32.gmra.mxu0 %v3645
  %v5106 = vpop.f32.mrf.mxu0
  %v5107 = vadd.f32 0.0, %v5106
  %5108 = vmatmul.f32.gmra.mxu0 %v2561
  %v5109 = vpop.f32.mrf.mxu0
  %v5110 = vadd.f32 0.0, %v5109
  %5111 = vmatmul.f32.gmra.mxu0 %v2564
  %v5112 = vpop.f32.mrf.mxu0
  %v5113 = vadd.f32 0.0, %v5112
  %5114 = vmatmul.f32.gmra.mxu0 %v2567
  %v5115 = vpop.f32.mrf.mxu0
  %v5116 = vadd.f32 0.0, %v5115
  %5117 = vmatmul.f32.gmra.mxu0 %v2570
  %v5118 = vpop.f32.mrf.mxu0
  %v5119 = vadd.f32 0.0, %v5118
  %5120 = vmatmul.f32.gmra.mxu0 %v2573
  %v5121 = vpop.f32.mrf.mxu0
  %v5122 = vadd.f32 0.0, %v5121
  %5123 = vmatmul.f32.gmra.mxu0 %v3044
  %v5124 = vpop.f32.mrf.mxu0
  %v5125 = vadd.f32 0.0, %v5124
  %5126 = vmatmul.f32.gmra.mxu0 %v3346
  %v5127 = vpop.f32.mrf.mxu0
  %v5128 = vadd.f32 0.0, %v5127
  %5129 = vmatmul.f32.gmra.mxu0 %v3648
  %v5130 = vpop.f32.mrf.mxu0
  %v5131 = vadd.f32 0.0, %v5130
  %5132 = vmatmul.f32.gmra.mxu0 %v3943
  %v5133 = vpop.f32.mrf.mxu0
  %v5134 = vadd.f32 0.0, %v5133
  %5135 = vmatmul.f32.gmra.mxu0 %v3946
  %v5136 = vpop.f32.mrf.mxu0
  %v5137 = vadd.f32 0.0, %v5136
  %5138 = vmatmul.f32.gmra.mxu0 %v3949
  %v5139 = vpop.f32.mrf.mxu0
  %v5140 = vadd.f32 0.0, %v5139
  %5141 = vmatmul.f32.gmra.mxu0 %v3952
  %v5142 = vpop.f32.mrf.mxu0
  %v5143 = vadd.f32 0.0, %v5142
  %5144 = vmatmul.f32.gmra.mxu0 %v3955
  %v5145 = vpop.f32.mrf.mxu0
  %v5146 = vadd.f32 0.0, %v5145
  %5147 = vmatmul.f32.gmra.mxu0 %v4384
  %v5148 = vpop.f32.mrf.mxu0
  %v5149 = vadd.f32 0.0, %v5148
  %5150 = vmatmul.f32.gmra.mxu0 %v4665
  %v5151 = vpop.f32.mrf.mxu0
  %v5152 = vadd.f32 0.0, %v5151
  %5153 = vmatmul.f32.gmra.mxu0 %v4946
  %v5154 = vpop.f32.mrf.mxu0
  %v5155 = vadd.f32 0.0, %v5154
  %5156 = vdwg.mxu0
  %v5157 = vadd.f32 %v4876, %v4966
  %v5158 = vadd.f32 %v4877, %v4969
  %v5159 = vadd.f32 %v4878, %v4972
  %v5160 = vadd.f32 %v4879, %v4975
  %v5161 = vadd.f32 %v4880, %v4978
  %v5162 = vadd.f32 %v4881, %v4981
  %v5163 = vadd.f32 %v4882, %v4984
  %v5164 = vadd.f32 %v4883, %v4987
  %v5165 = vadd.f32 %v4884, %v4990
  %v5166 = vadd.f32 %v4885, %v4993
  %v5167 = vadd.f32 %v4886, %v4996
  %v5168 = vadd.f32 %v4887, %v4999
  %v5169 = vadd.f32 %v4888, %v5002
  %v5170 = vadd.f32 %v4889, %v5005
  %v5171 = vadd.f32 %v4890, %v5008
  %v5172 = vadd.f32 %v4891, %v5011
  %v5173 = vadd.f32 %v4892, %v5014
  %v5174 = vadd.f32 %v4893, %v5017
  %v5175 = vadd.f32 %v4894, %v5020
  %v5176 = vadd.f32 %v4895, %v5023
  %v5177 = vadd.f32 %v4896, %v5026
  %v5178 = vadd.f32 %v4897, %v5029
  %v5179 = vadd.f32 %v4898, %v5032
  %v5180 = vadd.f32 %v4899, %v5035
  %v5181 = vadd.f32 %v4900, %v5038
  %v5182 = vadd.f32 %v4901, %v5041
  %v5183 = vadd.f32 %v4902, %v5044
  %v5184 = vadd.f32 %v4903, %v5047
  %v5185 = vadd.f32 %v4904, %v5050
  %v5186 = vadd.f32 %v4905, %v5053
  %v5187 = vadd.f32 %v4906, %v5056
  %v5188 = vadd.f32 %v4907, %v5059
  %v5189 = vadd.f32 %v4908, %v5062
  %v5190 = vadd.f32 %v4909, %v5065
  %v5191 = vadd.f32 %v4910, %v5068
  %v5192 = vadd.f32 %v4911, %v5071
  %v5193 = vadd.f32 %v4912, %v5074
  %v5194 = vadd.f32 %v4913, %v5077
  %v5195 = vadd.f32 %v4914, %v5080
  %v5196 = vadd.f32 %v4915, %v5083
  %v5197 = vadd.f32 %v4916, %v5086
  %v5198 = vadd.f32 %v4917, %v5089
  %v5199 = vadd.f32 %v4918, %v5092
  %v5200 = vadd.f32 %v4919, %v5095
  %v5201 = vadd.f32 %v4920, %v5098
  %v5202 = vadd.f32 %v4921, %v5101
  %v5203 = vadd.f32 %v4922, %v5104
  %v5204 = vadd.f32 %v4923, %v5107
  %v5205 = vadd.f32 %v4924, %v5110
  %v5206 = vadd.f32 %v4925, %v5113
  %v5207 = vadd.f32 %v4926, %v5116
  %v5208 = vadd.f32 %v4927, %v5119
  %v5209 = vadd.f32 %v4928, %v5122
  %v5210 = vadd.f32 %v4929, %v5125
  %v5211 = vadd.f32 %v4930, %v5128
  %v5212 = vadd.f32 %v4931, %v5131
  %v5213 = vadd.f32 %v4932, %v5134
  %v5214 = vadd.f32 %v4933, %v5137
  %v5215 = vadd.f32 %v4934, %v5140
  %v5216 = vadd.f32 %v4935, %v5143
  %v5217 = vadd.f32 %v4936, %v5146
  %v5218 = vadd.f32 %v4937, %v5149
  %v5219 = vadd.f32 %v4938, %v5152
  %v5220 = vadd.f32 %v4939, %v5155
  %s5221 = scalar_lea.vmem %s3, 320
  %v5222 = vld [vmem:[%s5221] sm:$0xff]
  %v5223 = vld [vmem:[%s5221 + $0x8] sm:$0xff]
  %v5224 = vld [vmem:[%s5221 + $0x10] sm:$0xff]
  %v5225 = vld [vmem:[%s5221 + $0x18] sm:$0xff]
  %s5226 = scalar_lea.vmem %s3, 352
  %v5227 = vld [vmem:[%s5226] sm:$0xff]
  %v5228 = vld [vmem:[%s5226 + $0x8] sm:$0xff]
  %v5229 = vld [vmem:[%s5226 + $0x10] sm:$0xff]
  %v5230 = vld [vmem:[%s5226 + $0x18] sm:$0xff]
  %v5232 = vsel %vm2382, %v2338, 0
  %v5235 = vsel %vm2382, %v2339, 0
  %v5238 = vsel %vm2382, %v2340, 0
  %v5241 = vsel %vm2382, %v2341, 0
  %v5244 = vsel %vm2382, %v2342, 0
  %v5247 = vsel %vm2382, %v2343, 0
  %v5250 = vsel %vm2382, %v2344, 0
  %v5253 = vsel %vm2382, %v2345, 0
  %5255 = vmatpush.msra.mxu0 0.0
  %5256 = vmatpush.msra.mxu0 0.0
  %5257 = vmatpush.msra.mxu0 0.0
  %5258 = vmatpush.msra.mxu0 0.0
  %5259 = vmatpush.msra.mxu0 0.0
  %5260 = vmatpush.msra.mxu0 0.0
  %5261 = vmatpush.msra.mxu0 0.0
  %5262 = vmatpush.msra.mxu0 0.0
  %5263 = vmatpush.msra.mxu0 0.0
  %5264 = vmatpush.msra.mxu0 0.0
  %5265 = vmatpush.msra.mxu0 0.0
  %5266 = vmatpush.msra.mxu0 0.0
  %5267 = vmatpush.msra.mxu0 %v5230
  %5268 = vmatpush.msra.mxu0 %v5229
  %5269 = vmatpush.msra.mxu0 %v5228
  %5270 = vmatpush.msra.mxu0 %v5227
  %5271 = vmatmul.f32.gmra.mxu0 %v2432
  %v5272 = vpop.f32.mrf.mxu0
  %v5273 = vadd.f32 0.0, %v5272
  %5274 = vmatmul.f32.gmra.mxu0 %v2435
  %v5275 = vpop.f32.mrf.mxu0
  %v5276 = vadd.f32 0.0, %v5275
  %5277 = vmatmul.f32.gmra.mxu0 %v2438
  %v5278 = vpop.f32.mrf.mxu0
  %v5279 = vadd.f32 0.0, %v5278
  %5280 = vmatmul.f32.gmra.mxu0 %v2441
  %v5281 = vpop.f32.mrf.mxu0
  %v5282 = vadd.f32 0.0, %v5281
  %5283 = vmatmul.f32.gmra.mxu0 %v2444
  %v5284 = vpop.f32.mrf.mxu0
  %v5285 = vadd.f32 0.0, %v5284
  %5286 = vmatmul.f32.gmra.mxu0 %v2447
  %v5287 = vpop.f32.mrf.mxu0
  %v5288 = vadd.f32 0.0, %v5287
  %5289 = vmatmul.f32.gmra.mxu0 %v2450
  %v5290 = vpop.f32.mrf.mxu0
  %v5291 = vadd.f32 0.0, %v5290
  %5292 = vmatmul.f32.gmra.mxu0 %v2453
  %v5293 = vpop.f32.mrf.mxu0
  %v5294 = vadd.f32 0.0, %v5293
  %5295 = vmatmul.f32.gmra.mxu0 %v2456
  %v5296 = vpop.f32.mrf.mxu0
  %v5297 = vadd.f32 0.0, %v5296
  %5298 = vmatmul.f32.gmra.mxu0 %v2459
  %v5299 = vpop.f32.mrf.mxu0
  %v5300 = vadd.f32 0.0, %v5299
  %5301 = vmatmul.f32.gmra.mxu0 %v2462
  %v5302 = vpop.f32.mrf.mxu0
  %v5303 = vadd.f32 0.0, %v5302
  %5304 = vmatmul.f32.gmra.mxu0 %v2465
  %v5305 = vpop.f32.mrf.mxu0
  %v5306 = vadd.f32 0.0, %v5305
  %5307 = vmatmul.f32.gmra.mxu0 %v2468
  %v5308 = vpop.f32.mrf.mxu0
  %v5309 = vadd.f32 0.0, %v5308
  %5310 = vmatmul.f32.gmra.mxu0 %v2471
  %v5311 = vpop.f32.mrf.mxu0
  %v5312 = vadd.f32 0.0, %v5311
  %5313 = vmatmul.f32.gmra.mxu0 %v2474
  %v5314 = vpop.f32.mrf.mxu0
  %v5315 = vadd.f32 0.0, %v5314
  %5316 = vmatmul.f32.gmra.mxu0 %v2477
  %v5317 = vpop.f32.mrf.mxu0
  %v5318 = vadd.f32 0.0, %v5317
  %5319 = vmatmul.f32.gmra.mxu0 %v2480
  %v5320 = vpop.f32.mrf.mxu0
  %v5321 = vadd.f32 0.0, %v5320
  %5322 = vmatmul.f32.gmra.mxu0 %v2483
  %v5323 = vpop.f32.mrf.mxu0
  %v5324 = vadd.f32 0.0, %v5323
  %5325 = vmatmul.f32.gmra.mxu0 %v2486
  %v5326 = vpop.f32.mrf.mxu0
  %v5327 = vadd.f32 0.0, %v5326
  %5328 = vmatmul.f32.gmra.mxu0 %v2489
  %v5329 = vpop.f32.mrf.mxu0
  %v5330 = vadd.f32 0.0, %v5329
  %5331 = vmatmul.f32.gmra.mxu0 %v2492
  %v5332 = vpop.f32.mrf.mxu0
  %v5333 = vadd.f32 0.0, %v5332
  %5334 = vmatmul.f32.gmra.mxu0 %v2495
  %v5335 = vpop.f32.mrf.mxu0
  %v5336 = vadd.f32 0.0, %v5335
  %5337 = vmatmul.f32.gmra.mxu0 %v2498
  %v5338 = vpop.f32.mrf.mxu0
  %v5339 = vadd.f32 0.0, %v5338
  %5340 = vmatmul.f32.gmra.mxu0 %v2501
  %v5341 = vpop.f32.mrf.mxu0
  %v5342 = vadd.f32 0.0, %v5341
  %5343 = vmatmul.f32.gmra.mxu0 %v2504
  %v5344 = vpop.f32.mrf.mxu0
  %v5345 = vadd.f32 0.0, %v5344
  %5346 = vmatmul.f32.gmra.mxu0 %v2507
  %v5347 = vpop.f32.mrf.mxu0
  %v5348 = vadd.f32 0.0, %v5347
  %5349 = vmatmul.f32.gmra.mxu0 %v2510
  %v5350 = vpop.f32.mrf.mxu0
  %v5351 = vadd.f32 0.0, %v5350
  %5352 = vmatmul.f32.gmra.mxu0 %v2513
  %v5353 = vpop.f32.mrf.mxu0
  %v5354 = vadd.f32 0.0, %v5353
  %5355 = vmatmul.f32.gmra.mxu0 %v2516
  %v5356 = vpop.f32.mrf.mxu0
  %v5357 = vadd.f32 0.0, %v5356
  %5358 = vmatmul.f32.gmra.mxu0 %v2519
  %v5359 = vpop.f32.mrf.mxu0
  %v5360 = vadd.f32 0.0, %v5359
  %5361 = vmatmul.f32.gmra.mxu0 %v2522
  %v5362 = vpop.f32.mrf.mxu0
  %v5363 = vadd.f32 0.0, %v5362
  %5364 = vmatmul.f32.gmra.mxu0 %v2525
  %v5365 = vpop.f32.mrf.mxu0
  %v5366 = vadd.f32 0.0, %v5365
  %5367 = vmatmul.f32.gmra.mxu0 %v2528
  %v5368 = vpop.f32.mrf.mxu0
  %v5369 = vadd.f32 0.0, %v5368
  %5370 = vmatmul.f32.gmra.mxu0 %v2531
  %v5371 = vpop.f32.mrf.mxu0
  %v5372 = vadd.f32 0.0, %v5371
  %5373 = vmatmul.f32.gmra.mxu0 %v2534
  %v5374 = vpop.f32.mrf.mxu0
  %v5375 = vadd.f32 0.0, %v5374
  %5376 = vmatmul.f32.gmra.mxu0 %v2537
  %v5377 = vpop.f32.mrf.mxu0
  %v5378 = vadd.f32 0.0, %v5377
  %5379 = vmatmul.f32.gmra.mxu0 %v2540
  %v5380 = vpop.f32.mrf.mxu0
  %v5381 = vadd.f32 0.0, %v5380
  %5382 = vmatmul.f32.gmra.mxu0 %v2543
  %v5383 = vpop.f32.mrf.mxu0
  %v5384 = vadd.f32 0.0, %v5383
  %5385 = vmatmul.f32.gmra.mxu0 %v2546
  %v5386 = vpop.f32.mrf.mxu0
  %v5387 = vadd.f32 0.0, %v5386
  %5388 = vmatmul.f32.gmra.mxu0 %v2549
  %v5389 = vpop.f32.mrf.mxu0
  %v5390 = vadd.f32 0.0, %v5389
  %5391 = vmatmul.f32.gmra.mxu0 %v2552
  %v5392 = vpop.f32.mrf.mxu0
  %v5393 = vadd.f32 0.0, %v5392
  %5394 = vmatmul.f32.gmra.mxu0 %v2555
  %v5395 = vpop.f32.mrf.mxu0
  %v5396 = vadd.f32 0.0, %v5395
  %5397 = vmatmul.f32.gmra.mxu0 %v2558
  %v5398 = vpop.f32.mrf.mxu0
  %v5399 = vadd.f32 0.0, %v5398
  %5400 = vmatmul.f32.gmra.mxu0 %v2561
  %v5401 = vpop.f32.mrf.mxu0
  %v5402 = vadd.f32 0.0, %v5401
  %5403 = vmatmul.f32.gmra.mxu0 %v2564
  %v5404 = vpop.f32.mrf.mxu0
  %v5405 = vadd.f32 0.0, %v5404
  %5406 = vmatmul.f32.gmra.mxu0 %v2567
  %v5407 = vpop.f32.mrf.mxu0
  %v5408 = vadd.f32 0.0, %v5407
  %5409 = vmatmul.f32.gmra.mxu0 %v2570
  %v5410 = vpop.f32.mrf.mxu0
  %v5411 = vadd.f32 0.0, %v5410
  %5412 = vmatmul.f32.gmra.mxu0 %v2573
  %v5413 = vpop.f32.mrf.mxu0
  %v5414 = vadd.f32 0.0, %v5413
  %5415 = vmatmul.f32.gmra.mxu0 %v3934
  %v5416 = vpop.f32.mrf.mxu0
  %v5417 = vadd.f32 0.0, %v5416
  %5418 = vmatmul.f32.gmra.mxu0 %v3937
  %v5419 = vpop.f32.mrf.mxu0
  %v5420 = vadd.f32 0.0, %v5419
  %5421 = vmatmul.f32.gmra.mxu0 %v3940
  %v5422 = vpop.f32.mrf.mxu0
  %v5423 = vadd.f32 0.0, %v5422
  %5424 = vmatmul.f32.gmra.mxu0 %v3943
  %v5425 = vpop.f32.mrf.mxu0
  %v5426 = vadd.f32 0.0, %v5425
  %5427 = vmatmul.f32.gmra.mxu0 %v3946
  %v5428 = vpop.f32.mrf.mxu0
  %v5429 = vadd.f32 0.0, %v5428
  %5430 = vmatmul.f32.gmra.mxu0 %v3949
  %v5431 = vpop.f32.mrf.mxu0
  %v5432 = vadd.f32 0.0, %v5431
  %5433 = vmatmul.f32.gmra.mxu0 %v3952
  %v5434 = vpop.f32.mrf.mxu0
  %v5435 = vadd.f32 0.0, %v5434
  %5436 = vmatmul.f32.gmra.mxu0 %v3955
  %v5437 = vpop.f32.mrf.mxu0
  %v5438 = vadd.f32 0.0, %v5437
  %5439 = vmatmul.f32.gmra.mxu0 %v5232
  %v5440 = vpop.f32.mrf.mxu0
  %v5441 = vadd.f32 0.0, %v5440
  %5442 = vmatmul.f32.gmra.mxu0 %v5235
  %v5443 = vpop.f32.mrf.mxu0
  %v5444 = vadd.f32 0.0, %v5443
  %5445 = vmatmul.f32.gmra.mxu0 %v5238
  %v5446 = vpop.f32.mrf.mxu0
  %v5447 = vadd.f32 0.0, %v5446
  %5448 = vmatmul.f32.gmra.mxu0 %v5241
  %v5449 = vpop.f32.mrf.mxu0
  %v5450 = vadd.f32 0.0, %v5449
  %5451 = vmatmul.f32.gmra.mxu0 %v5244
  %v5452 = vpop.f32.mrf.mxu0
  %v5453 = vadd.f32 0.0, %v5452
  %5454 = vmatmul.f32.gmra.mxu0 %v5247
  %v5455 = vpop.f32.mrf.mxu0
  %v5456 = vadd.f32 0.0, %v5455
  %5457 = vmatmul.f32.gmra.mxu0 %v5250
  %v5458 = vpop.f32.mrf.mxu0
  %v5459 = vadd.f32 0.0, %v5458
  %5460 = vmatmul.f32.gmra.mxu0 %v5253
  %v5461 = vpop.f32.mrf.mxu0
  %v5462 = vadd.f32 0.0, %v5461
  %5463 = vdwg.mxu0
  %v5465 = vsel %vm2382, %v2337, 0
  %5467 = vmatpush.msra.mxu0 0.0
  %5468 = vmatpush.msra.mxu0 0.0
  %5469 = vmatpush.msra.mxu0 0.0
  %5470 = vmatpush.msra.mxu0 0.0
  %5471 = vmatpush.msra.mxu0 0.0
  %5472 = vmatpush.msra.mxu0 0.0
  %5473 = vmatpush.msra.mxu0 0.0
  %5474 = vmatpush.msra.mxu0 0.0
  %5475 = vmatpush.msra.mxu0 0.0
  %5476 = vmatpush.msra.mxu0 0.0
  %5477 = vmatpush.msra.mxu0 0.0
  %5478 = vmatpush.msra.mxu0 0.0
  %5479 = vmatpush.msra.mxu0 %v5225
  %5480 = vmatpush.msra.mxu0 %v5224
  %5481 = vmatpush.msra.mxu0 %v5223
  %5482 = vmatpush.msra.mxu0 %v5222
  %5483 = vmatmul.f32.gmra.mxu0 %v2791
  %v5484 = vpop.f32.mrf.mxu0
  %v5485 = vadd.f32 %v5273, %v5484
  %5486 = vmatmul.f32.gmra.mxu0 %v2432
  %v5487 = vpop.f32.mrf.mxu0
  %v5488 = vadd.f32 %v5276, %v5487
  %5489 = vmatmul.f32.gmra.mxu0 %v2435
  %v5490 = vpop.f32.mrf.mxu0
  %v5491 = vadd.f32 %v5279, %v5490
  %5492 = vmatmul.f32.gmra.mxu0 %v2438
  %v5493 = vpop.f32.mrf.mxu0
  %v5494 = vadd.f32 %v5282, %v5493
  %5495 = vmatmul.f32.gmra.mxu0 %v2441
  %v5496 = vpop.f32.mrf.mxu0
  %v5497 = vadd.f32 %v5285, %v5496
  %5498 = vmatmul.f32.gmra.mxu0 %v2444
  %v5499 = vpop.f32.mrf.mxu0
  %v5500 = vadd.f32 %v5288, %v5499
  %5501 = vmatmul.f32.gmra.mxu0 %v2447
  %v5502 = vpop.f32.mrf.mxu0
  %v5503 = vadd.f32 %v5291, %v5502
  %5504 = vmatmul.f32.gmra.mxu0 %v2450
  %v5505 = vpop.f32.mrf.mxu0
  %v5506 = vadd.f32 %v5294, %v5505
  %5507 = vmatmul.f32.gmra.mxu0 %v2794
  %v5508 = vpop.f32.mrf.mxu0
  %v5509 = vadd.f32 %v5297, %v5508
  %5510 = vmatmul.f32.gmra.mxu0 %v2456
  %v5511 = vpop.f32.mrf.mxu0
  %v5512 = vadd.f32 %v5300, %v5511
  %5513 = vmatmul.f32.gmra.mxu0 %v2459
  %v5514 = vpop.f32.mrf.mxu0
  %v5515 = vadd.f32 %v5303, %v5514
  %5516 = vmatmul.f32.gmra.mxu0 %v2462
  %v5517 = vpop.f32.mrf.mxu0
  %v5518 = vadd.f32 %v5306, %v5517
  %5519 = vmatmul.f32.gmra.mxu0 %v2465
  %v5520 = vpop.f32.mrf.mxu0
  %v5521 = vadd.f32 %v5309, %v5520
  %5522 = vmatmul.f32.gmra.mxu0 %v2468
  %v5523 = vpop.f32.mrf.mxu0
  %v5524 = vadd.f32 %v5312, %v5523
  %5525 = vmatmul.f32.gmra.mxu0 %v2471
  %v5526 = vpop.f32.mrf.mxu0
  %v5527 = vadd.f32 %v5315, %v5526
  %5528 = vmatmul.f32.gmra.mxu0 %v2474
  %v5529 = vpop.f32.mrf.mxu0
  %v5530 = vadd.f32 %v5318, %v5529
  %5531 = vmatmul.f32.gmra.mxu0 %v2797
  %v5532 = vpop.f32.mrf.mxu0
  %v5533 = vadd.f32 %v5321, %v5532
  %5534 = vmatmul.f32.gmra.mxu0 %v2480
  %v5535 = vpop.f32.mrf.mxu0
  %v5536 = vadd.f32 %v5324, %v5535
  %5537 = vmatmul.f32.gmra.mxu0 %v2483
  %v5538 = vpop.f32.mrf.mxu0
  %v5539 = vadd.f32 %v5327, %v5538
  %5540 = vmatmul.f32.gmra.mxu0 %v2486
  %v5541 = vpop.f32.mrf.mxu0
  %v5542 = vadd.f32 %v5330, %v5541
  %5543 = vmatmul.f32.gmra.mxu0 %v2489
  %v5544 = vpop.f32.mrf.mxu0
  %v5545 = vadd.f32 %v5333, %v5544
  %5546 = vmatmul.f32.gmra.mxu0 %v2492
  %v5547 = vpop.f32.mrf.mxu0
  %v5548 = vadd.f32 %v5336, %v5547
  %5549 = vmatmul.f32.gmra.mxu0 %v2495
  %v5550 = vpop.f32.mrf.mxu0
  %v5551 = vadd.f32 %v5339, %v5550
  %5552 = vmatmul.f32.gmra.mxu0 %v2498
  %v5553 = vpop.f32.mrf.mxu0
  %v5554 = vadd.f32 %v5342, %v5553
  %5555 = vmatmul.f32.gmra.mxu0 %v2800
  %v5556 = vpop.f32.mrf.mxu0
  %v5557 = vadd.f32 %v5345, %v5556
  %5558 = vmatmul.f32.gmra.mxu0 %v2504
  %v5559 = vpop.f32.mrf.mxu0
  %v5560 = vadd.f32 %v5348, %v5559
  %5561 = vmatmul.f32.gmra.mxu0 %v2507
  %v5562 = vpop.f32.mrf.mxu0
  %v5563 = vadd.f32 %v5351, %v5562
  %5564 = vmatmul.f32.gmra.mxu0 %v2510
  %v5565 = vpop.f32.mrf.mxu0
  %v5566 = vadd.f32 %v5354, %v5565
  %5567 = vmatmul.f32.gmra.mxu0 %v2513
  %v5568 = vpop.f32.mrf.mxu0
  %v5569 = vadd.f32 %v5357, %v5568
  %5570 = vmatmul.f32.gmra.mxu0 %v2516
  %v5571 = vpop.f32.mrf.mxu0
  %v5572 = vadd.f32 %v5360, %v5571
  %5573 = vmatmul.f32.gmra.mxu0 %v2519
  %v5574 = vpop.f32.mrf.mxu0
  %v5575 = vadd.f32 %v5363, %v5574
  %5576 = vmatmul.f32.gmra.mxu0 %v2522
  %v5577 = vpop.f32.mrf.mxu0
  %v5578 = vadd.f32 %v5366, %v5577
  %5579 = vmatmul.f32.gmra.mxu0 %v2803
  %v5580 = vpop.f32.mrf.mxu0
  %v5581 = vadd.f32 %v5369, %v5580
  %5582 = vmatmul.f32.gmra.mxu0 %v2528
  %v5583 = vpop.f32.mrf.mxu0
  %v5584 = vadd.f32 %v5372, %v5583
  %5585 = vmatmul.f32.gmra.mxu0 %v2531
  %v5586 = vpop.f32.mrf.mxu0
  %v5587 = vadd.f32 %v5375, %v5586
  %5588 = vmatmul.f32.gmra.mxu0 %v2534
  %v5589 = vpop.f32.mrf.mxu0
  %v5590 = vadd.f32 %v5378, %v5589
  %5591 = vmatmul.f32.gmra.mxu0 %v2537
  %v5592 = vpop.f32.mrf.mxu0
  %v5593 = vadd.f32 %v5381, %v5592
  %5594 = vmatmul.f32.gmra.mxu0 %v2540
  %v5595 = vpop.f32.mrf.mxu0
  %v5596 = vadd.f32 %v5384, %v5595
  %5597 = vmatmul.f32.gmra.mxu0 %v2543
  %v5598 = vpop.f32.mrf.mxu0
  %v5599 = vadd.f32 %v5387, %v5598
  %5600 = vmatmul.f32.gmra.mxu0 %v2546
  %v5601 = vpop.f32.mrf.mxu0
  %v5602 = vadd.f32 %v5390, %v5601
  %5603 = vmatmul.f32.gmra.mxu0 %v2806
  %v5604 = vpop.f32.mrf.mxu0
  %v5605 = vadd.f32 %v5393, %v5604
  %5606 = vmatmul.f32.gmra.mxu0 %v2552
  %v5607 = vpop.f32.mrf.mxu0
  %v5608 = vadd.f32 %v5396, %v5607
  %5609 = vmatmul.f32.gmra.mxu0 %v2555
  %v5610 = vpop.f32.mrf.mxu0
  %v5611 = vadd.f32 %v5399, %v5610
  %5612 = vmatmul.f32.gmra.mxu0 %v2558
  %v5613 = vpop.f32.mrf.mxu0
  %v5614 = vadd.f32 %v5402, %v5613
  %5615 = vmatmul.f32.gmra.mxu0 %v2561
  %v5616 = vpop.f32.mrf.mxu0
  %v5617 = vadd.f32 %v5405, %v5616
  %5618 = vmatmul.f32.gmra.mxu0 %v2564
  %v5619 = vpop.f32.mrf.mxu0
  %v5620 = vadd.f32 %v5408, %v5619
  %5621 = vmatmul.f32.gmra.mxu0 %v2567
  %v5622 = vpop.f32.mrf.mxu0
  %v5623 = vadd.f32 %v5411, %v5622
  %5624 = vmatmul.f32.gmra.mxu0 %v2570
  %v5625 = vpop.f32.mrf.mxu0
  %v5626 = vadd.f32 %v5414, %v5625
  %5627 = vmatmul.f32.gmra.mxu0 %v4167
  %v5628 = vpop.f32.mrf.mxu0
  %v5629 = vadd.f32 %v5417, %v5628
  %5630 = vmatmul.f32.gmra.mxu0 %v3934
  %v5631 = vpop.f32.mrf.mxu0
  %v5632 = vadd.f32 %v5420, %v5631
  %5633 = vmatmul.f32.gmra.mxu0 %v3937
  %v5634 = vpop.f32.mrf.mxu0
  %v5635 = vadd.f32 %v5423, %v5634
  %5636 = vmatmul.f32.gmra.mxu0 %v3940
  %v5637 = vpop.f32.mrf.mxu0
  %v5638 = vadd.f32 %v5426, %v5637
  %5639 = vmatmul.f32.gmra.mxu0 %v3943
  %v5640 = vpop.f32.mrf.mxu0
  %v5641 = vadd.f32 %v5429, %v5640
  %5642 = vmatmul.f32.gmra.mxu0 %v3946
  %v5643 = vpop.f32.mrf.mxu0
  %v5644 = vadd.f32 %v5432, %v5643
  %5645 = vmatmul.f32.gmra.mxu0 %v3949
  %v5646 = vpop.f32.mrf.mxu0
  %v5647 = vadd.f32 %v5435, %v5646
  %5648 = vmatmul.f32.gmra.mxu0 %v3952
  %v5649 = vpop.f32.mrf.mxu0
  %v5650 = vadd.f32 %v5438, %v5649
  %5651 = vmatmul.f32.gmra.mxu0 %v5465
  %v5652 = vpop.f32.mrf.mxu0
  %v5653 = vadd.f32 %v5441, %v5652
  %5654 = vmatmul.f32.gmra.mxu0 %v5232
  %v5655 = vpop.f32.mrf.mxu0
  %v5656 = vadd.f32 %v5444, %v5655
  %5657 = vmatmul.f32.gmra.mxu0 %v5235
  %v5658 = vpop.f32.mrf.mxu0
  %v5659 = vadd.f32 %v5447, %v5658
  %5660 = vmatmul.f32.gmra.mxu0 %v5238
  %v5661 = vpop.f32.mrf.mxu0
  %v5662 = vadd.f32 %v5450, %v5661
  %5663 = vmatmul.f32.gmra.mxu0 %v5241
  %v5664 = vpop.f32.mrf.mxu0
  %v5665 = vadd.f32 %v5453, %v5664
  %5666 = vmatmul.f32.gmra.mxu0 %v5244
  %v5667 = vpop.f32.mrf.mxu0
  %v5668 = vadd.f32 %v5456, %v5667
  %5669 = vmatmul.f32.gmra.mxu0 %v5247
  %v5670 = vpop.f32.mrf.mxu0
  %v5671 = vadd.f32 %v5459, %v5670
  %5672 = vmatmul.f32.gmra.mxu0 %v5250
  %v5673 = vpop.f32.mrf.mxu0
  %v5674 = vadd.f32 %v5462, %v5673
  %5675 = vdwg.mxu0
  %s5676 = scalar_lea.vmem %s3, 384
  %v5677 = vld [vmem:[%s5676] sm:$0xff]
  %v5678 = vld [vmem:[%s5676 + $0x8] sm:$0xff]
  %v5679 = vld [vmem:[%s5676 + $0x10] sm:$0xff]
  %v5680 = vld [vmem:[%s5676 + $0x18] sm:$0xff]
  %v5682 = vsel %vm2382, %v2346, 0
  %5684 = vmatpush.msra.mxu0 0.0
  %5685 = vmatpush.msra.mxu0 0.0
  %5686 = vmatpush.msra.mxu0 0.0
  %5687 = vmatpush.msra.mxu0 0.0
  %5688 = vmatpush.msra.mxu0 0.0
  %5689 = vmatpush.msra.mxu0 0.0
  %5690 = vmatpush.msra.mxu0 0.0
  %5691 = vmatpush.msra.mxu0 0.0
  %5692 = vmatpush.msra.mxu0 0.0
  %5693 = vmatpush.msra.mxu0 0.0
  %5694 = vmatpush.msra.mxu0 0.0
  %5695 = vmatpush.msra.mxu0 0.0
  %5696 = vmatpush.msra.mxu0 %v5680
  %5697 = vmatpush.msra.mxu0 %v5679
  %5698 = vmatpush.msra.mxu0 %v5678
  %5699 = vmatpush.msra.mxu0 %v5677
  %5700 = vmatmul.f32.gmra.mxu0 %v2435
  %v5701 = vpop.f32.mrf.mxu0
  %v5702 = vadd.f32 0.0, %v5701
  %5703 = vmatmul.f32.gmra.mxu0 %v2438
  %v5704 = vpop.f32.mrf.mxu0
  %v5705 = vadd.f32 0.0, %v5704
  %5706 = vmatmul.f32.gmra.mxu0 %v2441
  %v5707 = vpop.f32.mrf.mxu0
  %v5708 = vadd.f32 0.0, %v5707
  %5709 = vmatmul.f32.gmra.mxu0 %v2444
  %v5710 = vpop.f32.mrf.mxu0
  %v5711 = vadd.f32 0.0, %v5710
  %5712 = vmatmul.f32.gmra.mxu0 %v2447
  %v5713 = vpop.f32.mrf.mxu0
  %v5714 = vadd.f32 0.0, %v5713
  %5715 = vmatmul.f32.gmra.mxu0 %v2450
  %v5716 = vpop.f32.mrf.mxu0
  %v5717 = vadd.f32 0.0, %v5716
  %5718 = vmatmul.f32.gmra.mxu0 %v2453
  %v5719 = vpop.f32.mrf.mxu0
  %v5720 = vadd.f32 0.0, %v5719
  %5721 = vmatmul.f32.gmra.mxu0 %v3029
  %v5722 = vpop.f32.mrf.mxu0
  %v5723 = vadd.f32 0.0, %v5722
  %5724 = vmatmul.f32.gmra.mxu0 %v2459
  %v5725 = vpop.f32.mrf.mxu0
  %v5726 = vadd.f32 0.0, %v5725
  %5727 = vmatmul.f32.gmra.mxu0 %v2462
  %v5728 = vpop.f32.mrf.mxu0
  %v5729 = vadd.f32 0.0, %v5728
  %5730 = vmatmul.f32.gmra.mxu0 %v2465
  %v5731 = vpop.f32.mrf.mxu0
  %v5732 = vadd.f32 0.0, %v5731
  %5733 = vmatmul.f32.gmra.mxu0 %v2468
  %v5734 = vpop.f32.mrf.mxu0
  %v5735 = vadd.f32 0.0, %v5734
  %5736 = vmatmul.f32.gmra.mxu0 %v2471
  %v5737 = vpop.f32.mrf.mxu0
  %v5738 = vadd.f32 0.0, %v5737
  %5739 = vmatmul.f32.gmra.mxu0 %v2474
  %v5740 = vpop.f32.mrf.mxu0
  %v5741 = vadd.f32 0.0, %v5740
  %5742 = vmatmul.f32.gmra.mxu0 %v2477
  %v5743 = vpop.f32.mrf.mxu0
  %v5744 = vadd.f32 0.0, %v5743
  %5745 = vmatmul.f32.gmra.mxu0 %v3032
  %v5746 = vpop.f32.mrf.mxu0
  %v5747 = vadd.f32 0.0, %v5746
  %5748 = vmatmul.f32.gmra.mxu0 %v2483
  %v5749 = vpop.f32.mrf.mxu0
  %v5750 = vadd.f32 0.0, %v5749
  %5751 = vmatmul.f32.gmra.mxu0 %v2486
  %v5752 = vpop.f32.mrf.mxu0
  %v5753 = vadd.f32 0.0, %v5752
  %5754 = vmatmul.f32.gmra.mxu0 %v2489
  %v5755 = vpop.f32.mrf.mxu0
  %v5756 = vadd.f32 0.0, %v5755
  %5757 = vmatmul.f32.gmra.mxu0 %v2492
  %v5758 = vpop.f32.mrf.mxu0
  %v5759 = vadd.f32 0.0, %v5758
  %5760 = vmatmul.f32.gmra.mxu0 %v2495
  %v5761 = vpop.f32.mrf.mxu0
  %v5762 = vadd.f32 0.0, %v5761
  %5763 = vmatmul.f32.gmra.mxu0 %v2498
  %v5764 = vpop.f32.mrf.mxu0
  %v5765 = vadd.f32 0.0, %v5764
  %5766 = vmatmul.f32.gmra.mxu0 %v2501
  %v5767 = vpop.f32.mrf.mxu0
  %v5768 = vadd.f32 0.0, %v5767
  %5769 = vmatmul.f32.gmra.mxu0 %v3035
  %v5770 = vpop.f32.mrf.mxu0
  %v5771 = vadd.f32 0.0, %v5770
  %5772 = vmatmul.f32.gmra.mxu0 %v2507
  %v5773 = vpop.f32.mrf.mxu0
  %v5774 = vadd.f32 0.0, %v5773
  %5775 = vmatmul.f32.gmra.mxu0 %v2510
  %v5776 = vpop.f32.mrf.mxu0
  %v5777 = vadd.f32 0.0, %v5776
  %5778 = vmatmul.f32.gmra.mxu0 %v2513
  %v5779 = vpop.f32.mrf.mxu0
  %v5780 = vadd.f32 0.0, %v5779
  %5781 = vmatmul.f32.gmra.mxu0 %v2516
  %v5782 = vpop.f32.mrf.mxu0
  %v5783 = vadd.f32 0.0, %v5782
  %5784 = vmatmul.f32.gmra.mxu0 %v2519
  %v5785 = vpop.f32.mrf.mxu0
  %v5786 = vadd.f32 0.0, %v5785
  %5787 = vmatmul.f32.gmra.mxu0 %v2522
  %v5788 = vpop.f32.mrf.mxu0
  %v5789 = vadd.f32 0.0, %v5788
  %5790 = vmatmul.f32.gmra.mxu0 %v2525
  %v5791 = vpop.f32.mrf.mxu0
  %v5792 = vadd.f32 0.0, %v5791
  %5793 = vmatmul.f32.gmra.mxu0 %v3038
  %v5794 = vpop.f32.mrf.mxu0
  %v5795 = vadd.f32 0.0, %v5794
  %5796 = vmatmul.f32.gmra.mxu0 %v2531
  %v5797 = vpop.f32.mrf.mxu0
  %v5798 = vadd.f32 0.0, %v5797
  %5799 = vmatmul.f32.gmra.mxu0 %v2534
  %v5800 = vpop.f32.mrf.mxu0
  %v5801 = vadd.f32 0.0, %v5800
  %5802 = vmatmul.f32.gmra.mxu0 %v2537
  %v5803 = vpop.f32.mrf.mxu0
  %v5804 = vadd.f32 0.0, %v5803
  %5805 = vmatmul.f32.gmra.mxu0 %v2540
  %v5806 = vpop.f32.mrf.mxu0
  %v5807 = vadd.f32 0.0, %v5806
  %5808 = vmatmul.f32.gmra.mxu0 %v2543
  %v5809 = vpop.f32.mrf.mxu0
  %v5810 = vadd.f32 0.0, %v5809
  %5811 = vmatmul.f32.gmra.mxu0 %v2546
  %v5812 = vpop.f32.mrf.mxu0
  %v5813 = vadd.f32 0.0, %v5812
  %5814 = vmatmul.f32.gmra.mxu0 %v2549
  %v5815 = vpop.f32.mrf.mxu0
  %v5816 = vadd.f32 0.0, %v5815
  %5817 = vmatmul.f32.gmra.mxu0 %v3041
  %v5818 = vpop.f32.mrf.mxu0
  %v5819 = vadd.f32 0.0, %v5818
  %5820 = vmatmul.f32.gmra.mxu0 %v2555
  %v5821 = vpop.f32.mrf.mxu0
  %v5822 = vadd.f32 0.0, %v5821
  %5823 = vmatmul.f32.gmra.mxu0 %v2558
  %v5824 = vpop.f32.mrf.mxu0
  %v5825 = vadd.f32 0.0, %v5824
  %5826 = vmatmul.f32.gmra.mxu0 %v2561
  %v5827 = vpop.f32.mrf.mxu0
  %v5828 = vadd.f32 0.0, %v5827
  %5829 = vmatmul.f32.gmra.mxu0 %v2564
  %v5830 = vpop.f32.mrf.mxu0
  %v5831 = vadd.f32 0.0, %v5830
  %5832 = vmatmul.f32.gmra.mxu0 %v2567
  %v5833 = vpop.f32.mrf.mxu0
  %v5834 = vadd.f32 0.0, %v5833
  %5835 = vmatmul.f32.gmra.mxu0 %v2570
  %v5836 = vpop.f32.mrf.mxu0
  %v5837 = vadd.f32 0.0, %v5836
  %5838 = vmatmul.f32.gmra.mxu0 %v2573
  %v5839 = vpop.f32.mrf.mxu0
  %v5840 = vadd.f32 0.0, %v5839
  %5841 = vmatmul.f32.gmra.mxu0 %v3044
  %v5842 = vpop.f32.mrf.mxu0
  %v5843 = vadd.f32 0.0, %v5842
  %5844 = vmatmul.f32.gmra.mxu0 %v3937
  %v5845 = vpop.f32.mrf.mxu0
  %v5846 = vadd.f32 0.0, %v5845
  %5847 = vmatmul.f32.gmra.mxu0 %v3940
  %v5848 = vpop.f32.mrf.mxu0
  %v5849 = vadd.f32 0.0, %v5848
  %5850 = vmatmul.f32.gmra.mxu0 %v3943
  %v5851 = vpop.f32.mrf.mxu0
  %v5852 = vadd.f32 0.0, %v5851
  %5853 = vmatmul.f32.gmra.mxu0 %v3946
  %v5854 = vpop.f32.mrf.mxu0
  %v5855 = vadd.f32 0.0, %v5854
  %5856 = vmatmul.f32.gmra.mxu0 %v3949
  %v5857 = vpop.f32.mrf.mxu0
  %v5858 = vadd.f32 0.0, %v5857
  %5859 = vmatmul.f32.gmra.mxu0 %v3952
  %v5860 = vpop.f32.mrf.mxu0
  %v5861 = vadd.f32 0.0, %v5860
  %5862 = vmatmul.f32.gmra.mxu0 %v3955
  %v5863 = vpop.f32.mrf.mxu0
  %v5864 = vadd.f32 0.0, %v5863
  %5865 = vmatmul.f32.gmra.mxu0 %v4384
  %v5866 = vpop.f32.mrf.mxu0
  %v5867 = vadd.f32 0.0, %v5866
  %5868 = vmatmul.f32.gmra.mxu0 %v5235
  %v5869 = vpop.f32.mrf.mxu0
  %v5870 = vadd.f32 0.0, %v5869
  %5871 = vmatmul.f32.gmra.mxu0 %v5238
  %v5872 = vpop.f32.mrf.mxu0
  %v5873 = vadd.f32 0.0, %v5872
  %5874 = vmatmul.f32.gmra.mxu0 %v5241
  %v5875 = vpop.f32.mrf.mxu0
  %v5876 = vadd.f32 0.0, %v5875
  %5877 = vmatmul.f32.gmra.mxu0 %v5244
  %v5878 = vpop.f32.mrf.mxu0
  %v5879 = vadd.f32 0.0, %v5878
  %5880 = vmatmul.f32.gmra.mxu0 %v5247
  %v5881 = vpop.f32.mrf.mxu0
  %v5882 = vadd.f32 0.0, %v5881
  %5883 = vmatmul.f32.gmra.mxu0 %v5250
  %v5884 = vpop.f32.mrf.mxu0
  %v5885 = vadd.f32 0.0, %v5884
  %5886 = vmatmul.f32.gmra.mxu0 %v5253
  %v5887 = vpop.f32.mrf.mxu0
  %v5888 = vadd.f32 0.0, %v5887
  %5889 = vmatmul.f32.gmra.mxu0 %v5682
  %v5890 = vpop.f32.mrf.mxu0
  %v5891 = vadd.f32 0.0, %v5890
  %5892 = vdwg.mxu0
  %v5893 = vadd.f32 %v5485, %v5702
  %v5894 = vadd.f32 %v5488, %v5705
  %v5895 = vadd.f32 %v5491, %v5708
  %v5896 = vadd.f32 %v5494, %v5711
  %v5897 = vadd.f32 %v5497, %v5714
  %v5898 = vadd.f32 %v5500, %v5717
  %v5899 = vadd.f32 %v5503, %v5720
  %v5900 = vadd.f32 %v5506, %v5723
  %v5901 = vadd.f32 %v5509, %v5726
  %v5902 = vadd.f32 %v5512, %v5729
  %v5903 = vadd.f32 %v5515, %v5732
  %v5904 = vadd.f32 %v5518, %v5735
  %v5905 = vadd.f32 %v5521, %v5738
  %v5906 = vadd.f32 %v5524, %v5741
  %v5907 = vadd.f32 %v5527, %v5744
  %v5908 = vadd.f32 %v5530, %v5747
  %v5909 = vadd.f32 %v5533, %v5750
  %v5910 = vadd.f32 %v5536, %v5753
  %v5911 = vadd.f32 %v5539, %v5756
  %v5912 = vadd.f32 %v5542, %v5759
  %v5913 = vadd.f32 %v5545, %v5762
  %v5914 = vadd.f32 %v5548, %v5765
  %v5915 = vadd.f32 %v5551, %v5768
  %v5916 = vadd.f32 %v5554, %v5771
  %v5917 = vadd.f32 %v5557, %v5774
  %v5918 = vadd.f32 %v5560, %v5777
  %v5919 = vadd.f32 %v5563, %v5780
  %v5920 = vadd.f32 %v5566, %v5783
  %v5921 = vadd.f32 %v5569, %v5786
  %v5922 = vadd.f32 %v5572, %v5789
  %v5923 = vadd.f32 %v5575, %v5792
  %v5924 = vadd.f32 %v5578, %v5795
  %v5925 = vadd.f32 %v5581, %v5798
  %v5926 = vadd.f32 %v5584, %v5801
  %v5927 = vadd.f32 %v5587, %v5804
  %v5928 = vadd.f32 %v5590, %v5807
  %v5929 = vadd.f32 %v5593, %v5810
  %v5930 = vadd.f32 %v5596, %v5813
  %v5931 = vadd.f32 %v5599, %v5816
  %v5932 = vadd.f32 %v5602, %v5819
  %v5933 = vadd.f32 %v5605, %v5822
  %v5934 = vadd.f32 %v5608, %v5825
  %v5935 = vadd.f32 %v5611, %v5828
  %v5936 = vadd.f32 %v5614, %v5831
  %v5937 = vadd.f32 %v5617, %v5834
  %v5938 = vadd.f32 %v5620, %v5837
  %v5939 = vadd.f32 %v5623, %v5840
  %v5940 = vadd.f32 %v5626, %v5843
  %v5941 = vadd.f32 %v5629, %v5846
  %v5942 = vadd.f32 %v5632, %v5849
  %v5943 = vadd.f32 %v5635, %v5852
  %v5944 = vadd.f32 %v5638, %v5855
  %v5945 = vadd.f32 %v5641, %v5858
  %v5946 = vadd.f32 %v5644, %v5861
  %v5947 = vadd.f32 %v5647, %v5864
  %v5948 = vadd.f32 %v5650, %v5867
  %v5949 = vadd.f32 %v5653, %v5870
  %v5950 = vadd.f32 %v5656, %v5873
  %v5951 = vadd.f32 %v5659, %v5876
  %v5952 = vadd.f32 %v5662, %v5879
  %v5953 = vadd.f32 %v5665, %v5882
  %v5954 = vadd.f32 %v5668, %v5885
  %v5955 = vadd.f32 %v5671, %v5888
  %v5956 = vadd.f32 %v5674, %v5891
  %s5957 = scalar_lea.vmem %s3, 416
  %v5958 = vld [vmem:[%s5957] sm:$0xff]
  %v5959 = vld [vmem:[%s5957 + $0x8] sm:$0xff]
  %v5960 = vld [vmem:[%s5957 + $0x10] sm:$0xff]
  %v5961 = vld [vmem:[%s5957 + $0x18] sm:$0xff]
  %v5963 = vsel %vm2382, %v2347, 0
  %5965 = vmatpush.msra.mxu0 0.0
  %5966 = vmatpush.msra.mxu0 0.0
  %5967 = vmatpush.msra.mxu0 0.0
  %5968 = vmatpush.msra.mxu0 0.0
  %5969 = vmatpush.msra.mxu0 0.0
  %5970 = vmatpush.msra.mxu0 0.0
  %5971 = vmatpush.msra.mxu0 0.0
  %5972 = vmatpush.msra.mxu0 0.0
  %5973 = vmatpush.msra.mxu0 0.0
  %5974 = vmatpush.msra.mxu0 0.0
  %5975 = vmatpush.msra.mxu0 0.0
  %5976 = vmatpush.msra.mxu0 0.0
  %5977 = vmatpush.msra.mxu0 %v5961
  %5978 = vmatpush.msra.mxu0 %v5960
  %5979 = vmatpush.msra.mxu0 %v5959
  %5980 = vmatpush.msra.mxu0 %v5958
  %5981 = vmatmul.f32.gmra.mxu0 %v2438
  %v5982 = vpop.f32.mrf.mxu0
  %v5983 = vadd.f32 0.0, %v5982
  %5984 = vmatmul.f32.gmra.mxu0 %v2441
  %v5985 = vpop.f32.mrf.mxu0
  %v5986 = vadd.f32 0.0, %v5985
  %5987 = vmatmul.f32.gmra.mxu0 %v2444
  %v5988 = vpop.f32.mrf.mxu0
  %v5989 = vadd.f32 0.0, %v5988
  %5990 = vmatmul.f32.gmra.mxu0 %v2447
  %v5991 = vpop.f32.mrf.mxu0
  %v5992 = vadd.f32 0.0, %v5991
  %5993 = vmatmul.f32.gmra.mxu0 %v2450
  %v5994 = vpop.f32.mrf.mxu0
  %v5995 = vadd.f32 0.0, %v5994
  %5996 = vmatmul.f32.gmra.mxu0 %v2453
  %v5997 = vpop.f32.mrf.mxu0
  %v5998 = vadd.f32 0.0, %v5997
  %5999 = vmatmul.f32.gmra.mxu0 %v3029
  %v6000 = vpop.f32.mrf.mxu0
  %v6001 = vadd.f32 0.0, %v6000
  %6002 = vmatmul.f32.gmra.mxu0 %v3331
  %v6003 = vpop.f32.mrf.mxu0
  %v6004 = vadd.f32 0.0, %v6003
  %6005 = vmatmul.f32.gmra.mxu0 %v2462
  %v6006 = vpop.f32.mrf.mxu0
  %v6007 = vadd.f32 0.0, %v6006
  %6008 = vmatmul.f32.gmra.mxu0 %v2465
  %v6009 = vpop.f32.mrf.mxu0
  %v6010 = vadd.f32 0.0, %v6009
  %6011 = vmatmul.f32.gmra.mxu0 %v2468
  %v6012 = vpop.f32.mrf.mxu0
  %v6013 = vadd.f32 0.0, %v6012
  %6014 = vmatmul.f32.gmra.mxu0 %v2471
  %v6015 = vpop.f32.mrf.mxu0
  %v6016 = vadd.f32 0.0, %v6015
  %6017 = vmatmul.f32.gmra.mxu0 %v2474
  %v6018 = vpop.f32.mrf.mxu0
  %v6019 = vadd.f32 0.0, %v6018
  %6020 = vmatmul.f32.gmra.mxu0 %v2477
  %v6021 = vpop.f32.mrf.mxu0
  %v6022 = vadd.f32 0.0, %v6021
  %6023 = vmatmul.f32.gmra.mxu0 %v3032
  %v6024 = vpop.f32.mrf.mxu0
  %v6025 = vadd.f32 0.0, %v6024
  %6026 = vmatmul.f32.gmra.mxu0 %v3334
  %v6027 = vpop.f32.mrf.mxu0
  %v6028 = vadd.f32 0.0, %v6027
  %6029 = vmatmul.f32.gmra.mxu0 %v2486
  %v6030 = vpop.f32.mrf.mxu0
  %v6031 = vadd.f32 0.0, %v6030
  %6032 = vmatmul.f32.gmra.mxu0 %v2489
  %v6033 = vpop.f32.mrf.mxu0
  %v6034 = vadd.f32 0.0, %v6033
  %6035 = vmatmul.f32.gmra.mxu0 %v2492
  %v6036 = vpop.f32.mrf.mxu0
  %v6037 = vadd.f32 0.0, %v6036
  %6038 = vmatmul.f32.gmra.mxu0 %v2495
  %v6039 = vpop.f32.mrf.mxu0
  %v6040 = vadd.f32 0.0, %v6039
  %6041 = vmatmul.f32.gmra.mxu0 %v2498
  %v6042 = vpop.f32.mrf.mxu0
  %v6043 = vadd.f32 0.0, %v6042
  %6044 = vmatmul.f32.gmra.mxu0 %v2501
  %v6045 = vpop.f32.mrf.mxu0
  %v6046 = vadd.f32 0.0, %v6045
  %6047 = vmatmul.f32.gmra.mxu0 %v3035
  %v6048 = vpop.f32.mrf.mxu0
  %v6049 = vadd.f32 0.0, %v6048
  %6050 = vmatmul.f32.gmra.mxu0 %v3337
  %v6051 = vpop.f32.mrf.mxu0
  %v6052 = vadd.f32 0.0, %v6051
  %6053 = vmatmul.f32.gmra.mxu0 %v2510
  %v6054 = vpop.f32.mrf.mxu0
  %v6055 = vadd.f32 0.0, %v6054
  %6056 = vmatmul.f32.gmra.mxu0 %v2513
  %v6057 = vpop.f32.mrf.mxu0
  %v6058 = vadd.f32 0.0, %v6057
  %6059 = vmatmul.f32.gmra.mxu0 %v2516
  %v6060 = vpop.f32.mrf.mxu0
  %v6061 = vadd.f32 0.0, %v6060
  %6062 = vmatmul.f32.gmra.mxu0 %v2519
  %v6063 = vpop.f32.mrf.mxu0
  %v6064 = vadd.f32 0.0, %v6063
  %6065 = vmatmul.f32.gmra.mxu0 %v2522
  %v6066 = vpop.f32.mrf.mxu0
  %v6067 = vadd.f32 0.0, %v6066
  %6068 = vmatmul.f32.gmra.mxu0 %v2525
  %v6069 = vpop.f32.mrf.mxu0
  %v6070 = vadd.f32 0.0, %v6069
  %6071 = vmatmul.f32.gmra.mxu0 %v3038
  %v6072 = vpop.f32.mrf.mxu0
  %v6073 = vadd.f32 0.0, %v6072
  %6074 = vmatmul.f32.gmra.mxu0 %v3340
  %v6075 = vpop.f32.mrf.mxu0
  %v6076 = vadd.f32 0.0, %v6075
  %6077 = vmatmul.f32.gmra.mxu0 %v2534
  %v6078 = vpop.f32.mrf.mxu0
  %v6079 = vadd.f32 0.0, %v6078
  %6080 = vmatmul.f32.gmra.mxu0 %v2537
  %v6081 = vpop.f32.mrf.mxu0
  %v6082 = vadd.f32 0.0, %v6081
  %6083 = vmatmul.f32.gmra.mxu0 %v2540
  %v6084 = vpop.f32.mrf.mxu0
  %v6085 = vadd.f32 0.0, %v6084
  %6086 = vmatmul.f32.gmra.mxu0 %v2543
  %v6087 = vpop.f32.mrf.mxu0
  %v6088 = vadd.f32 0.0, %v6087
  %6089 = vmatmul.f32.gmra.mxu0 %v2546
  %v6090 = vpop.f32.mrf.mxu0
  %v6091 = vadd.f32 0.0, %v6090
  %6092 = vmatmul.f32.gmra.mxu0 %v2549
  %v6093 = vpop.f32.mrf.mxu0
  %v6094 = vadd.f32 0.0, %v6093
  %6095 = vmatmul.f32.gmra.mxu0 %v3041
  %v6096 = vpop.f32.mrf.mxu0
  %v6097 = vadd.f32 0.0, %v6096
  %6098 = vmatmul.f32.gmra.mxu0 %v3343
  %v6099 = vpop.f32.mrf.mxu0
  %v6100 = vadd.f32 0.0, %v6099
  %6101 = vmatmul.f32.gmra.mxu0 %v2558
  %v6102 = vpop.f32.mrf.mxu0
  %v6103 = vadd.f32 0.0, %v6102
  %6104 = vmatmul.f32.gmra.mxu0 %v2561
  %v6105 = vpop.f32.mrf.mxu0
  %v6106 = vadd.f32 0.0, %v6105
  %6107 = vmatmul.f32.gmra.mxu0 %v2564
  %v6108 = vpop.f32.mrf.mxu0
  %v6109 = vadd.f32 0.0, %v6108
  %6110 = vmatmul.f32.gmra.mxu0 %v2567
  %v6111 = vpop.f32.mrf.mxu0
  %v6112 = vadd.f32 0.0, %v6111
  %6113 = vmatmul.f32.gmra.mxu0 %v2570
  %v6114 = vpop.f32.mrf.mxu0
  %v6115 = vadd.f32 0.0, %v6114
  %6116 = vmatmul.f32.gmra.mxu0 %v2573
  %v6117 = vpop.f32.mrf.mxu0
  %v6118 = vadd.f32 0.0, %v6117
  %6119 = vmatmul.f32.gmra.mxu0 %v3044
  %v6120 = vpop.f32.mrf.mxu0
  %v6121 = vadd.f32 0.0, %v6120
  %6122 = vmatmul.f32.gmra.mxu0 %v3346
  %v6123 = vpop.f32.mrf.mxu0
  %v6124 = vadd.f32 0.0, %v6123
  %6125 = vmatmul.f32.gmra.mxu0 %v3940
  %v6126 = vpop.f32.mrf.mxu0
  %v6127 = vadd.f32 0.0, %v6126
  %6128 = vmatmul.f32.gmra.mxu0 %v3943
  %v6129 = vpop.f32.mrf.mxu0
  %v6130 = vadd.f32 0.0, %v6129
  %6131 = vmatmul.f32.gmra.mxu0 %v3946
  %v6132 = vpop.f32.mrf.mxu0
  %v6133 = vadd.f32 0.0, %v6132
  %6134 = vmatmul.f32.gmra.mxu0 %v3949
  %v6135 = vpop.f32.mrf.mxu0
  %v6136 = vadd.f32 0.0, %v6135
  %6137 = vmatmul.f32.gmra.mxu0 %v3952
  %v6138 = vpop.f32.mrf.mxu0
  %v6139 = vadd.f32 0.0, %v6138
  %6140 = vmatmul.f32.gmra.mxu0 %v3955
  %v6141 = vpop.f32.mrf.mxu0
  %v6142 = vadd.f32 0.0, %v6141
  %6143 = vmatmul.f32.gmra.mxu0 %v4384
  %v6144 = vpop.f32.mrf.mxu0
  %v6145 = vadd.f32 0.0, %v6144
  %6146 = vmatmul.f32.gmra.mxu0 %v4665
  %v6147 = vpop.f32.mrf.mxu0
  %v6148 = vadd.f32 0.0, %v6147
  %6149 = vmatmul.f32.gmra.mxu0 %v5238
  %v6150 = vpop.f32.mrf.mxu0
  %v6151 = vadd.f32 0.0, %v6150
  %6152 = vmatmul.f32.gmra.mxu0 %v5241
  %v6153 = vpop.f32.mrf.mxu0
  %v6154 = vadd.f32 0.0, %v6153
  %6155 = vmatmul.f32.gmra.mxu0 %v5244
  %v6156 = vpop.f32.mrf.mxu0
  %v6157 = vadd.f32 0.0, %v6156
  %6158 = vmatmul.f32.gmra.mxu0 %v5247
  %v6159 = vpop.f32.mrf.mxu0
  %v6160 = vadd.f32 0.0, %v6159
  %6161 = vmatmul.f32.gmra.mxu0 %v5250
  %v6162 = vpop.f32.mrf.mxu0
  %v6163 = vadd.f32 0.0, %v6162
  %6164 = vmatmul.f32.gmra.mxu0 %v5253
  %v6165 = vpop.f32.mrf.mxu0
  %v6166 = vadd.f32 0.0, %v6165
  %6167 = vmatmul.f32.gmra.mxu0 %v5682
  %v6168 = vpop.f32.mrf.mxu0
  %v6169 = vadd.f32 0.0, %v6168
  %6170 = vmatmul.f32.gmra.mxu0 %v5963
  %v6171 = vpop.f32.mrf.mxu0
  %v6172 = vadd.f32 0.0, %v6171
  %6173 = vdwg.mxu0
  %v6174 = vadd.f32 %v5893, %v5983
  %v6175 = vadd.f32 %v5894, %v5986
  %v6176 = vadd.f32 %v5895, %v5989
  %v6177 = vadd.f32 %v5896, %v5992
  %v6178 = vadd.f32 %v5897, %v5995
  %v6179 = vadd.f32 %v5898, %v5998
  %v6180 = vadd.f32 %v5899, %v6001
  %v6181 = vadd.f32 %v5900, %v6004
  %v6182 = vadd.f32 %v5901, %v6007
  %v6183 = vadd.f32 %v5902, %v6010
  %v6184 = vadd.f32 %v5903, %v6013
  %v6185 = vadd.f32 %v5904, %v6016
  %v6186 = vadd.f32 %v5905, %v6019
  %v6187 = vadd.f32 %v5906, %v6022
  %v6188 = vadd.f32 %v5907, %v6025
  %v6189 = vadd.f32 %v5908, %v6028
  %v6190 = vadd.f32 %v5909, %v6031
  %v6191 = vadd.f32 %v5910, %v6034
  %v6192 = vadd.f32 %v5911, %v6037
  %v6193 = vadd.f32 %v5912, %v6040
  %v6194 = vadd.f32 %v5913, %v6043
  %v6195 = vadd.f32 %v5914, %v6046
  %v6196 = vadd.f32 %v5915, %v6049
  %v6197 = vadd.f32 %v5916, %v6052
  %v6198 = vadd.f32 %v5917, %v6055
  %v6199 = vadd.f32 %v5918, %v6058
  %v6200 = vadd.f32 %v5919, %v6061
  %v6201 = vadd.f32 %v5920, %v6064
  %v6202 = vadd.f32 %v5921, %v6067
  %v6203 = vadd.f32 %v5922, %v6070
  %v6204 = vadd.f32 %v5923, %v6073
  %v6205 = vadd.f32 %v5924, %v6076
  %v6206 = vadd.f32 %v5925, %v6079
  %v6207 = vadd.f32 %v5926, %v6082
  %v6208 = vadd.f32 %v5927, %v6085
  %v6209 = vadd.f32 %v5928, %v6088
  %v6210 = vadd.f32 %v5929, %v6091
  %v6211 = vadd.f32 %v5930, %v6094
  %v6212 = vadd.f32 %v5931, %v6097
  %v6213 = vadd.f32 %v5932, %v6100
  %v6214 = vadd.f32 %v5933, %v6103
  %v6215 = vadd.f32 %v5934, %v6106
  %v6216 = vadd.f32 %v5935, %v6109
  %v6217 = vadd.f32 %v5936, %v6112
  %v6218 = vadd.f32 %v5937, %v6115
  %v6219 = vadd.f32 %v5938, %v6118
  %v6220 = vadd.f32 %v5939, %v6121
  %v6221 = vadd.f32 %v5940, %v6124
  %v6222 = vadd.f32 %v5941, %v6127
  %v6223 = vadd.f32 %v5942, %v6130
  %v6224 = vadd.f32 %v5943, %v6133
  %v6225 = vadd.f32 %v5944, %v6136
  %v6226 = vadd.f32 %v5945, %v6139
  %v6227 = vadd.f32 %v5946, %v6142
  %v6228 = vadd.f32 %v5947, %v6145
  %v6229 = vadd.f32 %v5948, %v6148
  %v6230 = vadd.f32 %v5949, %v6151
  %v6231 = vadd.f32 %v5950, %v6154
  %v6232 = vadd.f32 %v5951, %v6157
  %v6233 = vadd.f32 %v5952, %v6160
  %v6234 = vadd.f32 %v5953, %v6163
  %v6235 = vadd.f32 %v5954, %v6166
  %v6236 = vadd.f32 %v5955, %v6169
  %v6237 = vadd.f32 %v5956, %v6172
  %s6238 = scalar_lea.vmem %s3, 448
  %v6239 = vld [vmem:[%s6238] sm:$0xff]
  %v6240 = vld [vmem:[%s6238 + $0x8] sm:$0xff]
  %v6241 = vld [vmem:[%s6238 + $0x10] sm:$0xff]
  %v6242 = vld [vmem:[%s6238 + $0x18] sm:$0xff]
  %v6244 = vsel %vm2382, %v2348, 0
  %6246 = vmatpush.msra.mxu0 0.0
  %6247 = vmatpush.msra.mxu0 0.0
  %6248 = vmatpush.msra.mxu0 0.0
  %6249 = vmatpush.msra.mxu0 0.0
  %6250 = vmatpush.msra.mxu0 0.0
  %6251 = vmatpush.msra.mxu0 0.0
  %6252 = vmatpush.msra.mxu0 0.0
  %6253 = vmatpush.msra.mxu0 0.0
  %6254 = vmatpush.msra.mxu0 0.0
  %6255 = vmatpush.msra.mxu0 0.0
  %6256 = vmatpush.msra.mxu0 0.0
  %6257 = vmatpush.msra.mxu0 0.0
  %6258 = vmatpush.msra.mxu0 %v6242
  %6259 = vmatpush.msra.mxu0 %v6241
  %6260 = vmatpush.msra.mxu0 %v6240
  %6261 = vmatpush.msra.mxu0 %v6239
  %6262 = vmatmul.f32.gmra.mxu0 %v2441
  %v6263 = vpop.f32.mrf.mxu0
  %v6264 = vadd.f32 0.0, %v6263
  %6265 = vmatmul.f32.gmra.mxu0 %v2444
  %v6266 = vpop.f32.mrf.mxu0
  %v6267 = vadd.f32 0.0, %v6266
  %6268 = vmatmul.f32.gmra.mxu0 %v2447
  %v6269 = vpop.f32.mrf.mxu0
  %v6270 = vadd.f32 0.0, %v6269
  %6271 = vmatmul.f32.gmra.mxu0 %v2450
  %v6272 = vpop.f32.mrf.mxu0
  %v6273 = vadd.f32 0.0, %v6272
  %6274 = vmatmul.f32.gmra.mxu0 %v2453
  %v6275 = vpop.f32.mrf.mxu0
  %v6276 = vadd.f32 0.0, %v6275
  %6277 = vmatmul.f32.gmra.mxu0 %v3029
  %v6278 = vpop.f32.mrf.mxu0
  %v6279 = vadd.f32 0.0, %v6278
  %6280 = vmatmul.f32.gmra.mxu0 %v3331
  %v6281 = vpop.f32.mrf.mxu0
  %v6282 = vadd.f32 0.0, %v6281
  %6283 = vmatmul.f32.gmra.mxu0 %v3633
  %v6284 = vpop.f32.mrf.mxu0
  %v6285 = vadd.f32 0.0, %v6284
  %6286 = vmatmul.f32.gmra.mxu0 %v2465
  %v6287 = vpop.f32.mrf.mxu0
  %v6288 = vadd.f32 0.0, %v6287
  %6289 = vmatmul.f32.gmra.mxu0 %v2468
  %v6290 = vpop.f32.mrf.mxu0
  %v6291 = vadd.f32 0.0, %v6290
  %6292 = vmatmul.f32.gmra.mxu0 %v2471
  %v6293 = vpop.f32.mrf.mxu0
  %v6294 = vadd.f32 0.0, %v6293
  %6295 = vmatmul.f32.gmra.mxu0 %v2474
  %v6296 = vpop.f32.mrf.mxu0
  %v6297 = vadd.f32 0.0, %v6296
  %6298 = vmatmul.f32.gmra.mxu0 %v2477
  %v6299 = vpop.f32.mrf.mxu0
  %v6300 = vadd.f32 0.0, %v6299
  %6301 = vmatmul.f32.gmra.mxu0 %v3032
  %v6302 = vpop.f32.mrf.mxu0
  %v6303 = vadd.f32 0.0, %v6302
  %6304 = vmatmul.f32.gmra.mxu0 %v3334
  %v6305 = vpop.f32.mrf.mxu0
  %v6306 = vadd.f32 0.0, %v6305
  %6307 = vmatmul.f32.gmra.mxu0 %v3636
  %v6308 = vpop.f32.mrf.mxu0
  %v6309 = vadd.f32 0.0, %v6308
  %6310 = vmatmul.f32.gmra.mxu0 %v2489
  %v6311 = vpop.f32.mrf.mxu0
  %v6312 = vadd.f32 0.0, %v6311
  %6313 = vmatmul.f32.gmra.mxu0 %v2492
  %v6314 = vpop.f32.mrf.mxu0
  %v6315 = vadd.f32 0.0, %v6314
  %6316 = vmatmul.f32.gmra.mxu0 %v2495
  %v6317 = vpop.f32.mrf.mxu0
  %v6318 = vadd.f32 0.0, %v6317
  %6319 = vmatmul.f32.gmra.mxu0 %v2498
  %v6320 = vpop.f32.mrf.mxu0
  %v6321 = vadd.f32 0.0, %v6320
  %6322 = vmatmul.f32.gmra.mxu0 %v2501
  %v6323 = vpop.f32.mrf.mxu0
  %v6324 = vadd.f32 0.0, %v6323
  %6325 = vmatmul.f32.gmra.mxu0 %v3035
  %v6326 = vpop.f32.mrf.mxu0
  %v6327 = vadd.f32 0.0, %v6326
  %6328 = vmatmul.f32.gmra.mxu0 %v3337
  %v6329 = vpop.f32.mrf.mxu0
  %v6330 = vadd.f32 0.0, %v6329
  %6331 = vmatmul.f32.gmra.mxu0 %v3639
  %v6332 = vpop.f32.mrf.mxu0
  %v6333 = vadd.f32 0.0, %v6332
  %6334 = vmatmul.f32.gmra.mxu0 %v2513
  %v6335 = vpop.f32.mrf.mxu0
  %v6336 = vadd.f32 0.0, %v6335
  %6337 = vmatmul.f32.gmra.mxu0 %v2516
  %v6338 = vpop.f32.mrf.mxu0
  %v6339 = vadd.f32 0.0, %v6338
  %6340 = vmatmul.f32.gmra.mxu0 %v2519
  %v6341 = vpop.f32.mrf.mxu0
  %v6342 = vadd.f32 0.0, %v6341
  %6343 = vmatmul.f32.gmra.mxu0 %v2522
  %v6344 = vpop.f32.mrf.mxu0
  %v6345 = vadd.f32 0.0, %v6344
  %6346 = vmatmul.f32.gmra.mxu0 %v2525
  %v6347 = vpop.f32.mrf.mxu0
  %v6348 = vadd.f32 0.0, %v6347
  %6349 = vmatmul.f32.gmra.mxu0 %v3038
  %v6350 = vpop.f32.mrf.mxu0
  %v6351 = vadd.f32 0.0, %v6350
  %6352 = vmatmul.f32.gmra.mxu0 %v3340
  %v6353 = vpop.f32.mrf.mxu0
  %v6354 = vadd.f32 0.0, %v6353
  %6355 = vmatmul.f32.gmra.mxu0 %v3642
  %v6356 = vpop.f32.mrf.mxu0
  %v6357 = vadd.f32 0.0, %v6356
  %6358 = vmatmul.f32.gmra.mxu0 %v2537
  %v6359 = vpop.f32.mrf.mxu0
  %v6360 = vadd.f32 0.0, %v6359
  %6361 = vmatmul.f32.gmra.mxu0 %v2540
  %v6362 = vpop.f32.mrf.mxu0
  %v6363 = vadd.f32 0.0, %v6362
  %6364 = vmatmul.f32.gmra.mxu0 %v2543
  %v6365 = vpop.f32.mrf.mxu0
  %v6366 = vadd.f32 0.0, %v6365
  %6367 = vmatmul.f32.gmra.mxu0 %v2546
  %v6368 = vpop.f32.mrf.mxu0
  %v6369 = vadd.f32 0.0, %v6368
  %6370 = vmatmul.f32.gmra.mxu0 %v2549
  %v6371 = vpop.f32.mrf.mxu0
  %v6372 = vadd.f32 0.0, %v6371
  %6373 = vmatmul.f32.gmra.mxu0 %v3041
  %v6374 = vpop.f32.mrf.mxu0
  %v6375 = vadd.f32 0.0, %v6374
  %6376 = vmatmul.f32.gmra.mxu0 %v3343
  %v6377 = vpop.f32.mrf.mxu0
  %v6378 = vadd.f32 0.0, %v6377
  %6379 = vmatmul.f32.gmra.mxu0 %v3645
  %v6380 = vpop.f32.mrf.mxu0
  %v6381 = vadd.f32 0.0, %v6380
  %6382 = vmatmul.f32.gmra.mxu0 %v2561
  %v6383 = vpop.f32.mrf.mxu0
  %v6384 = vadd.f32 0.0, %v6383
  %6385 = vmatmul.f32.gmra.mxu0 %v2564
  %v6386 = vpop.f32.mrf.mxu0
  %v6387 = vadd.f32 0.0, %v6386
  %6388 = vmatmul.f32.gmra.mxu0 %v2567
  %v6389 = vpop.f32.mrf.mxu0
  %v6390 = vadd.f32 0.0, %v6389
  %6391 = vmatmul.f32.gmra.mxu0 %v2570
  %v6392 = vpop.f32.mrf.mxu0
  %v6393 = vadd.f32 0.0, %v6392
  %6394 = vmatmul.f32.gmra.mxu0 %v2573
  %v6395 = vpop.f32.mrf.mxu0
  %v6396 = vadd.f32 0.0, %v6395
  %6397 = vmatmul.f32.gmra.mxu0 %v3044
  %v6398 = vpop.f32.mrf.mxu0
  %v6399 = vadd.f32 0.0, %v6398
  %6400 = vmatmul.f32.gmra.mxu0 %v3346
  %v6401 = vpop.f32.mrf.mxu0
  %v6402 = vadd.f32 0.0, %v6401
  %6403 = vmatmul.f32.gmra.mxu0 %v3648
  %v6404 = vpop.f32.mrf.mxu0
  %v6405 = vadd.f32 0.0, %v6404
  %6406 = vmatmul.f32.gmra.mxu0 %v3943
  %v6407 = vpop.f32.mrf.mxu0
  %v6408 = vadd.f32 0.0, %v6407
  %6409 = vmatmul.f32.gmra.mxu0 %v3946
  %v6410 = vpop.f32.mrf.mxu0
  %v6411 = vadd.f32 0.0, %v6410
  %6412 = vmatmul.f32.gmra.mxu0 %v3949
  %v6413 = vpop.f32.mrf.mxu0
  %v6414 = vadd.f32 0.0, %v6413
  %6415 = vmatmul.f32.gmra.mxu0 %v3952
  %v6416 = vpop.f32.mrf.mxu0
  %v6417 = vadd.f32 0.0, %v6416
  %6418 = vmatmul.f32.gmra.mxu0 %v3955
  %v6419 = vpop.f32.mrf.mxu0
  %v6420 = vadd.f32 0.0, %v6419
  %6421 = vmatmul.f32.gmra.mxu0 %v4384
  %v6422 = vpop.f32.mrf.mxu0
  %v6423 = vadd.f32 0.0, %v6422
  %6424 = vmatmul.f32.gmra.mxu0 %v4665
  %v6425 = vpop.f32.mrf.mxu0
  %v6426 = vadd.f32 0.0, %v6425
  %6427 = vmatmul.f32.gmra.mxu0 %v4946
  %v6428 = vpop.f32.mrf.mxu0
  %v6429 = vadd.f32 0.0, %v6428
  %6430 = vmatmul.f32.gmra.mxu0 %v5241
  %v6431 = vpop.f32.mrf.mxu0
  %v6432 = vadd.f32 0.0, %v6431
  %6433 = vmatmul.f32.gmra.mxu0 %v5244
  %v6434 = vpop.f32.mrf.mxu0
  %v6435 = vadd.f32 0.0, %v6434
  %6436 = vmatmul.f32.gmra.mxu0 %v5247
  %v6437 = vpop.f32.mrf.mxu0
  %v6438 = vadd.f32 0.0, %v6437
  %6439 = vmatmul.f32.gmra.mxu0 %v5250
  %v6440 = vpop.f32.mrf.mxu0
  %v6441 = vadd.f32 0.0, %v6440
  %6442 = vmatmul.f32.gmra.mxu0 %v5253
  %v6443 = vpop.f32.mrf.mxu0
  %v6444 = vadd.f32 0.0, %v6443
  %6445 = vmatmul.f32.gmra.mxu0 %v5682
  %v6446 = vpop.f32.mrf.mxu0
  %v6447 = vadd.f32 0.0, %v6446
  %6448 = vmatmul.f32.gmra.mxu0 %v5963
  %v6449 = vpop.f32.mrf.mxu0
  %v6450 = vadd.f32 0.0, %v6449
  %6451 = vmatmul.f32.gmra.mxu0 %v6244
  %v6452 = vpop.f32.mrf.mxu0
  %v6453 = vadd.f32 0.0, %v6452
  %6454 = vdwg.mxu0
  %v6455 = vadd.f32 %v6174, %v6264
  %v6456 = vadd.f32 %v6175, %v6267
  %v6457 = vadd.f32 %v6176, %v6270
  %v6458 = vadd.f32 %v6177, %v6273
  %v6459 = vadd.f32 %v6178, %v6276
  %v6460 = vadd.f32 %v6179, %v6279
  %v6461 = vadd.f32 %v6180, %v6282
  %v6462 = vadd.f32 %v6181, %v6285
  %v6463 = vadd.f32 %v6182, %v6288
  %v6464 = vadd.f32 %v6183, %v6291
  %v6465 = vadd.f32 %v6184, %v6294
  %v6466 = vadd.f32 %v6185, %v6297
  %v6467 = vadd.f32 %v6186, %v6300
  %v6468 = vadd.f32 %v6187, %v6303
  %v6469 = vadd.f32 %v6188, %v6306
  %v6470 = vadd.f32 %v6189, %v6309
  %v6471 = vadd.f32 %v6190, %v6312
  %v6472 = vadd.f32 %v6191, %v6315
  %v6473 = vadd.f32 %v6192, %v6318
  %v6474 = vadd.f32 %v6193, %v6321
  %v6475 = vadd.f32 %v6194, %v6324
  %v6476 = vadd.f32 %v6195, %v6327
  %v6477 = vadd.f32 %v6196, %v6330
  %v6478 = vadd.f32 %v6197, %v6333
  %v6479 = vadd.f32 %v6198, %v6336
  %v6480 = vadd.f32 %v6199, %v6339
  %v6481 = vadd.f32 %v6200, %v6342
  %v6482 = vadd.f32 %v6201, %v6345
  %v6483 = vadd.f32 %v6202, %v6348
  %v6484 = vadd.f32 %v6203, %v6351
  %v6485 = vadd.f32 %v6204, %v6354
  %v6486 = vadd.f32 %v6205, %v6357
  %v6487 = vadd.f32 %v6206, %v6360
  %v6488 = vadd.f32 %v6207, %v6363
  %v6489 = vadd.f32 %v6208, %v6366
  %v6490 = vadd.f32 %v6209, %v6369
  %v6491 = vadd.f32 %v6210, %v6372
  %v6492 = vadd.f32 %v6211, %v6375
  %v6493 = vadd.f32 %v6212, %v6378
  %v6494 = vadd.f32 %v6213, %v6381
  %v6495 = vadd.f32 %v6214, %v6384
  %v6496 = vadd.f32 %v6215, %v6387
  %v6497 = vadd.f32 %v6216, %v6390
  %v6498 = vadd.f32 %v6217, %v6393
  %v6499 = vadd.f32 %v6218, %v6396
  %v6500 = vadd.f32 %v6219, %v6399
  %v6501 = vadd.f32 %v6220, %v6402
  %v6502 = vadd.f32 %v6221, %v6405
  %v6503 = vadd.f32 %v6222, %v6408
  %v6504 = vadd.f32 %v6223, %v6411
  %v6505 = vadd.f32 %v6224, %v6414
  %v6506 = vadd.f32 %v6225, %v6417
  %v6507 = vadd.f32 %v6226, %v6420
  %v6508 = vadd.f32 %v6227, %v6423
  %v6509 = vadd.f32 %v6228, %v6426
  %v6510 = vadd.f32 %v6229, %v6429
  %v6511 = vadd.f32 %v6230, %v6432
  %v6512 = vadd.f32 %v6231, %v6435
  %v6513 = vadd.f32 %v6232, %v6438
  %v6514 = vadd.f32 %v6233, %v6441
  %v6515 = vadd.f32 %v6234, %v6444
  %v6516 = vadd.f32 %v6235, %v6447
  %v6517 = vadd.f32 %v6236, %v6450
  %v6518 = vadd.f32 %v6237, %v6453
  %s6519 = scalar_lea.vmem %s3, 480
  %v6520 = vld [vmem:[%s6519] sm:$0xff]
  %v6521 = vld [vmem:[%s6519 + $0x8] sm:$0xff]
  %v6522 = vld [vmem:[%s6519 + $0x10] sm:$0xff]
  %v6523 = vld [vmem:[%s6519 + $0x18] sm:$0xff]
  %s6524 = scalar_lea.vmem %s3, 512
  %v6525 = vld [vmem:[%s6524] sm:$0xff]
  %v6526 = vld [vmem:[%s6524 + $0x8] sm:$0xff]
  %v6527 = vld [vmem:[%s6524 + $0x10] sm:$0xff]
  %v6528 = vld [vmem:[%s6524 + $0x18] sm:$0xff]
  %v6530 = vsel %vm2382, %v2350, 0
  %v6533 = vsel %vm2382, %v2351, 0
  %v6536 = vsel %vm2382, %v2352, 0
  %v6539 = vsel %vm2382, %v2353, 0
  %v6542 = vsel %vm2382, %v2354, 0
  %v6545 = vsel %vm2382, %v2355, 0
  %v6548 = vsel %vm2382, %v2356, 0
  %v6551 = vsel %vm2382, %v2357, 0
  %6553 = vmatpush.msra.mxu0 0.0
  %6554 = vmatpush.msra.mxu0 0.0
  %6555 = vmatpush.msra.mxu0 0.0
  %6556 = vmatpush.msra.mxu0 0.0
  %6557 = vmatpush.msra.mxu0 0.0
  %6558 = vmatpush.msra.mxu0 0.0
  %6559 = vmatpush.msra.mxu0 0.0
  %6560 = vmatpush.msra.mxu0 0.0
  %6561 = vmatpush.msra.mxu0 0.0
  %6562 = vmatpush.msra.mxu0 0.0
  %6563 = vmatpush.msra.mxu0 0.0
  %6564 = vmatpush.msra.mxu0 0.0
  %6565 = vmatpush.msra.mxu0 %v6528
  %6566 = vmatpush.msra.mxu0 %v6527
  %6567 = vmatpush.msra.mxu0 %v6526
  %6568 = vmatpush.msra.mxu0 %v6525
  %6569 = vmatmul.f32.gmra.mxu0 %v2456
  %v6570 = vpop.f32.mrf.mxu0
  %v6571 = vadd.f32 0.0, %v6570
  %6572 = vmatmul.f32.gmra.mxu0 %v2459
  %v6573 = vpop.f32.mrf.mxu0
  %v6574 = vadd.f32 0.0, %v6573
  %6575 = vmatmul.f32.gmra.mxu0 %v2462
  %v6576 = vpop.f32.mrf.mxu0
  %v6577 = vadd.f32 0.0, %v6576
  %6578 = vmatmul.f32.gmra.mxu0 %v2465
  %v6579 = vpop.f32.mrf.mxu0
  %v6580 = vadd.f32 0.0, %v6579
  %6581 = vmatmul.f32.gmra.mxu0 %v2468
  %v6582 = vpop.f32.mrf.mxu0
  %v6583 = vadd.f32 0.0, %v6582
  %6584 = vmatmul.f32.gmra.mxu0 %v2471
  %v6585 = vpop.f32.mrf.mxu0
  %v6586 = vadd.f32 0.0, %v6585
  %6587 = vmatmul.f32.gmra.mxu0 %v2474
  %v6588 = vpop.f32.mrf.mxu0
  %v6589 = vadd.f32 0.0, %v6588
  %6590 = vmatmul.f32.gmra.mxu0 %v2477
  %v6591 = vpop.f32.mrf.mxu0
  %v6592 = vadd.f32 0.0, %v6591
  %6593 = vmatmul.f32.gmra.mxu0 %v2480
  %v6594 = vpop.f32.mrf.mxu0
  %v6595 = vadd.f32 0.0, %v6594
  %6596 = vmatmul.f32.gmra.mxu0 %v2483
  %v6597 = vpop.f32.mrf.mxu0
  %v6598 = vadd.f32 0.0, %v6597
  %6599 = vmatmul.f32.gmra.mxu0 %v2486
  %v6600 = vpop.f32.mrf.mxu0
  %v6601 = vadd.f32 0.0, %v6600
  %6602 = vmatmul.f32.gmra.mxu0 %v2489
  %v6603 = vpop.f32.mrf.mxu0
  %v6604 = vadd.f32 0.0, %v6603
  %6605 = vmatmul.f32.gmra.mxu0 %v2492
  %v6606 = vpop.f32.mrf.mxu0
  %v6607 = vadd.f32 0.0, %v6606
  %6608 = vmatmul.f32.gmra.mxu0 %v2495
  %v6609 = vpop.f32.mrf.mxu0
  %v6610 = vadd.f32 0.0, %v6609
  %6611 = vmatmul.f32.gmra.mxu0 %v2498
  %v6612 = vpop.f32.mrf.mxu0
  %v6613 = vadd.f32 0.0, %v6612
  %6614 = vmatmul.f32.gmra.mxu0 %v2501
  %v6615 = vpop.f32.mrf.mxu0
  %v6616 = vadd.f32 0.0, %v6615
  %6617 = vmatmul.f32.gmra.mxu0 %v2504
  %v6618 = vpop.f32.mrf.mxu0
  %v6619 = vadd.f32 0.0, %v6618
  %6620 = vmatmul.f32.gmra.mxu0 %v2507
  %v6621 = vpop.f32.mrf.mxu0
  %v6622 = vadd.f32 0.0, %v6621
  %6623 = vmatmul.f32.gmra.mxu0 %v2510
  %v6624 = vpop.f32.mrf.mxu0
  %v6625 = vadd.f32 0.0, %v6624
  %6626 = vmatmul.f32.gmra.mxu0 %v2513
  %v6627 = vpop.f32.mrf.mxu0
  %v6628 = vadd.f32 0.0, %v6627
  %6629 = vmatmul.f32.gmra.mxu0 %v2516
  %v6630 = vpop.f32.mrf.mxu0
  %v6631 = vadd.f32 0.0, %v6630
  %6632 = vmatmul.f32.gmra.mxu0 %v2519
  %v6633 = vpop.f32.mrf.mxu0
  %v6634 = vadd.f32 0.0, %v6633
  %6635 = vmatmul.f32.gmra.mxu0 %v2522
  %v6636 = vpop.f32.mrf.mxu0
  %v6637 = vadd.f32 0.0, %v6636
  %6638 = vmatmul.f32.gmra.mxu0 %v2525
  %v6639 = vpop.f32.mrf.mxu0
  %v6640 = vadd.f32 0.0, %v6639
  %6641 = vmatmul.f32.gmra.mxu0 %v2528
  %v6642 = vpop.f32.mrf.mxu0
  %v6643 = vadd.f32 0.0, %v6642
  %6644 = vmatmul.f32.gmra.mxu0 %v2531
  %v6645 = vpop.f32.mrf.mxu0
  %v6646 = vadd.f32 0.0, %v6645
  %6647 = vmatmul.f32.gmra.mxu0 %v2534
  %v6648 = vpop.f32.mrf.mxu0
  %v6649 = vadd.f32 0.0, %v6648
  %6650 = vmatmul.f32.gmra.mxu0 %v2537
  %v6651 = vpop.f32.mrf.mxu0
  %v6652 = vadd.f32 0.0, %v6651
  %6653 = vmatmul.f32.gmra.mxu0 %v2540
  %v6654 = vpop.f32.mrf.mxu0
  %v6655 = vadd.f32 0.0, %v6654
  %6656 = vmatmul.f32.gmra.mxu0 %v2543
  %v6657 = vpop.f32.mrf.mxu0
  %v6658 = vadd.f32 0.0, %v6657
  %6659 = vmatmul.f32.gmra.mxu0 %v2546
  %v6660 = vpop.f32.mrf.mxu0
  %v6661 = vadd.f32 0.0, %v6660
  %6662 = vmatmul.f32.gmra.mxu0 %v2549
  %v6663 = vpop.f32.mrf.mxu0
  %v6664 = vadd.f32 0.0, %v6663
  %6665 = vmatmul.f32.gmra.mxu0 %v2552
  %v6666 = vpop.f32.mrf.mxu0
  %v6667 = vadd.f32 0.0, %v6666
  %6668 = vmatmul.f32.gmra.mxu0 %v2555
  %v6669 = vpop.f32.mrf.mxu0
  %v6670 = vadd.f32 0.0, %v6669
  %6671 = vmatmul.f32.gmra.mxu0 %v2558
  %v6672 = vpop.f32.mrf.mxu0
  %v6673 = vadd.f32 0.0, %v6672
  %6674 = vmatmul.f32.gmra.mxu0 %v2561
  %v6675 = vpop.f32.mrf.mxu0
  %v6676 = vadd.f32 0.0, %v6675
  %6677 = vmatmul.f32.gmra.mxu0 %v2564
  %v6678 = vpop.f32.mrf.mxu0
  %v6679 = vadd.f32 0.0, %v6678
  %6680 = vmatmul.f32.gmra.mxu0 %v2567
  %v6681 = vpop.f32.mrf.mxu0
  %v6682 = vadd.f32 0.0, %v6681
  %6683 = vmatmul.f32.gmra.mxu0 %v2570
  %v6684 = vpop.f32.mrf.mxu0
  %v6685 = vadd.f32 0.0, %v6684
  %6686 = vmatmul.f32.gmra.mxu0 %v2573
  %v6687 = vpop.f32.mrf.mxu0
  %v6688 = vadd.f32 0.0, %v6687
  %6689 = vmatmul.f32.gmra.mxu0 %v3934
  %v6690 = vpop.f32.mrf.mxu0
  %v6691 = vadd.f32 0.0, %v6690
  %6692 = vmatmul.f32.gmra.mxu0 %v3937
  %v6693 = vpop.f32.mrf.mxu0
  %v6694 = vadd.f32 0.0, %v6693
  %6695 = vmatmul.f32.gmra.mxu0 %v3940
  %v6696 = vpop.f32.mrf.mxu0
  %v6697 = vadd.f32 0.0, %v6696
  %6698 = vmatmul.f32.gmra.mxu0 %v3943
  %v6699 = vpop.f32.mrf.mxu0
  %v6700 = vadd.f32 0.0, %v6699
  %6701 = vmatmul.f32.gmra.mxu0 %v3946
  %v6702 = vpop.f32.mrf.mxu0
  %v6703 = vadd.f32 0.0, %v6702
  %6704 = vmatmul.f32.gmra.mxu0 %v3949
  %v6705 = vpop.f32.mrf.mxu0
  %v6706 = vadd.f32 0.0, %v6705
  %6707 = vmatmul.f32.gmra.mxu0 %v3952
  %v6708 = vpop.f32.mrf.mxu0
  %v6709 = vadd.f32 0.0, %v6708
  %6710 = vmatmul.f32.gmra.mxu0 %v3955
  %v6711 = vpop.f32.mrf.mxu0
  %v6712 = vadd.f32 0.0, %v6711
  %6713 = vmatmul.f32.gmra.mxu0 %v5232
  %v6714 = vpop.f32.mrf.mxu0
  %v6715 = vadd.f32 0.0, %v6714
  %6716 = vmatmul.f32.gmra.mxu0 %v5235
  %v6717 = vpop.f32.mrf.mxu0
  %v6718 = vadd.f32 0.0, %v6717
  %6719 = vmatmul.f32.gmra.mxu0 %v5238
  %v6720 = vpop.f32.mrf.mxu0
  %v6721 = vadd.f32 0.0, %v6720
  %6722 = vmatmul.f32.gmra.mxu0 %v5241
  %v6723 = vpop.f32.mrf.mxu0
  %v6724 = vadd.f32 0.0, %v6723
  %6725 = vmatmul.f32.gmra.mxu0 %v5244
  %v6726 = vpop.f32.mrf.mxu0
  %v6727 = vadd.f32 0.0, %v6726
  %6728 = vmatmul.f32.gmra.mxu0 %v5247
  %v6729 = vpop.f32.mrf.mxu0
  %v6730 = vadd.f32 0.0, %v6729
  %6731 = vmatmul.f32.gmra.mxu0 %v5250
  %v6732 = vpop.f32.mrf.mxu0
  %v6733 = vadd.f32 0.0, %v6732
  %6734 = vmatmul.f32.gmra.mxu0 %v5253
  %v6735 = vpop.f32.mrf.mxu0
  %v6736 = vadd.f32 0.0, %v6735
  %6737 = vmatmul.f32.gmra.mxu0 %v6530
  %v6738 = vpop.f32.mrf.mxu0
  %v6739 = vadd.f32 0.0, %v6738
  %6740 = vmatmul.f32.gmra.mxu0 %v6533
  %v6741 = vpop.f32.mrf.mxu0
  %v6742 = vadd.f32 0.0, %v6741
  %6743 = vmatmul.f32.gmra.mxu0 %v6536
  %v6744 = vpop.f32.mrf.mxu0
  %v6745 = vadd.f32 0.0, %v6744
  %6746 = vmatmul.f32.gmra.mxu0 %v6539
  %v6747 = vpop.f32.mrf.mxu0
  %v6748 = vadd.f32 0.0, %v6747
  %6749 = vmatmul.f32.gmra.mxu0 %v6542
  %v6750 = vpop.f32.mrf.mxu0
  %v6751 = vadd.f32 0.0, %v6750
  %6752 = vmatmul.f32.gmra.mxu0 %v6545
  %v6753 = vpop.f32.mrf.mxu0
  %v6754 = vadd.f32 0.0, %v6753
  %6755 = vmatmul.f32.gmra.mxu0 %v6548
  %v6756 = vpop.f32.mrf.mxu0
  %v6757 = vadd.f32 0.0, %v6756
  %6758 = vmatmul.f32.gmra.mxu0 %v6551
  %v6759 = vpop.f32.mrf.mxu0
  %v6760 = vadd.f32 0.0, %v6759
  %6761 = vdwg.mxu0
  %v6763 = vsel %vm2382, %v2349, 0
  %6765 = vmatpush.msra.mxu0 0.0
  %6766 = vmatpush.msra.mxu0 0.0
  %6767 = vmatpush.msra.mxu0 0.0
  %6768 = vmatpush.msra.mxu0 0.0
  %6769 = vmatpush.msra.mxu0 0.0
  %6770 = vmatpush.msra.mxu0 0.0
  %6771 = vmatpush.msra.mxu0 0.0
  %6772 = vmatpush.msra.mxu0 0.0
  %6773 = vmatpush.msra.mxu0 0.0
  %6774 = vmatpush.msra.mxu0 0.0
  %6775 = vmatpush.msra.mxu0 0.0
  %6776 = vmatpush.msra.mxu0 0.0
  %6777 = vmatpush.msra.mxu0 %v6523
  %6778 = vmatpush.msra.mxu0 %v6522
  %6779 = vmatpush.msra.mxu0 %v6521
  %6780 = vmatpush.msra.mxu0 %v6520
  %6781 = vmatmul.f32.gmra.mxu0 %v2794
  %v6782 = vpop.f32.mrf.mxu0
  %v6783 = vadd.f32 %v6571, %v6782
  %6784 = vmatmul.f32.gmra.mxu0 %v2456
  %v6785 = vpop.f32.mrf.mxu0
  %v6786 = vadd.f32 %v6574, %v6785
  %6787 = vmatmul.f32.gmra.mxu0 %v2459
  %v6788 = vpop.f32.mrf.mxu0
  %v6789 = vadd.f32 %v6577, %v6788
  %6790 = vmatmul.f32.gmra.mxu0 %v2462
  %v6791 = vpop.f32.mrf.mxu0
  %v6792 = vadd.f32 %v6580, %v6791
  %6793 = vmatmul.f32.gmra.mxu0 %v2465
  %v6794 = vpop.f32.mrf.mxu0
  %v6795 = vadd.f32 %v6583, %v6794
  %6796 = vmatmul.f32.gmra.mxu0 %v2468
  %v6797 = vpop.f32.mrf.mxu0
  %v6798 = vadd.f32 %v6586, %v6797
  %6799 = vmatmul.f32.gmra.mxu0 %v2471
  %v6800 = vpop.f32.mrf.mxu0
  %v6801 = vadd.f32 %v6589, %v6800
  %6802 = vmatmul.f32.gmra.mxu0 %v2474
  %v6803 = vpop.f32.mrf.mxu0
  %v6804 = vadd.f32 %v6592, %v6803
  %6805 = vmatmul.f32.gmra.mxu0 %v2797
  %v6806 = vpop.f32.mrf.mxu0
  %v6807 = vadd.f32 %v6595, %v6806
  %6808 = vmatmul.f32.gmra.mxu0 %v2480
  %v6809 = vpop.f32.mrf.mxu0
  %v6810 = vadd.f32 %v6598, %v6809
  %6811 = vmatmul.f32.gmra.mxu0 %v2483
  %v6812 = vpop.f32.mrf.mxu0
  %v6813 = vadd.f32 %v6601, %v6812
  %6814 = vmatmul.f32.gmra.mxu0 %v2486
  %v6815 = vpop.f32.mrf.mxu0
  %v6816 = vadd.f32 %v6604, %v6815
  %6817 = vmatmul.f32.gmra.mxu0 %v2489
  %v6818 = vpop.f32.mrf.mxu0
  %v6819 = vadd.f32 %v6607, %v6818
  %6820 = vmatmul.f32.gmra.mxu0 %v2492
  %v6821 = vpop.f32.mrf.mxu0
  %v6822 = vadd.f32 %v6610, %v6821
  %6823 = vmatmul.f32.gmra.mxu0 %v2495
  %v6824 = vpop.f32.mrf.mxu0
  %v6825 = vadd.f32 %v6613, %v6824
  %6826 = vmatmul.f32.gmra.mxu0 %v2498
  %v6827 = vpop.f32.mrf.mxu0
  %v6828 = vadd.f32 %v6616, %v6827
  %6829 = vmatmul.f32.gmra.mxu0 %v2800
  %v6830 = vpop.f32.mrf.mxu0
  %v6831 = vadd.f32 %v6619, %v6830
  %6832 = vmatmul.f32.gmra.mxu0 %v2504
  %v6833 = vpop.f32.mrf.mxu0
  %v6834 = vadd.f32 %v6622, %v6833
  %6835 = vmatmul.f32.gmra.mxu0 %v2507
  %v6836 = vpop.f32.mrf.mxu0
  %v6837 = vadd.f32 %v6625, %v6836
  %6838 = vmatmul.f32.gmra.mxu0 %v2510
  %v6839 = vpop.f32.mrf.mxu0
  %v6840 = vadd.f32 %v6628, %v6839
  %6841 = vmatmul.f32.gmra.mxu0 %v2513
  %v6842 = vpop.f32.mrf.mxu0
  %v6843 = vadd.f32 %v6631, %v6842
  %6844 = vmatmul.f32.gmra.mxu0 %v2516
  %v6845 = vpop.f32.mrf.mxu0
  %v6846 = vadd.f32 %v6634, %v6845
  %6847 = vmatmul.f32.gmra.mxu0 %v2519
  %v6848 = vpop.f32.mrf.mxu0
  %v6849 = vadd.f32 %v6637, %v6848
  %6850 = vmatmul.f32.gmra.mxu0 %v2522
  %v6851 = vpop.f32.mrf.mxu0
  %v6852 = vadd.f32 %v6640, %v6851
  %6853 = vmatmul.f32.gmra.mxu0 %v2803
  %v6854 = vpop.f32.mrf.mxu0
  %v6855 = vadd.f32 %v6643, %v6854
  %6856 = vmatmul.f32.gmra.mxu0 %v2528
  %v6857 = vpop.f32.mrf.mxu0
  %v6858 = vadd.f32 %v6646, %v6857
  %6859 = vmatmul.f32.gmra.mxu0 %v2531
  %v6860 = vpop.f32.mrf.mxu0
  %v6861 = vadd.f32 %v6649, %v6860
  %6862 = vmatmul.f32.gmra.mxu0 %v2534
  %v6863 = vpop.f32.mrf.mxu0
  %v6864 = vadd.f32 %v6652, %v6863
  %6865 = vmatmul.f32.gmra.mxu0 %v2537
  %v6866 = vpop.f32.mrf.mxu0
  %v6867 = vadd.f32 %v6655, %v6866
  %6868 = vmatmul.f32.gmra.mxu0 %v2540
  %v6869 = vpop.f32.mrf.mxu0
  %v6870 = vadd.f32 %v6658, %v6869
  %6871 = vmatmul.f32.gmra.mxu0 %v2543
  %v6872 = vpop.f32.mrf.mxu0
  %v6873 = vadd.f32 %v6661, %v6872
  %6874 = vmatmul.f32.gmra.mxu0 %v2546
  %v6875 = vpop.f32.mrf.mxu0
  %v6876 = vadd.f32 %v6664, %v6875
  %6877 = vmatmul.f32.gmra.mxu0 %v2806
  %v6878 = vpop.f32.mrf.mxu0
  %v6879 = vadd.f32 %v6667, %v6878
  %6880 = vmatmul.f32.gmra.mxu0 %v2552
  %v6881 = vpop.f32.mrf.mxu0
  %v6882 = vadd.f32 %v6670, %v6881
  %6883 = vmatmul.f32.gmra.mxu0 %v2555
  %v6884 = vpop.f32.mrf.mxu0
  %v6885 = vadd.f32 %v6673, %v6884
  %6886 = vmatmul.f32.gmra.mxu0 %v2558
  %v6887 = vpop.f32.mrf.mxu0
  %v6888 = vadd.f32 %v6676, %v6887
  %6889 = vmatmul.f32.gmra.mxu0 %v2561
  %v6890 = vpop.f32.mrf.mxu0
  %v6891 = vadd.f32 %v6679, %v6890
  %6892 = vmatmul.f32.gmra.mxu0 %v2564
  %v6893 = vpop.f32.mrf.mxu0
  %v6894 = vadd.f32 %v6682, %v6893
  %6895 = vmatmul.f32.gmra.mxu0 %v2567
  %v6896 = vpop.f32.mrf.mxu0
  %v6897 = vadd.f32 %v6685, %v6896
  %6898 = vmatmul.f32.gmra.mxu0 %v2570
  %v6899 = vpop.f32.mrf.mxu0
  %v6900 = vadd.f32 %v6688, %v6899
  %6901 = vmatmul.f32.gmra.mxu0 %v4167
  %v6902 = vpop.f32.mrf.mxu0
  %v6903 = vadd.f32 %v6691, %v6902
  %6904 = vmatmul.f32.gmra.mxu0 %v3934
  %v6905 = vpop.f32.mrf.mxu0
  %v6906 = vadd.f32 %v6694, %v6905
  %6907 = vmatmul.f32.gmra.mxu0 %v3937
  %v6908 = vpop.f32.mrf.mxu0
  %v6909 = vadd.f32 %v6697, %v6908
  %6910 = vmatmul.f32.gmra.mxu0 %v3940
  %v6911 = vpop.f32.mrf.mxu0
  %v6912 = vadd.f32 %v6700, %v6911
  %6913 = vmatmul.f32.gmra.mxu0 %v3943
  %v6914 = vpop.f32.mrf.mxu0
  %v6915 = vadd.f32 %v6703, %v6914
  %6916 = vmatmul.f32.gmra.mxu0 %v3946
  %v6917 = vpop.f32.mrf.mxu0
  %v6918 = vadd.f32 %v6706, %v6917
  %6919 = vmatmul.f32.gmra.mxu0 %v3949
  %v6920 = vpop.f32.mrf.mxu0
  %v6921 = vadd.f32 %v6709, %v6920
  %6922 = vmatmul.f32.gmra.mxu0 %v3952
  %v6923 = vpop.f32.mrf.mxu0
  %v6924 = vadd.f32 %v6712, %v6923
  %6925 = vmatmul.f32.gmra.mxu0 %v5465
  %v6926 = vpop.f32.mrf.mxu0
  %v6927 = vadd.f32 %v6715, %v6926
  %6928 = vmatmul.f32.gmra.mxu0 %v5232
  %v6929 = vpop.f32.mrf.mxu0
  %v6930 = vadd.f32 %v6718, %v6929
  %6931 = vmatmul.f32.gmra.mxu0 %v5235
  %v6932 = vpop.f32.mrf.mxu0
  %v6933 = vadd.f32 %v6721, %v6932
  %6934 = vmatmul.f32.gmra.mxu0 %v5238
  %v6935 = vpop.f32.mrf.mxu0
  %v6936 = vadd.f32 %v6724, %v6935
  %6937 = vmatmul.f32.gmra.mxu0 %v5241
  %v6938 = vpop.f32.mrf.mxu0
  %v6939 = vadd.f32 %v6727, %v6938
  %6940 = vmatmul.f32.gmra.mxu0 %v5244
  %v6941 = vpop.f32.mrf.mxu0
  %v6942 = vadd.f32 %v6730, %v6941
  %6943 = vmatmul.f32.gmra.mxu0 %v5247
  %v6944 = vpop.f32.mrf.mxu0
  %v6945 = vadd.f32 %v6733, %v6944
  %6946 = vmatmul.f32.gmra.mxu0 %v5250
  %v6947 = vpop.f32.mrf.mxu0
  %v6948 = vadd.f32 %v6736, %v6947
  %6949 = vmatmul.f32.gmra.mxu0 %v6763
  %v6950 = vpop.f32.mrf.mxu0
  %v6951 = vadd.f32 %v6739, %v6950
  %6952 = vmatmul.f32.gmra.mxu0 %v6530
  %v6953 = vpop.f32.mrf.mxu0
  %v6954 = vadd.f32 %v6742, %v6953
  %6955 = vmatmul.f32.gmra.mxu0 %v6533
  %v6956 = vpop.f32.mrf.mxu0
  %v6957 = vadd.f32 %v6745, %v6956
  %6958 = vmatmul.f32.gmra.mxu0 %v6536
  %v6959 = vpop.f32.mrf.mxu0
  %v6960 = vadd.f32 %v6748, %v6959
  %6961 = vmatmul.f32.gmra.mxu0 %v6539
  %v6962 = vpop.f32.mrf.mxu0
  %v6963 = vadd.f32 %v6751, %v6962
  %6964 = vmatmul.f32.gmra.mxu0 %v6542
  %v6965 = vpop.f32.mrf.mxu0
  %v6966 = vadd.f32 %v6754, %v6965
  %6967 = vmatmul.f32.gmra.mxu0 %v6545
  %v6968 = vpop.f32.mrf.mxu0
  %v6969 = vadd.f32 %v6757, %v6968
  %6970 = vmatmul.f32.gmra.mxu0 %v6548
  %v6971 = vpop.f32.mrf.mxu0
  %v6972 = vadd.f32 %v6760, %v6971
  %6973 = vdwg.mxu0
  %s6974 = scalar_lea.vmem %s3, 544
  %v6975 = vld [vmem:[%s6974] sm:$0xff]
  %v6976 = vld [vmem:[%s6974 + $0x8] sm:$0xff]
  %v6977 = vld [vmem:[%s6974 + $0x10] sm:$0xff]
  %v6978 = vld [vmem:[%s6974 + $0x18] sm:$0xff]
  %v6980 = vsel %vm2382, %v2358, 0
  %6982 = vmatpush.msra.mxu0 0.0
  %6983 = vmatpush.msra.mxu0 0.0
  %6984 = vmatpush.msra.mxu0 0.0
  %6985 = vmatpush.msra.mxu0 0.0
  %6986 = vmatpush.msra.mxu0 0.0
  %6987 = vmatpush.msra.mxu0 0.0
  %6988 = vmatpush.msra.mxu0 0.0
  %6989 = vmatpush.msra.mxu0 0.0
  %6990 = vmatpush.msra.mxu0 0.0
  %6991 = vmatpush.msra.mxu0 0.0
  %6992 = vmatpush.msra.mxu0 0.0
  %6993 = vmatpush.msra.mxu0 0.0
  %6994 = vmatpush.msra.mxu0 %v6978
  %6995 = vmatpush.msra.mxu0 %v6977
  %6996 = vmatpush.msra.mxu0 %v6976
  %6997 = vmatpush.msra.mxu0 %v6975
  %6998 = vmatmul.f32.gmra.mxu0 %v2459
  %v6999 = vpop.f32.mrf.mxu0
  %v7000 = vadd.f32 0.0, %v6999
  %7001 = vmatmul.f32.gmra.mxu0 %v2462
  %v7002 = vpop.f32.mrf.mxu0
  %v7003 = vadd.f32 0.0, %v7002
  %7004 = vmatmul.f32.gmra.mxu0 %v2465
  %v7005 = vpop.f32.mrf.mxu0
  %v7006 = vadd.f32 0.0, %v7005
  %7007 = vmatmul.f32.gmra.mxu0 %v2468
  %v7008 = vpop.f32.mrf.mxu0
  %v7009 = vadd.f32 0.0, %v7008
  %7010 = vmatmul.f32.gmra.mxu0 %v2471
  %v7011 = vpop.f32.mrf.mxu0
  %v7012 = vadd.f32 0.0, %v7011
  %7013 = vmatmul.f32.gmra.mxu0 %v2474
  %v7014 = vpop.f32.mrf.mxu0
  %v7015 = vadd.f32 0.0, %v7014
  %7016 = vmatmul.f32.gmra.mxu0 %v2477
  %v7017 = vpop.f32.mrf.mxu0
  %v7018 = vadd.f32 0.0, %v7017
  %7019 = vmatmul.f32.gmra.mxu0 %v3032
  %v7020 = vpop.f32.mrf.mxu0
  %v7021 = vadd.f32 0.0, %v7020
  %7022 = vmatmul.f32.gmra.mxu0 %v2483
  %v7023 = vpop.f32.mrf.mxu0
  %v7024 = vadd.f32 0.0, %v7023
  %7025 = vmatmul.f32.gmra.mxu0 %v2486
  %v7026 = vpop.f32.mrf.mxu0
  %v7027 = vadd.f32 0.0, %v7026
  %7028 = vmatmul.f32.gmra.mxu0 %v2489
  %v7029 = vpop.f32.mrf.mxu0
  %v7030 = vadd.f32 0.0, %v7029
  %7031 = vmatmul.f32.gmra.mxu0 %v2492
  %v7032 = vpop.f32.mrf.mxu0
  %v7033 = vadd.f32 0.0, %v7032
  %7034 = vmatmul.f32.gmra.mxu0 %v2495
  %v7035 = vpop.f32.mrf.mxu0
  %v7036 = vadd.f32 0.0, %v7035
  %7037 = vmatmul.f32.gmra.mxu0 %v2498
  %v7038 = vpop.f32.mrf.mxu0
  %v7039 = vadd.f32 0.0, %v7038
  %7040 = vmatmul.f32.gmra.mxu0 %v2501
  %v7041 = vpop.f32.mrf.mxu0
  %v7042 = vadd.f32 0.0, %v7041
  %7043 = vmatmul.f32.gmra.mxu0 %v3035
  %v7044 = vpop.f32.mrf.mxu0
  %v7045 = vadd.f32 0.0, %v7044
  %7046 = vmatmul.f32.gmra.mxu0 %v2507
  %v7047 = vpop.f32.mrf.mxu0
  %v7048 = vadd.f32 0.0, %v7047
  %7049 = vmatmul.f32.gmra.mxu0 %v2510
  %v7050 = vpop.f32.mrf.mxu0
  %v7051 = vadd.f32 0.0, %v7050
  %7052 = vmatmul.f32.gmra.mxu0 %v2513
  %v7053 = vpop.f32.mrf.mxu0
  %v7054 = vadd.f32 0.0, %v7053
  %7055 = vmatmul.f32.gmra.mxu0 %v2516
  %v7056 = vpop.f32.mrf.mxu0
  %v7057 = vadd.f32 0.0, %v7056
  %7058 = vmatmul.f32.gmra.mxu0 %v2519
  %v7059 = vpop.f32.mrf.mxu0
  %v7060 = vadd.f32 0.0, %v7059
  %7061 = vmatmul.f32.gmra.mxu0 %v2522
  %v7062 = vpop.f32.mrf.mxu0
  %v7063 = vadd.f32 0.0, %v7062
  %7064 = vmatmul.f32.gmra.mxu0 %v2525
  %v7065 = vpop.f32.mrf.mxu0
  %v7066 = vadd.f32 0.0, %v7065
  %7067 = vmatmul.f32.gmra.mxu0 %v3038
  %v7068 = vpop.f32.mrf.mxu0
  %v7069 = vadd.f32 0.0, %v7068
  %7070 = vmatmul.f32.gmra.mxu0 %v2531
  %v7071 = vpop.f32.mrf.mxu0
  %v7072 = vadd.f32 0.0, %v7071
  %7073 = vmatmul.f32.gmra.mxu0 %v2534
  %v7074 = vpop.f32.mrf.mxu0
  %v7075 = vadd.f32 0.0, %v7074
  %7076 = vmatmul.f32.gmra.mxu0 %v2537
  %v7077 = vpop.f32.mrf.mxu0
  %v7078 = vadd.f32 0.0, %v7077
  %7079 = vmatmul.f32.gmra.mxu0 %v2540
  %v7080 = vpop.f32.mrf.mxu0
  %v7081 = vadd.f32 0.0, %v7080
  %7082 = vmatmul.f32.gmra.mxu0 %v2543
  %v7083 = vpop.f32.mrf.mxu0
  %v7084 = vadd.f32 0.0, %v7083
  %7085 = vmatmul.f32.gmra.mxu0 %v2546
  %v7086 = vpop.f32.mrf.mxu0
  %v7087 = vadd.f32 0.0, %v7086
  %7088 = vmatmul.f32.gmra.mxu0 %v2549
  %v7089 = vpop.f32.mrf.mxu0
  %v7090 = vadd.f32 0.0, %v7089
  %7091 = vmatmul.f32.gmra.mxu0 %v3041
  %v7092 = vpop.f32.mrf.mxu0
  %v7093 = vadd.f32 0.0, %v7092
  %7094 = vmatmul.f32.gmra.mxu0 %v2555
  %v7095 = vpop.f32.mrf.mxu0
  %v7096 = vadd.f32 0.0, %v7095
  %7097 = vmatmul.f32.gmra.mxu0 %v2558
  %v7098 = vpop.f32.mrf.mxu0
  %v7099 = vadd.f32 0.0, %v7098
  %7100 = vmatmul.f32.gmra.mxu0 %v2561
  %v7101 = vpop.f32.mrf.mxu0
  %v7102 = vadd.f32 0.0, %v7101
  %7103 = vmatmul.f32.gmra.mxu0 %v2564
  %v7104 = vpop.f32.mrf.mxu0
  %v7105 = vadd.f32 0.0, %v7104
  %7106 = vmatmul.f32.gmra.mxu0 %v2567
  %v7107 = vpop.f32.mrf.mxu0
  %v7108 = vadd.f32 0.0, %v7107
  %7109 = vmatmul.f32.gmra.mxu0 %v2570
  %v7110 = vpop.f32.mrf.mxu0
  %v7111 = vadd.f32 0.0, %v7110
  %7112 = vmatmul.f32.gmra.mxu0 %v2573
  %v7113 = vpop.f32.mrf.mxu0
  %v7114 = vadd.f32 0.0, %v7113
  %7115 = vmatmul.f32.gmra.mxu0 %v3044
  %v7116 = vpop.f32.mrf.mxu0
  %v7117 = vadd.f32 0.0, %v7116
  %7118 = vmatmul.f32.gmra.mxu0 %v3937
  %v7119 = vpop.f32.mrf.mxu0
  %v7120 = vadd.f32 0.0, %v7119
  %7121 = vmatmul.f32.gmra.mxu0 %v3940
  %v7122 = vpop.f32.mrf.mxu0
  %v7123 = vadd.f32 0.0, %v7122
  %7124 = vmatmul.f32.gmra.mxu0 %v3943
  %v7125 = vpop.f32.mrf.mxu0
  %v7126 = vadd.f32 0.0, %v7125
  %7127 = vmatmul.f32.gmra.mxu0 %v3946
  %v7128 = vpop.f32.mrf.mxu0
  %v7129 = vadd.f32 0.0, %v7128
  %7130 = vmatmul.f32.gmra.mxu0 %v3949
  %v7131 = vpop.f32.mrf.mxu0
  %v7132 = vadd.f32 0.0, %v7131
  %7133 = vmatmul.f32.gmra.mxu0 %v3952
  %v7134 = vpop.f32.mrf.mxu0
  %v7135 = vadd.f32 0.0, %v7134
  %7136 = vmatmul.f32.gmra.mxu0 %v3955
  %v7137 = vpop.f32.mrf.mxu0
  %v7138 = vadd.f32 0.0, %v7137
  %7139 = vmatmul.f32.gmra.mxu0 %v4384
  %v7140 = vpop.f32.mrf.mxu0
  %v7141 = vadd.f32 0.0, %v7140
  %7142 = vmatmul.f32.gmra.mxu0 %v5235
  %v7143 = vpop.f32.mrf.mxu0
  %v7144 = vadd.f32 0.0, %v7143
  %7145 = vmatmul.f32.gmra.mxu0 %v5238
  %v7146 = vpop.f32.mrf.mxu0
  %v7147 = vadd.f32 0.0, %v7146
  %7148 = vmatmul.f32.gmra.mxu0 %v5241
  %v7149 = vpop.f32.mrf.mxu0
  %v7150 = vadd.f32 0.0, %v7149
  %7151 = vmatmul.f32.gmra.mxu0 %v5244
  %v7152 = vpop.f32.mrf.mxu0
  %v7153 = vadd.f32 0.0, %v7152
  %7154 = vmatmul.f32.gmra.mxu0 %v5247
  %v7155 = vpop.f32.mrf.mxu0
  %v7156 = vadd.f32 0.0, %v7155
  %7157 = vmatmul.f32.gmra.mxu0 %v5250
  %v7158 = vpop.f32.mrf.mxu0
  %v7159 = vadd.f32 0.0, %v7158
  %7160 = vmatmul.f32.gmra.mxu0 %v5253
  %v7161 = vpop.f32.mrf.mxu0
  %v7162 = vadd.f32 0.0, %v7161
  %7163 = vmatmul.f32.gmra.mxu0 %v5682
  %v7164 = vpop.f32.mrf.mxu0
  %v7165 = vadd.f32 0.0, %v7164
  %7166 = vmatmul.f32.gmra.mxu0 %v6533
  %v7167 = vpop.f32.mrf.mxu0
  %v7168 = vadd.f32 0.0, %v7167
  %7169 = vmatmul.f32.gmra.mxu0 %v6536
  %v7170 = vpop.f32.mrf.mxu0
  %v7171 = vadd.f32 0.0, %v7170
  %7172 = vmatmul.f32.gmra.mxu0 %v6539
  %v7173 = vpop.f32.mrf.mxu0
  %v7174 = vadd.f32 0.0, %v7173
  %7175 = vmatmul.f32.gmra.mxu0 %v6542
  %v7176 = vpop.f32.mrf.mxu0
  %v7177 = vadd.f32 0.0, %v7176
  %7178 = vmatmul.f32.gmra.mxu0 %v6545
  %v7179 = vpop.f32.mrf.mxu0
  %v7180 = vadd.f32 0.0, %v7179
  %7181 = vmatmul.f32.gmra.mxu0 %v6548
  %v7182 = vpop.f32.mrf.mxu0
  %v7183 = vadd.f32 0.0, %v7182
  %7184 = vmatmul.f32.gmra.mxu0 %v6551
  %v7185 = vpop.f32.mrf.mxu0
  %v7186 = vadd.f32 0.0, %v7185
  %7187 = vmatmul.f32.gmra.mxu0 %v6980
  %v7188 = vpop.f32.mrf.mxu0
  %v7189 = vadd.f32 0.0, %v7188
  %7190 = vdwg.mxu0
  %v7191 = vadd.f32 %v6783, %v7000
  %v7192 = vadd.f32 %v6786, %v7003
  %v7193 = vadd.f32 %v6789, %v7006
  %v7194 = vadd.f32 %v6792, %v7009
  %v7195 = vadd.f32 %v6795, %v7012
  %v7196 = vadd.f32 %v6798, %v7015
  %v7197 = vadd.f32 %v6801, %v7018
  %v7198 = vadd.f32 %v6804, %v7021
  %v7199 = vadd.f32 %v6807, %v7024
  %v7200 = vadd.f32 %v6810, %v7027
  %v7201 = vadd.f32 %v6813, %v7030
  %v7202 = vadd.f32 %v6816, %v7033
  %v7203 = vadd.f32 %v6819, %v7036
  %v7204 = vadd.f32 %v6822, %v7039
  %v7205 = vadd.f32 %v6825, %v7042
  %v7206 = vadd.f32 %v6828, %v7045
  %v7207 = vadd.f32 %v6831, %v7048
  %v7208 = vadd.f32 %v6834, %v7051
  %v7209 = vadd.f32 %v6837, %v7054
  %v7210 = vadd.f32 %v6840, %v7057
  %v7211 = vadd.f32 %v6843, %v7060
  %v7212 = vadd.f32 %v6846, %v7063
  %v7213 = vadd.f32 %v6849, %v7066
  %v7214 = vadd.f32 %v6852, %v7069
  %v7215 = vadd.f32 %v6855, %v7072
  %v7216 = vadd.f32 %v6858, %v7075
  %v7217 = vadd.f32 %v6861, %v7078
  %v7218 = vadd.f32 %v6864, %v7081
  %v7219 = vadd.f32 %v6867, %v7084
  %v7220 = vadd.f32 %v6870, %v7087
  %v7221 = vadd.f32 %v6873, %v7090
  %v7222 = vadd.f32 %v6876, %v7093
  %v7223 = vadd.f32 %v6879, %v7096
  %v7224 = vadd.f32 %v6882, %v7099
  %v7225 = vadd.f32 %v6885, %v7102
  %v7226 = vadd.f32 %v6888, %v7105
  %v7227 = vadd.f32 %v6891, %v7108
  %v7228 = vadd.f32 %v6894, %v7111
  %v7229 = vadd.f32 %v6897, %v7114
  %v7230 = vadd.f32 %v6900, %v7117
  %v7231 = vadd.f32 %v6903, %v7120
  %v7232 = vadd.f32 %v6906, %v7123
  %v7233 = vadd.f32 %v6909, %v7126
  %v7234 = vadd.f32 %v6912, %v7129
  %v7235 = vadd.f32 %v6915, %v7132
  %v7236 = vadd.f32 %v6918, %v7135
  %v7237 = vadd.f32 %v6921, %v7138
  %v7238 = vadd.f32 %v6924, %v7141
  %v7239 = vadd.f32 %v6927, %v7144
  %v7240 = vadd.f32 %v6930, %v7147
  %v7241 = vadd.f32 %v6933, %v7150
  %v7242 = vadd.f32 %v6936, %v7153
  %v7243 = vadd.f32 %v6939, %v7156
  %v7244 = vadd.f32 %v6942, %v7159
  %v7245 = vadd.f32 %v6945, %v7162
  %v7246 = vadd.f32 %v6948, %v7165
  %v7247 = vadd.f32 %v6951, %v7168
  %v7248 = vadd.f32 %v6954, %v7171
  %v7249 = vadd.f32 %v6957, %v7174
  %v7250 = vadd.f32 %v6960, %v7177
  %v7251 = vadd.f32 %v6963, %v7180
  %v7252 = vadd.f32 %v6966, %v7183
  %v7253 = vadd.f32 %v6969, %v7186
  %v7254 = vadd.f32 %v6972, %v7189
  %s7255 = scalar_lea.vmem %s3, 576
  %v7256 = vld [vmem:[%s7255] sm:$0xff]
  %v7257 = vld [vmem:[%s7255 + $0x8] sm:$0xff]
  %v7258 = vld [vmem:[%s7255 + $0x10] sm:$0xff]
  %v7259 = vld [vmem:[%s7255 + $0x18] sm:$0xff]
  %v7261 = vsel %vm2382, %v2359, 0
  %7263 = vmatpush.msra.mxu0 0.0
  %7264 = vmatpush.msra.mxu0 0.0
  %7265 = vmatpush.msra.mxu0 0.0
  %7266 = vmatpush.msra.mxu0 0.0
  %7267 = vmatpush.msra.mxu0 0.0
  %7268 = vmatpush.msra.mxu0 0.0
  %7269 = vmatpush.msra.mxu0 0.0
  %7270 = vmatpush.msra.mxu0 0.0
  %7271 = vmatpush.msra.mxu0 0.0
  %7272 = vmatpush.msra.mxu0 0.0
  %7273 = vmatpush.msra.mxu0 0.0
  %7274 = vmatpush.msra.mxu0 0.0
  %7275 = vmatpush.msra.mxu0 %v7259
  %7276 = vmatpush.msra.mxu0 %v7258
  %7277 = vmatpush.msra.mxu0 %v7257
  %7278 = vmatpush.msra.mxu0 %v7256
  %7279 = vmatmul.f32.gmra.mxu0 %v2462
  %v7280 = vpop.f32.mrf.mxu0
  %v7281 = vadd.f32 0.0, %v7280
  %7282 = vmatmul.f32.gmra.mxu0 %v2465
  %v7283 = vpop.f32.mrf.mxu0
  %v7284 = vadd.f32 0.0, %v7283
  %7285 = vmatmul.f32.gmra.mxu0 %v2468
  %v7286 = vpop.f32.mrf.mxu0
  %v7287 = vadd.f32 0.0, %v7286
  %7288 = vmatmul.f32.gmra.mxu0 %v2471
  %v7289 = vpop.f32.mrf.mxu0
  %v7290 = vadd.f32 0.0, %v7289
  %7291 = vmatmul.f32.gmra.mxu0 %v2474
  %v7292 = vpop.f32.mrf.mxu0
  %v7293 = vadd.f32 0.0, %v7292
  %7294 = vmatmul.f32.gmra.mxu0 %v2477
  %v7295 = vpop.f32.mrf.mxu0
  %v7296 = vadd.f32 0.0, %v7295
  %7297 = vmatmul.f32.gmra.mxu0 %v3032
  %v7298 = vpop.f32.mrf.mxu0
  %v7299 = vadd.f32 0.0, %v7298
  %7300 = vmatmul.f32.gmra.mxu0 %v3334
  %v7301 = vpop.f32.mrf.mxu0
  %v7302 = vadd.f32 0.0, %v7301
  %7303 = vmatmul.f32.gmra.mxu0 %v2486
  %v7304 = vpop.f32.mrf.mxu0
  %v7305 = vadd.f32 0.0, %v7304
  %7306 = vmatmul.f32.gmra.mxu0 %v2489
  %v7307 = vpop.f32.mrf.mxu0
  %v7308 = vadd.f32 0.0, %v7307
  %7309 = vmatmul.f32.gmra.mxu0 %v2492
  %v7310 = vpop.f32.mrf.mxu0
  %v7311 = vadd.f32 0.0, %v7310
  %7312 = vmatmul.f32.gmra.mxu0 %v2495
  %v7313 = vpop.f32.mrf.mxu0
  %v7314 = vadd.f32 0.0, %v7313
  %7315 = vmatmul.f32.gmra.mxu0 %v2498
  %v7316 = vpop.f32.mrf.mxu0
  %v7317 = vadd.f32 0.0, %v7316
  %7318 = vmatmul.f32.gmra.mxu0 %v2501
  %v7319 = vpop.f32.mrf.mxu0
  %v7320 = vadd.f32 0.0, %v7319
  %7321 = vmatmul.f32.gmra.mxu0 %v3035
  %v7322 = vpop.f32.mrf.mxu0
  %v7323 = vadd.f32 0.0, %v7322
  %7324 = vmatmul.f32.gmra.mxu0 %v3337
  %v7325 = vpop.f32.mrf.mxu0
  %v7326 = vadd.f32 0.0, %v7325
  %7327 = vmatmul.f32.gmra.mxu0 %v2510
  %v7328 = vpop.f32.mrf.mxu0
  %v7329 = vadd.f32 0.0, %v7328
  %7330 = vmatmul.f32.gmra.mxu0 %v2513
  %v7331 = vpop.f32.mrf.mxu0
  %v7332 = vadd.f32 0.0, %v7331
  %7333 = vmatmul.f32.gmra.mxu0 %v2516
  %v7334 = vpop.f32.mrf.mxu0
  %v7335 = vadd.f32 0.0, %v7334
  %7336 = vmatmul.f32.gmra.mxu0 %v2519
  %v7337 = vpop.f32.mrf.mxu0
  %v7338 = vadd.f32 0.0, %v7337
  %7339 = vmatmul.f32.gmra.mxu0 %v2522
  %v7340 = vpop.f32.mrf.mxu0
  %v7341 = vadd.f32 0.0, %v7340
  %7342 = vmatmul.f32.gmra.mxu0 %v2525
  %v7343 = vpop.f32.mrf.mxu0
  %v7344 = vadd.f32 0.0, %v7343
  %7345 = vmatmul.f32.gmra.mxu0 %v3038
  %v7346 = vpop.f32.mrf.mxu0
  %v7347 = vadd.f32 0.0, %v7346
  %7348 = vmatmul.f32.gmra.mxu0 %v3340
  %v7349 = vpop.f32.mrf.mxu0
  %v7350 = vadd.f32 0.0, %v7349
  %7351 = vmatmul.f32.gmra.mxu0 %v2534
  %v7352 = vpop.f32.mrf.mxu0
  %v7353 = vadd.f32 0.0, %v7352
  %7354 = vmatmul.f32.gmra.mxu0 %v2537
  %v7355 = vpop.f32.mrf.mxu0
  %v7356 = vadd.f32 0.0, %v7355
  %7357 = vmatmul.f32.gmra.mxu0 %v2540
  %v7358 = vpop.f32.mrf.mxu0
  %v7359 = vadd.f32 0.0, %v7358
  %7360 = vmatmul.f32.gmra.mxu0 %v2543
  %v7361 = vpop.f32.mrf.mxu0
  %v7362 = vadd.f32 0.0, %v7361
  %7363 = vmatmul.f32.gmra.mxu0 %v2546
  %v7364 = vpop.f32.mrf.mxu0
  %v7365 = vadd.f32 0.0, %v7364
  %7366 = vmatmul.f32.gmra.mxu0 %v2549
  %v7367 = vpop.f32.mrf.mxu0
  %v7368 = vadd.f32 0.0, %v7367
  %7369 = vmatmul.f32.gmra.mxu0 %v3041
  %v7370 = vpop.f32.mrf.mxu0
  %v7371 = vadd.f32 0.0, %v7370
  %7372 = vmatmul.f32.gmra.mxu0 %v3343
  %v7373 = vpop.f32.mrf.mxu0
  %v7374 = vadd.f32 0.0, %v7373
  %7375 = vmatmul.f32.gmra.mxu0 %v2558
  %v7376 = vpop.f32.mrf.mxu0
  %v7377 = vadd.f32 0.0, %v7376
  %7378 = vmatmul.f32.gmra.mxu0 %v2561
  %v7379 = vpop.f32.mrf.mxu0
  %v7380 = vadd.f32 0.0, %v7379
  %7381 = vmatmul.f32.gmra.mxu0 %v2564
  %v7382 = vpop.f32.mrf.mxu0
  %v7383 = vadd.f32 0.0, %v7382
  %7384 = vmatmul.f32.gmra.mxu0 %v2567
  %v7385 = vpop.f32.mrf.mxu0
  %v7386 = vadd.f32 0.0, %v7385
  %7387 = vmatmul.f32.gmra.mxu0 %v2570
  %v7388 = vpop.f32.mrf.mxu0
  %v7389 = vadd.f32 0.0, %v7388
  %7390 = vmatmul.f32.gmra.mxu0 %v2573
  %v7391 = vpop.f32.mrf.mxu0
  %v7392 = vadd.f32 0.0, %v7391
  %7393 = vmatmul.f32.gmra.mxu0 %v3044
  %v7394 = vpop.f32.mrf.mxu0
  %v7395 = vadd.f32 0.0, %v7394
  %7396 = vmatmul.f32.gmra.mxu0 %v3346
  %v7397 = vpop.f32.mrf.mxu0
  %v7398 = vadd.f32 0.0, %v7397
  %7399 = vmatmul.f32.gmra.mxu0 %v3940
  %v7400 = vpop.f32.mrf.mxu0
  %v7401 = vadd.f32 0.0, %v7400
  %7402 = vmatmul.f32.gmra.mxu0 %v3943
  %v7403 = vpop.f32.mrf.mxu0
  %v7404 = vadd.f32 0.0, %v7403
  %7405 = vmatmul.f32.gmra.mxu0 %v3946
  %v7406 = vpop.f32.mrf.mxu0
  %v7407 = vadd.f32 0.0, %v7406
  %7408 = vmatmul.f32.gmra.mxu0 %v3949
  %v7409 = vpop.f32.mrf.mxu0
  %v7410 = vadd.f32 0.0, %v7409
  %7411 = vmatmul.f32.gmra.mxu0 %v3952
  %v7412 = vpop.f32.mrf.mxu0
  %v7413 = vadd.f32 0.0, %v7412
  %7414 = vmatmul.f32.gmra.mxu0 %v3955
  %v7415 = vpop.f32.mrf.mxu0
  %v7416 = vadd.f32 0.0, %v7415
  %7417 = vmatmul.f32.gmra.mxu0 %v4384
  %v7418 = vpop.f32.mrf.mxu0
  %v7419 = vadd.f32 0.0, %v7418
  %7420 = vmatmul.f32.gmra.mxu0 %v4665
  %v7421 = vpop.f32.mrf.mxu0
  %v7422 = vadd.f32 0.0, %v7421
  %7423 = vmatmul.f32.gmra.mxu0 %v5238
  %v7424 = vpop.f32.mrf.mxu0
  %v7425 = vadd.f32 0.0, %v7424
  %7426 = vmatmul.f32.gmra.mxu0 %v5241
  %v7427 = vpop.f32.mrf.mxu0
  %v7428 = vadd.f32 0.0, %v7427
  %7429 = vmatmul.f32.gmra.mxu0 %v5244
  %v7430 = vpop.f32.mrf.mxu0
  %v7431 = vadd.f32 0.0, %v7430
  %7432 = vmatmul.f32.gmra.mxu0 %v5247
  %v7433 = vpop.f32.mrf.mxu0
  %v7434 = vadd.f32 0.0, %v7433
  %7435 = vmatmul.f32.gmra.mxu0 %v5250
  %v7436 = vpop.f32.mrf.mxu0
  %v7437 = vadd.f32 0.0, %v7436
  %7438 = vmatmul.f32.gmra.mxu0 %v5253
  %v7439 = vpop.f32.mrf.mxu0
  %v7440 = vadd.f32 0.0, %v7439
  %7441 = vmatmul.f32.gmra.mxu0 %v5682
  %v7442 = vpop.f32.mrf.mxu0
  %v7443 = vadd.f32 0.0, %v7442
  %7444 = vmatmul.f32.gmra.mxu0 %v5963
  %v7445 = vpop.f32.mrf.mxu0
  %v7446 = vadd.f32 0.0, %v7445
  %7447 = vmatmul.f32.gmra.mxu0 %v6536
  %v7448 = vpop.f32.mrf.mxu0
  %v7449 = vadd.f32 0.0, %v7448
  %7450 = vmatmul.f32.gmra.mxu0 %v6539
  %v7451 = vpop.f32.mrf.mxu0
  %v7452 = vadd.f32 0.0, %v7451
  %7453 = vmatmul.f32.gmra.mxu0 %v6542
  %v7454 = vpop.f32.mrf.mxu0
  %v7455 = vadd.f32 0.0, %v7454
  %7456 = vmatmul.f32.gmra.mxu0 %v6545
  %v7457 = vpop.f32.mrf.mxu0
  %v7458 = vadd.f32 0.0, %v7457
  %7459 = vmatmul.f32.gmra.mxu0 %v6548
  %v7460 = vpop.f32.mrf.mxu0
  %v7461 = vadd.f32 0.0, %v7460
  %7462 = vmatmul.f32.gmra.mxu0 %v6551
  %v7463 = vpop.f32.mrf.mxu0
  %v7464 = vadd.f32 0.0, %v7463
  %7465 = vmatmul.f32.gmra.mxu0 %v6980
  %v7466 = vpop.f32.mrf.mxu0
  %v7467 = vadd.f32 0.0, %v7466
  %7468 = vmatmul.f32.gmra.mxu0 %v7261
  %v7469 = vpop.f32.mrf.mxu0
  %v7470 = vadd.f32 0.0, %v7469
  %7471 = vdwg.mxu0
  %v7472 = vadd.f32 %v7191, %v7281
  %v7473 = vadd.f32 %v7192, %v7284
  %v7474 = vadd.f32 %v7193, %v7287
  %v7475 = vadd.f32 %v7194, %v7290
  %v7476 = vadd.f32 %v7195, %v7293
  %v7477 = vadd.f32 %v7196, %v7296
  %v7478 = vadd.f32 %v7197, %v7299
  %v7479 = vadd.f32 %v7198, %v7302
  %v7480 = vadd.f32 %v7199, %v7305
  %v7481 = vadd.f32 %v7200, %v7308
  %v7482 = vadd.f32 %v7201, %v7311
  %v7483 = vadd.f32 %v7202, %v7314
  %v7484 = vadd.f32 %v7203, %v7317
  %v7485 = vadd.f32 %v7204, %v7320
  %v7486 = vadd.f32 %v7205, %v7323
  %v7487 = vadd.f32 %v7206, %v7326
  %v7488 = vadd.f32 %v7207, %v7329
  %v7489 = vadd.f32 %v7208, %v7332
  %v7490 = vadd.f32 %v7209, %v7335
  %v7491 = vadd.f32 %v7210, %v7338
  %v7492 = vadd.f32 %v7211, %v7341
  %v7493 = vadd.f32 %v7212, %v7344
  %v7494 = vadd.f32 %v7213, %v7347
  %v7495 = vadd.f32 %v7214, %v7350
  %v7496 = vadd.f32 %v7215, %v7353
  %v7497 = vadd.f32 %v7216, %v7356
  %v7498 = vadd.f32 %v7217, %v7359
  %v7499 = vadd.f32 %v7218, %v7362
  %v7500 = vadd.f32 %v7219, %v7365
  %v7501 = vadd.f32 %v7220, %v7368
  %v7502 = vadd.f32 %v7221, %v7371
  %v7503 = vadd.f32 %v7222, %v7374
  %v7504 = vadd.f32 %v7223, %v7377
  %v7505 = vadd.f32 %v7224, %v7380
  %v7506 = vadd.f32 %v7225, %v7383
  %v7507 = vadd.f32 %v7226, %v7386
  %v7508 = vadd.f32 %v7227, %v7389
  %v7509 = vadd.f32 %v7228, %v7392
  %v7510 = vadd.f32 %v7229, %v7395
  %v7511 = vadd.f32 %v7230, %v7398
  %v7512 = vadd.f32 %v7231, %v7401
  %v7513 = vadd.f32 %v7232, %v7404
  %v7514 = vadd.f32 %v7233, %v7407
  %v7515 = vadd.f32 %v7234, %v7410
  %v7516 = vadd.f32 %v7235, %v7413
  %v7517 = vadd.f32 %v7236, %v7416
  %v7518 = vadd.f32 %v7237, %v7419
  %v7519 = vadd.f32 %v7238, %v7422
  %v7520 = vadd.f32 %v7239, %v7425
  %v7521 = vadd.f32 %v7240, %v7428
  %v7522 = vadd.f32 %v7241, %v7431
  %v7523 = vadd.f32 %v7242, %v7434
  %v7524 = vadd.f32 %v7243, %v7437
  %v7525 = vadd.f32 %v7244, %v7440
  %v7526 = vadd.f32 %v7245, %v7443
  %v7527 = vadd.f32 %v7246, %v7446
  %v7528 = vadd.f32 %v7247, %v7449
  %v7529 = vadd.f32 %v7248, %v7452
  %v7530 = vadd.f32 %v7249, %v7455
  %v7531 = vadd.f32 %v7250, %v7458
  %v7532 = vadd.f32 %v7251, %v7461
  %v7533 = vadd.f32 %v7252, %v7464
  %v7534 = vadd.f32 %v7253, %v7467
  %v7535 = vadd.f32 %v7254, %v7470
  %s7536 = scalar_lea.vmem %s3, 608
  %v7537 = vld [vmem:[%s7536] sm:$0xff]
  %v7538 = vld [vmem:[%s7536 + $0x8] sm:$0xff]
  %v7539 = vld [vmem:[%s7536 + $0x10] sm:$0xff]
  %v7540 = vld [vmem:[%s7536 + $0x18] sm:$0xff]
  %v7542 = vsel %vm2382, %v2360, 0
  %7544 = vmatpush.msra.mxu0 0.0
  %7545 = vmatpush.msra.mxu0 0.0
  %7546 = vmatpush.msra.mxu0 0.0
  %7547 = vmatpush.msra.mxu0 0.0
  %7548 = vmatpush.msra.mxu0 0.0
  %7549 = vmatpush.msra.mxu0 0.0
  %7550 = vmatpush.msra.mxu0 0.0
  %7551 = vmatpush.msra.mxu0 0.0
  %7552 = vmatpush.msra.mxu0 0.0
  %7553 = vmatpush.msra.mxu0 0.0
  %7554 = vmatpush.msra.mxu0 0.0
  %7555 = vmatpush.msra.mxu0 0.0
  %7556 = vmatpush.msra.mxu0 %v7540
  %7557 = vmatpush.msra.mxu0 %v7539
  %7558 = vmatpush.msra.mxu0 %v7538
  %7559 = vmatpush.msra.mxu0 %v7537
  %7560 = vmatmul.f32.gmra.mxu0 %v2465
  %v7561 = vpop.f32.mrf.mxu0
  %v7562 = vadd.f32 0.0, %v7561
  %7563 = vmatmul.f32.gmra.mxu0 %v2468
  %v7564 = vpop.f32.mrf.mxu0
  %v7565 = vadd.f32 0.0, %v7564
  %7566 = vmatmul.f32.gmra.mxu0 %v2471
  %v7567 = vpop.f32.mrf.mxu0
  %v7568 = vadd.f32 0.0, %v7567
  %7569 = vmatmul.f32.gmra.mxu0 %v2474
  %v7570 = vpop.f32.mrf.mxu0
  %v7571 = vadd.f32 0.0, %v7570
  %7572 = vmatmul.f32.gmra.mxu0 %v2477
  %v7573 = vpop.f32.mrf.mxu0
  %v7574 = vadd.f32 0.0, %v7573
  %7575 = vmatmul.f32.gmra.mxu0 %v3032
  %v7576 = vpop.f32.mrf.mxu0
  %v7577 = vadd.f32 0.0, %v7576
  %7578 = vmatmul.f32.gmra.mxu0 %v3334
  %v7579 = vpop.f32.mrf.mxu0
  %v7580 = vadd.f32 0.0, %v7579
  %7581 = vmatmul.f32.gmra.mxu0 %v3636
  %v7582 = vpop.f32.mrf.mxu0
  %v7583 = vadd.f32 0.0, %v7582
  %7584 = vmatmul.f32.gmra.mxu0 %v2489
  %v7585 = vpop.f32.mrf.mxu0
  %v7586 = vadd.f32 0.0, %v7585
  %7587 = vmatmul.f32.gmra.mxu0 %v2492
  %v7588 = vpop.f32.mrf.mxu0
  %v7589 = vadd.f32 0.0, %v7588
  %7590 = vmatmul.f32.gmra.mxu0 %v2495
  %v7591 = vpop.f32.mrf.mxu0
  %v7592 = vadd.f32 0.0, %v7591
  %7593 = vmatmul.f32.gmra.mxu0 %v2498
  %v7594 = vpop.f32.mrf.mxu0
  %v7595 = vadd.f32 0.0, %v7594
  %7596 = vmatmul.f32.gmra.mxu0 %v2501
  %v7597 = vpop.f32.mrf.mxu0
  %v7598 = vadd.f32 0.0, %v7597
  %7599 = vmatmul.f32.gmra.mxu0 %v3035
  %v7600 = vpop.f32.mrf.mxu0
  %v7601 = vadd.f32 0.0, %v7600
  %7602 = vmatmul.f32.gmra.mxu0 %v3337
  %v7603 = vpop.f32.mrf.mxu0
  %v7604 = vadd.f32 0.0, %v7603
  %7605 = vmatmul.f32.gmra.mxu0 %v3639
  %v7606 = vpop.f32.mrf.mxu0
  %v7607 = vadd.f32 0.0, %v7606
  %7608 = vmatmul.f32.gmra.mxu0 %v2513
  %v7609 = vpop.f32.mrf.mxu0
  %v7610 = vadd.f32 0.0, %v7609
  %7611 = vmatmul.f32.gmra.mxu0 %v2516
  %v7612 = vpop.f32.mrf.mxu0
  %v7613 = vadd.f32 0.0, %v7612
  %7614 = vmatmul.f32.gmra.mxu0 %v2519
  %v7615 = vpop.f32.mrf.mxu0
  %v7616 = vadd.f32 0.0, %v7615
  %7617 = vmatmul.f32.gmra.mxu0 %v2522
  %v7618 = vpop.f32.mrf.mxu0
  %v7619 = vadd.f32 0.0, %v7618
  %7620 = vmatmul.f32.gmra.mxu0 %v2525
  %v7621 = vpop.f32.mrf.mxu0
  %v7622 = vadd.f32 0.0, %v7621
  %7623 = vmatmul.f32.gmra.mxu0 %v3038
  %v7624 = vpop.f32.mrf.mxu0
  %v7625 = vadd.f32 0.0, %v7624
  %7626 = vmatmul.f32.gmra.mxu0 %v3340
  %v7627 = vpop.f32.mrf.mxu0
  %v7628 = vadd.f32 0.0, %v7627
  %7629 = vmatmul.f32.gmra.mxu0 %v3642
  %v7630 = vpop.f32.mrf.mxu0
  %v7631 = vadd.f32 0.0, %v7630
  %7632 = vmatmul.f32.gmra.mxu0 %v2537
  %v7633 = vpop.f32.mrf.mxu0
  %v7634 = vadd.f32 0.0, %v7633
  %7635 = vmatmul.f32.gmra.mxu0 %v2540
  %v7636 = vpop.f32.mrf.mxu0
  %v7637 = vadd.f32 0.0, %v7636
  %7638 = vmatmul.f32.gmra.mxu0 %v2543
  %v7639 = vpop.f32.mrf.mxu0
  %v7640 = vadd.f32 0.0, %v7639
  %7641 = vmatmul.f32.gmra.mxu0 %v2546
  %v7642 = vpop.f32.mrf.mxu0
  %v7643 = vadd.f32 0.0, %v7642
  %7644 = vmatmul.f32.gmra.mxu0 %v2549
  %v7645 = vpop.f32.mrf.mxu0
  %v7646 = vadd.f32 0.0, %v7645
  %7647 = vmatmul.f32.gmra.mxu0 %v3041
  %v7648 = vpop.f32.mrf.mxu0
  %v7649 = vadd.f32 0.0, %v7648
  %7650 = vmatmul.f32.gmra.mxu0 %v3343
  %v7651 = vpop.f32.mrf.mxu0
  %v7652 = vadd.f32 0.0, %v7651
  %7653 = vmatmul.f32.gmra.mxu0 %v3645
  %v7654 = vpop.f32.mrf.mxu0
  %v7655 = vadd.f32 0.0, %v7654
  %7656 = vmatmul.f32.gmra.mxu0 %v2561
  %v7657 = vpop.f32.mrf.mxu0
  %v7658 = vadd.f32 0.0, %v7657
  %7659 = vmatmul.f32.gmra.mxu0 %v2564
  %v7660 = vpop.f32.mrf.mxu0
  %v7661 = vadd.f32 0.0, %v7660
  %7662 = vmatmul.f32.gmra.mxu0 %v2567
  %v7663 = vpop.f32.mrf.mxu0
  %v7664 = vadd.f32 0.0, %v7663
  %7665 = vmatmul.f32.gmra.mxu0 %v2570
  %v7666 = vpop.f32.mrf.mxu0
  %v7667 = vadd.f32 0.0, %v7666
  %7668 = vmatmul.f32.gmra.mxu0 %v2573
  %v7669 = vpop.f32.mrf.mxu0
  %v7670 = vadd.f32 0.0, %v7669
  %7671 = vmatmul.f32.gmra.mxu0 %v3044
  %v7672 = vpop.f32.mrf.mxu0
  %v7673 = vadd.f32 0.0, %v7672
  %7674 = vmatmul.f32.gmra.mxu0 %v3346
  %v7675 = vpop.f32.mrf.mxu0
  %v7676 = vadd.f32 0.0, %v7675
  %7677 = vmatmul.f32.gmra.mxu0 %v3648
  %v7678 = vpop.f32.mrf.mxu0
  %v7679 = vadd.f32 0.0, %v7678
  %7680 = vmatmul.f32.gmra.mxu0 %v3943
  %v7681 = vpop.f32.mrf.mxu0
  %v7682 = vadd.f32 0.0, %v7681
  %7683 = vmatmul.f32.gmra.mxu0 %v3946
  %v7684 = vpop.f32.mrf.mxu0
  %v7685 = vadd.f32 0.0, %v7684
  %7686 = vmatmul.f32.gmra.mxu0 %v3949
  %v7687 = vpop.f32.mrf.mxu0
  %v7688 = vadd.f32 0.0, %v7687
  %7689 = vmatmul.f32.gmra.mxu0 %v3952
  %v7690 = vpop.f32.mrf.mxu0
  %v7691 = vadd.f32 0.0, %v7690
  %7692 = vmatmul.f32.gmra.mxu0 %v3955
  %v7693 = vpop.f32.mrf.mxu0
  %v7694 = vadd.f32 0.0, %v7693
  %7695 = vmatmul.f32.gmra.mxu0 %v4384
  %v7696 = vpop.f32.mrf.mxu0
  %v7697 = vadd.f32 0.0, %v7696
  %7698 = vmatmul.f32.gmra.mxu0 %v4665
  %v7699 = vpop.f32.mrf.mxu0
  %v7700 = vadd.f32 0.0, %v7699
  %7701 = vmatmul.f32.gmra.mxu0 %v4946
  %v7702 = vpop.f32.mrf.mxu0
  %v7703 = vadd.f32 0.0, %v7702
  %7704 = vmatmul.f32.gmra.mxu0 %v5241
  %v7705 = vpop.f32.mrf.mxu0
  %v7706 = vadd.f32 0.0, %v7705
  %7707 = vmatmul.f32.gmra.mxu0 %v5244
  %v7708 = vpop.f32.mrf.mxu0
  %v7709 = vadd.f32 0.0, %v7708
  %7710 = vmatmul.f32.gmra.mxu0 %v5247
  %v7711 = vpop.f32.mrf.mxu0
  %v7712 = vadd.f32 0.0, %v7711
  %7713 = vmatmul.f32.gmra.mxu0 %v5250
  %v7714 = vpop.f32.mrf.mxu0
  %v7715 = vadd.f32 0.0, %v7714
  %7716 = vmatmul.f32.gmra.mxu0 %v5253
  %v7717 = vpop.f32.mrf.mxu0
  %v7718 = vadd.f32 0.0, %v7717
  %7719 = vmatmul.f32.gmra.mxu0 %v5682
  %v7720 = vpop.f32.mrf.mxu0
  %v7721 = vadd.f32 0.0, %v7720
  %7722 = vmatmul.f32.gmra.mxu0 %v5963
  %v7723 = vpop.f32.mrf.mxu0
  %v7724 = vadd.f32 0.0, %v7723
  %7725 = vmatmul.f32.gmra.mxu0 %v6244
  %v7726 = vpop.f32.mrf.mxu0
  %v7727 = vadd.f32 0.0, %v7726
  %7728 = vmatmul.f32.gmra.mxu0 %v6539
  %v7729 = vpop.f32.mrf.mxu0
  %v7730 = vadd.f32 0.0, %v7729
  %7731 = vmatmul.f32.gmra.mxu0 %v6542
  %v7732 = vpop.f32.mrf.mxu0
  %v7733 = vadd.f32 0.0, %v7732
  %7734 = vmatmul.f32.gmra.mxu0 %v6545
  %v7735 = vpop.f32.mrf.mxu0
  %v7736 = vadd.f32 0.0, %v7735
  %7737 = vmatmul.f32.gmra.mxu0 %v6548
  %v7738 = vpop.f32.mrf.mxu0
  %v7739 = vadd.f32 0.0, %v7738
  %7740 = vmatmul.f32.gmra.mxu0 %v6551
  %v7741 = vpop.f32.mrf.mxu0
  %v7742 = vadd.f32 0.0, %v7741
  %7743 = vmatmul.f32.gmra.mxu0 %v6980
  %v7744 = vpop.f32.mrf.mxu0
  %v7745 = vadd.f32 0.0, %v7744
  %7746 = vmatmul.f32.gmra.mxu0 %v7261
  %v7747 = vpop.f32.mrf.mxu0
  %v7748 = vadd.f32 0.0, %v7747
  %7749 = vmatmul.f32.gmra.mxu0 %v7542
  %v7750 = vpop.f32.mrf.mxu0
  %v7751 = vadd.f32 0.0, %v7750
  %7752 = vdwg.mxu0
  %v7753 = vadd.f32 %v7472, %v7562
  %v7754 = vadd.f32 %v7473, %v7565
  %v7755 = vadd.f32 %v7474, %v7568
  %v7756 = vadd.f32 %v7475, %v7571
  %v7757 = vadd.f32 %v7476, %v7574
  %v7758 = vadd.f32 %v7477, %v7577
  %v7759 = vadd.f32 %v7478, %v7580
  %v7760 = vadd.f32 %v7479, %v7583
  %v7761 = vadd.f32 %v7480, %v7586
  %v7762 = vadd.f32 %v7481, %v7589
  %v7763 = vadd.f32 %v7482, %v7592
  %v7764 = vadd.f32 %v7483, %v7595
  %v7765 = vadd.f32 %v7484, %v7598
  %v7766 = vadd.f32 %v7485, %v7601
  %v7767 = vadd.f32 %v7486, %v7604
  %v7768 = vadd.f32 %v7487, %v7607
  %v7769 = vadd.f32 %v7488, %v7610
  %v7770 = vadd.f32 %v7489, %v7613
  %v7771 = vadd.f32 %v7490, %v7616
  %v7772 = vadd.f32 %v7491, %v7619
  %v7773 = vadd.f32 %v7492, %v7622
  %v7774 = vadd.f32 %v7493, %v7625
  %v7775 = vadd.f32 %v7494, %v7628
  %v7776 = vadd.f32 %v7495, %v7631
  %v7777 = vadd.f32 %v7496, %v7634
  %v7778 = vadd.f32 %v7497, %v7637
  %v7779 = vadd.f32 %v7498, %v7640
  %v7780 = vadd.f32 %v7499, %v7643
  %v7781 = vadd.f32 %v7500, %v7646
  %v7782 = vadd.f32 %v7501, %v7649
  %v7783 = vadd.f32 %v7502, %v7652
  %v7784 = vadd.f32 %v7503, %v7655
  %v7785 = vadd.f32 %v7504, %v7658
  %v7786 = vadd.f32 %v7505, %v7661
  %v7787 = vadd.f32 %v7506, %v7664
  %v7788 = vadd.f32 %v7507, %v7667
  %v7789 = vadd.f32 %v7508, %v7670
  %v7790 = vadd.f32 %v7509, %v7673
  %v7791 = vadd.f32 %v7510, %v7676
  %v7792 = vadd.f32 %v7511, %v7679
  %v7793 = vadd.f32 %v7512, %v7682
  %v7794 = vadd.f32 %v7513, %v7685
  %v7795 = vadd.f32 %v7514, %v7688
  %v7796 = vadd.f32 %v7515, %v7691
  %v7797 = vadd.f32 %v7516, %v7694
  %v7798 = vadd.f32 %v7517, %v7697
  %v7799 = vadd.f32 %v7518, %v7700
  %v7800 = vadd.f32 %v7519, %v7703
  %v7801 = vadd.f32 %v7520, %v7706
  %v7802 = vadd.f32 %v7521, %v7709
  %v7803 = vadd.f32 %v7522, %v7712
  %v7804 = vadd.f32 %v7523, %v7715
  %v7805 = vadd.f32 %v7524, %v7718
  %v7806 = vadd.f32 %v7525, %v7721
  %v7807 = vadd.f32 %v7526, %v7724
  %v7808 = vadd.f32 %v7527, %v7727
  %v7809 = vadd.f32 %v7528, %v7730
  %v7810 = vadd.f32 %v7529, %v7733
  %v7811 = vadd.f32 %v7530, %v7736
  %v7812 = vadd.f32 %v7531, %v7739
  %v7813 = vadd.f32 %v7532, %v7742
  %v7814 = vadd.f32 %v7533, %v7745
  %v7815 = vadd.f32 %v7534, %v7748
  %v7816 = vadd.f32 %v7535, %v7751
  %s7817 = scalar_lea.vmem %s3, 640
  %v7818 = vld [vmem:[%s7817] sm:$0xff]
  %v7819 = vld [vmem:[%s7817 + $0x8] sm:$0xff]
  %v7820 = vld [vmem:[%s7817 + $0x10] sm:$0xff]
  %v7821 = vld [vmem:[%s7817 + $0x18] sm:$0xff]
  %s7822 = scalar_lea.vmem %s3, 672
  %v7823 = vld [vmem:[%s7822] sm:$0xff]
  %v7824 = vld [vmem:[%s7822 + $0x8] sm:$0xff]
  %v7825 = vld [vmem:[%s7822 + $0x10] sm:$0xff]
  %v7826 = vld [vmem:[%s7822 + $0x18] sm:$0xff]
  %v7828 = vsel %vm2382, %v2362, 0
  %v7831 = vsel %vm2382, %v2363, 0
  %v7834 = vsel %vm2382, %v2364, 0
  %v7837 = vsel %vm2382, %v2365, 0
  %v7840 = vsel %vm2382, %v2366, 0
  %v7843 = vsel %vm2382, %v2367, 0
  %v7846 = vsel %vm2382, %v2368, 0
  %v7849 = vsel %vm2382, %v2369, 0
  %7851 = vmatpush.msra.mxu0 0.0
  %7852 = vmatpush.msra.mxu0 0.0
  %7853 = vmatpush.msra.mxu0 0.0
  %7854 = vmatpush.msra.mxu0 0.0
  %7855 = vmatpush.msra.mxu0 0.0
  %7856 = vmatpush.msra.mxu0 0.0
  %7857 = vmatpush.msra.mxu0 0.0
  %7858 = vmatpush.msra.mxu0 0.0
  %7859 = vmatpush.msra.mxu0 0.0
  %7860 = vmatpush.msra.mxu0 0.0
  %7861 = vmatpush.msra.mxu0 0.0
  %7862 = vmatpush.msra.mxu0 0.0
  %7863 = vmatpush.msra.mxu0 %v7826
  %7864 = vmatpush.msra.mxu0 %v7825
  %7865 = vmatpush.msra.mxu0 %v7824
  %7866 = vmatpush.msra.mxu0 %v7823
  %7867 = vmatmul.f32.gmra.mxu0 %v2480
  %v7868 = vpop.f32.mrf.mxu0
  %v7869 = vadd.f32 0.0, %v7868
  %7870 = vmatmul.f32.gmra.mxu0 %v2483
  %v7871 = vpop.f32.mrf.mxu0
  %v7872 = vadd.f32 0.0, %v7871
  %7873 = vmatmul.f32.gmra.mxu0 %v2486
  %v7874 = vpop.f32.mrf.mxu0
  %v7875 = vadd.f32 0.0, %v7874
  %7876 = vmatmul.f32.gmra.mxu0 %v2489
  %v7877 = vpop.f32.mrf.mxu0
  %v7878 = vadd.f32 0.0, %v7877
  %7879 = vmatmul.f32.gmra.mxu0 %v2492
  %v7880 = vpop.f32.mrf.mxu0
  %v7881 = vadd.f32 0.0, %v7880
  %7882 = vmatmul.f32.gmra.mxu0 %v2495
  %v7883 = vpop.f32.mrf.mxu0
  %v7884 = vadd.f32 0.0, %v7883
  %7885 = vmatmul.f32.gmra.mxu0 %v2498
  %v7886 = vpop.f32.mrf.mxu0
  %v7887 = vadd.f32 0.0, %v7886
  %7888 = vmatmul.f32.gmra.mxu0 %v2501
  %v7889 = vpop.f32.mrf.mxu0
  %v7890 = vadd.f32 0.0, %v7889
  %7891 = vmatmul.f32.gmra.mxu0 %v2504
  %v7892 = vpop.f32.mrf.mxu0
  %v7893 = vadd.f32 0.0, %v7892
  %7894 = vmatmul.f32.gmra.mxu0 %v2507
  %v7895 = vpop.f32.mrf.mxu0
  %v7896 = vadd.f32 0.0, %v7895
  %7897 = vmatmul.f32.gmra.mxu0 %v2510
  %v7898 = vpop.f32.mrf.mxu0
  %v7899 = vadd.f32 0.0, %v7898
  %7900 = vmatmul.f32.gmra.mxu0 %v2513
  %v7901 = vpop.f32.mrf.mxu0
  %v7902 = vadd.f32 0.0, %v7901
  %7903 = vmatmul.f32.gmra.mxu0 %v2516
  %v7904 = vpop.f32.mrf.mxu0
  %v7905 = vadd.f32 0.0, %v7904
  %7906 = vmatmul.f32.gmra.mxu0 %v2519
  %v7907 = vpop.f32.mrf.mxu0
  %v7908 = vadd.f32 0.0, %v7907
  %7909 = vmatmul.f32.gmra.mxu0 %v2522
  %v7910 = vpop.f32.mrf.mxu0
  %v7911 = vadd.f32 0.0, %v7910
  %7912 = vmatmul.f32.gmra.mxu0 %v2525
  %v7913 = vpop.f32.mrf.mxu0
  %v7914 = vadd.f32 0.0, %v7913
  %7915 = vmatmul.f32.gmra.mxu0 %v2528
  %v7916 = vpop.f32.mrf.mxu0
  %v7917 = vadd.f32 0.0, %v7916
  %7918 = vmatmul.f32.gmra.mxu0 %v2531
  %v7919 = vpop.f32.mrf.mxu0
  %v7920 = vadd.f32 0.0, %v7919
  %7921 = vmatmul.f32.gmra.mxu0 %v2534
  %v7922 = vpop.f32.mrf.mxu0
  %v7923 = vadd.f32 0.0, %v7922
  %7924 = vmatmul.f32.gmra.mxu0 %v2537
  %v7925 = vpop.f32.mrf.mxu0
  %v7926 = vadd.f32 0.0, %v7925
  %7927 = vmatmul.f32.gmra.mxu0 %v2540
  %v7928 = vpop.f32.mrf.mxu0
  %v7929 = vadd.f32 0.0, %v7928
  %7930 = vmatmul.f32.gmra.mxu0 %v2543
  %v7931 = vpop.f32.mrf.mxu0
  %v7932 = vadd.f32 0.0, %v7931
  %7933 = vmatmul.f32.gmra.mxu0 %v2546
  %v7934 = vpop.f32.mrf.mxu0
  %v7935 = vadd.f32 0.0, %v7934
  %7936 = vmatmul.f32.gmra.mxu0 %v2549
  %v7937 = vpop.f32.mrf.mxu0
  %v7938 = vadd.f32 0.0, %v7937
  %7939 = vmatmul.f32.gmra.mxu0 %v2552
  %v7940 = vpop.f32.mrf.mxu0
  %v7941 = vadd.f32 0.0, %v7940
  %7942 = vmatmul.f32.gmra.mxu0 %v2555
  %v7943 = vpop.f32.mrf.mxu0
  %v7944 = vadd.f32 0.0, %v7943
  %7945 = vmatmul.f32.gmra.mxu0 %v2558
  %v7946 = vpop.f32.mrf.mxu0
  %v7947 = vadd.f32 0.0, %v7946
  %7948 = vmatmul.f32.gmra.mxu0 %v2561
  %v7949 = vpop.f32.mrf.mxu0
  %v7950 = vadd.f32 0.0, %v7949
  %7951 = vmatmul.f32.gmra.mxu0 %v2564
  %v7952 = vpop.f32.mrf.mxu0
  %v7953 = vadd.f32 0.0, %v7952
  %7954 = vmatmul.f32.gmra.mxu0 %v2567
  %v7955 = vpop.f32.mrf.mxu0
  %v7956 = vadd.f32 0.0, %v7955
  %7957 = vmatmul.f32.gmra.mxu0 %v2570
  %v7958 = vpop.f32.mrf.mxu0
  %v7959 = vadd.f32 0.0, %v7958
  %7960 = vmatmul.f32.gmra.mxu0 %v2573
  %v7961 = vpop.f32.mrf.mxu0
  %v7962 = vadd.f32 0.0, %v7961
  %7963 = vmatmul.f32.gmra.mxu0 %v3934
  %v7964 = vpop.f32.mrf.mxu0
  %v7965 = vadd.f32 0.0, %v7964
  %7966 = vmatmul.f32.gmra.mxu0 %v3937
  %v7967 = vpop.f32.mrf.mxu0
  %v7968 = vadd.f32 0.0, %v7967
  %7969 = vmatmul.f32.gmra.mxu0 %v3940
  %v7970 = vpop.f32.mrf.mxu0
  %v7971 = vadd.f32 0.0, %v7970
  %7972 = vmatmul.f32.gmra.mxu0 %v3943
  %v7973 = vpop.f32.mrf.mxu0
  %v7974 = vadd.f32 0.0, %v7973
  %7975 = vmatmul.f32.gmra.mxu0 %v3946
  %v7976 = vpop.f32.mrf.mxu0
  %v7977 = vadd.f32 0.0, %v7976
  %7978 = vmatmul.f32.gmra.mxu0 %v3949
  %v7979 = vpop.f32.mrf.mxu0
  %v7980 = vadd.f32 0.0, %v7979
  %7981 = vmatmul.f32.gmra.mxu0 %v3952
  %v7982 = vpop.f32.mrf.mxu0
  %v7983 = vadd.f32 0.0, %v7982
  %7984 = vmatmul.f32.gmra.mxu0 %v3955
  %v7985 = vpop.f32.mrf.mxu0
  %v7986 = vadd.f32 0.0, %v7985
  %7987 = vmatmul.f32.gmra.mxu0 %v5232
  %v7988 = vpop.f32.mrf.mxu0
  %v7989 = vadd.f32 0.0, %v7988
  %7990 = vmatmul.f32.gmra.mxu0 %v5235
  %v7991 = vpop.f32.mrf.mxu0
  %v7992 = vadd.f32 0.0, %v7991
  %7993 = vmatmul.f32.gmra.mxu0 %v5238
  %v7994 = vpop.f32.mrf.mxu0
  %v7995 = vadd.f32 0.0, %v7994
  %7996 = vmatmul.f32.gmra.mxu0 %v5241
  %v7997 = vpop.f32.mrf.mxu0
  %v7998 = vadd.f32 0.0, %v7997
  %7999 = vmatmul.f32.gmra.mxu0 %v5244
  %v8000 = vpop.f32.mrf.mxu0
  %v8001 = vadd.f32 0.0, %v8000
  %8002 = vmatmul.f32.gmra.mxu0 %v5247
  %v8003 = vpop.f32.mrf.mxu0
  %v8004 = vadd.f32 0.0, %v8003
  %8005 = vmatmul.f32.gmra.mxu0 %v5250
  %v8006 = vpop.f32.mrf.mxu0
  %v8007 = vadd.f32 0.0, %v8006
  %8008 = vmatmul.f32.gmra.mxu0 %v5253
  %v8009 = vpop.f32.mrf.mxu0
  %v8010 = vadd.f32 0.0, %v8009
  %8011 = vmatmul.f32.gmra.mxu0 %v6530
  %v8012 = vpop.f32.mrf.mxu0
  %v8013 = vadd.f32 0.0, %v8012
  %8014 = vmatmul.f32.gmra.mxu0 %v6533
  %v8015 = vpop.f32.mrf.mxu0
  %v8016 = vadd.f32 0.0, %v8015
  %8017 = vmatmul.f32.gmra.mxu0 %v6536
  %v8018 = vpop.f32.mrf.mxu0
  %v8019 = vadd.f32 0.0, %v8018
  %8020 = vmatmul.f32.gmra.mxu0 %v6539
  %v8021 = vpop.f32.mrf.mxu0
  %v8022 = vadd.f32 0.0, %v8021
  %8023 = vmatmul.f32.gmra.mxu0 %v6542
  %v8024 = vpop.f32.mrf.mxu0
  %v8025 = vadd.f32 0.0, %v8024
  %8026 = vmatmul.f32.gmra.mxu0 %v6545
  %v8027 = vpop.f32.mrf.mxu0
  %v8028 = vadd.f32 0.0, %v8027
  %8029 = vmatmul.f32.gmra.mxu0 %v6548
  %v8030 = vpop.f32.mrf.mxu0
  %v8031 = vadd.f32 0.0, %v8030
  %8032 = vmatmul.f32.gmra.mxu0 %v6551
  %v8033 = vpop.f32.mrf.mxu0
  %v8034 = vadd.f32 0.0, %v8033
  %8035 = vmatmul.f32.gmra.mxu0 %v7828
  %v8036 = vpop.f32.mrf.mxu0
  %v8037 = vadd.f32 0.0, %v8036
  %8038 = vmatmul.f32.gmra.mxu0 %v7831
  %v8039 = vpop.f32.mrf.mxu0
  %v8040 = vadd.f32 0.0, %v8039
  %8041 = vmatmul.f32.gmra.mxu0 %v7834
  %v8042 = vpop.f32.mrf.mxu0
  %v8043 = vadd.f32 0.0, %v8042
  %8044 = vmatmul.f32.gmra.mxu0 %v7837
  %v8045 = vpop.f32.mrf.mxu0
  %v8046 = vadd.f32 0.0, %v8045
  %8047 = vmatmul.f32.gmra.mxu0 %v7840
  %v8048 = vpop.f32.mrf.mxu0
  %v8049 = vadd.f32 0.0, %v8048
  %8050 = vmatmul.f32.gmra.mxu0 %v7843
  %v8051 = vpop.f32.mrf.mxu0
  %v8052 = vadd.f32 0.0, %v8051
  %8053 = vmatmul.f32.gmra.mxu0 %v7846
  %v8054 = vpop.f32.mrf.mxu0
  %v8055 = vadd.f32 0.0, %v8054
  %8056 = vmatmul.f32.gmra.mxu0 %v7849
  %v8057 = vpop.f32.mrf.mxu0
  %v8058 = vadd.f32 0.0, %v8057
  %8059 = vdwg.mxu0
  %v8061 = vsel %vm2382, %v2361, 0
  %8063 = vmatpush.msra.mxu0 0.0
  %8064 = vmatpush.msra.mxu0 0.0
  %8065 = vmatpush.msra.mxu0 0.0
  %8066 = vmatpush.msra.mxu0 0.0
  %8067 = vmatpush.msra.mxu0 0.0
  %8068 = vmatpush.msra.mxu0 0.0
  %8069 = vmatpush.msra.mxu0 0.0
  %8070 = vmatpush.msra.mxu0 0.0
  %8071 = vmatpush.msra.mxu0 0.0
  %8072 = vmatpush.msra.mxu0 0.0
  %8073 = vmatpush.msra.mxu0 0.0
  %8074 = vmatpush.msra.mxu0 0.0
  %8075 = vmatpush.msra.mxu0 %v7821
  %8076 = vmatpush.msra.mxu0 %v7820
  %8077 = vmatpush.msra.mxu0 %v7819
  %8078 = vmatpush.msra.mxu0 %v7818
  %8079 = vmatmul.f32.gmra.mxu0 %v2797
  %v8080 = vpop.f32.mrf.mxu0
  %v8081 = vadd.f32 %v7869, %v8080
  %8082 = vmatmul.f32.gmra.mxu0 %v2480
  %v8083 = vpop.f32.mrf.mxu0
  %v8084 = vadd.f32 %v7872, %v8083
  %8085 = vmatmul.f32.gmra.mxu0 %v2483
  %v8086 = vpop.f32.mrf.mxu0
  %v8087 = vadd.f32 %v7875, %v8086
  %8088 = vmatmul.f32.gmra.mxu0 %v2486
  %v8089 = vpop.f32.mrf.mxu0
  %v8090 = vadd.f32 %v7878, %v8089
  %8091 = vmatmul.f32.gmra.mxu0 %v2489
  %v8092 = vpop.f32.mrf.mxu0
  %v8093 = vadd.f32 %v7881, %v8092
  %8094 = vmatmul.f32.gmra.mxu0 %v2492
  %v8095 = vpop.f32.mrf.mxu0
  %v8096 = vadd.f32 %v7884, %v8095
  %8097 = vmatmul.f32.gmra.mxu0 %v2495
  %v8098 = vpop.f32.mrf.mxu0
  %v8099 = vadd.f32 %v7887, %v8098
  %8100 = vmatmul.f32.gmra.mxu0 %v2498
  %v8101 = vpop.f32.mrf.mxu0
  %v8102 = vadd.f32 %v7890, %v8101
  %8103 = vmatmul.f32.gmra.mxu0 %v2800
  %v8104 = vpop.f32.mrf.mxu0
  %v8105 = vadd.f32 %v7893, %v8104
  %8106 = vmatmul.f32.gmra.mxu0 %v2504
  %v8107 = vpop.f32.mrf.mxu0
  %v8108 = vadd.f32 %v7896, %v8107
  %8109 = vmatmul.f32.gmra.mxu0 %v2507
  %v8110 = vpop.f32.mrf.mxu0
  %v8111 = vadd.f32 %v7899, %v8110
  %8112 = vmatmul.f32.gmra.mxu0 %v2510
  %v8113 = vpop.f32.mrf.mxu0
  %v8114 = vadd.f32 %v7902, %v8113
  %8115 = vmatmul.f32.gmra.mxu0 %v2513
  %v8116 = vpop.f32.mrf.mxu0
  %v8117 = vadd.f32 %v7905, %v8116
  %8118 = vmatmul.f32.gmra.mxu0 %v2516
  %v8119 = vpop.f32.mrf.mxu0
  %v8120 = vadd.f32 %v7908, %v8119
  %8121 = vmatmul.f32.gmra.mxu0 %v2519
  %v8122 = vpop.f32.mrf.mxu0
  %v8123 = vadd.f32 %v7911, %v8122
  %8124 = vmatmul.f32.gmra.mxu0 %v2522
  %v8125 = vpop.f32.mrf.mxu0
  %v8126 = vadd.f32 %v7914, %v8125
  %8127 = vmatmul.f32.gmra.mxu0 %v2803
  %v8128 = vpop.f32.mrf.mxu0
  %v8129 = vadd.f32 %v7917, %v8128
  %8130 = vmatmul.f32.gmra.mxu0 %v2528
  %v8131 = vpop.f32.mrf.mxu0
  %v8132 = vadd.f32 %v7920, %v8131
  %8133 = vmatmul.f32.gmra.mxu0 %v2531
  %v8134 = vpop.f32.mrf.mxu0
  %v8135 = vadd.f32 %v7923, %v8134
  %8136 = vmatmul.f32.gmra.mxu0 %v2534
  %v8137 = vpop.f32.mrf.mxu0
  %v8138 = vadd.f32 %v7926, %v8137
  %8139 = vmatmul.f32.gmra.mxu0 %v2537
  %v8140 = vpop.f32.mrf.mxu0
  %v8141 = vadd.f32 %v7929, %v8140
  %8142 = vmatmul.f32.gmra.mxu0 %v2540
  %v8143 = vpop.f32.mrf.mxu0
  %v8144 = vadd.f32 %v7932, %v8143
  %8145 = vmatmul.f32.gmra.mxu0 %v2543
  %v8146 = vpop.f32.mrf.mxu0
  %v8147 = vadd.f32 %v7935, %v8146
  %8148 = vmatmul.f32.gmra.mxu0 %v2546
  %v8149 = vpop.f32.mrf.mxu0
  %v8150 = vadd.f32 %v7938, %v8149
  %8151 = vmatmul.f32.gmra.mxu0 %v2806
  %v8152 = vpop.f32.mrf.mxu0
  %v8153 = vadd.f32 %v7941, %v8152
  %8154 = vmatmul.f32.gmra.mxu0 %v2552
  %v8155 = vpop.f32.mrf.mxu0
  %v8156 = vadd.f32 %v7944, %v8155
  %8157 = vmatmul.f32.gmra.mxu0 %v2555
  %v8158 = vpop.f32.mrf.mxu0
  %v8159 = vadd.f32 %v7947, %v8158
  %8160 = vmatmul.f32.gmra.mxu0 %v2558
  %v8161 = vpop.f32.mrf.mxu0
  %v8162 = vadd.f32 %v7950, %v8161
  %8163 = vmatmul.f32.gmra.mxu0 %v2561
  %v8164 = vpop.f32.mrf.mxu0
  %v8165 = vadd.f32 %v7953, %v8164
  %8166 = vmatmul.f32.gmra.mxu0 %v2564
  %v8167 = vpop.f32.mrf.mxu0
  %v8168 = vadd.f32 %v7956, %v8167
  %8169 = vmatmul.f32.gmra.mxu0 %v2567
  %v8170 = vpop.f32.mrf.mxu0
  %v8171 = vadd.f32 %v7959, %v8170
  %8172 = vmatmul.f32.gmra.mxu0 %v2570
  %v8173 = vpop.f32.mrf.mxu0
  %v8174 = vadd.f32 %v7962, %v8173
  %8175 = vmatmul.f32.gmra.mxu0 %v4167
  %v8176 = vpop.f32.mrf.mxu0
  %v8177 = vadd.f32 %v7965, %v8176
  %8178 = vmatmul.f32.gmra.mxu0 %v3934
  %v8179 = vpop.f32.mrf.mxu0
  %v8180 = vadd.f32 %v7968, %v8179
  %8181 = vmatmul.f32.gmra.mxu0 %v3937
  %v8182 = vpop.f32.mrf.mxu0
  %v8183 = vadd.f32 %v7971, %v8182
  %8184 = vmatmul.f32.gmra.mxu0 %v3940
  %v8185 = vpop.f32.mrf.mxu0
  %v8186 = vadd.f32 %v7974, %v8185
  %8187 = vmatmul.f32.gmra.mxu0 %v3943
  %v8188 = vpop.f32.mrf.mxu0
  %v8189 = vadd.f32 %v7977, %v8188
  %8190 = vmatmul.f32.gmra.mxu0 %v3946
  %v8191 = vpop.f32.mrf.mxu0
  %v8192 = vadd.f32 %v7980, %v8191
  %8193 = vmatmul.f32.gmra.mxu0 %v3949
  %v8194 = vpop.f32.mrf.mxu0
  %v8195 = vadd.f32 %v7983, %v8194
  %8196 = vmatmul.f32.gmra.mxu0 %v3952
  %v8197 = vpop.f32.mrf.mxu0
  %v8198 = vadd.f32 %v7986, %v8197
  %8199 = vmatmul.f32.gmra.mxu0 %v5465
  %v8200 = vpop.f32.mrf.mxu0
  %v8201 = vadd.f32 %v7989, %v8200
  %8202 = vmatmul.f32.gmra.mxu0 %v5232
  %v8203 = vpop.f32.mrf.mxu0
  %v8204 = vadd.f32 %v7992, %v8203
  %8205 = vmatmul.f32.gmra.mxu0 %v5235
  %v8206 = vpop.f32.mrf.mxu0
  %v8207 = vadd.f32 %v7995, %v8206
  %8208 = vmatmul.f32.gmra.mxu0 %v5238
  %v8209 = vpop.f32.mrf.mxu0
  %v8210 = vadd.f32 %v7998, %v8209
  %8211 = vmatmul.f32.gmra.mxu0 %v5241
  %v8212 = vpop.f32.mrf.mxu0
  %v8213 = vadd.f32 %v8001, %v8212
  %8214 = vmatmul.f32.gmra.mxu0 %v5244
  %v8215 = vpop.f32.mrf.mxu0
  %v8216 = vadd.f32 %v8004, %v8215
  %8217 = vmatmul.f32.gmra.mxu0 %v5247
  %v8218 = vpop.f32.mrf.mxu0
  %v8219 = vadd.f32 %v8007, %v8218
  %8220 = vmatmul.f32.gmra.mxu0 %v5250
  %v8221 = vpop.f32.mrf.mxu0
  %v8222 = vadd.f32 %v8010, %v8221
  %8223 = vmatmul.f32.gmra.mxu0 %v6763
  %v8224 = vpop.f32.mrf.mxu0
  %v8225 = vadd.f32 %v8013, %v8224
  %8226 = vmatmul.f32.gmra.mxu0 %v6530
  %v8227 = vpop.f32.mrf.mxu0
  %v8228 = vadd.f32 %v8016, %v8227
  %8229 = vmatmul.f32.gmra.mxu0 %v6533
  %v8230 = vpop.f32.mrf.mxu0
  %v8231 = vadd.f32 %v8019, %v8230
  %8232 = vmatmul.f32.gmra.mxu0 %v6536
  %v8233 = vpop.f32.mrf.mxu0
  %v8234 = vadd.f32 %v8022, %v8233
  %8235 = vmatmul.f32.gmra.mxu0 %v6539
  %v8236 = vpop.f32.mrf.mxu0
  %v8237 = vadd.f32 %v8025, %v8236
  %8238 = vmatmul.f32.gmra.mxu0 %v6542
  %v8239 = vpop.f32.mrf.mxu0
  %v8240 = vadd.f32 %v8028, %v8239
  %8241 = vmatmul.f32.gmra.mxu0 %v6545
  %v8242 = vpop.f32.mrf.mxu0
  %v8243 = vadd.f32 %v8031, %v8242
  %8244 = vmatmul.f32.gmra.mxu0 %v6548
  %v8245 = vpop.f32.mrf.mxu0
  %v8246 = vadd.f32 %v8034, %v8245
  %8247 = vmatmul.f32.gmra.mxu0 %v8061
  %v8248 = vpop.f32.mrf.mxu0
  %v8249 = vadd.f32 %v8037, %v8248
  %8250 = vmatmul.f32.gmra.mxu0 %v7828
  %v8251 = vpop.f32.mrf.mxu0
  %v8252 = vadd.f32 %v8040, %v8251
  %8253 = vmatmul.f32.gmra.mxu0 %v7831
  %v8254 = vpop.f32.mrf.mxu0
  %v8255 = vadd.f32 %v8043, %v8254
  %8256 = vmatmul.f32.gmra.mxu0 %v7834
  %v8257 = vpop.f32.mrf.mxu0
  %v8258 = vadd.f32 %v8046, %v8257
  %8259 = vmatmul.f32.gmra.mxu0 %v7837
  %v8260 = vpop.f32.mrf.mxu0
  %v8261 = vadd.f32 %v8049, %v8260
  %8262 = vmatmul.f32.gmra.mxu0 %v7840
  %v8263 = vpop.f32.mrf.mxu0
  %v8264 = vadd.f32 %v8052, %v8263
  %8265 = vmatmul.f32.gmra.mxu0 %v7843
  %v8266 = vpop.f32.mrf.mxu0
  %v8267 = vadd.f32 %v8055, %v8266
  %8268 = vmatmul.f32.gmra.mxu0 %v7846
  %v8269 = vpop.f32.mrf.mxu0
  %v8270 = vadd.f32 %v8058, %v8269
  %8271 = vdwg.mxu0
  %s8272 = scalar_lea.vmem %s3, 704
  %v8273 = vld [vmem:[%s8272] sm:$0xff]
  %v8274 = vld [vmem:[%s8272 + $0x8] sm:$0xff]
  %v8275 = vld [vmem:[%s8272 + $0x10] sm:$0xff]
  %v8276 = vld [vmem:[%s8272 + $0x18] sm:$0xff]
  %v8278 = vsel %vm2382, %v2370, 0
  %8280 = vmatpush.msra.mxu0 0.0
  %8281 = vmatpush.msra.mxu0 0.0
  %8282 = vmatpush.msra.mxu0 0.0
  %8283 = vmatpush.msra.mxu0 0.0
  %8284 = vmatpush.msra.mxu0 0.0
  %8285 = vmatpush.msra.mxu0 0.0
  %8286 = vmatpush.msra.mxu0 0.0
  %8287 = vmatpush.msra.mxu0 0.0
  %8288 = vmatpush.msra.mxu0 0.0
  %8289 = vmatpush.msra.mxu0 0.0
  %8290 = vmatpush.msra.mxu0 0.0
  %8291 = vmatpush.msra.mxu0 0.0
  %8292 = vmatpush.msra.mxu0 %v8276
  %8293 = vmatpush.msra.mxu0 %v8275
  %8294 = vmatpush.msra.mxu0 %v8274
  %8295 = vmatpush.msra.mxu0 %v8273
  %8296 = vmatmul.f32.gmra.mxu0 %v2483
  %v8297 = vpop.f32.mrf.mxu0
  %v8298 = vadd.f32 0.0, %v8297
  %8299 = vmatmul.f32.gmra.mxu0 %v2486
  %v8300 = vpop.f32.mrf.mxu0
  %v8301 = vadd.f32 0.0, %v8300
  %8302 = vmatmul.f32.gmra.mxu0 %v2489
  %v8303 = vpop.f32.mrf.mxu0
  %v8304 = vadd.f32 0.0, %v8303
  %8305 = vmatmul.f32.gmra.mxu0 %v2492
  %v8306 = vpop.f32.mrf.mxu0
  %v8307 = vadd.f32 0.0, %v8306
  %8308 = vmatmul.f32.gmra.mxu0 %v2495
  %v8309 = vpop.f32.mrf.mxu0
  %v8310 = vadd.f32 0.0, %v8309
  %8311 = vmatmul.f32.gmra.mxu0 %v2498
  %v8312 = vpop.f32.mrf.mxu0
  %v8313 = vadd.f32 0.0, %v8312
  %8314 = vmatmul.f32.gmra.mxu0 %v2501
  %v8315 = vpop.f32.mrf.mxu0
  %v8316 = vadd.f32 0.0, %v8315
  %8317 = vmatmul.f32.gmra.mxu0 %v3035
  %v8318 = vpop.f32.mrf.mxu0
  %v8319 = vadd.f32 0.0, %v8318
  %8320 = vmatmul.f32.gmra.mxu0 %v2507
  %v8321 = vpop.f32.mrf.mxu0
  %v8322 = vadd.f32 0.0, %v8321
  %8323 = vmatmul.f32.gmra.mxu0 %v2510
  %v8324 = vpop.f32.mrf.mxu0
  %v8325 = vadd.f32 0.0, %v8324
  %8326 = vmatmul.f32.gmra.mxu0 %v2513
  %v8327 = vpop.f32.mrf.mxu0
  %v8328 = vadd.f32 0.0, %v8327
  %8329 = vmatmul.f32.gmra.mxu0 %v2516
  %v8330 = vpop.f32.mrf.mxu0
  %v8331 = vadd.f32 0.0, %v8330
  %8332 = vmatmul.f32.gmra.mxu0 %v2519
  %v8333 = vpop.f32.mrf.mxu0
  %v8334 = vadd.f32 0.0, %v8333
  %8335 = vmatmul.f32.gmra.mxu0 %v2522
  %v8336 = vpop.f32.mrf.mxu0
  %v8337 = vadd.f32 0.0, %v8336
  %8338 = vmatmul.f32.gmra.mxu0 %v2525
  %v8339 = vpop.f32.mrf.mxu0
  %v8340 = vadd.f32 0.0, %v8339
  %8341 = vmatmul.f32.gmra.mxu0 %v3038
  %v8342 = vpop.f32.mrf.mxu0
  %v8343 = vadd.f32 0.0, %v8342
  %8344 = vmatmul.f32.gmra.mxu0 %v2531
  %v8345 = vpop.f32.mrf.mxu0
  %v8346 = vadd.f32 0.0, %v8345
  %8347 = vmatmul.f32.gmra.mxu0 %v2534
  %v8348 = vpop.f32.mrf.mxu0
  %v8349 = vadd.f32 0.0, %v8348
  %8350 = vmatmul.f32.gmra.mxu0 %v2537
  %v8351 = vpop.f32.mrf.mxu0
  %v8352 = vadd.f32 0.0, %v8351
  %8353 = vmatmul.f32.gmra.mxu0 %v2540
  %v8354 = vpop.f32.mrf.mxu0
  %v8355 = vadd.f32 0.0, %v8354
  %8356 = vmatmul.f32.gmra.mxu0 %v2543
  %v8357 = vpop.f32.mrf.mxu0
  %v8358 = vadd.f32 0.0, %v8357
  %8359 = vmatmul.f32.gmra.mxu0 %v2546
  %v8360 = vpop.f32.mrf.mxu0
  %v8361 = vadd.f32 0.0, %v8360
  %8362 = vmatmul.f32.gmra.mxu0 %v2549
  %v8363 = vpop.f32.mrf.mxu0
  %v8364 = vadd.f32 0.0, %v8363
  %8365 = vmatmul.f32.gmra.mxu0 %v3041
  %v8366 = vpop.f32.mrf.mxu0
  %v8367 = vadd.f32 0.0, %v8366
  %8368 = vmatmul.f32.gmra.mxu0 %v2555
  %v8369 = vpop.f32.mrf.mxu0
  %v8370 = vadd.f32 0.0, %v8369
  %8371 = vmatmul.f32.gmra.mxu0 %v2558
  %v8372 = vpop.f32.mrf.mxu0
  %v8373 = vadd.f32 0.0, %v8372
  %8374 = vmatmul.f32.gmra.mxu0 %v2561
  %v8375 = vpop.f32.mrf.mxu0
  %v8376 = vadd.f32 0.0, %v8375
  %8377 = vmatmul.f32.gmra.mxu0 %v2564
  %v8378 = vpop.f32.mrf.mxu0
  %v8379 = vadd.f32 0.0, %v8378
  %8380 = vmatmul.f32.gmra.mxu0 %v2567
  %v8381 = vpop.f32.mrf.mxu0
  %v8382 = vadd.f32 0.0, %v8381
  %8383 = vmatmul.f32.gmra.mxu0 %v2570
  %v8384 = vpop.f32.mrf.mxu0
  %v8385 = vadd.f32 0.0, %v8384
  %8386 = vmatmul.f32.gmra.mxu0 %v2573
  %v8387 = vpop.f32.mrf.mxu0
  %v8388 = vadd.f32 0.0, %v8387
  %8389 = vmatmul.f32.gmra.mxu0 %v3044
  %v8390 = vpop.f32.mrf.mxu0
  %v8391 = vadd.f32 0.0, %v8390
  %8392 = vmatmul.f32.gmra.mxu0 %v3937
  %v8393 = vpop.f32.mrf.mxu0
  %v8394 = vadd.f32 0.0, %v8393
  %8395 = vmatmul.f32.gmra.mxu0 %v3940
  %v8396 = vpop.f32.mrf.mxu0
  %v8397 = vadd.f32 0.0, %v8396
  %8398 = vmatmul.f32.gmra.mxu0 %v3943
  %v8399 = vpop.f32.mrf.mxu0
  %v8400 = vadd.f32 0.0, %v8399
  %8401 = vmatmul.f32.gmra.mxu0 %v3946
  %v8402 = vpop.f32.mrf.mxu0
  %v8403 = vadd.f32 0.0, %v8402
  %8404 = vmatmul.f32.gmra.mxu0 %v3949
  %v8405 = vpop.f32.mrf.mxu0
  %v8406 = vadd.f32 0.0, %v8405
  %8407 = vmatmul.f32.gmra.mxu0 %v3952
  %v8408 = vpop.f32.mrf.mxu0
  %v8409 = vadd.f32 0.0, %v8408
  %8410 = vmatmul.f32.gmra.mxu0 %v3955
  %v8411 = vpop.f32.mrf.mxu0
  %v8412 = vadd.f32 0.0, %v8411
  %8413 = vmatmul.f32.gmra.mxu0 %v4384
  %v8414 = vpop.f32.mrf.mxu0
  %v8415 = vadd.f32 0.0, %v8414
  %8416 = vmatmul.f32.gmra.mxu0 %v5235
  %v8417 = vpop.f32.mrf.mxu0
  %v8418 = vadd.f32 0.0, %v8417
  %8419 = vmatmul.f32.gmra.mxu0 %v5238
  %v8420 = vpop.f32.mrf.mxu0
  %v8421 = vadd.f32 0.0, %v8420
  %8422 = vmatmul.f32.gmra.mxu0 %v5241
  %v8423 = vpop.f32.mrf.mxu0
  %v8424 = vadd.f32 0.0, %v8423
  %8425 = vmatmul.f32.gmra.mxu0 %v5244
  %v8426 = vpop.f32.mrf.mxu0
  %v8427 = vadd.f32 0.0, %v8426
  %8428 = vmatmul.f32.gmra.mxu0 %v5247
  %v8429 = vpop.f32.mrf.mxu0
  %v8430 = vadd.f32 0.0, %v8429
  %8431 = vmatmul.f32.gmra.mxu0 %v5250
  %v8432 = vpop.f32.mrf.mxu0
  %v8433 = vadd.f32 0.0, %v8432
  %8434 = vmatmul.f32.gmra.mxu0 %v5253
  %v8435 = vpop.f32.mrf.mxu0
  %v8436 = vadd.f32 0.0, %v8435
  %8437 = vmatmul.f32.gmra.mxu0 %v5682
  %v8438 = vpop.f32.mrf.mxu0
  %v8439 = vadd.f32 0.0, %v8438
  %8440 = vmatmul.f32.gmra.mxu0 %v6533
  %v8441 = vpop.f32.mrf.mxu0
  %v8442 = vadd.f32 0.0, %v8441
  %8443 = vmatmul.f32.gmra.mxu0 %v6536
  %v8444 = vpop.f32.mrf.mxu0
  %v8445 = vadd.f32 0.0, %v8444
  %8446 = vmatmul.f32.gmra.mxu0 %v6539
  %v8447 = vpop.f32.mrf.mxu0
  %v8448 = vadd.f32 0.0, %v8447
  %8449 = vmatmul.f32.gmra.mxu0 %v6542
  %v8450 = vpop.f32.mrf.mxu0
  %v8451 = vadd.f32 0.0, %v8450
  %8452 = vmatmul.f32.gmra.mxu0 %v6545
  %v8453 = vpop.f32.mrf.mxu0
  %v8454 = vadd.f32 0.0, %v8453
  %8455 = vmatmul.f32.gmra.mxu0 %v6548
  %v8456 = vpop.f32.mrf.mxu0
  %v8457 = vadd.f32 0.0, %v8456
  %8458 = vmatmul.f32.gmra.mxu0 %v6551
  %v8459 = vpop.f32.mrf.mxu0
  %v8460 = vadd.f32 0.0, %v8459
  %8461 = vmatmul.f32.gmra.mxu0 %v6980
  %v8462 = vpop.f32.mrf.mxu0
  %v8463 = vadd.f32 0.0, %v8462
  %8464 = vmatmul.f32.gmra.mxu0 %v7831
  %v8465 = vpop.f32.mrf.mxu0
  %v8466 = vadd.f32 0.0, %v8465
  %8467 = vmatmul.f32.gmra.mxu0 %v7834
  %v8468 = vpop.f32.mrf.mxu0
  %v8469 = vadd.f32 0.0, %v8468
  %8470 = vmatmul.f32.gmra.mxu0 %v7837
  %v8471 = vpop.f32.mrf.mxu0
  %v8472 = vadd.f32 0.0, %v8471
  %8473 = vmatmul.f32.gmra.mxu0 %v7840
  %v8474 = vpop.f32.mrf.mxu0
  %v8475 = vadd.f32 0.0, %v8474
  %8476 = vmatmul.f32.gmra.mxu0 %v7843
  %v8477 = vpop.f32.mrf.mxu0
  %v8478 = vadd.f32 0.0, %v8477
  %8479 = vmatmul.f32.gmra.mxu0 %v7846
  %v8480 = vpop.f32.mrf.mxu0
  %v8481 = vadd.f32 0.0, %v8480
  %8482 = vmatmul.f32.gmra.mxu0 %v7849
  %v8483 = vpop.f32.mrf.mxu0
  %v8484 = vadd.f32 0.0, %v8483
  %8485 = vmatmul.f32.gmra.mxu0 %v8278
  %v8486 = vpop.f32.mrf.mxu0
  %v8487 = vadd.f32 0.0, %v8486
  %8488 = vdwg.mxu0
  %v8489 = vadd.f32 %v8081, %v8298
  %v8490 = vadd.f32 %v8084, %v8301
  %v8491 = vadd.f32 %v8087, %v8304
  %v8492 = vadd.f32 %v8090, %v8307
  %v8493 = vadd.f32 %v8093, %v8310
  %v8494 = vadd.f32 %v8096, %v8313
  %v8495 = vadd.f32 %v8099, %v8316
  %v8496 = vadd.f32 %v8102, %v8319
  %v8497 = vadd.f32 %v8105, %v8322
  %v8498 = vadd.f32 %v8108, %v8325
  %v8499 = vadd.f32 %v8111, %v8328
  %v8500 = vadd.f32 %v8114, %v8331
  %v8501 = vadd.f32 %v8117, %v8334
  %v8502 = vadd.f32 %v8120, %v8337
  %v8503 = vadd.f32 %v8123, %v8340
  %v8504 = vadd.f32 %v8126, %v8343
  %v8505 = vadd.f32 %v8129, %v8346
  %v8506 = vadd.f32 %v8132, %v8349
  %v8507 = vadd.f32 %v8135, %v8352
  %v8508 = vadd.f32 %v8138, %v8355
  %v8509 = vadd.f32 %v8141, %v8358
  %v8510 = vadd.f32 %v8144, %v8361
  %v8511 = vadd.f32 %v8147, %v8364
  %v8512 = vadd.f32 %v8150, %v8367
  %v8513 = vadd.f32 %v8153, %v8370
  %v8514 = vadd.f32 %v8156, %v8373
  %v8515 = vadd.f32 %v8159, %v8376
  %v8516 = vadd.f32 %v8162, %v8379
  %v8517 = vadd.f32 %v8165, %v8382
  %v8518 = vadd.f32 %v8168, %v8385
  %v8519 = vadd.f32 %v8171, %v8388
  %v8520 = vadd.f32 %v8174, %v8391
  %v8521 = vadd.f32 %v8177, %v8394
  %v8522 = vadd.f32 %v8180, %v8397
  %v8523 = vadd.f32 %v8183, %v8400
  %v8524 = vadd.f32 %v8186, %v8403
  %v8525 = vadd.f32 %v8189, %v8406
  %v8526 = vadd.f32 %v8192, %v8409
  %v8527 = vadd.f32 %v8195, %v8412
  %v8528 = vadd.f32 %v8198, %v8415
  %v8529 = vadd.f32 %v8201, %v8418
  %v8530 = vadd.f32 %v8204, %v8421
  %v8531 = vadd.f32 %v8207, %v8424
  %v8532 = vadd.f32 %v8210, %v8427
  %v8533 = vadd.f32 %v8213, %v8430
  %v8534 = vadd.f32 %v8216, %v8433
  %v8535 = vadd.f32 %v8219, %v8436
  %v8536 = vadd.f32 %v8222, %v8439
  %v8537 = vadd.f32 %v8225, %v8442
  %v8538 = vadd.f32 %v8228, %v8445
  %v8539 = vadd.f32 %v8231, %v8448
  %v8540 = vadd.f32 %v8234, %v8451
  %v8541 = vadd.f32 %v8237, %v8454
  %v8542 = vadd.f32 %v8240, %v8457
  %v8543 = vadd.f32 %v8243, %v8460
  %v8544 = vadd.f32 %v8246, %v8463
  %v8545 = vadd.f32 %v8249, %v8466
  %v8546 = vadd.f32 %v8252, %v8469
  %v8547 = vadd.f32 %v8255, %v8472
  %v8548 = vadd.f32 %v8258, %v8475
  %v8549 = vadd.f32 %v8261, %v8478
  %v8550 = vadd.f32 %v8264, %v8481
  %v8551 = vadd.f32 %v8267, %v8484
  %v8552 = vadd.f32 %v8270, %v8487
  %s8553 = scalar_lea.vmem %s3, 736
  %v8554 = vld [vmem:[%s8553] sm:$0xff]
  %v8555 = vld [vmem:[%s8553 + $0x8] sm:$0xff]
  %v8556 = vld [vmem:[%s8553 + $0x10] sm:$0xff]
  %v8557 = vld [vmem:[%s8553 + $0x18] sm:$0xff]
  %v8559 = vsel %vm2382, %v2371, 0
  %8561 = vmatpush.msra.mxu0 0.0
  %8562 = vmatpush.msra.mxu0 0.0
  %8563 = vmatpush.msra.mxu0 0.0
  %8564 = vmatpush.msra.mxu0 0.0
  %8565 = vmatpush.msra.mxu0 0.0
  %8566 = vmatpush.msra.mxu0 0.0
  %8567 = vmatpush.msra.mxu0 0.0
  %8568 = vmatpush.msra.mxu0 0.0
  %8569 = vmatpush.msra.mxu0 0.0
  %8570 = vmatpush.msra.mxu0 0.0
  %8571 = vmatpush.msra.mxu0 0.0
  %8572 = vmatpush.msra.mxu0 0.0
  %8573 = vmatpush.msra.mxu0 %v8557
  %8574 = vmatpush.msra.mxu0 %v8556
  %8575 = vmatpush.msra.mxu0 %v8555
  %8576 = vmatpush.msra.mxu0 %v8554
  %8577 = vmatmul.f32.gmra.mxu0 %v2486
  %v8578 = vpop.f32.mrf.mxu0
  %v8579 = vadd.f32 0.0, %v8578
  %8580 = vmatmul.f32.gmra.mxu0 %v2489
  %v8581 = vpop.f32.mrf.mxu0
  %v8582 = vadd.f32 0.0, %v8581
  %8583 = vmatmul.f32.gmra.mxu0 %v2492
  %v8584 = vpop.f32.mrf.mxu0
  %v8585 = vadd.f32 0.0, %v8584
  %8586 = vmatmul.f32.gmra.mxu0 %v2495
  %v8587 = vpop.f32.mrf.mxu0
  %v8588 = vadd.f32 0.0, %v8587
  %8589 = vmatmul.f32.gmra.mxu0 %v2498
  %v8590 = vpop.f32.mrf.mxu0
  %v8591 = vadd.f32 0.0, %v8590
  %8592 = vmatmul.f32.gmra.mxu0 %v2501
  %v8593 = vpop.f32.mrf.mxu0
  %v8594 = vadd.f32 0.0, %v8593
  %8595 = vmatmul.f32.gmra.mxu0 %v3035
  %v8596 = vpop.f32.mrf.mxu0
  %v8597 = vadd.f32 0.0, %v8596
  %8598 = vmatmul.f32.gmra.mxu0 %v3337
  %v8599 = vpop.f32.mrf.mxu0
  %v8600 = vadd.f32 0.0, %v8599
  %8601 = vmatmul.f32.gmra.mxu0 %v2510
  %v8602 = vpop.f32.mrf.mxu0
  %v8603 = vadd.f32 0.0, %v8602
  %8604 = vmatmul.f32.gmra.mxu0 %v2513
  %v8605 = vpop.f32.mrf.mxu0
  %v8606 = vadd.f32 0.0, %v8605
  %8607 = vmatmul.f32.gmra.mxu0 %v2516
  %v8608 = vpop.f32.mrf.mxu0
  %v8609 = vadd.f32 0.0, %v8608
  %8610 = vmatmul.f32.gmra.mxu0 %v2519
  %v8611 = vpop.f32.mrf.mxu0
  %v8612 = vadd.f32 0.0, %v8611
  %8613 = vmatmul.f32.gmra.mxu0 %v2522
  %v8614 = vpop.f32.mrf.mxu0
  %v8615 = vadd.f32 0.0, %v8614
  %8616 = vmatmul.f32.gmra.mxu0 %v2525
  %v8617 = vpop.f32.mrf.mxu0
  %v8618 = vadd.f32 0.0, %v8617
  %8619 = vmatmul.f32.gmra.mxu0 %v3038
  %v8620 = vpop.f32.mrf.mxu0
  %v8621 = vadd.f32 0.0, %v8620
  %8622 = vmatmul.f32.gmra.mxu0 %v3340
  %v8623 = vpop.f32.mrf.mxu0
  %v8624 = vadd.f32 0.0, %v8623
  %8625 = vmatmul.f32.gmra.mxu0 %v2534
  %v8626 = vpop.f32.mrf.mxu0
  %v8627 = vadd.f32 0.0, %v8626
  %8628 = vmatmul.f32.gmra.mxu0 %v2537
  %v8629 = vpop.f32.mrf.mxu0
  %v8630 = vadd.f32 0.0, %v8629
  %8631 = vmatmul.f32.gmra.mxu0 %v2540
  %v8632 = vpop.f32.mrf.mxu0
  %v8633 = vadd.f32 0.0, %v8632
  %8634 = vmatmul.f32.gmra.mxu0 %v2543
  %v8635 = vpop.f32.mrf.mxu0
  %v8636 = vadd.f32 0.0, %v8635
  %8637 = vmatmul.f32.gmra.mxu0 %v2546
  %v8638 = vpop.f32.mrf.mxu0
  %v8639 = vadd.f32 0.0, %v8638
  %8640 = vmatmul.f32.gmra.mxu0 %v2549
  %v8641 = vpop.f32.mrf.mxu0
  %v8642 = vadd.f32 0.0, %v8641
  %8643 = vmatmul.f32.gmra.mxu0 %v3041
  %v8644 = vpop.f32.mrf.mxu0
  %v8645 = vadd.f32 0.0, %v8644
  %8646 = vmatmul.f32.gmra.mxu0 %v3343
  %v8647 = vpop.f32.mrf.mxu0
  %v8648 = vadd.f32 0.0, %v8647
  %8649 = vmatmul.f32.gmra.mxu0 %v2558
  %v8650 = vpop.f32.mrf.mxu0
  %v8651 = vadd.f32 0.0, %v8650
  %8652 = vmatmul.f32.gmra.mxu0 %v2561
  %v8653 = vpop.f32.mrf.mxu0
  %v8654 = vadd.f32 0.0, %v8653
  %8655 = vmatmul.f32.gmra.mxu0 %v2564
  %v8656 = vpop.f32.mrf.mxu0
  %v8657 = vadd.f32 0.0, %v8656
  %8658 = vmatmul.f32.gmra.mxu0 %v2567
  %v8659 = vpop.f32.mrf.mxu0
  %v8660 = vadd.f32 0.0, %v8659
  %8661 = vmatmul.f32.gmra.mxu0 %v2570
  %v8662 = vpop.f32.mrf.mxu0
  %v8663 = vadd.f32 0.0, %v8662
  %8664 = vmatmul.f32.gmra.mxu0 %v2573
  %v8665 = vpop.f32.mrf.mxu0
  %v8666 = vadd.f32 0.0, %v8665
  %8667 = vmatmul.f32.gmra.mxu0 %v3044
  %v8668 = vpop.f32.mrf.mxu0
  %v8669 = vadd.f32 0.0, %v8668
  %8670 = vmatmul.f32.gmra.mxu0 %v3346
  %v8671 = vpop.f32.mrf.mxu0
  %v8672 = vadd.f32 0.0, %v8671
  %8673 = vmatmul.f32.gmra.mxu0 %v3940
  %v8674 = vpop.f32.mrf.mxu0
  %v8675 = vadd.f32 0.0, %v8674
  %8676 = vmatmul.f32.gmra.mxu0 %v3943
  %v8677 = vpop.f32.mrf.mxu0
  %v8678 = vadd.f32 0.0, %v8677
  %8679 = vmatmul.f32.gmra.mxu0 %v3946
  %v8680 = vpop.f32.mrf.mxu0
  %v8681 = vadd.f32 0.0, %v8680
  %8682 = vmatmul.f32.gmra.mxu0 %v3949
  %v8683 = vpop.f32.mrf.mxu0
  %v8684 = vadd.f32 0.0, %v8683
  %8685 = vmatmul.f32.gmra.mxu0 %v3952
  %v8686 = vpop.f32.mrf.mxu0
  %v8687 = vadd.f32 0.0, %v8686
  %8688 = vmatmul.f32.gmra.mxu0 %v3955
  %v8689 = vpop.f32.mrf.mxu0
  %v8690 = vadd.f32 0.0, %v8689
  %8691 = vmatmul.f32.gmra.mxu0 %v4384
  %v8692 = vpop.f32.mrf.mxu0
  %v8693 = vadd.f32 0.0, %v8692
  %8694 = vmatmul.f32.gmra.mxu0 %v4665
  %v8695 = vpop.f32.mrf.mxu0
  %v8696 = vadd.f32 0.0, %v8695
  %8697 = vmatmul.f32.gmra.mxu0 %v5238
  %v8698 = vpop.f32.mrf.mxu0
  %v8699 = vadd.f32 0.0, %v8698
  %8700 = vmatmul.f32.gmra.mxu0 %v5241
  %v8701 = vpop.f32.mrf.mxu0
  %v8702 = vadd.f32 0.0, %v8701
  %8703 = vmatmul.f32.gmra.mxu0 %v5244
  %v8704 = vpop.f32.mrf.mxu0
  %v8705 = vadd.f32 0.0, %v8704
  %8706 = vmatmul.f32.gmra.mxu0 %v5247
  %v8707 = vpop.f32.mrf.mxu0
  %v8708 = vadd.f32 0.0, %v8707
  %8709 = vmatmul.f32.gmra.mxu0 %v5250
  %v8710 = vpop.f32.mrf.mxu0
  %v8711 = vadd.f32 0.0, %v8710
  %8712 = vmatmul.f32.gmra.mxu0 %v5253
  %v8713 = vpop.f32.mrf.mxu0
  %v8714 = vadd.f32 0.0, %v8713
  %8715 = vmatmul.f32.gmra.mxu0 %v5682
  %v8716 = vpop.f32.mrf.mxu0
  %v8717 = vadd.f32 0.0, %v8716
  %8718 = vmatmul.f32.gmra.mxu0 %v5963
  %v8719 = vpop.f32.mrf.mxu0
  %v8720 = vadd.f32 0.0, %v8719
  %8721 = vmatmul.f32.gmra.mxu0 %v6536
  %v8722 = vpop.f32.mrf.mxu0
  %v8723 = vadd.f32 0.0, %v8722
  %8724 = vmatmul.f32.gmra.mxu0 %v6539
  %v8725 = vpop.f32.mrf.mxu0
  %v8726 = vadd.f32 0.0, %v8725
  %8727 = vmatmul.f32.gmra.mxu0 %v6542
  %v8728 = vpop.f32.mrf.mxu0
  %v8729 = vadd.f32 0.0, %v8728
  %8730 = vmatmul.f32.gmra.mxu0 %v6545
  %v8731 = vpop.f32.mrf.mxu0
  %v8732 = vadd.f32 0.0, %v8731
  %8733 = vmatmul.f32.gmra.mxu0 %v6548
  %v8734 = vpop.f32.mrf.mxu0
  %v8735 = vadd.f32 0.0, %v8734
  %8736 = vmatmul.f32.gmra.mxu0 %v6551
  %v8737 = vpop.f32.mrf.mxu0
  %v8738 = vadd.f32 0.0, %v8737
  %8739 = vmatmul.f32.gmra.mxu0 %v6980
  %v8740 = vpop.f32.mrf.mxu0
  %v8741 = vadd.f32 0.0, %v8740
  %8742 = vmatmul.f32.gmra.mxu0 %v7261
  %v8743 = vpop.f32.mrf.mxu0
  %v8744 = vadd.f32 0.0, %v8743
  %8745 = vmatmul.f32.gmra.mxu0 %v7834
  %v8746 = vpop.f32.mrf.mxu0
  %v8747 = vadd.f32 0.0, %v8746
  %8748 = vmatmul.f32.gmra.mxu0 %v7837
  %v8749 = vpop.f32.mrf.mxu0
  %v8750 = vadd.f32 0.0, %v8749
  %8751 = vmatmul.f32.gmra.mxu0 %v7840
  %v8752 = vpop.f32.mrf.mxu0
  %v8753 = vadd.f32 0.0, %v8752
  %8754 = vmatmul.f32.gmra.mxu0 %v7843
  %v8755 = vpop.f32.mrf.mxu0
  %v8756 = vadd.f32 0.0, %v8755
  %8757 = vmatmul.f32.gmra.mxu0 %v7846
  %v8758 = vpop.f32.mrf.mxu0
  %v8759 = vadd.f32 0.0, %v8758
  %8760 = vmatmul.f32.gmra.mxu0 %v7849
  %v8761 = vpop.f32.mrf.mxu0
  %v8762 = vadd.f32 0.0, %v8761
  %8763 = vmatmul.f32.gmra.mxu0 %v8278
  %v8764 = vpop.f32.mrf.mxu0
  %v8765 = vadd.f32 0.0, %v8764
  %8766 = vmatmul.f32.gmra.mxu0 %v8559
  %v8767 = vpop.f32.mrf.mxu0
  %v8768 = vadd.f32 0.0, %v8767
  %8769 = vdwg.mxu0
  %v8770 = vadd.f32 %v8489, %v8579
  %v8771 = vadd.f32 %v8490, %v8582
  %v8772 = vadd.f32 %v8491, %v8585
  %v8773 = vadd.f32 %v8492, %v8588
  %v8774 = vadd.f32 %v8493, %v8591
  %v8775 = vadd.f32 %v8494, %v8594
  %v8776 = vadd.f32 %v8495, %v8597
  %v8777 = vadd.f32 %v8496, %v8600
  %v8778 = vadd.f32 %v8497, %v8603
  %v8779 = vadd.f32 %v8498, %v8606
  %v8780 = vadd.f32 %v8499, %v8609
  %v8781 = vadd.f32 %v8500, %v8612
  %v8782 = vadd.f32 %v8501, %v8615
  %v8783 = vadd.f32 %v8502, %v8618
  %v8784 = vadd.f32 %v8503, %v8621
  %v8785 = vadd.f32 %v8504, %v8624
  %v8786 = vadd.f32 %v8505, %v8627
  %v8787 = vadd.f32 %v8506, %v8630
  %v8788 = vadd.f32 %v8507, %v8633
  %v8789 = vadd.f32 %v8508, %v8636
  %v8790 = vadd.f32 %v8509, %v8639
  %v8791 = vadd.f32 %v8510, %v8642
  %v8792 = vadd.f32 %v8511, %v8645
  %v8793 = vadd.f32 %v8512, %v8648
  %v8794 = vadd.f32 %v8513, %v8651
  %v8795 = vadd.f32 %v8514, %v8654
  %v8796 = vadd.f32 %v8515, %v8657
  %v8797 = vadd.f32 %v8516, %v8660
  %v8798 = vadd.f32 %v8517, %v8663
  %v8799 = vadd.f32 %v8518, %v8666
  %v8800 = vadd.f32 %v8519, %v8669
  %v8801 = vadd.f32 %v8520, %v8672
  %v8802 = vadd.f32 %v8521, %v8675
  %v8803 = vadd.f32 %v8522, %v8678
  %v8804 = vadd.f32 %v8523, %v8681
  %v8805 = vadd.f32 %v8524, %v8684
  %v8806 = vadd.f32 %v8525, %v8687
  %v8807 = vadd.f32 %v8526, %v8690
  %v8808 = vadd.f32 %v8527, %v8693
  %v8809 = vadd.f32 %v8528, %v8696
  %v8810 = vadd.f32 %v8529, %v8699
  %v8811 = vadd.f32 %v8530, %v8702
  %v8812 = vadd.f32 %v8531, %v8705
  %v8813 = vadd.f32 %v8532, %v8708
  %v8814 = vadd.f32 %v8533, %v8711
  %v8815 = vadd.f32 %v8534, %v8714
  %v8816 = vadd.f32 %v8535, %v8717
  %v8817 = vadd.f32 %v8536, %v8720
  %v8818 = vadd.f32 %v8537, %v8723
  %v8819 = vadd.f32 %v8538, %v8726
  %v8820 = vadd.f32 %v8539, %v8729
  %v8821 = vadd.f32 %v8540, %v8732
  %v8822 = vadd.f32 %v8541, %v8735
  %v8823 = vadd.f32 %v8542, %v8738
  %v8824 = vadd.f32 %v8543, %v8741
  %v8825 = vadd.f32 %v8544, %v8744
  %v8826 = vadd.f32 %v8545, %v8747
  %v8827 = vadd.f32 %v8546, %v8750
  %v8828 = vadd.f32 %v8547, %v8753
  %v8829 = vadd.f32 %v8548, %v8756
  %v8830 = vadd.f32 %v8549, %v8759
  %v8831 = vadd.f32 %v8550, %v8762
  %v8832 = vadd.f32 %v8551, %v8765
  %v8833 = vadd.f32 %v8552, %v8768
  %s8834 = scalar_lea.vmem %s3, 768
  %v8835 = vld [vmem:[%s8834] sm:$0xff]
  %v8836 = vld [vmem:[%s8834 + $0x8] sm:$0xff]
  %v8837 = vld [vmem:[%s8834 + $0x10] sm:$0xff]
  %v8838 = vld [vmem:[%s8834 + $0x18] sm:$0xff]
  %v8840 = vsel %vm2382, %v2372, 0
  %8842 = vmatpush.msra.mxu0 0.0
  %8843 = vmatpush.msra.mxu0 0.0
  %8844 = vmatpush.msra.mxu0 0.0
  %8845 = vmatpush.msra.mxu0 0.0
  %8846 = vmatpush.msra.mxu0 0.0
  %8847 = vmatpush.msra.mxu0 0.0
  %8848 = vmatpush.msra.mxu0 0.0
  %8849 = vmatpush.msra.mxu0 0.0
  %8850 = vmatpush.msra.mxu0 0.0
  %8851 = vmatpush.msra.mxu0 0.0
  %8852 = vmatpush.msra.mxu0 0.0
  %8853 = vmatpush.msra.mxu0 0.0
  %8854 = vmatpush.msra.mxu0 %v8838
  %8855 = vmatpush.msra.mxu0 %v8837
  %8856 = vmatpush.msra.mxu0 %v8836
  %8857 = vmatpush.msra.mxu0 %v8835
  %8858 = vmatmul.f32.gmra.mxu0 %v2489
  %v8859 = vpop.f32.mrf.mxu0
  %v8860 = vadd.f32 0.0, %v8859
  %8861 = vmatmul.f32.gmra.mxu0 %v2492
  %v8862 = vpop.f32.mrf.mxu0
  %v8863 = vadd.f32 0.0, %v8862
  %8864 = vmatmul.f32.gmra.mxu0 %v2495
  %v8865 = vpop.f32.mrf.mxu0
  %v8866 = vadd.f32 0.0, %v8865
  %8867 = vmatmul.f32.gmra.mxu0 %v2498
  %v8868 = vpop.f32.mrf.mxu0
  %v8869 = vadd.f32 0.0, %v8868
  %8870 = vmatmul.f32.gmra.mxu0 %v2501
  %v8871 = vpop.f32.mrf.mxu0
  %v8872 = vadd.f32 0.0, %v8871
  %8873 = vmatmul.f32.gmra.mxu0 %v3035
  %v8874 = vpop.f32.mrf.mxu0
  %v8875 = vadd.f32 0.0, %v8874
  %8876 = vmatmul.f32.gmra.mxu0 %v3337
  %v8877 = vpop.f32.mrf.mxu0
  %v8878 = vadd.f32 0.0, %v8877
  %8879 = vmatmul.f32.gmra.mxu0 %v3639
  %v8880 = vpop.f32.mrf.mxu0
  %v8881 = vadd.f32 0.0, %v8880
  %8882 = vmatmul.f32.gmra.mxu0 %v2513
  %v8883 = vpop.f32.mrf.mxu0
  %v8884 = vadd.f32 0.0, %v8883
  %8885 = vmatmul.f32.gmra.mxu0 %v2516
  %v8886 = vpop.f32.mrf.mxu0
  %v8887 = vadd.f32 0.0, %v8886
  %8888 = vmatmul.f32.gmra.mxu0 %v2519
  %v8889 = vpop.f32.mrf.mxu0
  %v8890 = vadd.f32 0.0, %v8889
  %8891 = vmatmul.f32.gmra.mxu0 %v2522
  %v8892 = vpop.f32.mrf.mxu0
  %v8893 = vadd.f32 0.0, %v8892
  %8894 = vmatmul.f32.gmra.mxu0 %v2525
  %v8895 = vpop.f32.mrf.mxu0
  %v8896 = vadd.f32 0.0, %v8895
  %8897 = vmatmul.f32.gmra.mxu0 %v3038
  %v8898 = vpop.f32.mrf.mxu0
  %v8899 = vadd.f32 0.0, %v8898
  %8900 = vmatmul.f32.gmra.mxu0 %v3340
  %v8901 = vpop.f32.mrf.mxu0
  %v8902 = vadd.f32 0.0, %v8901
  %8903 = vmatmul.f32.gmra.mxu0 %v3642
  %v8904 = vpop.f32.mrf.mxu0
  %v8905 = vadd.f32 0.0, %v8904
  %8906 = vmatmul.f32.gmra.mxu0 %v2537
  %v8907 = vpop.f32.mrf.mxu0
  %v8908 = vadd.f32 0.0, %v8907
  %8909 = vmatmul.f32.gmra.mxu0 %v2540
  %v8910 = vpop.f32.mrf.mxu0
  %v8911 = vadd.f32 0.0, %v8910
  %8912 = vmatmul.f32.gmra.mxu0 %v2543
  %v8913 = vpop.f32.mrf.mxu0
  %v8914 = vadd.f32 0.0, %v8913
  %8915 = vmatmul.f32.gmra.mxu0 %v2546
  %v8916 = vpop.f32.mrf.mxu0
  %v8917 = vadd.f32 0.0, %v8916
  %8918 = vmatmul.f32.gmra.mxu0 %v2549
  %v8919 = vpop.f32.mrf.mxu0
  %v8920 = vadd.f32 0.0, %v8919
  %8921 = vmatmul.f32.gmra.mxu0 %v3041
  %v8922 = vpop.f32.mrf.mxu0
  %v8923 = vadd.f32 0.0, %v8922
  %8924 = vmatmul.f32.gmra.mxu0 %v3343
  %v8925 = vpop.f32.mrf.mxu0
  %v8926 = vadd.f32 0.0, %v8925
  %8927 = vmatmul.f32.gmra.mxu0 %v3645
  %v8928 = vpop.f32.mrf.mxu0
  %v8929 = vadd.f32 0.0, %v8928
  %8930 = vmatmul.f32.gmra.mxu0 %v2561
  %v8931 = vpop.f32.mrf.mxu0
  %v8932 = vadd.f32 0.0, %v8931
  %8933 = vmatmul.f32.gmra.mxu0 %v2564
  %v8934 = vpop.f32.mrf.mxu0
  %v8935 = vadd.f32 0.0, %v8934
  %8936 = vmatmul.f32.gmra.mxu0 %v2567
  %v8937 = vpop.f32.mrf.mxu0
  %v8938 = vadd.f32 0.0, %v8937
  %8939 = vmatmul.f32.gmra.mxu0 %v2570
  %v8940 = vpop.f32.mrf.mxu0
  %v8941 = vadd.f32 0.0, %v8940
  %8942 = vmatmul.f32.gmra.mxu0 %v2573
  %v8943 = vpop.f32.mrf.mxu0
  %v8944 = vadd.f32 0.0, %v8943
  %8945 = vmatmul.f32.gmra.mxu0 %v3044
  %v8946 = vpop.f32.mrf.mxu0
  %v8947 = vadd.f32 0.0, %v8946
  %8948 = vmatmul.f32.gmra.mxu0 %v3346
  %v8949 = vpop.f32.mrf.mxu0
  %v8950 = vadd.f32 0.0, %v8949
  %8951 = vmatmul.f32.gmra.mxu0 %v3648
  %v8952 = vpop.f32.mrf.mxu0
  %v8953 = vadd.f32 0.0, %v8952
  %8954 = vmatmul.f32.gmra.mxu0 %v3943
  %v8955 = vpop.f32.mrf.mxu0
  %v8956 = vadd.f32 0.0, %v8955
  %8957 = vmatmul.f32.gmra.mxu0 %v3946
  %v8958 = vpop.f32.mrf.mxu0
  %v8959 = vadd.f32 0.0, %v8958
  %8960 = vmatmul.f32.gmra.mxu0 %v3949
  %v8961 = vpop.f32.mrf.mxu0
  %v8962 = vadd.f32 0.0, %v8961
  %8963 = vmatmul.f32.gmra.mxu0 %v3952
  %v8964 = vpop.f32.mrf.mxu0
  %v8965 = vadd.f32 0.0, %v8964
  %8966 = vmatmul.f32.gmra.mxu0 %v3955
  %v8967 = vpop.f32.mrf.mxu0
  %v8968 = vadd.f32 0.0, %v8967
  %8969 = vmatmul.f32.gmra.mxu0 %v4384
  %v8970 = vpop.f32.mrf.mxu0
  %v8971 = vadd.f32 0.0, %v8970
  %8972 = vmatmul.f32.gmra.mxu0 %v4665
  %v8973 = vpop.f32.mrf.mxu0
  %v8974 = vadd.f32 0.0, %v8973
  %8975 = vmatmul.f32.gmra.mxu0 %v4946
  %v8976 = vpop.f32.mrf.mxu0
  %v8977 = vadd.f32 0.0, %v8976
  %8978 = vmatmul.f32.gmra.mxu0 %v5241
  %v8979 = vpop.f32.mrf.mxu0
  %v8980 = vadd.f32 0.0, %v8979
  %8981 = vmatmul.f32.gmra.mxu0 %v5244
  %v8982 = vpop.f32.mrf.mxu0
  %v8983 = vadd.f32 0.0, %v8982
  %8984 = vmatmul.f32.gmra.mxu0 %v5247
  %v8985 = vpop.f32.mrf.mxu0
  %v8986 = vadd.f32 0.0, %v8985
  %8987 = vmatmul.f32.gmra.mxu0 %v5250
  %v8988 = vpop.f32.mrf.mxu0
  %v8989 = vadd.f32 0.0, %v8988
  %8990 = vmatmul.f32.gmra.mxu0 %v5253
  %v8991 = vpop.f32.mrf.mxu0
  %v8992 = vadd.f32 0.0, %v8991
  %8993 = vmatmul.f32.gmra.mxu0 %v5682
  %v8994 = vpop.f32.mrf.mxu0
  %v8995 = vadd.f32 0.0, %v8994
  %8996 = vmatmul.f32.gmra.mxu0 %v5963
  %v8997 = vpop.f32.mrf.mxu0
  %v8998 = vadd.f32 0.0, %v8997
  %8999 = vmatmul.f32.gmra.mxu0 %v6244
  %v9000 = vpop.f32.mrf.mxu0
  %v9001 = vadd.f32 0.0, %v9000
  %9002 = vmatmul.f32.gmra.mxu0 %v6539
  %v9003 = vpop.f32.mrf.mxu0
  %v9004 = vadd.f32 0.0, %v9003
  %9005 = vmatmul.f32.gmra.mxu0 %v6542
  %v9006 = vpop.f32.mrf.mxu0
  %v9007 = vadd.f32 0.0, %v9006
  %9008 = vmatmul.f32.gmra.mxu0 %v6545
  %v9009 = vpop.f32.mrf.mxu0
  %v9010 = vadd.f32 0.0, %v9009
  %9011 = vmatmul.f32.gmra.mxu0 %v6548
  %v9012 = vpop.f32.mrf.mxu0
  %v9013 = vadd.f32 0.0, %v9012
  %9014 = vmatmul.f32.gmra.mxu0 %v6551
  %v9015 = vpop.f32.mrf.mxu0
  %v9016 = vadd.f32 0.0, %v9015
  %9017 = vmatmul.f32.gmra.mxu0 %v6980
  %v9018 = vpop.f32.mrf.mxu0
  %v9019 = vadd.f32 0.0, %v9018
  %9020 = vmatmul.f32.gmra.mxu0 %v7261
  %v9021 = vpop.f32.mrf.mxu0
  %v9022 = vadd.f32 0.0, %v9021
  %9023 = vmatmul.f32.gmra.mxu0 %v7542
  %v9024 = vpop.f32.mrf.mxu0
  %v9025 = vadd.f32 0.0, %v9024
  %9026 = vmatmul.f32.gmra.mxu0 %v7837
  %v9027 = vpop.f32.mrf.mxu0
  %v9028 = vadd.f32 0.0, %v9027
  %9029 = vmatmul.f32.gmra.mxu0 %v7840
  %v9030 = vpop.f32.mrf.mxu0
  %v9031 = vadd.f32 0.0, %v9030
  %9032 = vmatmul.f32.gmra.mxu0 %v7843
  %v9033 = vpop.f32.mrf.mxu0
  %v9034 = vadd.f32 0.0, %v9033
  %9035 = vmatmul.f32.gmra.mxu0 %v7846
  %v9036 = vpop.f32.mrf.mxu0
  %v9037 = vadd.f32 0.0, %v9036
  %9038 = vmatmul.f32.gmra.mxu0 %v7849
  %v9039 = vpop.f32.mrf.mxu0
  %v9040 = vadd.f32 0.0, %v9039
  %9041 = vmatmul.f32.gmra.mxu0 %v8278
  %v9042 = vpop.f32.mrf.mxu0
  %v9043 = vadd.f32 0.0, %v9042
  %9044 = vmatmul.f32.gmra.mxu0 %v8559
  %v9045 = vpop.f32.mrf.mxu0
  %v9046 = vadd.f32 0.0, %v9045
  %9047 = vmatmul.f32.gmra.mxu0 %v8840
  %v9048 = vpop.f32.mrf.mxu0
  %v9049 = vadd.f32 0.0, %v9048
  %9050 = vdwg.mxu0
  %v9051 = vadd.f32 %v8770, %v8860
  %v9052 = vadd.f32 %v8771, %v8863
  %v9053 = vadd.f32 %v8772, %v8866
  %v9054 = vadd.f32 %v8773, %v8869
  %v9055 = vadd.f32 %v8774, %v8872
  %v9056 = vadd.f32 %v8775, %v8875
  %v9057 = vadd.f32 %v8776, %v8878
  %v9058 = vadd.f32 %v8777, %v8881
  %v9059 = vadd.f32 %v8778, %v8884
  %v9060 = vadd.f32 %v8779, %v8887
  %v9061 = vadd.f32 %v8780, %v8890
  %v9062 = vadd.f32 %v8781, %v8893
  %v9063 = vadd.f32 %v8782, %v8896
  %v9064 = vadd.f32 %v8783, %v8899
  %v9065 = vadd.f32 %v8784, %v8902
  %v9066 = vadd.f32 %v8785, %v8905
  %v9067 = vadd.f32 %v8786, %v8908
  %v9068 = vadd.f32 %v8787, %v8911
  %v9069 = vadd.f32 %v8788, %v8914
  %v9070 = vadd.f32 %v8789, %v8917
  %v9071 = vadd.f32 %v8790, %v8920
  %v9072 = vadd.f32 %v8791, %v8923
  %v9073 = vadd.f32 %v8792, %v8926
  %v9074 = vadd.f32 %v8793, %v8929
  %v9075 = vadd.f32 %v8794, %v8932
  %v9076 = vadd.f32 %v8795, %v8935
  %v9077 = vadd.f32 %v8796, %v8938
  %v9078 = vadd.f32 %v8797, %v8941
  %v9079 = vadd.f32 %v8798, %v8944
  %v9080 = vadd.f32 %v8799, %v8947
  %v9081 = vadd.f32 %v8800, %v8950
  %v9082 = vadd.f32 %v8801, %v8953
  %v9083 = vadd.f32 %v8802, %v8956
  %v9084 = vadd.f32 %v8803, %v8959
  %v9085 = vadd.f32 %v8804, %v8962
  %v9086 = vadd.f32 %v8805, %v8965
  %v9087 = vadd.f32 %v8806, %v8968
  %v9088 = vadd.f32 %v8807, %v8971
  %v9089 = vadd.f32 %v8808, %v8974
  %v9090 = vadd.f32 %v8809, %v8977
  %v9091 = vadd.f32 %v8810, %v8980
  %v9092 = vadd.f32 %v8811, %v8983
  %v9093 = vadd.f32 %v8812, %v8986
  %v9094 = vadd.f32 %v8813, %v8989
  %v9095 = vadd.f32 %v8814, %v8992
  %v9096 = vadd.f32 %v8815, %v8995
  %v9097 = vadd.f32 %v8816, %v8998
  %v9098 = vadd.f32 %v8817, %v9001
  %v9099 = vadd.f32 %v8818, %v9004
  %v9100 = vadd.f32 %v8819, %v9007
  %v9101 = vadd.f32 %v8820, %v9010
  %v9102 = vadd.f32 %v8821, %v9013
  %v9103 = vadd.f32 %v8822, %v9016
  %v9104 = vadd.f32 %v8823, %v9019
  %v9105 = vadd.f32 %v8824, %v9022
  %v9106 = vadd.f32 %v8825, %v9025
  %v9107 = vadd.f32 %v8826, %v9028
  %v9108 = vadd.f32 %v8827, %v9031
  %v9109 = vadd.f32 %v8828, %v9034
  %v9110 = vadd.f32 %v8829, %v9037
  %v9111 = vadd.f32 %v8830, %v9040
  %v9112 = vadd.f32 %v8831, %v9043
  %v9113 = vadd.f32 %v8832, %v9046
  %v9114 = vadd.f32 %v8833, %v9049
  %v9115 = vadd.f32 %v3859, %v5157
  %v9116 = vadd.f32 %v3860, %v5158
  %v9117 = vadd.f32 %v3861, %v5159
  %v9118 = vadd.f32 %v3862, %v5160
  %v9119 = vadd.f32 %v3863, %v5161
  %v9120 = vadd.f32 %v3864, %v5162
  %v9121 = vadd.f32 %v3865, %v5163
  %v9122 = vadd.f32 %v3866, %v5164
  %v9123 = vadd.f32 %v3867, %v5165
  %v9124 = vadd.f32 %v3868, %v5166
  %v9125 = vadd.f32 %v3869, %v5167
  %v9126 = vadd.f32 %v3870, %v5168
  %v9127 = vadd.f32 %v3871, %v5169
  %v9128 = vadd.f32 %v3872, %v5170
  %v9129 = vadd.f32 %v3873, %v5171
  %v9130 = vadd.f32 %v3874, %v5172
  %v9131 = vadd.f32 %v3875, %v5173
  %v9132 = vadd.f32 %v3876, %v5174
  %v9133 = vadd.f32 %v3877, %v5175
  %v9134 = vadd.f32 %v3878, %v5176
  %v9135 = vadd.f32 %v3879, %v5177
  %v9136 = vadd.f32 %v3880, %v5178
  %v9137 = vadd.f32 %v3881, %v5179
  %v9138 = vadd.f32 %v3882, %v5180
  %v9139 = vadd.f32 %v3883, %v5181
  %v9140 = vadd.f32 %v3884, %v5182
  %v9141 = vadd.f32 %v3885, %v5183
  %v9142 = vadd.f32 %v3886, %v5184
  %v9143 = vadd.f32 %v3887, %v5185
  %v9144 = vadd.f32 %v3888, %v5186
  %v9145 = vadd.f32 %v3889, %v5187
  %v9146 = vadd.f32 %v3890, %v5188
  %v9147 = vadd.f32 %v3891, %v5189
  %v9148 = vadd.f32 %v3892, %v5190
  %v9149 = vadd.f32 %v3893, %v5191
  %v9150 = vadd.f32 %v3894, %v5192
  %v9151 = vadd.f32 %v3895, %v5193
  %v9152 = vadd.f32 %v3896, %v5194
  %v9153 = vadd.f32 %v3897, %v5195
  %v9154 = vadd.f32 %v3898, %v5196
  %v9155 = vadd.f32 %v3899, %v5197
  %v9156 = vadd.f32 %v3900, %v5198
  %v9157 = vadd.f32 %v3901, %v5199
  %v9158 = vadd.f32 %v3902, %v5200
  %v9159 = vadd.f32 %v3903, %v5201
  %v9160 = vadd.f32 %v3904, %v5202
  %v9161 = vadd.f32 %v3905, %v5203
  %v9162 = vadd.f32 %v3906, %v5204
  %v9163 = vadd.f32 %v3907, %v5205
  %v9164 = vadd.f32 %v3908, %v5206
  %v9165 = vadd.f32 %v3909, %v5207
  %v9166 = vadd.f32 %v3910, %v5208
  %v9167 = vadd.f32 %v3911, %v5209
  %v9168 = vadd.f32 %v3912, %v5210
  %v9169 = vadd.f32 %v3913, %v5211
  %v9170 = vadd.f32 %v3914, %v5212
  %v9171 = vadd.f32 %v3915, %v5213
  %v9172 = vadd.f32 %v3916, %v5214
  %v9173 = vadd.f32 %v3917, %v5215
  %v9174 = vadd.f32 %v3918, %v5216
  %v9175 = vadd.f32 %v3919, %v5217
  %v9176 = vadd.f32 %v3920, %v5218
  %v9177 = vadd.f32 %v3921, %v5219
  %v9178 = vadd.f32 %v3922, %v5220
  %v9179 = vadd.f32 %v6455, %v7753
  %v9180 = vadd.f32 %v6456, %v7754
  %v9181 = vadd.f32 %v6457, %v7755
  %v9182 = vadd.f32 %v6458, %v7756
  %v9183 = vadd.f32 %v6459, %v7757
  %v9184 = vadd.f32 %v6460, %v7758
  %v9185 = vadd.f32 %v6461, %v7759
  %v9186 = vadd.f32 %v6462, %v7760
  %v9187 = vadd.f32 %v6463, %v7761
  %v9188 = vadd.f32 %v6464, %v7762
  %v9189 = vadd.f32 %v6465, %v7763
  %v9190 = vadd.f32 %v6466, %v7764
  %v9191 = vadd.f32 %v6467, %v7765
  %v9192 = vadd.f32 %v6468, %v7766
  %v9193 = vadd.f32 %v6469, %v7767
  %v9194 = vadd.f32 %v6470, %v7768
  %v9195 = vadd.f32 %v6471, %v7769
  %v9196 = vadd.f32 %v6472, %v7770
  %v9197 = vadd.f32 %v6473, %v7771
  %v9198 = vadd.f32 %v6474, %v7772
  %v9199 = vadd.f32 %v6475, %v7773
  %v9200 = vadd.f32 %v6476, %v7774
  %v9201 = vadd.f32 %v6477, %v7775
  %v9202 = vadd.f32 %v6478, %v7776
  %v9203 = vadd.f32 %v6479, %v7777
  %v9204 = vadd.f32 %v6480, %v7778
  %v9205 = vadd.f32 %v6481, %v7779
  %v9206 = vadd.f32 %v6482, %v7780
  %v9207 = vadd.f32 %v6483, %v7781
  %v9208 = vadd.f32 %v6484, %v7782
  %v9209 = vadd.f32 %v6485, %v7783
  %v9210 = vadd.f32 %v6486, %v7784
  %v9211 = vadd.f32 %v6487, %v7785
  %v9212 = vadd.f32 %v6488, %v7786
  %v9213 = vadd.f32 %v6489, %v7787
  %v9214 = vadd.f32 %v6490, %v7788
  %v9215 = vadd.f32 %v6491, %v7789
  %v9216 = vadd.f32 %v6492, %v7790
  %v9217 = vadd.f32 %v6493, %v7791
  %v9218 = vadd.f32 %v6494, %v7792
  %v9219 = vadd.f32 %v6495, %v7793
  %v9220 = vadd.f32 %v6496, %v7794
  %v9221 = vadd.f32 %v6497, %v7795
  %v9222 = vadd.f32 %v6498, %v7796
  %v9223 = vadd.f32 %v6499, %v7797
  %v9224 = vadd.f32 %v6500, %v7798
  %v9225 = vadd.f32 %v6501, %v7799
  %v9226 = vadd.f32 %v6502, %v7800
  %v9227 = vadd.f32 %v6503, %v7801
  %v9228 = vadd.f32 %v6504, %v7802
  %v9229 = vadd.f32 %v6505, %v7803
  %v9230 = vadd.f32 %v6506, %v7804
  %v9231 = vadd.f32 %v6507, %v7805
  %v9232 = vadd.f32 %v6508, %v7806
  %v9233 = vadd.f32 %v6509, %v7807
  %v9234 = vadd.f32 %v6510, %v7808
  %v9235 = vadd.f32 %v6511, %v7809
  %v9236 = vadd.f32 %v6512, %v7810
  %v9237 = vadd.f32 %v6513, %v7811
  %v9238 = vadd.f32 %v6514, %v7812
  %v9239 = vadd.f32 %v6515, %v7813
  %v9240 = vadd.f32 %v6516, %v7814
  %v9241 = vadd.f32 %v6517, %v7815
  %v9242 = vadd.f32 %v6518, %v7816
  %v9243 = vadd.f32 %v9115, %v9179
  %v9244 = vadd.f32 %v9116, %v9180
  %v9245 = vadd.f32 %v9117, %v9181
  %v9246 = vadd.f32 %v9118, %v9182
  %v9247 = vadd.f32 %v9119, %v9183
  %v9248 = vadd.f32 %v9120, %v9184
  %v9249 = vadd.f32 %v9121, %v9185
  %v9250 = vadd.f32 %v9122, %v9186
  %v9251 = vadd.f32 %v9123, %v9187
  %v9252 = vadd.f32 %v9124, %v9188
  %v9253 = vadd.f32 %v9125, %v9189
  %v9254 = vadd.f32 %v9126, %v9190
  %v9255 = vadd.f32 %v9127, %v9191
  %v9256 = vadd.f32 %v9128, %v9192
  %v9257 = vadd.f32 %v9129, %v9193
  %v9258 = vadd.f32 %v9130, %v9194
  %v9259 = vadd.f32 %v9131, %v9195
  %v9260 = vadd.f32 %v9132, %v9196
  %v9261 = vadd.f32 %v9133, %v9197
  %v9262 = vadd.f32 %v9134, %v9198
  %v9263 = vadd.f32 %v9135, %v9199
  %v9264 = vadd.f32 %v9136, %v9200
  %v9265 = vadd.f32 %v9137, %v9201
  %v9266 = vadd.f32 %v9138, %v9202
  %v9267 = vadd.f32 %v9139, %v9203
  %v9268 = vadd.f32 %v9140, %v9204
  %v9269 = vadd.f32 %v9141, %v9205
  %v9270 = vadd.f32 %v9142, %v9206
  %v9271 = vadd.f32 %v9143, %v9207
  %v9272 = vadd.f32 %v9144, %v9208
  %v9273 = vadd.f32 %v9145, %v9209
  %v9274 = vadd.f32 %v9146, %v9210
  %v9275 = vadd.f32 %v9147, %v9211
  %v9276 = vadd.f32 %v9148, %v9212
  %v9277 = vadd.f32 %v9149, %v9213
  %v9278 = vadd.f32 %v9150, %v9214
  %v9279 = vadd.f32 %v9151, %v9215
  %v9280 = vadd.f32 %v9152, %v9216
  %v9281 = vadd.f32 %v9153, %v9217
  %v9282 = vadd.f32 %v9154, %v9218
  %v9283 = vadd.f32 %v9155, %v9219
  %v9284 = vadd.f32 %v9156, %v9220
  %v9285 = vadd.f32 %v9157, %v9221
  %v9286 = vadd.f32 %v9158, %v9222
  %v9287 = vadd.f32 %v9159, %v9223
  %v9288 = vadd.f32 %v9160, %v9224
  %v9289 = vadd.f32 %v9161, %v9225
  %v9290 = vadd.f32 %v9162, %v9226
  %v9291 = vadd.f32 %v9163, %v9227
  %v9292 = vadd.f32 %v9164, %v9228
  %v9293 = vadd.f32 %v9165, %v9229
  %v9294 = vadd.f32 %v9166, %v9230
  %v9295 = vadd.f32 %v9167, %v9231
  %v9296 = vadd.f32 %v9168, %v9232
  %v9297 = vadd.f32 %v9169, %v9233
  %v9298 = vadd.f32 %v9170, %v9234
  %v9299 = vadd.f32 %v9171, %v9235
  %v9300 = vadd.f32 %v9172, %v9236
  %v9301 = vadd.f32 %v9173, %v9237
  %v9302 = vadd.f32 %v9174, %v9238
  %v9303 = vadd.f32 %v9175, %v9239
  %v9304 = vadd.f32 %v9176, %v9240
  %v9305 = vadd.f32 %v9177, %v9241
  %v9306 = vadd.f32 %v9178, %v9242
  %v9307 = vadd.f32 %v9243, %v9051
  %v9308 = vadd.f32 %v9244, %v9052
  %v9309 = vadd.f32 %v9245, %v9053
  %v9310 = vadd.f32 %v9246, %v9054
  %v9311 = vadd.f32 %v9247, %v9055
  %v9312 = vadd.f32 %v9248, %v9056
  %v9313 = vadd.f32 %v9249, %v9057
  %v9314 = vadd.f32 %v9250, %v9058
  %v9315 = vadd.f32 %v9251, %v9059
  %v9316 = vadd.f32 %v9252, %v9060
  %v9317 = vadd.f32 %v9253, %v9061
  %v9318 = vadd.f32 %v9254, %v9062
  %v9319 = vadd.f32 %v9255, %v9063
  %v9320 = vadd.f32 %v9256, %v9064
  %v9321 = vadd.f32 %v9257, %v9065
  %v9322 = vadd.f32 %v9258, %v9066
  %v9323 = vadd.f32 %v9259, %v9067
  %v9324 = vadd.f32 %v9260, %v9068
  %v9325 = vadd.f32 %v9261, %v9069
  %v9326 = vadd.f32 %v9262, %v9070
  %v9327 = vadd.f32 %v9263, %v9071
  %v9328 = vadd.f32 %v9264, %v9072
  %v9329 = vadd.f32 %v9265, %v9073
  %v9330 = vadd.f32 %v9266, %v9074
  %v9331 = vadd.f32 %v9267, %v9075
  %v9332 = vadd.f32 %v9268, %v9076
  %v9333 = vadd.f32 %v9269, %v9077
  %v9334 = vadd.f32 %v9270, %v9078
  %v9335 = vadd.f32 %v9271, %v9079
  %v9336 = vadd.f32 %v9272, %v9080
  %v9337 = vadd.f32 %v9273, %v9081
  %v9338 = vadd.f32 %v9274, %v9082
  %v9339 = vadd.f32 %v9275, %v9083
  %v9340 = vadd.f32 %v9276, %v9084
  %v9341 = vadd.f32 %v9277, %v9085
  %v9342 = vadd.f32 %v9278, %v9086
  %v9343 = vadd.f32 %v9279, %v9087
  %v9344 = vadd.f32 %v9280, %v9088
  %v9345 = vadd.f32 %v9281, %v9089
  %v9346 = vadd.f32 %v9282, %v9090
  %v9347 = vadd.f32 %v9283, %v9091
  %v9348 = vadd.f32 %v9284, %v9092
  %v9349 = vadd.f32 %v9285, %v9093
  %v9350 = vadd.f32 %v9286, %v9094
  %v9351 = vadd.f32 %v9287, %v9095
  %v9352 = vadd.f32 %v9288, %v9096
  %v9353 = vadd.f32 %v9289, %v9097
  %v9354 = vadd.f32 %v9290, %v9098
  %v9355 = vadd.f32 %v9291, %v9099
  %v9356 = vadd.f32 %v9292, %v9100
  %v9357 = vadd.f32 %v9293, %v9101
  %v9358 = vadd.f32 %v9294, %v9102
  %v9359 = vadd.f32 %v9295, %v9103
  %v9360 = vadd.f32 %v9296, %v9104
  %v9361 = vadd.f32 %v9297, %v9105
  %v9362 = vadd.f32 %v9298, %v9106
  %v9363 = vadd.f32 %v9299, %v9107
  %v9364 = vadd.f32 %v9300, %v9108
  %v9365 = vadd.f32 %v9301, %v9109
  %v9366 = vadd.f32 %v9302, %v9110
  %v9367 = vadd.f32 %v9303, %v9111
  %v9368 = vadd.f32 %v9304, %v9112
  %v9369 = vadd.f32 %v9305, %v9113
  %v9370 = vadd.f32 %v9306, %v9114
  %v9371 = vld [vmem:[%s4] sm:$0x1]
  %v9373 = vperm.slane %v9371, 0
  %v9375 = vadd.f32 %v9307, %v9373
  %v9376 = vadd.f32 %v9308, %v9373
  %v9377 = vadd.f32 %v9309, %v9373
  %v9378 = vadd.f32 %v9310, %v9373
  %v9379 = vadd.f32 %v9311, %v9373
  %v9380 = vadd.f32 %v9312, %v9373
  %v9381 = vadd.f32 %v9313, %v9373
  %v9382 = vadd.f32 %v9314, %v9373
  %v9383 = vadd.f32 %v9315, %v9373
  %v9384 = vadd.f32 %v9316, %v9373
  %v9385 = vadd.f32 %v9317, %v9373
  %v9386 = vadd.f32 %v9318, %v9373
  %v9387 = vadd.f32 %v9319, %v9373
  %v9388 = vadd.f32 %v9320, %v9373
  %v9389 = vadd.f32 %v9321, %v9373
  %v9390 = vadd.f32 %v9322, %v9373
  %v9391 = vadd.f32 %v9323, %v9373
  %v9392 = vadd.f32 %v9324, %v9373
  %v9393 = vadd.f32 %v9325, %v9373
  %v9394 = vadd.f32 %v9326, %v9373
  %v9395 = vadd.f32 %v9327, %v9373
  %v9396 = vadd.f32 %v9328, %v9373
  %v9397 = vadd.f32 %v9329, %v9373
  %v9398 = vadd.f32 %v9330, %v9373
  %v9399 = vadd.f32 %v9331, %v9373
  %v9400 = vadd.f32 %v9332, %v9373
  %v9401 = vadd.f32 %v9333, %v9373
  %v9402 = vadd.f32 %v9334, %v9373
  %v9403 = vadd.f32 %v9335, %v9373
  %v9404 = vadd.f32 %v9336, %v9373
  %v9405 = vadd.f32 %v9337, %v9373
  %v9406 = vadd.f32 %v9338, %v9373
  %v9407 = vadd.f32 %v9339, %v9373
  %v9408 = vadd.f32 %v9340, %v9373
  %v9409 = vadd.f32 %v9341, %v9373
  %v9410 = vadd.f32 %v9342, %v9373
  %v9411 = vadd.f32 %v9343, %v9373
  %v9412 = vadd.f32 %v9344, %v9373
  %v9413 = vadd.f32 %v9345, %v9373
  %v9414 = vadd.f32 %v9346, %v9373
  %v9415 = vadd.f32 %v9347, %v9373
  %v9416 = vadd.f32 %v9348, %v9373
  %v9417 = vadd.f32 %v9349, %v9373
  %v9418 = vadd.f32 %v9350, %v9373
  %v9419 = vadd.f32 %v9351, %v9373
  %v9420 = vadd.f32 %v9352, %v9373
  %v9421 = vadd.f32 %v9353, %v9373
  %v9422 = vadd.f32 %v9354, %v9373
  %v9423 = vadd.f32 %v9355, %v9373
  %v9424 = vadd.f32 %v9356, %v9373
  %v9425 = vadd.f32 %v9357, %v9373
  %v9426 = vadd.f32 %v9358, %v9373
  %v9427 = vadd.f32 %v9359, %v9373
  %v9428 = vadd.f32 %v9360, %v9373
  %v9429 = vadd.f32 %v9361, %v9373
  %v9430 = vadd.f32 %v9362, %v9373
  %v9431 = vadd.f32 %v9363, %v9373
  %v9432 = vadd.f32 %v9364, %v9373
  %v9433 = vadd.f32 %v9365, %v9373
  %v9434 = vadd.f32 %v9366, %v9373
  %v9435 = vadd.f32 %v9367, %v9373
  %v9436 = vadd.f32 %v9368, %v9373
  %v9437 = vadd.f32 %v9369, %v9373
  %v9438 = vadd.f32 %v9370, %v9373
  %v9439 = vmax.f32 %v9375, %v9376
  %v9440 = vmax.f32 %v9377, %v9378
  %v9441 = vmax.f32 %v9379, %v9380
  %v9442 = vmax.f32 %v9381, %v9382
  %v9443 = vmax.f32 %v9391, %v9392
  %v9444 = vmax.f32 %v9393, %v9394
  %v9445 = vmax.f32 %v9395, %v9396
  %v9446 = vmax.f32 %v9397, %v9398
  %v9447 = vmax.f32 %v9407, %v9408
  %v9448 = vmax.f32 %v9409, %v9410
  %v9449 = vmax.f32 %v9411, %v9412
  %v9450 = vmax.f32 %v9413, %v9414
  %v9451 = vmax.f32 %v9423, %v9424
  %v9452 = vmax.f32 %v9425, %v9426
  %v9453 = vmax.f32 %v9427, %v9428
  %v9454 = vmax.f32 %v9429, %v9430
  %v9455 = vmax.f32 %v9383, %v9384
  %v9456 = vmax.f32 %v9385, %v9386
  %v9457 = vmax.f32 %v9387, %v9388
  %v9458 = vmax.f32 %v9389, %v9390
  %v9459 = vmax.f32 %v9399, %v9400
  %v9460 = vmax.f32 %v9401, %v9402
  %v9461 = vmax.f32 %v9403, %v9404
  %v9462 = vmax.f32 %v9405, %v9406
  %v9463 = vmax.f32 %v9415, %v9416
  %v9464 = vmax.f32 %v9417, %v9418
  %v9465 = vmax.f32 %v9419, %v9420
  %v9466 = vmax.f32 %v9421, %v9422
  %v9467 = vmax.f32 %v9431, %v9432
  %v9468 = vmax.f32 %v9433, %v9434
  %v9469 = vmax.f32 %v9435, %v9436
  %v9470 = vmax.f32 %v9437, %v9438
  %v9471 = vmax.f32 %v9439, %v9455
  %v9472 = vmax.f32 %v9440, %v9456
  %v9473 = vmax.f32 %v9441, %v9457
  %v9474 = vmax.f32 %v9442, %v9458
  %v9475 = vmax.f32 %v9443, %v9459
  %v9476 = vmax.f32 %v9444, %v9460
  %v9477 = vmax.f32 %v9445, %v9461
  %v9478 = vmax.f32 %v9446, %v9462
  %v9479 = vmax.f32 %v9447, %v9463
  %v9480 = vmax.f32 %v9448, %v9464
  %v9481 = vmax.f32 %v9449, %v9465
  %v9482 = vmax.f32 %v9450, %v9466
  %v9483 = vmax.f32 %v9451, %v9467
  %v9484 = vmax.f32 %v9452, %v9468
  %v9485 = vmax.f32 %v9453, %v9469
  %v9486 = vmax.f32 %v9454, %v9470
  %v9487 = vmax.f32 %v9471, 0.0
  %v9488 = vmax.f32 %v9472, 0.0
  %v9489 = vmax.f32 %v9473, 0.0
  %v9490 = vmax.f32 %v9474, 0.0
  %v9491 = vmax.f32 %v9475, 0.0
  %v9492 = vmax.f32 %v9476, 0.0
  %v9493 = vmax.f32 %v9477, 0.0
  %v9494 = vmax.f32 %v9478, 0.0
  %v9495 = vmax.f32 %v9479, 0.0
  %v9496 = vmax.f32 %v9480, 0.0
  %v9497 = vmax.f32 %v9481, 0.0
  %v9498 = vmax.f32 %v9482, 0.0
  %v9499 = vmax.f32 %v9483, 0.0
  %v9500 = vmax.f32 %v9484, 0.0
  %v9501 = vmax.f32 %v9485, 0.0
  %v9502 = vmax.f32 %v9486, 0.0
  %v9503 = vld [vmem:[%s5] sm:$0xff]
  %v9504 = vld [vmem:[%s5 + $0x8] sm:$0xff]
  %v9505 = vld [vmem:[%s5 + $0x10] sm:$0xff]
  %v9506 = vld [vmem:[%s5 + $0x18] sm:$0xff]
  %s9507 = scalar_lea.vmem %s5, 32
  %v9508 = vld [vmem:[%s9507] sm:$0xff]
  %v9509 = vld [vmem:[%s9507 + $0x8] sm:$0xff]
  %v9510 = vld [vmem:[%s9507 + $0x10] sm:$0xff]
  %v9511 = vld [vmem:[%s9507 + $0x18] sm:$0xff]
  %v9513 = vsel %vm2382, %v9488, 0
  %9515 = vmatpush.msra.mxu0 0.0
  %9516 = vmatpush.msra.mxu0 0.0
  %9517 = vmatpush.msra.mxu0 0.0
  %9518 = vmatpush.msra.mxu0 0.0
  %9519 = vmatpush.msra.mxu0 0.0
  %9520 = vmatpush.msra.mxu0 0.0
  %9521 = vmatpush.msra.mxu0 0.0
  %9522 = vmatpush.msra.mxu0 0.0
  %9523 = vmatpush.msra.mxu0 0.0
  %9524 = vmatpush.msra.mxu0 0.0
  %9525 = vmatpush.msra.mxu0 0.0
  %9526 = vmatpush.msra.mxu0 0.0
  %9527 = vmatpush.msra.mxu0 %v9511
  %9528 = vmatpush.msra.mxu0 %v9510
  %9529 = vmatpush.msra.mxu0 %v9509
  %9530 = vmatpush.msra.mxu0 %v9508
  %9531 = vmatmul.f32.gmra.mxu0 %v9513
  %v9532 = vpop.f32.mrf.mxu0
  %v9533 = vadd.f32 0.0, %v9532
  %9534 = vdwg.mxu0
  %v9536 = vsel %vm2382, %v9487, 0
  %9538 = vmatpush.msra.mxu0 0.0
  %9539 = vmatpush.msra.mxu0 0.0
  %9540 = vmatpush.msra.mxu0 0.0
  %9541 = vmatpush.msra.mxu0 0.0
  %9542 = vmatpush.msra.mxu0 0.0
  %9543 = vmatpush.msra.mxu0 0.0
  %9544 = vmatpush.msra.mxu0 0.0
  %9545 = vmatpush.msra.mxu0 0.0
  %9546 = vmatpush.msra.mxu0 0.0
  %9547 = vmatpush.msra.mxu0 0.0
  %9548 = vmatpush.msra.mxu0 0.0
  %9549 = vmatpush.msra.mxu0 0.0
  %9550 = vmatpush.msra.mxu0 %v9506
  %9551 = vmatpush.msra.mxu0 %v9505
  %9552 = vmatpush.msra.mxu0 %v9504
  %9553 = vmatpush.msra.mxu0 %v9503
  %9554 = vmatmul.f32.gmra.mxu0 %v9536
  %v9555 = vpop.f32.mrf.mxu0
  %v9556 = vadd.f32 %v9533, %v9555
  %9557 = vdwg.mxu0
  %s9558 = scalar_lea.vmem %s5, 64
  %v9559 = vld [vmem:[%s9558] sm:$0xff]
  %v9560 = vld [vmem:[%s9558 + $0x8] sm:$0xff]
  %v9561 = vld [vmem:[%s9558 + $0x10] sm:$0xff]
  %v9562 = vld [vmem:[%s9558 + $0x18] sm:$0xff]
  %v9564 = vsel %vm2382, %v9489, 0
  %9566 = vmatpush.msra.mxu0 0.0
  %9567 = vmatpush.msra.mxu0 0.0
  %9568 = vmatpush.msra.mxu0 0.0
  %9569 = vmatpush.msra.mxu0 0.0
  %9570 = vmatpush.msra.mxu0 0.0
  %9571 = vmatpush.msra.mxu0 0.0
  %9572 = vmatpush.msra.mxu0 0.0
  %9573 = vmatpush.msra.mxu0 0.0
  %9574 = vmatpush.msra.mxu0 0.0
  %9575 = vmatpush.msra.mxu0 0.0
  %9576 = vmatpush.msra.mxu0 0.0
  %9577 = vmatpush.msra.mxu0 0.0
  %9578 = vmatpush.msra.mxu0 %v9562
  %9579 = vmatpush.msra.mxu0 %v9561
  %9580 = vmatpush.msra.mxu0 %v9560
  %9581 = vmatpush.msra.mxu0 %v9559
  %9582 = vmatmul.f32.gmra.mxu0 %v9564
  %v9583 = vpop.f32.mrf.mxu0
  %v9584 = vadd.f32 0.0, %v9583
  %9585 = vdwg.mxu0
  %v9586 = vadd.f32 %v9556, %v9584
  %s9587 = scalar_lea.vmem %s5, 96
  %v9588 = vld [vmem:[%s9587] sm:$0xff]
  %v9589 = vld [vmem:[%s9587 + $0x8] sm:$0xff]
  %v9590 = vld [vmem:[%s9587 + $0x10] sm:$0xff]
  %v9591 = vld [vmem:[%s9587 + $0x18] sm:$0xff]
  %v9593 = vsel %vm2382, %v9490, 0
  %9595 = vmatpush.msra.mxu0 0.0
  %9596 = vmatpush.msra.mxu0 0.0
  %9597 = vmatpush.msra.mxu0 0.0
  %9598 = vmatpush.msra.mxu0 0.0
  %9599 = vmatpush.msra.mxu0 0.0
  %9600 = vmatpush.msra.mxu0 0.0
  %9601 = vmatpush.msra.mxu0 0.0
  %9602 = vmatpush.msra.mxu0 0.0
  %9603 = vmatpush.msra.mxu0 0.0
  %9604 = vmatpush.msra.mxu0 0.0
  %9605 = vmatpush.msra.mxu0 0.0
  %9606 = vmatpush.msra.mxu0 0.0
  %9607 = vmatpush.msra.mxu0 %v9591
  %9608 = vmatpush.msra.mxu0 %v9590
  %9609 = vmatpush.msra.mxu0 %v9589
  %9610 = vmatpush.msra.mxu0 %v9588
  %9611 = vmatmul.f32.gmra.mxu0 %v9593
  %v9612 = vpop.f32.mrf.mxu0
  %v9613 = vadd.f32 0.0, %v9612
  %9614 = vdwg.mxu0
  %v9615 = vadd.f32 %v9586, %v9613
  %s9616 = scalar_lea.vmem %s5, 128
  %v9617 = vld [vmem:[%s9616] sm:$0xff]
  %v9618 = vld [vmem:[%s9616 + $0x8] sm:$0xff]
  %v9619 = vld [vmem:[%s9616 + $0x10] sm:$0xff]
  %v9620 = vld [vmem:[%s9616 + $0x18] sm:$0xff]
  %s9621 = scalar_lea.vmem %s5, 160
  %v9622 = vld [vmem:[%s9621] sm:$0xff]
  %v9623 = vld [vmem:[%s9621 + $0x8] sm:$0xff]
  %v9624 = vld [vmem:[%s9621 + $0x10] sm:$0xff]
  %v9625 = vld [vmem:[%s9621 + $0x18] sm:$0xff]
  %v9627 = vsel %vm2382, %v9492, 0
  %9629 = vmatpush.msra.mxu0 0.0
  %9630 = vmatpush.msra.mxu0 0.0
  %9631 = vmatpush.msra.mxu0 0.0
  %9632 = vmatpush.msra.mxu0 0.0
  %9633 = vmatpush.msra.mxu0 0.0
  %9634 = vmatpush.msra.mxu0 0.0
  %9635 = vmatpush.msra.mxu0 0.0
  %9636 = vmatpush.msra.mxu0 0.0
  %9637 = vmatpush.msra.mxu0 0.0
  %9638 = vmatpush.msra.mxu0 0.0
  %9639 = vmatpush.msra.mxu0 0.0
  %9640 = vmatpush.msra.mxu0 0.0
  %9641 = vmatpush.msra.mxu0 %v9625
  %9642 = vmatpush.msra.mxu0 %v9624
  %9643 = vmatpush.msra.mxu0 %v9623
  %9644 = vmatpush.msra.mxu0 %v9622
  %9645 = vmatmul.f32.gmra.mxu0 %v9627
  %v9646 = vpop.f32.mrf.mxu0
  %v9647 = vadd.f32 0.0, %v9646
  %9648 = vdwg.mxu0
  %v9650 = vsel %vm2382, %v9491, 0
  %9652 = vmatpush.msra.mxu0 0.0
  %9653 = vmatpush.msra.mxu0 0.0
  %9654 = vmatpush.msra.mxu0 0.0
  %9655 = vmatpush.msra.mxu0 0.0
  %9656 = vmatpush.msra.mxu0 0.0
  %9657 = vmatpush.msra.mxu0 0.0
  %9658 = vmatpush.msra.mxu0 0.0
  %9659 = vmatpush.msra.mxu0 0.0
  %9660 = vmatpush.msra.mxu0 0.0
  %9661 = vmatpush.msra.mxu0 0.0
  %9662 = vmatpush.msra.mxu0 0.0
  %9663 = vmatpush.msra.mxu0 0.0
  %9664 = vmatpush.msra.mxu0 %v9620
  %9665 = vmatpush.msra.mxu0 %v9619
  %9666 = vmatpush.msra.mxu0 %v9618
  %9667 = vmatpush.msra.mxu0 %v9617
  %9668 = vmatmul.f32.gmra.mxu0 %v9650
  %v9669 = vpop.f32.mrf.mxu0
  %v9670 = vadd.f32 %v9647, %v9669
  %9671 = vdwg.mxu0
  %s9672 = scalar_lea.vmem %s5, 192
  %v9673 = vld [vmem:[%s9672] sm:$0xff]
  %v9674 = vld [vmem:[%s9672 + $0x8] sm:$0xff]
  %v9675 = vld [vmem:[%s9672 + $0x10] sm:$0xff]
  %v9676 = vld [vmem:[%s9672 + $0x18] sm:$0xff]
  %v9678 = vsel %vm2382, %v9493, 0
  %9680 = vmatpush.msra.mxu0 0.0
  %9681 = vmatpush.msra.mxu0 0.0
  %9682 = vmatpush.msra.mxu0 0.0
  %9683 = vmatpush.msra.mxu0 0.0
  %9684 = vmatpush.msra.mxu0 0.0
  %9685 = vmatpush.msra.mxu0 0.0
  %9686 = vmatpush.msra.mxu0 0.0
  %9687 = vmatpush.msra.mxu0 0.0
  %9688 = vmatpush.msra.mxu0 0.0
  %9689 = vmatpush.msra.mxu0 0.0
  %9690 = vmatpush.msra.mxu0 0.0
  %9691 = vmatpush.msra.mxu0 0.0
  %9692 = vmatpush.msra.mxu0 %v9676
  %9693 = vmatpush.msra.mxu0 %v9675
  %9694 = vmatpush.msra.mxu0 %v9674
  %9695 = vmatpush.msra.mxu0 %v9673
  %9696 = vmatmul.f32.gmra.mxu0 %v9678
  %v9697 = vpop.f32.mrf.mxu0
  %v9698 = vadd.f32 0.0, %v9697
  %9699 = vdwg.mxu0
  %v9700 = vadd.f32 %v9670, %v9698
  %s9701 = scalar_lea.vmem %s5, 224
  %v9702 = vld [vmem:[%s9701] sm:$0xff]
  %v9703 = vld [vmem:[%s9701 + $0x8] sm:$0xff]
  %v9704 = vld [vmem:[%s9701 + $0x10] sm:$0xff]
  %v9705 = vld [vmem:[%s9701 + $0x18] sm:$0xff]
  %v9707 = vsel %vm2382, %v9494, 0
  %9709 = vmatpush.msra.mxu0 0.0
  %9710 = vmatpush.msra.mxu0 0.0
  %9711 = vmatpush.msra.mxu0 0.0
  %9712 = vmatpush.msra.mxu0 0.0
  %9713 = vmatpush.msra.mxu0 0.0
  %9714 = vmatpush.msra.mxu0 0.0
  %9715 = vmatpush.msra.mxu0 0.0
  %9716 = vmatpush.msra.mxu0 0.0
  %9717 = vmatpush.msra.mxu0 0.0
  %9718 = vmatpush.msra.mxu0 0.0
  %9719 = vmatpush.msra.mxu0 0.0
  %9720 = vmatpush.msra.mxu0 0.0
  %9721 = vmatpush.msra.mxu0 %v9705
  %9722 = vmatpush.msra.mxu0 %v9704
  %9723 = vmatpush.msra.mxu0 %v9703
  %9724 = vmatpush.msra.mxu0 %v9702
  %9725 = vmatmul.f32.gmra.mxu0 %v9707
  %v9726 = vpop.f32.mrf.mxu0
  %v9727 = vadd.f32 0.0, %v9726
  %9728 = vdwg.mxu0
  %v9729 = vadd.f32 %v9700, %v9727
  %s9730 = scalar_lea.vmem %s5, 256
  %v9731 = vld [vmem:[%s9730] sm:$0xff]
  %v9732 = vld [vmem:[%s9730 + $0x8] sm:$0xff]
  %v9733 = vld [vmem:[%s9730 + $0x10] sm:$0xff]
  %v9734 = vld [vmem:[%s9730 + $0x18] sm:$0xff]
  %s9735 = scalar_lea.vmem %s5, 288
  %v9736 = vld [vmem:[%s9735] sm:$0xff]
  %v9737 = vld [vmem:[%s9735 + $0x8] sm:$0xff]
  %v9738 = vld [vmem:[%s9735 + $0x10] sm:$0xff]
  %v9739 = vld [vmem:[%s9735 + $0x18] sm:$0xff]
  %v9741 = vsel %vm2382, %v9496, 0
  %9743 = vmatpush.msra.mxu0 0.0
  %9744 = vmatpush.msra.mxu0 0.0
  %9745 = vmatpush.msra.mxu0 0.0
  %9746 = vmatpush.msra.mxu0 0.0
  %9747 = vmatpush.msra.mxu0 0.0
  %9748 = vmatpush.msra.mxu0 0.0
  %9749 = vmatpush.msra.mxu0 0.0
  %9750 = vmatpush.msra.mxu0 0.0
  %9751 = vmatpush.msra.mxu0 0.0
  %9752 = vmatpush.msra.mxu0 0.0
  %9753 = vmatpush.msra.mxu0 0.0
  %9754 = vmatpush.msra.mxu0 0.0
  %9755 = vmatpush.msra.mxu0 %v9739
  %9756 = vmatpush.msra.mxu0 %v9738
  %9757 = vmatpush.msra.mxu0 %v9737
  %9758 = vmatpush.msra.mxu0 %v9736
  %9759 = vmatmul.f32.gmra.mxu0 %v9741
  %v9760 = vpop.f32.mrf.mxu0
  %v9761 = vadd.f32 0.0, %v9760
  %9762 = vdwg.mxu0
  %v9764 = vsel %vm2382, %v9495, 0
  %9766 = vmatpush.msra.mxu0 0.0
  %9767 = vmatpush.msra.mxu0 0.0
  %9768 = vmatpush.msra.mxu0 0.0
  %9769 = vmatpush.msra.mxu0 0.0
  %9770 = vmatpush.msra.mxu0 0.0
  %9771 = vmatpush.msra.mxu0 0.0
  %9772 = vmatpush.msra.mxu0 0.0
  %9773 = vmatpush.msra.mxu0 0.0
  %9774 = vmatpush.msra.mxu0 0.0
  %9775 = vmatpush.msra.mxu0 0.0
  %9776 = vmatpush.msra.mxu0 0.0
  %9777 = vmatpush.msra.mxu0 0.0
  %9778 = vmatpush.msra.mxu0 %v9734
  %9779 = vmatpush.msra.mxu0 %v9733
  %9780 = vmatpush.msra.mxu0 %v9732
  %9781 = vmatpush.msra.mxu0 %v9731
  %9782 = vmatmul.f32.gmra.mxu0 %v9764
  %v9783 = vpop.f32.mrf.mxu0
  %v9784 = vadd.f32 %v9761, %v9783
  %9785 = vdwg.mxu0
  %s9786 = scalar_lea.vmem %s5, 320
  %v9787 = vld [vmem:[%s9786] sm:$0xff]
  %v9788 = vld [vmem:[%s9786 + $0x8] sm:$0xff]
  %v9789 = vld [vmem:[%s9786 + $0x10] sm:$0xff]
  %v9790 = vld [vmem:[%s9786 + $0x18] sm:$0xff]
  %v9792 = vsel %vm2382, %v9497, 0
  %9794 = vmatpush.msra.mxu0 0.0
  %9795 = vmatpush.msra.mxu0 0.0
  %9796 = vmatpush.msra.mxu0 0.0
  %9797 = vmatpush.msra.mxu0 0.0
  %9798 = vmatpush.msra.mxu0 0.0
  %9799 = vmatpush.msra.mxu0 0.0
  %9800 = vmatpush.msra.mxu0 0.0
  %9801 = vmatpush.msra.mxu0 0.0
  %9802 = vmatpush.msra.mxu0 0.0
  %9803 = vmatpush.msra.mxu0 0.0
  %9804 = vmatpush.msra.mxu0 0.0
  %9805 = vmatpush.msra.mxu0 0.0
  %9806 = vmatpush.msra.mxu0 %v9790
  %9807 = vmatpush.msra.mxu0 %v9789
  %9808 = vmatpush.msra.mxu0 %v9788
  %9809 = vmatpush.msra.mxu0 %v9787
  %9810 = vmatmul.f32.gmra.mxu0 %v9792
  %v9811 = vpop.f32.mrf.mxu0
  %v9812 = vadd.f32 0.0, %v9811
  %9813 = vdwg.mxu0
  %v9814 = vadd.f32 %v9784, %v9812
  %s9815 = scalar_lea.vmem %s5, 352
  %v9816 = vld [vmem:[%s9815] sm:$0xff]
  %v9817 = vld [vmem:[%s9815 + $0x8] sm:$0xff]
  %v9818 = vld [vmem:[%s9815 + $0x10] sm:$0xff]
  %v9819 = vld [vmem:[%s9815 + $0x18] sm:$0xff]
  %v9821 = vsel %vm2382, %v9498, 0
  %9823 = vmatpush.msra.mxu0 0.0
  %9824 = vmatpush.msra.mxu0 0.0
  %9825 = vmatpush.msra.mxu0 0.0
  %9826 = vmatpush.msra.mxu0 0.0
  %9827 = vmatpush.msra.mxu0 0.0
  %9828 = vmatpush.msra.mxu0 0.0
  %9829 = vmatpush.msra.mxu0 0.0
  %9830 = vmatpush.msra.mxu0 0.0
  %9831 = vmatpush.msra.mxu0 0.0
  %9832 = vmatpush.msra.mxu0 0.0
  %9833 = vmatpush.msra.mxu0 0.0
  %9834 = vmatpush.msra.mxu0 0.0
  %9835 = vmatpush.msra.mxu0 %v9819
  %9836 = vmatpush.msra.mxu0 %v9818
  %9837 = vmatpush.msra.mxu0 %v9817
  %9838 = vmatpush.msra.mxu0 %v9816
  %9839 = vmatmul.f32.gmra.mxu0 %v9821
  %v9840 = vpop.f32.mrf.mxu0
  %v9841 = vadd.f32 0.0, %v9840
  %9842 = vdwg.mxu0
  %v9843 = vadd.f32 %v9814, %v9841
  %s9844 = scalar_lea.vmem %s5, 384
  %v9845 = vld [vmem:[%s9844] sm:$0xff]
  %v9846 = vld [vmem:[%s9844 + $0x8] sm:$0xff]
  %v9847 = vld [vmem:[%s9844 + $0x10] sm:$0xff]
  %v9848 = vld [vmem:[%s9844 + $0x18] sm:$0xff]
  %s9849 = scalar_lea.vmem %s5, 416
  %v9850 = vld [vmem:[%s9849] sm:$0xff]
  %v9851 = vld [vmem:[%s9849 + $0x8] sm:$0xff]
  %v9852 = vld [vmem:[%s9849 + $0x10] sm:$0xff]
  %v9853 = vld [vmem:[%s9849 + $0x18] sm:$0xff]
  %v9855 = vsel %vm2382, %v9500, 0
  %9857 = vmatpush.msra.mxu0 0.0
  %9858 = vmatpush.msra.mxu0 0.0
  %9859 = vmatpush.msra.mxu0 0.0
  %9860 = vmatpush.msra.mxu0 0.0
  %9861 = vmatpush.msra.mxu0 0.0
  %9862 = vmatpush.msra.mxu0 0.0
  %9863 = vmatpush.msra.mxu0 0.0
  %9864 = vmatpush.msra.mxu0 0.0
  %9865 = vmatpush.msra.mxu0 0.0
  %9866 = vmatpush.msra.mxu0 0.0
  %9867 = vmatpush.msra.mxu0 0.0
  %9868 = vmatpush.msra.mxu0 0.0
  %9869 = vmatpush.msra.mxu0 %v9853
  %9870 = vmatpush.msra.mxu0 %v9852
  %9871 = vmatpush.msra.mxu0 %v9851
  %9872 = vmatpush.msra.mxu0 %v9850
  %9873 = vmatmul.f32.gmra.mxu0 %v9855
  %v9874 = vpop.f32.mrf.mxu0
  %v9875 = vadd.f32 0.0, %v9874
  %9876 = vdwg.mxu0
  %v9878 = vsel %vm2382, %v9499, 0
  %9880 = vmatpush.msra.mxu0 0.0
  %9881 = vmatpush.msra.mxu0 0.0
  %9882 = vmatpush.msra.mxu0 0.0
  %9883 = vmatpush.msra.mxu0 0.0
  %9884 = vmatpush.msra.mxu0 0.0
  %9885 = vmatpush.msra.mxu0 0.0
  %9886 = vmatpush.msra.mxu0 0.0
  %9887 = vmatpush.msra.mxu0 0.0
  %9888 = vmatpush.msra.mxu0 0.0
  %9889 = vmatpush.msra.mxu0 0.0
  %9890 = vmatpush.msra.mxu0 0.0
  %9891 = vmatpush.msra.mxu0 0.0
  %9892 = vmatpush.msra.mxu0 %v9848
  %9893 = vmatpush.msra.mxu0 %v9847
  %9894 = vmatpush.msra.mxu0 %v9846
  %9895 = vmatpush.msra.mxu0 %v9845
  %9896 = vmatmul.f32.gmra.mxu0 %v9878
  %v9897 = vpop.f32.mrf.mxu0
  %v9898 = vadd.f32 %v9875, %v9897
  %9899 = vdwg.mxu0
  %s9900 = scalar_lea.vmem %s5, 448
  %v9901 = vld [vmem:[%s9900] sm:$0xff]
  %v9902 = vld [vmem:[%s9900 + $0x8] sm:$0xff]
  %v9903 = vld [vmem:[%s9900 + $0x10] sm:$0xff]
  %v9904 = vld [vmem:[%s9900 + $0x18] sm:$0xff]
  %v9906 = vsel %vm2382, %v9501, 0
  %9908 = vmatpush.msra.mxu0 0.0
  %9909 = vmatpush.msra.mxu0 0.0
  %9910 = vmatpush.msra.mxu0 0.0
  %9911 = vmatpush.msra.mxu0 0.0
  %9912 = vmatpush.msra.mxu0 0.0
  %9913 = vmatpush.msra.mxu0 0.0
  %9914 = vmatpush.msra.mxu0 0.0
  %9915 = vmatpush.msra.mxu0 0.0
  %9916 = vmatpush.msra.mxu0 0.0
  %9917 = vmatpush.msra.mxu0 0.0
  %9918 = vmatpush.msra.mxu0 0.0
  %9919 = vmatpush.msra.mxu0 0.0
  %9920 = vmatpush.msra.mxu0 %v9904
  %9921 = vmatpush.msra.mxu0 %v9903
  %9922 = vmatpush.msra.mxu0 %v9902
  %9923 = vmatpush.msra.mxu0 %v9901
  %9924 = vmatmul.f32.gmra.mxu0 %v9906
  %v9925 = vpop.f32.mrf.mxu0
  %v9926 = vadd.f32 0.0, %v9925
  %9927 = vdwg.mxu0
  %v9928 = vadd.f32 %v9898, %v9926
  %s9929 = scalar_lea.vmem %s5, 480
  %v9930 = vld [vmem:[%s9929] sm:$0xff]
  %v9931 = vld [vmem:[%s9929 + $0x8] sm:$0xff]
  %v9932 = vld [vmem:[%s9929 + $0x10] sm:$0xff]
  %v9933 = vld [vmem:[%s9929 + $0x18] sm:$0xff]
  %v9935 = vsel %vm2382, %v9502, 0
  %9937 = vmatpush.msra.mxu0 0.0
  %9938 = vmatpush.msra.mxu0 0.0
  %9939 = vmatpush.msra.mxu0 0.0
  %9940 = vmatpush.msra.mxu0 0.0
  %9941 = vmatpush.msra.mxu0 0.0
  %9942 = vmatpush.msra.mxu0 0.0
  %9943 = vmatpush.msra.mxu0 0.0
  %9944 = vmatpush.msra.mxu0 0.0
  %9945 = vmatpush.msra.mxu0 0.0
  %9946 = vmatpush.msra.mxu0 0.0
  %9947 = vmatpush.msra.mxu0 0.0
  %9948 = vmatpush.msra.mxu0 0.0
  %9949 = vmatpush.msra.mxu0 %v9933
  %9950 = vmatpush.msra.mxu0 %v9932
  %9951 = vmatpush.msra.mxu0 %v9931
  %9952 = vmatpush.msra.mxu0 %v9930
  %9953 = vmatmul.f32.gmra.mxu0 %v9935
  %v9954 = vpop.f32.mrf.mxu0
  %v9955 = vadd.f32 0.0, %v9954
  %9956 = vdwg.mxu0
  %v9957 = vadd.f32 %v9928, %v9955
  %v9958 = vadd.f32 %v9615, %v9729
  %v9959 = vadd.f32 %v9843, %v9957
  %v9960 = vadd.f32 %v9958, %v9959
  %v9961 = vld [vmem:[%s6] sm:$0x1]
  %v9963 = vperm.slane %v9961, 0
  %v9965 = vadd.f32 %v9960, %v9963
  %v9966 = vmax.f32 %v9965, 0.0
  %v9967 = vld [vmem:[%s7] sm:$0xff]
  %v9968 = vld [vmem:[%s7 + $0x8] sm:$0xff]
  %v9969 = vld [vmem:[%s7 + $0x10] sm:$0xff]
  %v9970 = vld [vmem:[%s7 + $0x18] sm:$0xff]
  %v9971 = vld [vmem:[%s7 + $0x20] sm:$0xff]
  %v9972 = vld [vmem:[%s7 + $0x28] sm:$0xff]
  %v9973 = vld [vmem:[%s7 + $0x30] sm:$0xff]
  %v9974 = vld [vmem:[%s7 + $0x38] sm:$0xff]
  %v9975 = vld [vmem:[%s8] sm:$0x1]
  %v9977 = vperm.slane %v9975, 0
  %vm9979 = vcmask 523264
  %v9981 = vsel %vm9979, %v9966, 0
  %9983 = vmatpush.msra.mxu0 0.0
  %9984 = vmatpush.msra.mxu0 0.0
  %9985 = vmatpush.msra.mxu0 0.0
  %9986 = vmatpush.msra.mxu0 0.0
  %9987 = vmatpush.msra.mxu0 0.0
  %9988 = vmatpush.msra.mxu0 0.0
  %9989 = vmatpush.msra.mxu0 0.0
  %9990 = vmatpush.msra.mxu0 0.0
  %9991 = vmatpush.msra.mxu0 %v9974
  %9992 = vmatpush.msra.mxu0 %v9973
  %9993 = vmatpush.msra.mxu0 %v9972
  %9994 = vmatpush.msra.mxu0 %v9971
  %9995 = vmatpush.msra.mxu0 %v9970
  %9996 = vmatpush.msra.mxu0 %v9969
  %9997 = vmatpush.msra.mxu0 %v9968
  %9998 = vmatpush.msra.mxu0 %v9967
  %9999 = vmatmul.f32.gmra.mxu0 %v9981
  %v10000 = vpop.f32.mrf.mxu0
  %v10001 = vadd.f32 %v9977, %v10000
  %10002 = vdwg.mxu0
  %10003 = vst [vmem:[%s9] sm:$0xff] %v10001
  // Predicated region
  $region38: #{network_forward.1} parent=0 // pred_check
    _
  $region39: #{network_forward.1} parent=0 // pred_check_branch
    %10005 = sbr.rel (0) target = $region41
  $region40: #{network_forward.1} parent=0 // pred_region
    _
  $region41: #{network_forward.1} parent=0 // pred_fallthru
    _
  // Predicated region
  $region42: #{network_forward.1} parent=0 // pred_check
    _
  $region43: #{network_forward.1} parent=0 // pred_check_branch
    %10007 = sbr.rel (0) target = $region45
  $region44: #{network_forward.1} parent=0 // pred_region
    _
  $region45: #{network_forward.1} parent=0 // pred_fallthru
    _

</llo_original>
